<compile_context>
chip_gen: v7x
topology: tpu7x:2x2x1
jax: 0.10.0
libtpu: 0.0.40
codegen_flags: <defaults>
</compile_context>

<pallas_src>
import functools

import jax
import jax.numpy as jnp
from jax import lax
from jax.experimental import pallas as pl
from jax.experimental.pallas import tpu as pltpu

K = 3  # 3x3x3 convolution


def _double_conv_kernel(x_ref, m_ref, w1_ref, g1_ref, be1_ref,
                        w2_ref, g2_ref, be2_ref,
                        o_ref, h_ref, slab_ref,
                        *, n_valid, C_in, C_out, CP, Hp, Wp, margin, Pp, eps):
    M = margin
    # Hoisted mask broadcast (JAX does not CSE broadcast_in_dim): 1.0 at real voxels.
    mask = jnp.broadcast_to(m_ref[...], (C_out, Pp))

    def build_slab(src_ref, C):
        # im2col: stack the 27 shifted (C, Pp) views along the contraction axis with a
        # fixed per-tap row stride CP (multiple of 8 -> aligned sublane stores).
        # One widened unaligned load per (kd, kh); kw shifts are sliced in-register.
        for kd in range(K):
            for kh in range(K):
                off0 = (kd - 1) * Hp * Wp + (kh - 1) * Wp - 1          # kw == 0 tap
                wide = src_ref[:, M + off0:M + off0 + Pp + 2]          # (C, Pp+2)
                for kw in range(K):
                    t0 = ((kd * K + kh) * K + kw) * CP
                    slab_ref[t0:t0 + C, :] = wide[:, kw:kw + Pp]

    def bn_relu_mask(acc, g_ref, be_ref):
        # Training-mode batch statistics over valid voxels only (mask is 0/1).
        am = acc * mask
        mean = jnp.sum(am, axis=1, keepdims=True) / n_valid             # (C_out, 1)
        var = jnp.sum(am * am, axis=1, keepdims=True) / n_valid - mean * mean
        scale = g_ref[...] * lax.rsqrt(var + eps)                       # (C_out, 1)
        shift = be_ref[...] - mean * scale
        y = acc * scale + shift
        # ReLU + re-mask: padded columns become exact zeros, which doubles as the
        # zero padding required by the second convolution.
        return jnp.maximum(y, 0.0) * mask

    @pl.when(pl.program_id(0) == 0)
    def _():
        # Zero the h margins (and, when channel blocks are padded, the slab) once.
        h_ref[:, 0:M] = jnp.zeros((C_out, M), jnp.float32)
        h_ref[:, M + Pp:M + Pp + M] = jnp.zeros((C_out, M), jnp.float32)
        if C_in < CP:
            slab_ref[...] = jnp.zeros_like(slab_ref)

    # ---- conv1: single contraction of depth 27*CP -> BN -> ReLU ----
    # (conv bias cancels exactly against the BN mean subtraction)
    build_slab(x_ref, C_in)
    acc1 = jnp.dot(w1_ref[...], slab_ref[...], preferred_element_type=jnp.float32)
    h = bn_relu_mask(acc1, g1_ref, be1_ref)

    # Stage h into the margin-padded scratch (aligned full-lane store).
    h_ref[:, M:M + Pp] = h

    # ---- conv2 -> BN -> ReLU ----
    build_slab(h_ref, C_out)
    acc2 = jnp.dot(w2_ref[...], slab_ref[...], preferred_element_type=jnp.float32)
    o_ref[...] = bn_relu_mask(acc2, g2_ref, be2_ref)


def double_conv(x_ncdhw, params, *, eps=1e-5):
    """DoubleConv forward. x_ncdhw: (N, C_in, D, H, W) f32 -> (N, C_out, D, H, W).

    Matches a freshly constructed PyTorch DoubleConv in default training mode
    (BatchNorm3d uses biased batch statistics, so the conv biases cancel and are
    dropped inside the kernel).
    """
    w1, b1, g1, be1, w2, b2, g2, be2 = params
    del b1, b2
    N, C_in, D, H, W = x_ncdhw.shape
    C_out = w1.shape[0]
    Dp, Hp, Wp = D + 2, H + 2, W + 2
    P = N * Dp * Hp * Wp
    Pp = ((P + 127) // 128) * 128               # lane-dense flat length
    halo = Hp * Wp + Wp + 1                     # max |tap offset| on the flat axis
    M = ((halo + 127) // 128) * 128             # margin, lane-aligned
    CP = ((max(C_in, C_out) + 7) // 8) * 8      # per-tap channel-block stride (slab rows)

    # NCDHW -> (C_in, N, Dp, Hp, Wp) -> flattened (C_in, Pp) with zero margins of
    # width M (so every shifted tap read stays in bounds) and a zero lane tail.
    xt = jnp.transpose(x_ncdhw, (1, 0, 2, 3, 4)).astype(jnp.float32)
    xp = jnp.pad(xt, ((0, 0), (0, 0), (1, 1), (1, 1), (1, 1)))
    x_ext = jnp.pad(xp.reshape(C_in, P), ((0, 0), (M, M + Pp - P)))

    # Validity mask over the flattened padded volume (1 at real voxels).
    mask = jnp.pad(jnp.ones((N, D, H, W), jnp.float32),
                   ((0, 0), (1, 1), (1, 1), (1, 1))).reshape(1, P)
    mask = jnp.pad(mask, ((0, 0), (0, Pp - P)))

    def flat_weights(w, cin):
        # PyTorch (C_out, cin, K, K, K) -> (C_out, 27*CP); the per-tap channel block is
        # zero-padded to CP columns to match the slab row layout.
        wt = jnp.transpose(w, (2, 3, 4, 0, 1)).astype(jnp.float32)     # (K,K,K,C_out,cin)
        wt = wt.reshape(K * K * K, C_out, cin)
        wt = jnp.pad(wt, ((0, 0), (0, 0), (0, CP - cin)))              # (27, C_out, CP)
        return jnp.transpose(wt, (1, 0, 2)).reshape(C_out, K * K * K * CP)

    w1f = flat_weights(w1, C_in)
    w2f = flat_weights(w2, C_out)
    g1r, be1r = g1.reshape(C_out, 1), be1.reshape(C_out, 1)
    g2r, be2r = g2.reshape(C_out, 1), be2.reshape(C_out, 1)

    kernel = functools.partial(_double_conv_kernel, n_valid=float(N * D * H * W),
                               C_in=C_in, C_out=C_out, CP=CP, Hp=Hp, Wp=Wp,
                               margin=M, Pp=Pp, eps=eps)

    def full(shape):
        nd = len(shape)
        return pl.BlockSpec(shape, lambda i, _nd=nd: (0,) * _nd)

    operands = (x_ext, mask, w1f, g1r, be1r, w2f, g2r, be2r)

    # Scoped-VMEM budget: operands (double-buffered) + output + scratches + headroom,
    # clamped to stay inside v7x's 64 MiB physical VMEM.
    f32b = 4
    footprint = f32b * (2 * sum(int(a.size) for a in operands)
                        + 2 * C_out * Pp                      # output block
                        + C_out * (Pp + 2 * M)                # h scratch
                        + K * K * K * CP * Pp)                # im2col slab scratch
    vmem_limit = int(min(max(2 * footprint, 32 << 20), 48 << 20))

    out_flat = pl.pallas_call(
        kernel,
        out_shape=jax.ShapeDtypeStruct((C_out, Pp), jnp.float32),
        grid=(1,),
        in_specs=[full(a.shape) for a in operands],
        out_specs=full((C_out, Pp)),
        scratch_shapes=[pltpu.VMEM((C_out, Pp + 2 * M), jnp.float32),
                        pltpu.VMEM((K * K * K * CP, Pp), jnp.float32)],
        compiler_params=pltpu.CompilerParams(
            dimension_semantics=("arbitrary",),
            vmem_limit_bytes=vmem_limit),
    )(*operands)

    # (C_out, Pp) -> crop lane tail and spatial padding -> NCDHW.
    out = out_flat[:, :P].reshape(C_out, N, Dp, Hp, Wp)[:, :, 1:D + 1, 1:H + 1, 1:W + 1]
    return jnp.transpose(out, (1, 0, 2, 3, 4))


def _reference(x, params, eps=1e-5):
    """Pure-JAX reference matching PyTorch DoubleConv.forward (training-mode BN)."""
    w1, b1, g1, be1, w2, b2, g2, be2 = params

    def block(x, w, b, g, be):
        dn = lax.conv_dimension_numbers(x.shape, w.shape,
                                        ('NCDHW', 'OIDHW', 'NCDHW'))
        y = lax.conv_general_dilated(x, w, (1, 1, 1),
                                     ((1, 1), (1, 1), (1, 1)),
                                     dimension_numbers=dn)
        y = y + b.reshape(1, -1, 1, 1, 1)
        mean = jnp.mean(y, axis=(0, 2, 3, 4), keepdims=True)
        var = jnp.mean((y - mean) ** 2, axis=(0, 2, 3, 4), keepdims=True)
        y = ((y - mean) * lax.rsqrt(var + eps) * g.reshape(1, -1, 1, 1, 1)
             + be.reshape(1, -1, 1, 1, 1))
        return jnp.maximum(y, 0.0)

    return block(block(x, w1, b1, g1, be1), w2, b2, g2, be2)


if __name__ == "__main__":
    key = jax.random.PRNGKey(0)
    N, C_in, C_out, D, H, W = 2, 4, 8, 8, 8, 8

    ks = jax.random.split(key, 9)
    x = jax.random.normal(ks[0], (N, C_in, D, H, W), jnp.float32)
    w1 = 0.1 * jax.random.normal(ks[1], (C_out, C_in, K, K, K), jnp.float32)
    b1 = 0.1 * jax.random.normal(ks[2], (C_out,), jnp.float32)
    g1 = 1.0 + 0.1 * jax.random.normal(ks[3], (C_out,), jnp.float32)
    be1 = 0.1 * jax.random.normal(ks[4], (C_out,), jnp.float32)
    w2 = 0.1 * jax.random.normal(ks[5], (C_out, C_out, K, K, K), jnp.float32)
    b2 = 0.1 * jax.random.normal(ks[6], (C_out,), jnp.float32)
    g2 = 1.0 + 0.1 * jax.random.normal(ks[7], (C_out,), jnp.float32)
    be2 = 0.1 * jax.random.normal(ks[8], (C_out,), jnp.float32)
    params = (w1, b1, g1, be1, w2, b2, g2, be2)

    out = jax.block_until_ready(double_conv(x, params))
    ref = jax.block_until_ready(_reference(x, params))

    assert out.shape == (N, C_out, D, H, W), out.shape
    max_err = float(jnp.max(jnp.abs(out - ref)))
    assert jnp.allclose(out, ref, rtol=1e-3, atol=1e-3), max_err
    print("KERNEL_OK")
</pallas_src>

<mosaic_0001>
module attributes {stable_mosaic.version = 11 : i64} {
  func.func @_double_conv_kernel(%arg0: i32, %arg1: memref<4x2304xf32, #tpu.memory_space<vmem>>, %arg2: memref<1x2048xf32, #tpu.memory_space<vmem>>, %arg3: memref<8x216xf32, #tpu.memory_space<vmem>>, %arg4: memref<8x1xf32, #tpu.memory_space<vmem>>, %arg5: memref<8x1xf32, #tpu.memory_space<vmem>>, %arg6: memref<8x216xf32, #tpu.memory_space<vmem>>, %arg7: memref<8x1xf32, #tpu.memory_space<vmem>>, %arg8: memref<8x1xf32, #tpu.memory_space<vmem>>, %arg9: memref<8x2048xf32, #tpu.memory_space<vmem>>, %arg10: memref<8x2304xf32, #tpu.memory_space<vmem>>, %arg11: memref<216x2048xf32, #tpu.memory_space<vmem>>) attributes {dimension_semantics = [#tpu.dimension_semantics<arbitrary>], iteration_bounds = array<i64: 1>, scalar_prefetch = 0 : i64, scratch_operands = 2 : i64, tpu.core_type = #tpu.core_type<tc>, window_params = [{pipeline_mode = #tpu.pipeline_mode<synchronous>, transform_indices = @transform_0, window_bounds = array<i64: 4, 2304>}, {pipeline_mode = #tpu.pipeline_mode<synchronous>, transform_indices = @transform_1, window_bounds = array<i64: 1, 2048>}, {pipeline_mode = #tpu.pipeline_mode<synchronous>, transform_indices = @transform_2, window_bounds = array<i64: 8, 216>}, {pipeline_mode = #tpu.pipeline_mode<synchronous>, transform_indices = @transform_3, window_bounds = array<i64: 8, 1>}, {pipeline_mode = #tpu.pipeline_mode<synchronous>, transform_indices = @transform_4, window_bounds = array<i64: 8, 1>}, {pipeline_mode = #tpu.pipeline_mode<synchronous>, transform_indices = @transform_5, window_bounds = array<i64: 8, 216>}, {pipeline_mode = #tpu.pipeline_mode<synchronous>, transform_indices = @transform_6, window_bounds = array<i64: 8, 1>}, {pipeline_mode = #tpu.pipeline_mode<synchronous>, transform_indices = @transform_7, window_bounds = array<i64: 8, 1>}, {pipeline_mode = #tpu.pipeline_mode<synchronous>, transform_indices = @transform_8, window_bounds = array<i64: 8, 2048>}]} {
    %c0 = arith.constant 0 : index
    %c0_0 = arith.constant 0 : index
    %0 = vector.load %arg2[%c0, %c0_0] : memref<1x2048xf32, #tpu.memory_space<vmem>>, vector<1x2048xf32>
    %1 = vector.shape_cast %0 : vector<1x2048xf32> to vector<1x2048xf32>
    %2 = vector.broadcast %1 : vector<1x2048xf32> to vector<8x2048xf32>
    %c0_i32 = arith.constant 0 : i32
    %3 = arith.cmpi eq, %arg0, %c0_i32 : i32
    %4 = arith.extui %3 : i1 to i32
    %c0_i32_1 = arith.constant 0 : i32
    %5 = arith.cmpi ne, %4, %c0_i32_1 : i32
    scf.if %5 {
      %cst_144 = arith.constant 0.000000e+00 : f32
      %194 = vector.broadcast %cst_144 : f32 to vector<8x128xf32>
      %c0_145 = arith.constant 0 : index
      %c0_146 = arith.constant 0 : index
      %195 = vector.load %arg10[%c0_145, %c0_146] : memref<8x2304xf32, #tpu.memory_space<vmem>>, vector<8x128xf32>
      tpu.vector_store %arg10[%c0_145, %c0_146], %194 {strides = array<i32>} : memref<8x2304xf32, #tpu.memory_space<vmem>>, vector<8x128xf32>,
      %cst_147 = arith.constant 0.000000e+00 : f32
      %196 = vector.broadcast %cst_147 : f32 to vector<8x128xf32>
      %c0_148 = arith.constant 0 : index
      %c2176 = arith.constant 2176 : index
      %197 = vector.load %arg10[%c0_148, %c2176] : memref<8x2304xf32, #tpu.memory_space<vmem>>, vector<8x128xf32>
      tpu.vector_store %arg10[%c0_148, %c2176], %196 {strides = array<i32>} : memref<8x2304xf32, #tpu.memory_space<vmem>>, vector<8x128xf32>,
      %cst_149 = arith.constant 0.000000e+00 : f32
      %198 = vector.broadcast %cst_149 : f32 to vector<216x2048xf32>
      %c0_150 = arith.constant 0 : index
      %c0_151 = arith.constant 0 : index
      %199 = vector.load %arg11[%c0_150, %c0_151] : memref<216x2048xf32, #tpu.memory_space<vmem>>, vector<216x2048xf32>
      tpu.vector_store %arg11[%c0_150, %c0_151], %198 {strides = array<i32>} : memref<216x2048xf32, #tpu.memory_space<vmem>>, vector<216x2048xf32>,
    } else {
    }
    %c0_2 = arith.constant 0 : index
    %c17 = arith.constant 17 : index
    %6 = vector.load %arg1[%c0_2, %c17] : memref<4x2304xf32, #tpu.memory_space<vmem>>, vector<4x2050xf32>
    %7 = vector.extract_strided_slice %6 {offsets = [0, 0], sizes = [4, 2048], strides = [1, 1]} : vector<4x2050xf32> to vector<4x2048xf32>
    %c0_3 = arith.constant 0 : index
    %c0_4 = arith.constant 0 : index
    %8 = vector.load %arg11[%c0_3, %c0_4] : memref<216x2048xf32, #tpu.memory_space<vmem>>, vector<4x2048xf32>
    tpu.vector_store %arg11[%c0_3, %c0_4], %7 {strides = array<i32>} : memref<216x2048xf32, #tpu.memory_space<vmem>>, vector<4x2048xf32>,
    %9 = vector.extract_strided_slice %6 {offsets = [0, 1], sizes = [4, 2048], strides = [1, 1]} : vector<4x2050xf32> to vector<4x2048xf32>
    %c8 = arith.constant 8 : index
    %c0_5 = arith.constant 0 : index
    %10 = vector.load %arg11[%c8, %c0_5] : memref<216x2048xf32, #tpu.memory_space<vmem>>, vector<4x2048xf32>
    tpu.vector_store %arg11[%c8, %c0_5], %9 {strides = array<i32>} : memref<216x2048xf32, #tpu.memory_space<vmem>>, vector<4x2048xf32>,
    %11 = vector.extract_strided_slice %6 {offsets = [0, 2], sizes = [4, 2048], strides = [1, 1]} : vector<4x2050xf32> to vector<4x2048xf32>
    %c16 = arith.constant 16 : index
    %c0_6 = arith.constant 0 : index
    %12 = vector.load %arg11[%c16, %c0_6] : memref<216x2048xf32, #tpu.memory_space<vmem>>, vector<4x2048xf32>
    tpu.vector_store %arg11[%c16, %c0_6], %11 {strides = array<i32>} : memref<216x2048xf32, #tpu.memory_space<vmem>>, vector<4x2048xf32>,
    %c0_7 = arith.constant 0 : index
    %c27 = arith.constant 27 : index
    %13 = vector.load %arg1[%c0_7, %c27] : memref<4x2304xf32, #tpu.memory_space<vmem>>, vector<4x2050xf32>
    %14 = vector.extract_strided_slice %13 {offsets = [0, 0], sizes = [4, 2048], strides = [1, 1]} : vector<4x2050xf32> to vector<4x2048xf32>
    %c24 = arith.constant 24 : index
    %c0_8 = arith.constant 0 : index
    %15 = vector.load %arg11[%c24, %c0_8] : memref<216x2048xf32, #tpu.memory_space<vmem>>, vector<4x2048xf32>
    tpu.vector_store %arg11[%c24, %c0_8], %14 {strides = array<i32>} : memref<216x2048xf32, #tpu.memory_space<vmem>>, vector<4x2048xf32>,
    %16 = vector.extract_strided_slice %13 {offsets = [0, 1], sizes = [4, 2048], strides = [1, 1]} : vector<4x2050xf32> to vector<4x2048xf32>
    %c32 = arith.constant 32 : index
    %c0_9 = arith.constant 0 : index
    %17 = vector.load %arg11[%c32, %c0_9] : memref<216x2048xf32, #tpu.memory_space<vmem>>, vector<4x2048xf32>
    tpu.vector_store %arg11[%c32, %c0_9], %16 {strides = array<i32>} : memref<216x2048xf32, #tpu.memory_space<vmem>>, vector<4x2048xf32>,
    %18 = vector.extract_strided_slice %13 {offsets = [0, 2], sizes = [4, 2048], strides = [1, 1]} : vector<4x2050xf32> to vector<4x2048xf32>
    %c40 = arith.constant 40 : index
    %c0_10 = arith.constant 0 : index
    %19 = vector.load %arg11[%c40, %c0_10] : memref<216x2048xf32, #tpu.memory_space<vmem>>, vector<4x2048xf32>
    tpu.vector_store %arg11[%c40, %c0_10], %18 {strides = array<i32>} : memref<216x2048xf32, #tpu.memory_space<vmem>>, vector<4x2048xf32>,
    %c0_11 = arith.constant 0 : index
    %c37 = arith.constant 37 : index
    %20 = vector.load %arg1[%c0_11, %c37] : memref<4x2304xf32, #tpu.memory_space<vmem>>, vector<4x2050xf32>
    %21 = vector.extract_strided_slice %20 {offsets = [0, 0], sizes = [4, 2048], strides = [1, 1]} : vector<4x2050xf32> to vector<4x2048xf32>
    %c48 = arith.constant 48 : index
    %c0_12 = arith.constant 0 : index
    %22 = vector.load %arg11[%c48, %c0_12] : memref<216x2048xf32, #tpu.memory_space<vmem>>, vector<4x2048xf32>
    tpu.vector_store %arg11[%c48, %c0_12], %21 {strides = array<i32>} : memref<216x2048xf32, #tpu.memory_space<vmem>>, vector<4x2048xf32>,
    %23 = vector.extract_strided_slice %20 {offsets = [0, 1], sizes = [4, 2048], strides = [1, 1]} : vector<4x2050xf32> to vector<4x2048xf32>
    %c56 = arith.constant 56 : index
    %c0_13 = arith.constant 0 : index
    %24 = vector.load %arg11[%c56, %c0_13] : memref<216x2048xf32, #tpu.memory_space<vmem>>, vector<4x2048xf32>
    tpu.vector_store %arg11[%c56, %c0_13], %23 {strides = array<i32>} : memref<216x2048xf32, #tpu.memory_space<vmem>>, vector<4x2048xf32>,
    %25 = vector.extract_strided_slice %20 {offsets = [0, 2], sizes = [4, 2048], strides = [1, 1]} : vector<4x2050xf32> to vector<4x2048xf32>
    %c64 = arith.constant 64 : index
    %c0_14 = arith.constant 0 : index
    %26 = vector.load %arg11[%c64, %c0_14] : memref<216x2048xf32, #tpu.memory_space<vmem>>, vector<4x2048xf32>
    tpu.vector_store %arg11[%c64, %c0_14], %25 {strides = array<i32>} : memref<216x2048xf32, #tpu.memory_space<vmem>>, vector<4x2048xf32>,
    %c0_15 = arith.constant 0 : index
    %c117 = arith.constant 117 : index
    %27 = vector.load %arg1[%c0_15, %c117] : memref<4x2304xf32, #tpu.memory_space<vmem>>, vector<4x2050xf32>
    %28 = vector.extract_strided_slice %27 {offsets = [0, 0], sizes = [4, 2048], strides = [1, 1]} : vector<4x2050xf32> to vector<4x2048xf32>
    %c72 = arith.constant 72 : index
    %c0_16 = arith.constant 0 : index
    %29 = vector.load %arg11[%c72, %c0_16] : memref<216x2048xf32, #tpu.memory_space<vmem>>, vector<4x2048xf32>
    tpu.vector_store %arg11[%c72, %c0_16], %28 {strides = array<i32>} : memref<216x2048xf32, #tpu.memory_space<vmem>>, vector<4x2048xf32>,
    %30 = vector.extract_strided_slice %27 {offsets = [0, 1], sizes = [4, 2048], strides = [1, 1]} : vector<4x2050xf32> to vector<4x2048xf32>
    %c80 = arith.constant 80 : index
    %c0_17 = arith.constant 0 : index
    %31 = vector.load %arg11[%c80, %c0_17] : memref<216x2048xf32, #tpu.memory_space<vmem>>, vector<4x2048xf32>
    tpu.vector_store %arg11[%c80, %c0_17], %30 {strides = array<i32>} : memref<216x2048xf32, #tpu.memory_space<vmem>>, vector<4x2048xf32>,
    %32 = vector.extract_strided_slice %27 {offsets = [0, 2], sizes = [4, 2048], strides = [1, 1]} : vector<4x2050xf32> to vector<4x2048xf32>
    %c88 = arith.constant 88 : index
    %c0_18 = arith.constant 0 : index
    %33 = vector.load %arg11[%c88, %c0_18] : memref<216x2048xf32, #tpu.memory_space<vmem>>, vector<4x2048xf32>
    tpu.vector_store %arg11[%c88, %c0_18], %32 {strides = array<i32>} : memref<216x2048xf32, #tpu.memory_space<vmem>>, vector<4x2048xf32>,
    %c0_19 = arith.constant 0 : index
    %c127 = arith.constant 127 : index
    %34 = vector.load %arg1[%c0_19, %c127] : memref<4x2304xf32, #tpu.memory_space<vmem>>, vector<4x2050xf32>
    %35 = vector.extract_strided_slice %34 {offsets = [0, 0], sizes = [4, 2048], strides = [1, 1]} : vector<4x2050xf32> to vector<4x2048xf32>
    %c96 = arith.constant 96 : index
    %c0_20 = arith.constant 0 : index
    %36 = vector.load %arg11[%c96, %c0_20] : memref<216x2048xf32, #tpu.memory_space<vmem>>, vector<4x2048xf32>
    tpu.vector_store %arg11[%c96, %c0_20], %35 {strides = array<i32>} : memref<216x2048xf32, #tpu.memory_space<vmem>>, vector<4x2048xf32>,
    %37 = vector.extract_strided_slice %34 {offsets = [0, 1], sizes = [4, 2048], strides = [1, 1]} : vector<4x2050xf32> to vector<4x2048xf32>
    %c104 = arith.constant 104 : index
    %c0_21 = arith.constant 0 : index
    %38 = vector.load %arg11[%c104, %c0_21] : memref<216x2048xf32, #tpu.memory_space<vmem>>, vector<4x2048xf32>
    tpu.vector_store %arg11[%c104, %c0_21], %37 {strides = array<i32>} : memref<216x2048xf32, #tpu.memory_space<vmem>>, vector<4x2048xf32>,
    %39 = vector.extract_strided_slice %34 {offsets = [0, 2], sizes = [4, 2048], strides = [1, 1]} : vector<4x2050xf32> to vector<4x2048xf32>
    %c112 = arith.constant 112 : index
    %c0_22 = arith.constant 0 : index
    %40 = vector.load %arg11[%c112, %c0_22] : memref<216x2048xf32, #tpu.memory_space<vmem>>, vector<4x2048xf32>
    tpu.vector_store %arg11[%c112, %c0_22], %39 {strides = array<i32>} : memref<216x2048xf32, #tpu.memory_space<vmem>>, vector<4x2048xf32>,
    %c0_23 = arith.constant 0 : index
    %c137 = arith.constant 137 : index
    %41 = vector.load %arg1[%c0_23, %c137] : memref<4x2304xf32, #tpu.memory_space<vmem>>, vector<4x2050xf32>
    %42 = vector.extract_strided_slice %41 {offsets = [0, 0], sizes = [4, 2048], strides = [1, 1]} : vector<4x2050xf32> to vector<4x2048xf32>
    %c120 = arith.constant 120 : index
    %c0_24 = arith.constant 0 : index
    %43 = vector.load %arg11[%c120, %c0_24] : memref<216x2048xf32, #tpu.memory_space<vmem>>, vector<4x2048xf32>
    tpu.vector_store %arg11[%c120, %c0_24], %42 {strides = array<i32>} : memref<216x2048xf32, #tpu.memory_space<vmem>>, vector<4x2048xf32>,
    %44 = vector.extract_strided_slice %41 {offsets = [0, 1], sizes = [4, 2048], strides = [1, 1]} : vector<4x2050xf32> to vector<4x2048xf32>
    %c128 = arith.constant 128 : index
    %c0_25 = arith.constant 0 : index
    %45 = vector.load %arg11[%c128, %c0_25] : memref<216x2048xf32, #tpu.memory_space<vmem>>, vector<4x2048xf32>
    tpu.vector_store %arg11[%c128, %c0_25], %44 {strides = array<i32>} : memref<216x2048xf32, #tpu.memory_space<vmem>>, vector<4x2048xf32>,
    %46 = vector.extract_strided_slice %41 {offsets = [0, 2], sizes = [4, 2048], strides = [1, 1]} : vector<4x2050xf32> to vector<4x2048xf32>
    %c136 = arith.constant 136 : index
    %c0_26 = arith.constant 0 : index
    %47 = vector.load %arg11[%c136, %c0_26] : memref<216x2048xf32, #tpu.memory_space<vmem>>, vector<4x2048xf32>
    tpu.vector_store %arg11[%c136, %c0_26], %46 {strides = array<i32>} : memref<216x2048xf32, #tpu.memory_space<vmem>>, vector<4x2048xf32>,
    %c0_27 = arith.constant 0 : index
    %c217 = arith.constant 217 : index
    %48 = vector.load %arg1[%c0_27, %c217] : memref<4x2304xf32, #tpu.memory_space<vmem>>, vector<4x2050xf32>
    %49 = vector.extract_strided_slice %48 {offsets = [0, 0], sizes = [4, 2048], strides = [1, 1]} : vector<4x2050xf32> to vector<4x2048xf32>
    %c144 = arith.constant 144 : index
    %c0_28 = arith.constant 0 : index
    %50 = vector.load %arg11[%c144, %c0_28] : memref<216x2048xf32, #tpu.memory_space<vmem>>, vector<4x2048xf32>
    tpu.vector_store %arg11[%c144, %c0_28], %49 {strides = array<i32>} : memref<216x2048xf32, #tpu.memory_space<vmem>>, vector<4x2048xf32>,
    %51 = vector.extract_strided_slice %48 {offsets = [0, 1], sizes = [4, 2048], strides = [1, 1]} : vector<4x2050xf32> to vector<4x2048xf32>
    %c152 = arith.constant 152 : index
    %c0_29 = arith.constant 0 : index
    %52 = vector.load %arg11[%c152, %c0_29] : memref<216x2048xf32, #tpu.memory_space<vmem>>, vector<4x2048xf32>
    tpu.vector_store %arg11[%c152, %c0_29], %51 {strides = array<i32>} : memref<216x2048xf32, #tpu.memory_space<vmem>>, vector<4x2048xf32>,
    %53 = vector.extract_strided_slice %48 {offsets = [0, 2], sizes = [4, 2048], strides = [1, 1]} : vector<4x2050xf32> to vector<4x2048xf32>
    %c160 = arith.constant 160 : index
    %c0_30 = arith.constant 0 : index
    %54 = vector.load %arg11[%c160, %c0_30] : memref<216x2048xf32, #tpu.memory_space<vmem>>, vector<4x2048xf32>
    tpu.vector_store %arg11[%c160, %c0_30], %53 {strides = array<i32>} : memref<216x2048xf32, #tpu.memory_space<vmem>>, vector<4x2048xf32>,
    %c0_31 = arith.constant 0 : index
    %c227 = arith.constant 227 : index
    %55 = vector.load %arg1[%c0_31, %c227] : memref<4x2304xf32, #tpu.memory_space<vmem>>, vector<4x2050xf32>
    %56 = vector.extract_strided_slice %55 {offsets = [0, 0], sizes = [4, 2048], strides = [1, 1]} : vector<4x2050xf32> to vector<4x2048xf32>
    %c168 = arith.constant 168 : index
    %c0_32 = arith.constant 0 : index
    %57 = vector.load %arg11[%c168, %c0_32] : memref<216x2048xf32, #tpu.memory_space<vmem>>, vector<4x2048xf32>
    tpu.vector_store %arg11[%c168, %c0_32], %56 {strides = array<i32>} : memref<216x2048xf32, #tpu.memory_space<vmem>>, vector<4x2048xf32>,
    %58 = vector.extract_strided_slice %55 {offsets = [0, 1], sizes = [4, 2048], strides = [1, 1]} : vector<4x2050xf32> to vector<4x2048xf32>
    %c176 = arith.constant 176 : index
    %c0_33 = arith.constant 0 : index
    %59 = vector.load %arg11[%c176, %c0_33] : memref<216x2048xf32, #tpu.memory_space<vmem>>, vector<4x2048xf32>
    tpu.vector_store %arg11[%c176, %c0_33], %58 {strides = array<i32>} : memref<216x2048xf32, #tpu.memory_space<vmem>>, vector<4x2048xf32>,
    %60 = vector.extract_strided_slice %55 {offsets = [0, 2], sizes = [4, 2048], strides = [1, 1]} : vector<4x2050xf32> to vector<4x2048xf32>
    %c184 = arith.constant 184 : index
    %c0_34 = arith.constant 0 : index
    %61 = vector.load %arg11[%c184, %c0_34] : memref<216x2048xf32, #tpu.memory_space<vmem>>, vector<4x2048xf32>
    tpu.vector_store %arg11[%c184, %c0_34], %60 {strides = array<i32>} : memref<216x2048xf32, #tpu.memory_space<vmem>>, vector<4x2048xf32>,
    %c0_35 = arith.constant 0 : index
    %c237 = arith.constant 237 : index
    %62 = vector.load %arg1[%c0_35, %c237] : memref<4x2304xf32, #tpu.memory_space<vmem>>, vector<4x2050xf32>
    %63 = vector.extract_strided_slice %62 {offsets = [0, 0], sizes = [4, 2048], strides = [1, 1]} : vector<4x2050xf32> to vector<4x2048xf32>
    %c192 = arith.constant 192 : index
    %c0_36 = arith.constant 0 : index
    %64 = vector.load %arg11[%c192, %c0_36] : memref<216x2048xf32, #tpu.memory_space<vmem>>, vector<4x2048xf32>
    tpu.vector_store %arg11[%c192, %c0_36], %63 {strides = array<i32>} : memref<216x2048xf32, #tpu.memory_space<vmem>>, vector<4x2048xf32>,
    %65 = vector.extract_strided_slice %62 {offsets = [0, 1], sizes = [4, 2048], strides = [1, 1]} : vector<4x2050xf32> to vector<4x2048xf32>
    %c200 = arith.constant 200 : index
    %c0_37 = arith.constant 0 : index
    %66 = vector.load %arg11[%c200, %c0_37] : memref<216x2048xf32, #tpu.memory_space<vmem>>, vector<4x2048xf32>
    tpu.vector_store %arg11[%c200, %c0_37], %65 {strides = array<i32>} : memref<216x2048xf32, #tpu.memory_space<vmem>>, vector<4x2048xf32>,
    %67 = vector.extract_strided_slice %62 {offsets = [0, 2], sizes = [4, 2048], strides = [1, 1]} : vector<4x2050xf32> to vector<4x2048xf32>
    %c208 = arith.constant 208 : index
    %c0_38 = arith.constant 0 : index
    %68 = vector.load %arg11[%c208, %c0_38] : memref<216x2048xf32, #tpu.memory_space<vmem>>, vector<4x2048xf32>
    tpu.vector_store %arg11[%c208, %c0_38], %67 {strides = array<i32>} : memref<216x2048xf32, #tpu.memory_space<vmem>>, vector<4x2048xf32>,
    %c0_39 = arith.constant 0 : index
    %c0_40 = arith.constant 0 : index
    %69 = vector.load %arg3[%c0_39, %c0_40] : memref<8x216xf32, #tpu.memory_space<vmem>>, vector<8x216xf32>
    %c0_41 = arith.constant 0 : index
    %c0_42 = arith.constant 0 : index
    %70 = vector.load %arg11[%c0_41, %c0_42] : memref<216x2048xf32, #tpu.memory_space<vmem>>, vector<216x2048xf32>
    %cst = arith.constant dense<0.000000e+00> : vector<8x2048xf32>
    %71 = tpu.matmul %69, %70, %cst {dimension_numbers = #tpu.dot_dimension_numbers<[1], [0], [0], [1], [0, 0, 1, 1], [], []>} : vector<8x216xf32>, vector<216x2048xf32>, vector<8x2048xf32> -> vector<8x2048xf32>
    %72 = arith.mulf %71, %2 : vector<8x2048xf32>
    %cst_43 = arith.constant dense<0.000000e+00> : vector<8xf32>
    %73 = vector.multi_reduction <add>, %72, %cst_43 [1] : vector<8x2048xf32> to vector<8xf32>
    %74 = vector.shape_cast %73 : vector<8xf32> to vector<8x1xf32>
    %cst_44 = arith.constant 1.024000e+03 : f32
    %75 = vector.broadcast %cst_44 : f32 to vector<8x1xf32>
    %76 = arith.divf %74, %75 : vector<8x1xf32>
    %77 = arith.mulf %72, %72 : vector<8x2048xf32>
    %cst_45 = arith.constant dense<0.000000e+00> : vector<8xf32>
    %78 = vector.multi_reduction <add>, %77, %cst_45 [1] : vector<8x2048xf32> to vector<8xf32>
    %79 = vector.shape_cast %78 : vector<8xf32> to vector<8x1xf32>
    %cst_46 = arith.constant 1.024000e+03 : f32
    %80 = vector.broadcast %cst_46 : f32 to vector<8x1xf32>
    %81 = arith.divf %79, %80 : vector<8x1xf32>
    %82 = arith.mulf %76, %76 : vector<8x1xf32>
    %83 = arith.subf %81, %82 : vector<8x1xf32>
    %c0_47 = arith.constant 0 : index
    %c0_48 = arith.constant 0 : index
    %84 = vector.load %arg4[%c0_47, %c0_48] : memref<8x1xf32, #tpu.memory_space<vmem>>, vector<8x1xf32>
    %cst_49 = arith.constant 9.99999974E-6 : f32
    %85 = vector.broadcast %cst_49 : f32 to vector<8x1xf32>
    %86 = arith.addf %83, %85 : vector<8x1xf32>
    %87 = math.rsqrt %86 : vector<8x1xf32>
    %88 = arith.mulf %84, %87 : vector<8x1xf32>
    %c0_50 = arith.constant 0 : index
    %c0_51 = arith.constant 0 : index
    %89 = vector.load %arg5[%c0_50, %c0_51] : memref<8x1xf32, #tpu.memory_space<vmem>>, vector<8x1xf32>
    %90 = arith.mulf %76, %88 : vector<8x1xf32>
    %91 = arith.subf %89, %90 : vector<8x1xf32>
    %92 = vector.broadcast %88 : vector<8x1xf32> to vector<8x2048xf32>
    %93 = arith.mulf %71, %92 : vector<8x2048xf32>
    %94 = vector.broadcast %91 : vector<8x1xf32> to vector<8x2048xf32>
    %95 = arith.addf %93, %94 : vector<8x2048xf32>
    %cst_52 = arith.constant 0.000000e+00 : f32
    %96 = vector.broadcast %cst_52 : f32 to vector<8x2048xf32>
    %97 = arith.maximumf %95, %96 : vector<8x2048xf32>
    %98 = arith.mulf %97, %2 : vector<8x2048xf32>
    %c0_53 = arith.constant 0 : index
    %c128_54 = arith.constant 128 : index
    %99 = vector.load %arg10[%c0_53, %c128_54] : memref<8x2304xf32, #tpu.memory_space<vmem>>, vector<8x2048xf32>
    tpu.vector_store %arg10[%c0_53, %c128_54], %98 {strides = array<i32>} : memref<8x2304xf32, #tpu.memory_space<vmem>>, vector<8x2048xf32>,
    %c0_55 = arith.constant 0 : index
    %c17_56 = arith.constant 17 : index
    %100 = vector.load %arg10[%c0_55, %c17_56] : memref<8x2304xf32, #tpu.memory_space<vmem>>, vector<8x2050xf32>
    %101 = vector.extract_strided_slice %100 {offsets = [0, 0], sizes = [8, 2048], strides = [1, 1]} : vector<8x2050xf32> to vector<8x2048xf32>
    %c0_57 = arith.constant 0 : index
    %c0_58 = arith.constant 0 : index
    %102 = vector.load %arg11[%c0_57, %c0_58] : memref<216x2048xf32, #tpu.memory_space<vmem>>, vector<8x2048xf32>
    tpu.vector_store %arg11[%c0_57, %c0_58], %101 {strides = array<i32>} : memref<216x2048xf32, #tpu.memory_space<vmem>>, vector<8x2048xf32>,
    %103 = vector.extract_strided_slice %100 {offsets = [0, 1], sizes = [8, 2048], strides = [1, 1]} : vector<8x2050xf32> to vector<8x2048xf32>
    %c8_59 = arith.constant 8 : index
    %c0_60 = arith.constant 0 : index
    %104 = vector.load %arg11[%c8_59, %c0_60] : memref<216x2048xf32, #tpu.memory_space<vmem>>, vector<8x2048xf32>
    tpu.vector_store %arg11[%c8_59, %c0_60], %103 {strides = array<i32>} : memref<216x2048xf32, #tpu.memory_space<vmem>>, vector<8x2048xf32>,
    %105 = vector.extract_strided_slice %100 {offsets = [0, 2], sizes = [8, 2048], strides = [1, 1]} : vector<8x2050xf32> to vector<8x2048xf32>
    %c16_61 = arith.constant 16 : index
    %c0_62 = arith.constant 0 : index
    %106 = vector.load %arg11[%c16_61, %c0_62] : memref<216x2048xf32, #tpu.memory_space<vmem>>, vector<8x2048xf32>
    tpu.vector_store %arg11[%c16_61, %c0_62], %105 {strides = array<i32>} : memref<216x2048xf32, #tpu.memory_space<vmem>>, vector<8x2048xf32>,
    %c0_63 = arith.constant 0 : index
    %c27_64 = arith.constant 27 : index
    %107 = vector.load %arg10[%c0_63, %c27_64] : memref<8x2304xf32, #tpu.memory_space<vmem>>, vector<8x2050xf32>
    %108 = vector.extract_strided_slice %107 {offsets = [0, 0], sizes = [8, 2048], strides = [1, 1]} : vector<8x2050xf32> to vector<8x2048xf32>
    %c24_65 = arith.constant 24 : index
    %c0_66 = arith.constant 0 : index
    %109 = vector.load %arg11[%c24_65, %c0_66] : memref<216x2048xf32, #tpu.memory_space<vmem>>, vector<8x2048xf32>
    tpu.vector_store %arg11[%c24_65, %c0_66], %108 {strides = array<i32>} : memref<216x2048xf32, #tpu.memory_space<vmem>>, vector<8x2048xf32>,
    %110 = vector.extract_strided_slice %107 {offsets = [0, 1], sizes = [8, 2048], strides = [1, 1]} : vector<8x2050xf32> to vector<8x2048xf32>
    %c32_67 = arith.constant 32 : index
    %c0_68 = arith.constant 0 : index
    %111 = vector.load %arg11[%c32_67, %c0_68] : memref<216x2048xf32, #tpu.memory_space<vmem>>, vector<8x2048xf32>
    tpu.vector_store %arg11[%c32_67, %c0_68], %110 {strides = array<i32>} : memref<216x2048xf32, #tpu.memory_space<vmem>>, vector<8x2048xf32>,
    %112 = vector.extract_strided_slice %107 {offsets = [0, 2], sizes = [8, 2048], strides = [1, 1]} : vector<8x2050xf32> to vector<8x2048xf32>
    %c40_69 = arith.constant 40 : index
    %c0_70 = arith.constant 0 : index
    %113 = vector.load %arg11[%c40_69, %c0_70] : memref<216x2048xf32, #tpu.memory_space<vmem>>, vector<8x2048xf32>
    tpu.vector_store %arg11[%c40_69, %c0_70], %112 {strides = array<i32>} : memref<216x2048xf32, #tpu.memory_space<vmem>>, vector<8x2048xf32>,
    %c0_71 = arith.constant 0 : index
    %c37_72 = arith.constant 37 : index
    %114 = vector.load %arg10[%c0_71, %c37_72] : memref<8x2304xf32, #tpu.memory_space<vmem>>, vector<8x2050xf32>
    %115 = vector.extract_strided_slice %114 {offsets = [0, 0], sizes = [8, 2048], strides = [1, 1]} : vector<8x2050xf32> to vector<8x2048xf32>
    %c48_73 = arith.constant 48 : index
    %c0_74 = arith.constant 0 : index
    %116 = vector.load %arg11[%c48_73, %c0_74] : memref<216x2048xf32, #tpu.memory_space<vmem>>, vector<8x2048xf32>
    tpu.vector_store %arg11[%c48_73, %c0_74], %115 {strides = array<i32>} : memref<216x2048xf32, #tpu.memory_space<vmem>>, vector<8x2048xf32>,
    %117 = vector.extract_strided_slice %114 {offsets = [0, 1], sizes = [8, 2048], strides = [1, 1]} : vector<8x2050xf32> to vector<8x2048xf32>
    %c56_75 = arith.constant 56 : index
    %c0_76 = arith.constant 0 : index
    %118 = vector.load %arg11[%c56_75, %c0_76] : memref<216x2048xf32, #tpu.memory_space<vmem>>, vector<8x2048xf32>
    tpu.vector_store %arg11[%c56_75, %c0_76], %117 {strides = array<i32>} : memref<216x2048xf32, #tpu.memory_space<vmem>>, vector<8x2048xf32>,
    %119 = vector.extract_strided_slice %114 {offsets = [0, 2], sizes = [8, 2048], strides = [1, 1]} : vector<8x2050xf32> to vector<8x2048xf32>
    %c64_77 = arith.constant 64 : index
    %c0_78 = arith.constant 0 : index
    %120 = vector.load %arg11[%c64_77, %c0_78] : memref<216x2048xf32, #tpu.memory_space<vmem>>, vector<8x2048xf32>
    tpu.vector_store %arg11[%c64_77, %c0_78], %119 {strides = array<i32>} : memref<216x2048xf32, #tpu.memory_space<vmem>>, vector<8x2048xf32>,
    %c0_79 = arith.constant 0 : index
    %c117_80 = arith.constant 117 : index
    %121 = vector.load %arg10[%c0_79, %c117_80] : memref<8x2304xf32, #tpu.memory_space<vmem>>, vector<8x2050xf32>
    %122 = vector.extract_strided_slice %121 {offsets = [0, 0], sizes = [8, 2048], strides = [1, 1]} : vector<8x2050xf32> to vector<8x2048xf32>
    %c72_81 = arith.constant 72 : index
    %c0_82 = arith.constant 0 : index
    %123 = vector.load %arg11[%c72_81, %c0_82] : memref<216x2048xf32, #tpu.memory_space<vmem>>, vector<8x2048xf32>
    tpu.vector_store %arg11[%c72_81, %c0_82], %122 {strides = array<i32>} : memref<216x2048xf32, #tpu.memory_space<vmem>>, vector<8x2048xf32>,
    %124 = vector.extract_strided_slice %121 {offsets = [0, 1], sizes = [8, 2048], strides = [1, 1]} : vector<8x2050xf32> to vector<8x2048xf32>
    %c80_83 = arith.constant 80 : index
    %c0_84 = arith.constant 0 : index
    %125 = vector.load %arg11[%c80_83, %c0_84] : memref<216x2048xf32, #tpu.memory_space<vmem>>, vector<8x2048xf32>
    tpu.vector_store %arg11[%c80_83, %c0_84], %124 {strides = array<i32>} : memref<216x2048xf32, #tpu.memory_space<vmem>>, vector<8x2048xf32>,
    %126 = vector.extract_strided_slice %121 {offsets = [0, 2], sizes = [8, 2048], strides = [1, 1]} : vector<8x2050xf32> to vector<8x2048xf32>
    %c88_85 = arith.constant 88 : index
    %c0_86 = arith.constant 0 : index
    %127 = vector.load %arg11[%c88_85, %c0_86] : memref<216x2048xf32, #tpu.memory_space<vmem>>, vector<8x2048xf32>
    tpu.vector_store %arg11[%c88_85, %c0_86], %126 {strides = array<i32>} : memref<216x2048xf32, #tpu.memory_space<vmem>>, vector<8x2048xf32>,
    %c0_87 = arith.constant 0 : index
    %c127_88 = arith.constant 127 : index
    %128 = vector.load %arg10[%c0_87, %c127_88] : memref<8x2304xf32, #tpu.memory_space<vmem>>, vector<8x2050xf32>
    %129 = vector.extract_strided_slice %128 {offsets = [0, 0], sizes = [8, 2048], strides = [1, 1]} : vector<8x2050xf32> to vector<8x2048xf32>
    %c96_89 = arith.constant 96 : index
    %c0_90 = arith.constant 0 : index
    %130 = vector.load %arg11[%c96_89, %c0_90] : memref<216x2048xf32, #tpu.memory_space<vmem>>, vector<8x2048xf32>
    tpu.vector_store %arg11[%c96_89, %c0_90], %129 {strides = array<i32>} : memref<216x2048xf32, #tpu.memory_space<vmem>>, vector<8x2048xf32>,
    %131 = vector.extract_strided_slice %128 {offsets = [0, 1], sizes = [8, 2048], strides = [1, 1]} : vector<8x2050xf32> to vector<8x2048xf32>
    %c104_91 = arith.constant 104 : index
    %c0_92 = arith.constant 0 : index
    %132 = vector.load %arg11[%c104_91, %c0_92] : memref<216x2048xf32, #tpu.memory_space<vmem>>, vector<8x2048xf32>
    tpu.vector_store %arg11[%c104_91, %c0_92], %131 {strides = array<i32>} : memref<216x2048xf32, #tpu.memory_space<vmem>>, vector<8x2048xf32>,
    %133 = vector.extract_strided_slice %128 {offsets = [0, 2], sizes = [8, 2048], strides = [1, 1]} : vector<8x2050xf32> to vector<8x2048xf32>
    %c112_93 = arith.constant 112 : index
    %c0_94 = arith.constant 0 : index
    %134 = vector.load %arg11[%c112_93, %c0_94] : memref<216x2048xf32, #tpu.memory_space<vmem>>, vector<8x2048xf32>
    tpu.vector_store %arg11[%c112_93, %c0_94], %133 {strides = array<i32>} : memref<216x2048xf32, #tpu.memory_space<vmem>>, vector<8x2048xf32>,
    %c0_95 = arith.constant 0 : index
    %c137_96 = arith.constant 137 : index
    %135 = vector.load %arg10[%c0_95, %c137_96] : memref<8x2304xf32, #tpu.memory_space<vmem>>, vector<8x2050xf32>
    %136 = vector.extract_strided_slice %135 {offsets = [0, 0], sizes = [8, 2048], strides = [1, 1]} : vector<8x2050xf32> to vector<8x2048xf32>
    %c120_97 = arith.constant 120 : index
    %c0_98 = arith.constant 0 : index
    %137 = vector.load %arg11[%c120_97, %c0_98] : memref<216x2048xf32, #tpu.memory_space<vmem>>, vector<8x2048xf32>
    tpu.vector_store %arg11[%c120_97, %c0_98], %136 {strides = array<i32>} : memref<216x2048xf32, #tpu.memory_space<vmem>>, vector<8x2048xf32>,
    %138 = vector.extract_strided_slice %135 {offsets = [0, 1], sizes = [8, 2048], strides = [1, 1]} : vector<8x2050xf32> to vector<8x2048xf32>
    %c128_99 = arith.constant 128 : index
    %c0_100 = arith.constant 0 : index
    %139 = vector.load %arg11[%c128_99, %c0_100] : memref<216x2048xf32, #tpu.memory_space<vmem>>, vector<8x2048xf32>
    tpu.vector_store %arg11[%c128_99, %c0_100], %138 {strides = array<i32>} : memref<216x2048xf32, #tpu.memory_space<vmem>>, vector<8x2048xf32>,
    %140 = vector.extract_strided_slice %135 {offsets = [0, 2], sizes = [8, 2048], strides = [1, 1]} : vector<8x2050xf32> to vector<8x2048xf32>
    %c136_101 = arith.constant 136 : index
    %c0_102 = arith.constant 0 : index
    %141 = vector.load %arg11[%c136_101, %c0_102] : memref<216x2048xf32, #tpu.memory_space<vmem>>, vector<8x2048xf32>
    tpu.vector_store %arg11[%c136_101, %c0_102], %140 {strides = array<i32>} : memref<216x2048xf32, #tpu.memory_space<vmem>>, vector<8x2048xf32>,
    %c0_103 = arith.constant 0 : index
    %c217_104 = arith.constant 217 : index
    %142 = vector.load %arg10[%c0_103, %c217_104] : memref<8x2304xf32, #tpu.memory_space<vmem>>, vector<8x2050xf32>
    %143 = vector.extract_strided_slice %142 {offsets = [0, 0], sizes = [8, 2048], strides = [1, 1]} : vector<8x2050xf32> to vector<8x2048xf32>
    %c144_105 = arith.constant 144 : index
    %c0_106 = arith.constant 0 : index
    %144 = vector.load %arg11[%c144_105, %c0_106] : memref<216x2048xf32, #tpu.memory_space<vmem>>, vector<8x2048xf32>
    tpu.vector_store %arg11[%c144_105, %c0_106], %143 {strides = array<i32>} : memref<216x2048xf32, #tpu.memory_space<vmem>>, vector<8x2048xf32>,
    %145 = vector.extract_strided_slice %142 {offsets = [0, 1], sizes = [8, 2048], strides = [1, 1]} : vector<8x2050xf32> to vector<8x2048xf32>
    %c152_107 = arith.constant 152 : index
    %c0_108 = arith.constant 0 : index
    %146 = vector.load %arg11[%c152_107, %c0_108] : memref<216x2048xf32, #tpu.memory_space<vmem>>, vector<8x2048xf32>
    tpu.vector_store %arg11[%c152_107, %c0_108], %145 {strides = array<i32>} : memref<216x2048xf32, #tpu.memory_space<vmem>>, vector<8x2048xf32>,
    %147 = vector.extract_strided_slice %142 {offsets = [0, 2], sizes = [8, 2048], strides = [1, 1]} : vector<8x2050xf32> to vector<8x2048xf32>
    %c160_109 = arith.constant 160 : index
    %c0_110 = arith.constant 0 : index
    %148 = vector.load %arg11[%c160_109, %c0_110] : memref<216x2048xf32, #tpu.memory_space<vmem>>, vector<8x2048xf32>
    tpu.vector_store %arg11[%c160_109, %c0_110], %147 {strides = array<i32>} : memref<216x2048xf32, #tpu.memory_space<vmem>>, vector<8x2048xf32>,
    %c0_111 = arith.constant 0 : index
    %c227_112 = arith.constant 227 : index
    %149 = vector.load %arg10[%c0_111, %c227_112] : memref<8x2304xf32, #tpu.memory_space<vmem>>, vector<8x2050xf32>
    %150 = vector.extract_strided_slice %149 {offsets = [0, 0], sizes = [8, 2048], strides = [1, 1]} : vector<8x2050xf32> to vector<8x2048xf32>
    %c168_113 = arith.constant 168 : index
    %c0_114 = arith.constant 0 : index
    %151 = vector.load %arg11[%c168_113, %c0_114] : memref<216x2048xf32, #tpu.memory_space<vmem>>, vector<8x2048xf32>
    tpu.vector_store %arg11[%c168_113, %c0_114], %150 {strides = array<i32>} : memref<216x2048xf32, #tpu.memory_space<vmem>>, vector<8x2048xf32>,
    %152 = vector.extract_strided_slice %149 {offsets = [0, 1], sizes = [8, 2048], strides = [1, 1]} : vector<8x2050xf32> to vector<8x2048xf32>
    %c176_115 = arith.constant 176 : index
    %c0_116 = arith.constant 0 : index
    %153 = vector.load %arg11[%c176_115, %c0_116] : memref<216x2048xf32, #tpu.memory_space<vmem>>, vector<8x2048xf32>
    tpu.vector_store %arg11[%c176_115, %c0_116], %152 {strides = array<i32>} : memref<216x2048xf32, #tpu.memory_space<vmem>>, vector<8x2048xf32>,
    %154 = vector.extract_strided_slice %149 {offsets = [0, 2], sizes = [8, 2048], strides = [1, 1]} : vector<8x2050xf32> to vector<8x2048xf32>
    %c184_117 = arith.constant 184 : index
    %c0_118 = arith.constant 0 : index
    %155 = vector.load %arg11[%c184_117, %c0_118] : memref<216x2048xf32, #tpu.memory_space<vmem>>, vector<8x2048xf32>
    tpu.vector_store %arg11[%c184_117, %c0_118], %154 {strides = array<i32>} : memref<216x2048xf32, #tpu.memory_space<vmem>>, vector<8x2048xf32>,
    %c0_119 = arith.constant 0 : index
    %c237_120 = arith.constant 237 : index
    %156 = vector.load %arg10[%c0_119, %c237_120] : memref<8x2304xf32, #tpu.memory_space<vmem>>, vector<8x2050xf32>
    %157 = vector.extract_strided_slice %156 {offsets = [0, 0], sizes = [8, 2048], strides = [1, 1]} : vector<8x2050xf32> to vector<8x2048xf32>
    %c192_121 = arith.constant 192 : index
    %c0_122 = arith.constant 0 : index
    %158 = vector.load %arg11[%c192_121, %c0_122] : memref<216x2048xf32, #tpu.memory_space<vmem>>, vector<8x2048xf32>
    tpu.vector_store %arg11[%c192_121, %c0_122], %157 {strides = array<i32>} : memref<216x2048xf32, #tpu.memory_space<vmem>>, vector<8x2048xf32>,
    %159 = vector.extract_strided_slice %156 {offsets = [0, 1], sizes = [8, 2048], strides = [1, 1]} : vector<8x2050xf32> to vector<8x2048xf32>
    %c200_123 = arith.constant 200 : index
    %c0_124 = arith.constant 0 : index
    %160 = vector.load %arg11[%c200_123, %c0_124] : memref<216x2048xf32, #tpu.memory_space<vmem>>, vector<8x2048xf32>
    tpu.vector_store %arg11[%c200_123, %c0_124], %159 {strides = array<i32>} : memref<216x2048xf32, #tpu.memory_space<vmem>>, vector<8x2048xf32>,
    %161 = vector.extract_strided_slice %156 {offsets = [0, 2], sizes = [8, 2048], strides = [1, 1]} : vector<8x2050xf32> to vector<8x2048xf32>
    %c208_125 = arith.constant 208 : index
    %c0_126 = arith.constant 0 : index
    %162 = vector.load %arg11[%c208_125, %c0_126] : memref<216x2048xf32, #tpu.memory_space<vmem>>, vector<8x2048xf32>
    tpu.vector_store %arg11[%c208_125, %c0_126], %161 {strides = array<i32>} : memref<216x2048xf32, #tpu.memory_space<vmem>>, vector<8x2048xf32>,
    %c0_127 = arith.constant 0 : index
    %c0_128 = arith.constant 0 : index
    %163 = vector.load %arg6[%c0_127, %c0_128] : memref<8x216xf32, #tpu.memory_space<vmem>>, vector<8x216xf32>
    %c0_129 = arith.constant 0 : index
    %c0_130 = arith.constant 0 : index
    %164 = vector.load %arg11[%c0_129, %c0_130] : memref<216x2048xf32, #tpu.memory_space<vmem>>, vector<216x2048xf32>
    %cst_131 = arith.constant dense<0.000000e+00> : vector<8x2048xf32>
    %165 = tpu.matmul %163, %164, %cst_131 {dimension_numbers = #tpu.dot_dimension_numbers<[1], [0], [0], [1], [0, 0, 1, 1], [], []>} : vector<8x216xf32>, vector<216x2048xf32>, vector<8x2048xf32> -> vector<8x2048xf32>
    %166 = arith.mulf %165, %2 : vector<8x2048xf32>
    %cst_132 = arith.constant dense<0.000000e+00> : vector<8xf32>
    %167 = vector.multi_reduction <add>, %166, %cst_132 [1] : vector<8x2048xf32> to vector<8xf32>
    %168 = vector.shape_cast %167 : vector<8xf32> to vector<8x1xf32>
    %cst_133 = arith.constant 1.024000e+03 : f32
    %169 = vector.broadcast %cst_133 : f32 to vector<8x1xf32>
    %170 = arith.divf %168, %169 : vector<8x1xf32>
    %171 = arith.mulf %166, %166 : vector<8x2048xf32>
    %cst_134 = arith.constant dense<0.000000e+00> : vector<8xf32>
    %172 = vector.multi_reduction <add>, %171, %cst_134 [1] : vector<8x2048xf32> to vector<8xf32>
    %173 = vector.shape_cast %172 : vector<8xf32> to vector<8x1xf32>
    %cst_135 = arith.constant 1.024000e+03 : f32
    %174 = vector.broadcast %cst_135 : f32 to vector<8x1xf32>
    %175 = arith.divf %173, %174 : vector<8x1xf32>
    %176 = arith.mulf %170, %170 : vector<8x1xf32>
    %177 = arith.subf %175, %176 : vector<8x1xf32>
    %c0_136 = arith.constant 0 : index
    %c0_137 = arith.constant 0 : index
    %178 = vector.load %arg7[%c0_136, %c0_137] : memref<8x1xf32, #tpu.memory_space<vmem>>, vector<8x1xf32>
    %cst_138 = arith.constant 9.99999974E-6 : f32
    %179 = vector.broadcast %cst_138 : f32 to vector<8x1xf32>
    %180 = arith.addf %177, %179 : vector<8x1xf32>
    %181 = math.rsqrt %180 : vector<8x1xf32>
    %182 = arith.mulf %178, %181 : vector<8x1xf32>
    %c0_139 = arith.constant 0 : index
    %c0_140 = arith.constant 0 : index
    %183 = vector.load %arg8[%c0_139, %c0_140] : memref<8x1xf32, #tpu.memory_space<vmem>>, vector<8x1xf32>
    %184 = arith.mulf %170, %182 : vector<8x1xf32>
    %185 = arith.subf %183, %184 : vector<8x1xf32>
    %186 = vector.broadcast %182 : vector<8x1xf32> to vector<8x2048xf32>
    %187 = arith.mulf %165, %186 : vector<8x2048xf32>
    %188 = vector.broadcast %185 : vector<8x1xf32> to vector<8x2048xf32>
    %189 = arith.addf %187, %188 : vector<8x2048xf32>
    %cst_141 = arith.constant 0.000000e+00 : f32
    %190 = vector.broadcast %cst_141 : f32 to vector<8x2048xf32>
    %191 = arith.maximumf %189, %190 : vector<8x2048xf32>
    %192 = arith.mulf %191, %2 : vector<8x2048xf32>
    %c0_142 = arith.constant 0 : index
    %c0_143 = arith.constant 0 : index
    %193 = vector.load %arg9[%c0_142, %c0_143] : memref<8x2048xf32, #tpu.memory_space<vmem>>, vector<8x2048xf32>
    tpu.vector_store %arg9[%c0_142, %c0_143], %192 {strides = array<i32>} : memref<8x2048xf32, #tpu.memory_space<vmem>>, vector<8x2048xf32>,
    return
  }
  func.func @transform_0(%arg0: i32) -> (i32, i32) {
    %c0_i32 = arith.constant 0 : i32
    %c0_i32_0 = arith.constant 0 : i32
    %c0_i32_1 = arith.constant 0 : i32
    return %c0_i32, %c0_i32_0 : i32, i32
  }
  func.func @transform_1(%arg0: i32) -> (i32, i32) {
    %c0_i32 = arith.constant 0 : i32
    %c0_i32_0 = arith.constant 0 : i32
    %c0_i32_1 = arith.constant 0 : i32
    return %c0_i32, %c0_i32_0 : i32, i32
  }
  func.func @transform_2(%arg0: i32) -> (i32, i32) {
    %c0_i32 = arith.constant 0 : i32
    %c0_i32_0 = arith.constant 0 : i32
    %c0_i32_1 = arith.constant 0 : i32
    return %c0_i32, %c0_i32_0 : i32, i32
  }
  func.func @transform_3(%arg0: i32) -> (i32, i32) {
    %c0_i32 = arith.constant 0 : i32
    %c0_i32_0 = arith.constant 0 : i32
    %c0_i32_1 = arith.constant 0 : i32
    return %c0_i32, %c0_i32_0 : i32, i32
  }
  func.func @transform_4(%arg0: i32) -> (i32, i32) {
    %c0_i32 = arith.constant 0 : i32
    %c0_i32_0 = arith.constant 0 : i32
    %c0_i32_1 = arith.constant 0 : i32
    return %c0_i32, %c0_i32_0 : i32, i32
  }
  func.func @transform_5(%arg0: i32) -> (i32, i32) {
    %c0_i32 = arith.constant 0 : i32
    %c0_i32_0 = arith.constant 0 : i32
    %c0_i32_1 = arith.constant 0 : i32
    return %c0_i32, %c0_i32_0 : i32, i32
  }
  func.func @transform_6(%arg0: i32) -> (i32, i32) {
    %c0_i32 = arith.constant 0 : i32
    %c0_i32_0 = arith.constant 0 : i32
    %c0_i32_1 = arith.constant 0 : i32
    return %c0_i32, %c0_i32_0 : i32, i32
  }
  func.func @transform_7(%arg0: i32) -> (i32, i32) {
    %c0_i32 = arith.constant 0 : i32
    %c0_i32_0 = arith.constant 0 : i32
    %c0_i32_1 = arith.constant 0 : i32
    return %c0_i32, %c0_i32_0 : i32, i32
  }
  func.func @transform_8(%arg0: i32) -> (i32, i32) {
    %c0_i32 = arith.constant 0 : i32
    %c0_i32_0 = arith.constant 0 : i32
    %c0_i32_1 = arith.constant 0 : i32
    return %c0_i32, %c0_i32_0 : i32, i32
  }
}

</mosaic_0001>

<llo_original>
// kernel: tpu_custom_call.1
$region0: #{tpu_custom_call.1}
  #allocation0 [shape = 'u32[]', space=smem, size = 0x4, offset = 0x4, fixed_abs, tag = 'smem constant byte address 0x4 - core index']
  #allocation1 [shape = 'u32[144,128]{1,0:T(1,128)}', space=vmem, size = 0x12000, scoped, tag = 'internal scratch']
  #allocation2 [shape = 'f32[8,2304]{1,0:T(8,128)}', space=vmem, size = 0x12000, scoped, tag = 'scratch operand']
  #allocation3 [shape = 'f32[216,2048]{1,0:T(8,128)}', space=vmem, size = 0x1b0000, scoped, tag = 'scratch operand']
  %s0 = inlined_call_operand.hbm [shape: f32[4,2304], index: 0, kind: input, shape index: {}]
  %s1 = inlined_call_operand.vmem [shape: f32[1,2048], index: 1, kind: input, shape index: {}]
  %s2 = inlined_call_operand.vmem [shape: f32[8,216], index: 2, kind: input, shape index: {}]
  %s3 = inlined_call_operand.vmem [shape: f32[8,1], index: 3, kind: input, shape index: {}]
  %s4 = inlined_call_operand.vmem [shape: f32[8,1], index: 4, kind: input, shape index: {}]
  %s5 = inlined_call_operand.vmem [shape: f32[8,216], index: 5, kind: input, shape index: {}]
  %s6 = inlined_call_operand.vmem [shape: f32[8,1], index: 6, kind: input, shape index: {}]
  %s7 = inlined_call_operand.vmem [shape: f32[8,1], index: 7, kind: input, shape index: {}]
  %s8 = inlined_call_operand.hbm [shape: f32[8,2048], index: 8, kind: output, shape index: {}]
  %s9 = sld [smem:[#allocation0]]
  $region50: #{tpu_custom_call.1} parent=0
    _
  %s11 = ssub.s32 1, %s9
  %s12 = scalar_select 0, %s11, %s9
  $region1: #{tpu_custom_call.1} parent=0
    #allocation4 [shape = 'u8[36864]{0}', space=vmem, size = 0x9000, scoped, tag = 'input window, operand 0, single buffered']
    #allocation5 [shape = 's32[1]{0}', space=sflag, size = 0x4, scoped, tag = 'scoped memory for tpu_custom_call.1']
    #allocation6 [shape = 's32[1]{0}', space=sflag, size = 0x4, scoped, tag = 'scoped memory for tpu_custom_call.1']
    #allocation7 [shape = 'u8[65536]{0}', space=vmem, size = 0x10000, scoped, tag = 'output window, operand 0, single buffered']
    %13 = vsyncpa [#allocation5], 0
    %14 = vsyncpa [#allocation6], 0
    // Predicated region
    $region2: #{tpu_custom_call.1} parent=1 // pred_check
      _
    $region3: #{tpu_custom_call.1} parent=1 // pred_check_branch
      %16 = sbr.rel (0) target = $region5
    $region4: #{tpu_custom_call.1} parent=1 // pred_region
      %s18 = ssub.s32 1152, 1152
      %19 = vsyncadd [#allocation5], %s18
      %s21 = sshll.u32 [#allocation4], 4
      %s22 = int_to_ptr.vmem [resolvable:$true] %s21
      %24 = dma.hbm_to_vmem [thread:$0]  %s0, 1152, %s22, [#allocation5]
    $region5: #{tpu_custom_call.1} parent=1 // pred_fallthru
      _
    // Predicated region
    $region6: #{tpu_custom_call.1} parent=1 // pred_check
      _
    $region7: #{tpu_custom_call.1} parent=1 // pred_check_branch
      %26 = sbr.rel (0) target = $region9
    $region8: #{tpu_custom_call.1} parent=1 // pred_region
      _
    $region9: #{tpu_custom_call.1} parent=1 // pred_fallthru
      _
    // Predicated region
    $region10: #{tpu_custom_call.1} parent=1 // pred_check
      _
    $region11: #{tpu_custom_call.1} parent=1 // pred_check_branch
      %28 = sbr.rel (0) target = $region13
    $region12: #{tpu_custom_call.1} parent=1 // pred_region
      _
    $region13: #{tpu_custom_call.1} parent=1 // pred_fallthru
      _
    // Predicated region
    $region14: #{tpu_custom_call.1} parent=1 // pred_check
      _
    $region15: #{tpu_custom_call.1} parent=1 // pred_check_branch
      %30 = sbr.rel (0) target = $region17
    $region16: #{tpu_custom_call.1} parent=1 // pred_region
      _
    $region17: #{tpu_custom_call.1} parent=1 // pred_fallthru
      _
    // Predicated region
    $region18: #{tpu_custom_call.1} parent=1 // pred_check
      _
    $region19: #{tpu_custom_call.1} parent=1 // pred_check_branch
      %32 = sbr.rel (0) target = $region21
    $region20: #{tpu_custom_call.1} parent=1 // pred_region
      _
    $region21: #{tpu_custom_call.1} parent=1 // pred_fallthru
      _
    // Predicated region
    $region22: #{tpu_custom_call.1} parent=1 // pred_check
      _
    $region23: #{tpu_custom_call.1} parent=1 // pred_check_branch
      %34 = sbr.rel (0) target = $region25
    $region24: #{tpu_custom_call.1} parent=1 // pred_region
      _
    $region25: #{tpu_custom_call.1} parent=1 // pred_fallthru
      _
    // Predicated region
    $region26: #{tpu_custom_call.1} parent=1 // pred_check
      _
    $region27: #{tpu_custom_call.1} parent=1 // pred_check_branch
      %36 = sbr.rel (0) target = $region29
    $region28: #{tpu_custom_call.1} parent=1 // pred_region
      _
    $region29: #{tpu_custom_call.1} parent=1 // pred_fallthru
      _
    // Predicated region
    $region30: #{tpu_custom_call.1} parent=1 // pred_check
      _
    $region31: #{tpu_custom_call.1} parent=1 // pred_check_branch
      %38 = sbr.rel (0) target = $region33
    $region32: #{tpu_custom_call.1} parent=1 // pred_region
      _
    $region33: #{tpu_custom_call.1} parent=1 // pred_fallthru
      _
    // Predicated region
    $region34: #{tpu_custom_call.1} parent=1 // pred_check
      _
    $region35: #{tpu_custom_call.1} parent=1 // pred_check_branch
      %40 = sbr.rel (0) target = $region37
    $region36: #{tpu_custom_call.1} parent=1 // pred_region
      %41 = dma.done [#allocation5], 1152
    $region37: #{tpu_custom_call.1} parent=1 // pred_fallthru
      _
    %v42 = vld [vmem:[%s1] sm:$0xff]
    %v43 = vld [vmem:[%s1 + $0x8] sm:$0xff]
    %v46 = vlaneseq
    %v47 = vshrl.u32 %v46, 7
    %v48 = vsub.s32 0, %v47
    %v49 = vrot.slane %v42, %v48
    %v50 = vlaneseq
    %v51 = vshrl.u32 %v50, 7
    %v52 = vsub.s32 1, %v51
    %v53 = vrot.slane %v42, %v52
    %v54 = vlaneseq
    %v55 = vshrl.u32 %v54, 7
    %v56 = vsub.s32 2, %v55
    %v57 = vrot.slane %v42, %v56
    %v58 = vlaneseq
    %v59 = vshrl.u32 %v58, 7
    %v60 = vsub.s32 3, %v59
    %v61 = vrot.slane %v42, %v60
    %v62 = vlaneseq
    %v63 = vshrl.u32 %v62, 7
    %v64 = vsub.s32 4, %v63
    %v65 = vrot.slane %v42, %v64
    %v66 = vlaneseq
    %v67 = vshrl.u32 %v66, 7
    %v68 = vsub.s32 5, %v67
    %v69 = vrot.slane %v42, %v68
    %v70 = vlaneseq
    %v71 = vshrl.u32 %v70, 7
    %v72 = vsub.s32 6, %v71
    %v73 = vrot.slane %v42, %v72
    %v74 = vlaneseq
    %v75 = vshrl.u32 %v74, 7
    %v76 = vsub.s32 7, %v75
    %v77 = vrot.slane %v42, %v76
    %v78 = vlaneseq
    %v79 = vshrl.u32 %v78, 7
    %v80 = vsub.s32 0, %v79
    %v81 = vrot.slane %v43, %v80
    %v82 = vlaneseq
    %v83 = vshrl.u32 %v82, 7
    %v84 = vsub.s32 1, %v83
    %v85 = vrot.slane %v43, %v84
    %v86 = vlaneseq
    %v87 = vshrl.u32 %v86, 7
    %v88 = vsub.s32 2, %v87
    %v89 = vrot.slane %v43, %v88
    %v90 = vlaneseq
    %v91 = vshrl.u32 %v90, 7
    %v92 = vsub.s32 3, %v91
    %v93 = vrot.slane %v43, %v92
    %v94 = vlaneseq
    %v95 = vshrl.u32 %v94, 7
    %v96 = vsub.s32 4, %v95
    %v97 = vrot.slane %v43, %v96
    %v98 = vlaneseq
    %v99 = vshrl.u32 %v98, 7
    %v100 = vsub.s32 5, %v99
    %v101 = vrot.slane %v43, %v100
    %v102 = vlaneseq
    %v103 = vshrl.u32 %v102, 7
    %v104 = vsub.s32 6, %v103
    %v105 = vrot.slane %v43, %v104
    %v106 = vlaneseq
    %v107 = vshrl.u32 %v106, 7
    %v108 = vsub.s32 7, %v107
    %v109 = vrot.slane %v43, %v108
    %p126 = scmp.eq.s32.totalorder 0, 0
    // Predicated region
    $region38: #{tpu_custom_call.1} parent=1 // pred_check
      %p127 = pneg %p126
    $region39: #{tpu_custom_call.1} parent=1 // pred_check_branch
      %129 = sbr.rel (%p127) target = $region41
    $region40: #{tpu_custom_call.1} parent=1 // pred_region
      %130 = vst [vmem:[#allocation2] sm:$0xff] 0.0
      %131 = vst [vmem:[#allocation2 + $0x88] sm:$0xff] 0.0
      %132 = vst [vmem:[#allocation3] sm:$0xff] 0.0
      %133 = vst [vmem:[#allocation3 + $0x8] sm:$0xff] 0.0
      %134 = vst [vmem:[#allocation3 + $0x10] sm:$0xff] 0.0
      %135 = vst [vmem:[#allocation3 + $0x18] sm:$0xff] 0.0
      %136 = vst [vmem:[#allocation3 + $0x20] sm:$0xff] 0.0
      %137 = vst [vmem:[#allocation3 + $0x28] sm:$0xff] 0.0
      %138 = vst [vmem:[#allocation3 + $0x30] sm:$0xff] 0.0
      %139 = vst [vmem:[#allocation3 + $0x38] sm:$0xff] 0.0
      %140 = vst [vmem:[#allocation3 + $0x40] sm:$0xff] 0.0
      %141 = vst [vmem:[#allocation3 + $0x48] sm:$0xff] 0.0
      %142 = vst [vmem:[#allocation3 + $0x50] sm:$0xff] 0.0
      %143 = vst [vmem:[#allocation3 + $0x58] sm:$0xff] 0.0
      %144 = vst [vmem:[#allocation3 + $0x60] sm:$0xff] 0.0
      %145 = vst [vmem:[#allocation3 + $0x68] sm:$0xff] 0.0
      %146 = vst [vmem:[#allocation3 + $0x70] sm:$0xff] 0.0
      %147 = vst [vmem:[#allocation3 + $0x78] sm:$0xff] 0.0
      %148 = vst [vmem:[#allocation3 + $0x80] sm:$0xff] 0.0
      %149 = vst [vmem:[#allocation3 + $0x88] sm:$0xff] 0.0
      %150 = vst [vmem:[#allocation3 + $0x90] sm:$0xff] 0.0
      %151 = vst [vmem:[#allocation3 + $0x98] sm:$0xff] 0.0
      %152 = vst [vmem:[#allocation3 + $0xa0] sm:$0xff] 0.0
      %153 = vst [vmem:[#allocation3 + $0xa8] sm:$0xff] 0.0
      %154 = vst [vmem:[#allocation3 + $0xb0] sm:$0xff] 0.0
      %155 = vst [vmem:[#allocation3 + $0xb8] sm:$0xff] 0.0
      %156 = vst [vmem:[#allocation3 + $0xc0] sm:$0xff] 0.0
      %157 = vst [vmem:[#allocation3 + $0xc8] sm:$0xff] 0.0
      %158 = vst [vmem:[#allocation3 + $0xd0] sm:$0xff] 0.0
      %159 = vst [vmem:[#allocation3 + $0xd8] sm:$0xff] 0.0
      %160 = vst [vmem:[#allocation3 + $0xe0] sm:$0xff] 0.0
      %161 = vst [vmem:[#allocation3 + $0xe8] sm:$0xff] 0.0
      %162 = vst [vmem:[#allocation3 + $0xf0] sm:$0xff] 0.0
      %163 = vst [vmem:[#allocation3 + $0xf8] sm:$0xff] 0.0
      %164 = vst [vmem:[#allocation3 + $0x100] sm:$0xff] 0.0
      %165 = vst [vmem:[#allocation3 + $0x108] sm:$0xff] 0.0
      %166 = vst [vmem:[#allocation3 + $0x110] sm:$0xff] 0.0
      %167 = vst [vmem:[#allocation3 + $0x118] sm:$0xff] 0.0
      %168 = vst [vmem:[#allocation3 + $0x120] sm:$0xff] 0.0
      %169 = vst [vmem:[#allocation3 + $0x128] sm:$0xff] 0.0
      %170 = vst [vmem:[#allocation3 + $0x130] sm:$0xff] 0.0
      %171 = vst [vmem:[#allocation3 + $0x138] sm:$0xff] 0.0
      %172 = vst [vmem:[#allocation3 + $0x140] sm:$0xff] 0.0
      %173 = vst [vmem:[#allocation3 + $0x148] sm:$0xff] 0.0
      %174 = vst [vmem:[#allocation3 + $0x150] sm:$0xff] 0.0
      %175 = vst [vmem:[#allocation3 + $0x158] sm:$0xff] 0.0
      %176 = vst [vmem:[#allocation3 + $0x160] sm:$0xff] 0.0
      %177 = vst [vmem:[#allocation3 + $0x168] sm:$0xff] 0.0
      %178 = vst [vmem:[#allocation3 + $0x170] sm:$0xff] 0.0
      %179 = vst [vmem:[#allocation3 + $0x178] sm:$0xff] 0.0
      %180 = vst [vmem:[#allocation3 + $0x180] sm:$0xff] 0.0
      %181 = vst [vmem:[#allocation3 + $0x188] sm:$0xff] 0.0
      %182 = vst [vmem:[#allocation3 + $0x190] sm:$0xff] 0.0
      %183 = vst [vmem:[#allocation3 + $0x198] sm:$0xff] 0.0
      %184 = vst [vmem:[#allocation3 + $0x1a0] sm:$0xff] 0.0
      %185 = vst [vmem:[#allocation3 + $0x1a8] sm:$0xff] 0.0
      %186 = vst [vmem:[#allocation3 + $0x1b0] sm:$0xff] 0.0
      %187 = vst [vmem:[#allocation3 + $0x1b8] sm:$0xff] 0.0
      %188 = vst [vmem:[#allocation3 + $0x1c0] sm:$0xff] 0.0
      %189 = vst [vmem:[#allocation3 + $0x1c8] sm:$0xff] 0.0
      %190 = vst [vmem:[#allocation3 + $0x1d0] sm:$0xff] 0.0
      %191 = vst [vmem:[#allocation3 + $0x1d8] sm:$0xff] 0.0
      %192 = vst [vmem:[#allocation3 + $0x1e0] sm:$0xff] 0.0
      %193 = vst [vmem:[#allocation3 + $0x1e8] sm:$0xff] 0.0
      %194 = vst [vmem:[#allocation3 + $0x1f0] sm:$0xff] 0.0
      %195 = vst [vmem:[#allocation3 + $0x1f8] sm:$0xff] 0.0
      %196 = vst [vmem:[#allocation3 + $0x200] sm:$0xff] 0.0
      %197 = vst [vmem:[#allocation3 + $0x208] sm:$0xff] 0.0
      %198 = vst [vmem:[#allocation3 + $0x210] sm:$0xff] 0.0
      %199 = vst [vmem:[#allocation3 + $0x218] sm:$0xff] 0.0
      %200 = vst [vmem:[#allocation3 + $0x220] sm:$0xff] 0.0
      %201 = vst [vmem:[#allocation3 + $0x228] sm:$0xff] 0.0
      %202 = vst [vmem:[#allocation3 + $0x230] sm:$0xff] 0.0
      %203 = vst [vmem:[#allocation3 + $0x238] sm:$0xff] 0.0
      %204 = vst [vmem:[#allocation3 + $0x240] sm:$0xff] 0.0
      %205 = vst [vmem:[#allocation3 + $0x248] sm:$0xff] 0.0
      %206 = vst [vmem:[#allocation3 + $0x250] sm:$0xff] 0.0
      %207 = vst [vmem:[#allocation3 + $0x258] sm:$0xff] 0.0
      %208 = vst [vmem:[#allocation3 + $0x260] sm:$0xff] 0.0
      %209 = vst [vmem:[#allocation3 + $0x268] sm:$0xff] 0.0
      %210 = vst [vmem:[#allocation3 + $0x270] sm:$0xff] 0.0
      %211 = vst [vmem:[#allocation3 + $0x278] sm:$0xff] 0.0
      %212 = vst [vmem:[#allocation3 + $0x280] sm:$0xff] 0.0
      %213 = vst [vmem:[#allocation3 + $0x288] sm:$0xff] 0.0
      %214 = vst [vmem:[#allocation3 + $0x290] sm:$0xff] 0.0
      %215 = vst [vmem:[#allocation3 + $0x298] sm:$0xff] 0.0
      %216 = vst [vmem:[#allocation3 + $0x2a0] sm:$0xff] 0.0
      %217 = vst [vmem:[#allocation3 + $0x2a8] sm:$0xff] 0.0
      %218 = vst [vmem:[#allocation3 + $0x2b0] sm:$0xff] 0.0
      %219 = vst [vmem:[#allocation3 + $0x2b8] sm:$0xff] 0.0
      %220 = vst [vmem:[#allocation3 + $0x2c0] sm:$0xff] 0.0
      %221 = vst [vmem:[#allocation3 + $0x2c8] sm:$0xff] 0.0
      %222 = vst [vmem:[#allocation3 + $0x2d0] sm:$0xff] 0.0
      %223 = vst [vmem:[#allocation3 + $0x2d8] sm:$0xff] 0.0
      %224 = vst [vmem:[#allocation3 + $0x2e0] sm:$0xff] 0.0
      %225 = vst [vmem:[#allocation3 + $0x2e8] sm:$0xff] 0.0
      %226 = vst [vmem:[#allocation3 + $0x2f0] sm:$0xff] 0.0
      %227 = vst [vmem:[#allocation3 + $0x2f8] sm:$0xff] 0.0
      %228 = vst [vmem:[#allocation3 + $0x300] sm:$0xff] 0.0
      %229 = vst [vmem:[#allocation3 + $0x308] sm:$0xff] 0.0
      %230 = vst [vmem:[#allocation3 + $0x310] sm:$0xff] 0.0
      %231 = vst [vmem:[#allocation3 + $0x318] sm:$0xff] 0.0
      %232 = vst [vmem:[#allocation3 + $0x320] sm:$0xff] 0.0
      %233 = vst [vmem:[#allocation3 + $0x328] sm:$0xff] 0.0
      %234 = vst [vmem:[#allocation3 + $0x330] sm:$0xff] 0.0
      %235 = vst [vmem:[#allocation3 + $0x338] sm:$0xff] 0.0
      %236 = vst [vmem:[#allocation3 + $0x340] sm:$0xff] 0.0
      %237 = vst [vmem:[#allocation3 + $0x348] sm:$0xff] 0.0
      %238 = vst [vmem:[#allocation3 + $0x350] sm:$0xff] 0.0
      %239 = vst [vmem:[#allocation3 + $0x358] sm:$0xff] 0.0
      %240 = vst [vmem:[#allocation3 + $0x360] sm:$0xff] 0.0
      %241 = vst [vmem:[#allocation3 + $0x368] sm:$0xff] 0.0
      %242 = vst [vmem:[#allocation3 + $0x370] sm:$0xff] 0.0
      %243 = vst [vmem:[#allocation3 + $0x378] sm:$0xff] 0.0
      %244 = vst [vmem:[#allocation3 + $0x380] sm:$0xff] 0.0
      %245 = vst [vmem:[#allocation3 + $0x388] sm:$0xff] 0.0
      %246 = vst [vmem:[#allocation3 + $0x390] sm:$0xff] 0.0
      %247 = vst [vmem:[#allocation3 + $0x398] sm:$0xff] 0.0
      %248 = vst [vmem:[#allocation3 + $0x3a0] sm:$0xff] 0.0
      %249 = vst [vmem:[#allocation3 + $0x3a8] sm:$0xff] 0.0
      %250 = vst [vmem:[#allocation3 + $0x3b0] sm:$0xff] 0.0
      %251 = vst [vmem:[#allocation3 + $0x3b8] sm:$0xff] 0.0
      %252 = vst [vmem:[#allocation3 + $0x3c0] sm:$0xff] 0.0
      %253 = vst [vmem:[#allocation3 + $0x3c8] sm:$0xff] 0.0
      %254 = vst [vmem:[#allocation3 + $0x3d0] sm:$0xff] 0.0
      %255 = vst [vmem:[#allocation3 + $0x3d8] sm:$0xff] 0.0
      %256 = vst [vmem:[#allocation3 + $0x3e0] sm:$0xff] 0.0
      %257 = vst [vmem:[#allocation3 + $0x3e8] sm:$0xff] 0.0
      %258 = vst [vmem:[#allocation3 + $0x3f0] sm:$0xff] 0.0
      %259 = vst [vmem:[#allocation3 + $0x3f8] sm:$0xff] 0.0
      %260 = vst [vmem:[#allocation3 + $0x400] sm:$0xff] 0.0
      %261 = vst [vmem:[#allocation3 + $0x408] sm:$0xff] 0.0
      %262 = vst [vmem:[#allocation3 + $0x410] sm:$0xff] 0.0
      %263 = vst [vmem:[#allocation3 + $0x418] sm:$0xff] 0.0
      %264 = vst [vmem:[#allocation3 + $0x420] sm:$0xff] 0.0
      %265 = vst [vmem:[#allocation3 + $0x428] sm:$0xff] 0.0
      %266 = vst [vmem:[#allocation3 + $0x430] sm:$0xff] 0.0
      %267 = vst [vmem:[#allocation3 + $0x438] sm:$0xff] 0.0
      %268 = vst [vmem:[#allocation3 + $0x440] sm:$0xff] 0.0
      %269 = vst [vmem:[#allocation3 + $0x448] sm:$0xff] 0.0
      %270 = vst [vmem:[#allocation3 + $0x450] sm:$0xff] 0.0
      %271 = vst [vmem:[#allocation3 + $0x458] sm:$0xff] 0.0
      %272 = vst [vmem:[#allocation3 + $0x460] sm:$0xff] 0.0
      %273 = vst [vmem:[#allocation3 + $0x468] sm:$0xff] 0.0
      %274 = vst [vmem:[#allocation3 + $0x470] sm:$0xff] 0.0
      %275 = vst [vmem:[#allocation3 + $0x478] sm:$0xff] 0.0
      %276 = vst [vmem:[#allocation3 + $0x480] sm:$0xff] 0.0
      %277 = vst [vmem:[#allocation3 + $0x488] sm:$0xff] 0.0
      %278 = vst [vmem:[#allocation3 + $0x490] sm:$0xff] 0.0
      %279 = vst [vmem:[#allocation3 + $0x498] sm:$0xff] 0.0
      %280 = vst [vmem:[#allocation3 + $0x4a0] sm:$0xff] 0.0
      %281 = vst [vmem:[#allocation3 + $0x4a8] sm:$0xff] 0.0
      %282 = vst [vmem:[#allocation3 + $0x4b0] sm:$0xff] 0.0
      %283 = vst [vmem:[#allocation3 + $0x4b8] sm:$0xff] 0.0
      %284 = vst [vmem:[#allocation3 + $0x4c0] sm:$0xff] 0.0
      %285 = vst [vmem:[#allocation3 + $0x4c8] sm:$0xff] 0.0
      %286 = vst [vmem:[#allocation3 + $0x4d0] sm:$0xff] 0.0
      %287 = vst [vmem:[#allocation3 + $0x4d8] sm:$0xff] 0.0
      %288 = vst [vmem:[#allocation3 + $0x4e0] sm:$0xff] 0.0
      %289 = vst [vmem:[#allocation3 + $0x4e8] sm:$0xff] 0.0
      %290 = vst [vmem:[#allocation3 + $0x4f0] sm:$0xff] 0.0
      %291 = vst [vmem:[#allocation3 + $0x4f8] sm:$0xff] 0.0
      %292 = vst [vmem:[#allocation3 + $0x500] sm:$0xff] 0.0
      %293 = vst [vmem:[#allocation3 + $0x508] sm:$0xff] 0.0
      %294 = vst [vmem:[#allocation3 + $0x510] sm:$0xff] 0.0
      %295 = vst [vmem:[#allocation3 + $0x518] sm:$0xff] 0.0
      %296 = vst [vmem:[#allocation3 + $0x520] sm:$0xff] 0.0
      %297 = vst [vmem:[#allocation3 + $0x528] sm:$0xff] 0.0
      %298 = vst [vmem:[#allocation3 + $0x530] sm:$0xff] 0.0
      %299 = vst [vmem:[#allocation3 + $0x538] sm:$0xff] 0.0
      %300 = vst [vmem:[#allocation3 + $0x540] sm:$0xff] 0.0
      %301 = vst [vmem:[#allocation3 + $0x548] sm:$0xff] 0.0
      %302 = vst [vmem:[#allocation3 + $0x550] sm:$0xff] 0.0
      %303 = vst [vmem:[#allocation3 + $0x558] sm:$0xff] 0.0
      %304 = vst [vmem:[#allocation3 + $0x560] sm:$0xff] 0.0
      %305 = vst [vmem:[#allocation3 + $0x568] sm:$0xff] 0.0
      %306 = vst [vmem:[#allocation3 + $0x570] sm:$0xff] 0.0
      %307 = vst [vmem:[#allocation3 + $0x578] sm:$0xff] 0.0
      %308 = vst [vmem:[#allocation3 + $0x580] sm:$0xff] 0.0
      %309 = vst [vmem:[#allocation3 + $0x588] sm:$0xff] 0.0
      %310 = vst [vmem:[#allocation3 + $0x590] sm:$0xff] 0.0
      %311 = vst [vmem:[#allocation3 + $0x598] sm:$0xff] 0.0
      %312 = vst [vmem:[#allocation3 + $0x5a0] sm:$0xff] 0.0
      %313 = vst [vmem:[#allocation3 + $0x5a8] sm:$0xff] 0.0
      %314 = vst [vmem:[#allocation3 + $0x5b0] sm:$0xff] 0.0
      %315 = vst [vmem:[#allocation3 + $0x5b8] sm:$0xff] 0.0
      %316 = vst [vmem:[#allocation3 + $0x5c0] sm:$0xff] 0.0
      %317 = vst [vmem:[#allocation3 + $0x5c8] sm:$0xff] 0.0
      %318 = vst [vmem:[#allocation3 + $0x5d0] sm:$0xff] 0.0
      %319 = vst [vmem:[#allocation3 + $0x5d8] sm:$0xff] 0.0
      %320 = vst [vmem:[#allocation3 + $0x5e0] sm:$0xff] 0.0
      %321 = vst [vmem:[#allocation3 + $0x5e8] sm:$0xff] 0.0
      %322 = vst [vmem:[#allocation3 + $0x5f0] sm:$0xff] 0.0
      %323 = vst [vmem:[#allocation3 + $0x5f8] sm:$0xff] 0.0
      %324 = vst [vmem:[#allocation3 + $0x600] sm:$0xff] 0.0
      %325 = vst [vmem:[#allocation3 + $0x608] sm:$0xff] 0.0
      %326 = vst [vmem:[#allocation3 + $0x610] sm:$0xff] 0.0
      %327 = vst [vmem:[#allocation3 + $0x618] sm:$0xff] 0.0
      %328 = vst [vmem:[#allocation3 + $0x620] sm:$0xff] 0.0
      %329 = vst [vmem:[#allocation3 + $0x628] sm:$0xff] 0.0
      %330 = vst [vmem:[#allocation3 + $0x630] sm:$0xff] 0.0
      %331 = vst [vmem:[#allocation3 + $0x638] sm:$0xff] 0.0
      %332 = vst [vmem:[#allocation3 + $0x640] sm:$0xff] 0.0
      %333 = vst [vmem:[#allocation3 + $0x648] sm:$0xff] 0.0
      %334 = vst [vmem:[#allocation3 + $0x650] sm:$0xff] 0.0
      %335 = vst [vmem:[#allocation3 + $0x658] sm:$0xff] 0.0
      %336 = vst [vmem:[#allocation3 + $0x660] sm:$0xff] 0.0
      %337 = vst [vmem:[#allocation3 + $0x668] sm:$0xff] 0.0
      %338 = vst [vmem:[#allocation3 + $0x670] sm:$0xff] 0.0
      %339 = vst [vmem:[#allocation3 + $0x678] sm:$0xff] 0.0
      %340 = vst [vmem:[#allocation3 + $0x680] sm:$0xff] 0.0
      %341 = vst [vmem:[#allocation3 + $0x688] sm:$0xff] 0.0
      %342 = vst [vmem:[#allocation3 + $0x690] sm:$0xff] 0.0
      %343 = vst [vmem:[#allocation3 + $0x698] sm:$0xff] 0.0
      %344 = vst [vmem:[#allocation3 + $0x6a0] sm:$0xff] 0.0
      %345 = vst [vmem:[#allocation3 + $0x6a8] sm:$0xff] 0.0
      %346 = vst [vmem:[#allocation3 + $0x6b0] sm:$0xff] 0.0
      %347 = vst [vmem:[#allocation3 + $0x6b8] sm:$0xff] 0.0
      %348 = vst [vmem:[#allocation3 + $0x6c0] sm:$0xff] 0.0
      %349 = vst [vmem:[#allocation3 + $0x6c8] sm:$0xff] 0.0
      %350 = vst [vmem:[#allocation3 + $0x6d0] sm:$0xff] 0.0
      %351 = vst [vmem:[#allocation3 + $0x6d8] sm:$0xff] 0.0
      %352 = vst [vmem:[#allocation3 + $0x6e0] sm:$0xff] 0.0
      %353 = vst [vmem:[#allocation3 + $0x6e8] sm:$0xff] 0.0
      %354 = vst [vmem:[#allocation3 + $0x6f0] sm:$0xff] 0.0
      %355 = vst [vmem:[#allocation3 + $0x6f8] sm:$0xff] 0.0
      %356 = vst [vmem:[#allocation3 + $0x700] sm:$0xff] 0.0
      %357 = vst [vmem:[#allocation3 + $0x708] sm:$0xff] 0.0
      %358 = vst [vmem:[#allocation3 + $0x710] sm:$0xff] 0.0
      %359 = vst [vmem:[#allocation3 + $0x718] sm:$0xff] 0.0
      %360 = vst [vmem:[#allocation3 + $0x720] sm:$0xff] 0.0
      %361 = vst [vmem:[#allocation3 + $0x728] sm:$0xff] 0.0
      %362 = vst [vmem:[#allocation3 + $0x730] sm:$0xff] 0.0
      %363 = vst [vmem:[#allocation3 + $0x738] sm:$0xff] 0.0
      %364 = vst [vmem:[#allocation3 + $0x740] sm:$0xff] 0.0
      %365 = vst [vmem:[#allocation3 + $0x748] sm:$0xff] 0.0
      %366 = vst [vmem:[#allocation3 + $0x750] sm:$0xff] 0.0
      %367 = vst [vmem:[#allocation3 + $0x758] sm:$0xff] 0.0
      %368 = vst [vmem:[#allocation3 + $0x760] sm:$0xff] 0.0
      %369 = vst [vmem:[#allocation3 + $0x768] sm:$0xff] 0.0
      %370 = vst [vmem:[#allocation3 + $0x770] sm:$0xff] 0.0
      %371 = vst [vmem:[#allocation3 + $0x778] sm:$0xff] 0.0
      %372 = vst [vmem:[#allocation3 + $0x780] sm:$0xff] 0.0
      %373 = vst [vmem:[#allocation3 + $0x788] sm:$0xff] 0.0
      %374 = vst [vmem:[#allocation3 + $0x790] sm:$0xff] 0.0
      %375 = vst [vmem:[#allocation3 + $0x798] sm:$0xff] 0.0
      %376 = vst [vmem:[#allocation3 + $0x7a0] sm:$0xff] 0.0
      %377 = vst [vmem:[#allocation3 + $0x7a8] sm:$0xff] 0.0
      %378 = vst [vmem:[#allocation3 + $0x7b0] sm:$0xff] 0.0
      %379 = vst [vmem:[#allocation3 + $0x7b8] sm:$0xff] 0.0
      %380 = vst [vmem:[#allocation3 + $0x7c0] sm:$0xff] 0.0
      %381 = vst [vmem:[#allocation3 + $0x7c8] sm:$0xff] 0.0
      %382 = vst [vmem:[#allocation3 + $0x7d0] sm:$0xff] 0.0
      %383 = vst [vmem:[#allocation3 + $0x7d8] sm:$0xff] 0.0
      %384 = vst [vmem:[#allocation3 + $0x7e0] sm:$0xff] 0.0
      %385 = vst [vmem:[#allocation3 + $0x7e8] sm:$0xff] 0.0
      %386 = vst [vmem:[#allocation3 + $0x7f0] sm:$0xff] 0.0
      %387 = vst [vmem:[#allocation3 + $0x7f8] sm:$0xff] 0.0
      %388 = vst [vmem:[#allocation3 + $0x800] sm:$0xff] 0.0
      %389 = vst [vmem:[#allocation3 + $0x808] sm:$0xff] 0.0
      %390 = vst [vmem:[#allocation3 + $0x810] sm:$0xff] 0.0
      %391 = vst [vmem:[#allocation3 + $0x818] sm:$0xff] 0.0
      %392 = vst [vmem:[#allocation3 + $0x820] sm:$0xff] 0.0
      %393 = vst [vmem:[#allocation3 + $0x828] sm:$0xff] 0.0
      %394 = vst [vmem:[#allocation3 + $0x830] sm:$0xff] 0.0
      %395 = vst [vmem:[#allocation3 + $0x838] sm:$0xff] 0.0
      %396 = vst [vmem:[#allocation3 + $0x840] sm:$0xff] 0.0
      %397 = vst [vmem:[#allocation3 + $0x848] sm:$0xff] 0.0
      %398 = vst [vmem:[#allocation3 + $0x850] sm:$0xff] 0.0
      %399 = vst [vmem:[#allocation3 + $0x858] sm:$0xff] 0.0
      %400 = vst [vmem:[#allocation3 + $0x860] sm:$0xff] 0.0
      %401 = vst [vmem:[#allocation3 + $0x868] sm:$0xff] 0.0
      %402 = vst [vmem:[#allocation3 + $0x870] sm:$0xff] 0.0
      %403 = vst [vmem:[#allocation3 + $0x878] sm:$0xff] 0.0
      %404 = vst [vmem:[#allocation3 + $0x880] sm:$0xff] 0.0
      %405 = vst [vmem:[#allocation3 + $0x888] sm:$0xff] 0.0
      %406 = vst [vmem:[#allocation3 + $0x890] sm:$0xff] 0.0
      %407 = vst [vmem:[#allocation3 + $0x898] sm:$0xff] 0.0
      %408 = vst [vmem:[#allocation3 + $0x8a0] sm:$0xff] 0.0
      %409 = vst [vmem:[#allocation3 + $0x8a8] sm:$0xff] 0.0
      %410 = vst [vmem:[#allocation3 + $0x8b0] sm:$0xff] 0.0
      %411 = vst [vmem:[#allocation3 + $0x8b8] sm:$0xff] 0.0
      %412 = vst [vmem:[#allocation3 + $0x8c0] sm:$0xff] 0.0
      %413 = vst [vmem:[#allocation3 + $0x8c8] sm:$0xff] 0.0
      %414 = vst [vmem:[#allocation3 + $0x8d0] sm:$0xff] 0.0
      %415 = vst [vmem:[#allocation3 + $0x8d8] sm:$0xff] 0.0
      %416 = vst [vmem:[#allocation3 + $0x8e0] sm:$0xff] 0.0
      %417 = vst [vmem:[#allocation3 + $0x8e8] sm:$0xff] 0.0
      %418 = vst [vmem:[#allocation3 + $0x8f0] sm:$0xff] 0.0
      %419 = vst [vmem:[#allocation3 + $0x8f8] sm:$0xff] 0.0
      %420 = vst [vmem:[#allocation3 + $0x900] sm:$0xff] 0.0
      %421 = vst [vmem:[#allocation3 + $0x908] sm:$0xff] 0.0
      %422 = vst [vmem:[#allocation3 + $0x910] sm:$0xff] 0.0
      %423 = vst [vmem:[#allocation3 + $0x918] sm:$0xff] 0.0
      %424 = vst [vmem:[#allocation3 + $0x920] sm:$0xff] 0.0
      %425 = vst [vmem:[#allocation3 + $0x928] sm:$0xff] 0.0
      %426 = vst [vmem:[#allocation3 + $0x930] sm:$0xff] 0.0
      %427 = vst [vmem:[#allocation3 + $0x938] sm:$0xff] 0.0
      %428 = vst [vmem:[#allocation3 + $0x940] sm:$0xff] 0.0
      %429 = vst [vmem:[#allocation3 + $0x948] sm:$0xff] 0.0
      %430 = vst [vmem:[#allocation3 + $0x950] sm:$0xff] 0.0
      %431 = vst [vmem:[#allocation3 + $0x958] sm:$0xff] 0.0
      %432 = vst [vmem:[#allocation3 + $0x960] sm:$0xff] 0.0
      %433 = vst [vmem:[#allocation3 + $0x968] sm:$0xff] 0.0
      %434 = vst [vmem:[#allocation3 + $0x970] sm:$0xff] 0.0
      %435 = vst [vmem:[#allocation3 + $0x978] sm:$0xff] 0.0
      %436 = vst [vmem:[#allocation3 + $0x980] sm:$0xff] 0.0
      %437 = vst [vmem:[#allocation3 + $0x988] sm:$0xff] 0.0
      %438 = vst [vmem:[#allocation3 + $0x990] sm:$0xff] 0.0
      %439 = vst [vmem:[#allocation3 + $0x998] sm:$0xff] 0.0
      %440 = vst [vmem:[#allocation3 + $0x9a0] sm:$0xff] 0.0
      %441 = vst [vmem:[#allocation3 + $0x9a8] sm:$0xff] 0.0
      %442 = vst [vmem:[#allocation3 + $0x9b0] sm:$0xff] 0.0
      %443 = vst [vmem:[#allocation3 + $0x9b8] sm:$0xff] 0.0
      %444 = vst [vmem:[#allocation3 + $0x9c0] sm:$0xff] 0.0
      %445 = vst [vmem:[#allocation3 + $0x9c8] sm:$0xff] 0.0
      %446 = vst [vmem:[#allocation3 + $0x9d0] sm:$0xff] 0.0
      %447 = vst [vmem:[#allocation3 + $0x9d8] sm:$0xff] 0.0
      %448 = vst [vmem:[#allocation3 + $0x9e0] sm:$0xff] 0.0
      %449 = vst [vmem:[#allocation3 + $0x9e8] sm:$0xff] 0.0
      %450 = vst [vmem:[#allocation3 + $0x9f0] sm:$0xff] 0.0
      %451 = vst [vmem:[#allocation3 + $0x9f8] sm:$0xff] 0.0
      %452 = vst [vmem:[#allocation3 + $0xa00] sm:$0xff] 0.0
      %453 = vst [vmem:[#allocation3 + $0xa08] sm:$0xff] 0.0
      %454 = vst [vmem:[#allocation3 + $0xa10] sm:$0xff] 0.0
      %455 = vst [vmem:[#allocation3 + $0xa18] sm:$0xff] 0.0
      %456 = vst [vmem:[#allocation3 + $0xa20] sm:$0xff] 0.0
      %457 = vst [vmem:[#allocation3 + $0xa28] sm:$0xff] 0.0
      %458 = vst [vmem:[#allocation3 + $0xa30] sm:$0xff] 0.0
      %459 = vst [vmem:[#allocation3 + $0xa38] sm:$0xff] 0.0
      %460 = vst [vmem:[#allocation3 + $0xa40] sm:$0xff] 0.0
      %461 = vst [vmem:[#allocation3 + $0xa48] sm:$0xff] 0.0
      %462 = vst [vmem:[#allocation3 + $0xa50] sm:$0xff] 0.0
      %463 = vst [vmem:[#allocation3 + $0xa58] sm:$0xff] 0.0
      %464 = vst [vmem:[#allocation3 + $0xa60] sm:$0xff] 0.0
      %465 = vst [vmem:[#allocation3 + $0xa68] sm:$0xff] 0.0
      %466 = vst [vmem:[#allocation3 + $0xa70] sm:$0xff] 0.0
      %467 = vst [vmem:[#allocation3 + $0xa78] sm:$0xff] 0.0
      %468 = vst [vmem:[#allocation3 + $0xa80] sm:$0xff] 0.0
      %469 = vst [vmem:[#allocation3 + $0xa88] sm:$0xff] 0.0
      %470 = vst [vmem:[#allocation3 + $0xa90] sm:$0xff] 0.0
      %471 = vst [vmem:[#allocation3 + $0xa98] sm:$0xff] 0.0
      %472 = vst [vmem:[#allocation3 + $0xaa0] sm:$0xff] 0.0
      %473 = vst [vmem:[#allocation3 + $0xaa8] sm:$0xff] 0.0
      %474 = vst [vmem:[#allocation3 + $0xab0] sm:$0xff] 0.0
      %475 = vst [vmem:[#allocation3 + $0xab8] sm:$0xff] 0.0
      %476 = vst [vmem:[#allocation3 + $0xac0] sm:$0xff] 0.0
      %477 = vst [vmem:[#allocation3 + $0xac8] sm:$0xff] 0.0
      %478 = vst [vmem:[#allocation3 + $0xad0] sm:$0xff] 0.0
      %479 = vst [vmem:[#allocation3 + $0xad8] sm:$0xff] 0.0
      %480 = vst [vmem:[#allocation3 + $0xae0] sm:$0xff] 0.0
      %481 = vst [vmem:[#allocation3 + $0xae8] sm:$0xff] 0.0
      %482 = vst [vmem:[#allocation3 + $0xaf0] sm:$0xff] 0.0
      %483 = vst [vmem:[#allocation3 + $0xaf8] sm:$0xff] 0.0
      %484 = vst [vmem:[#allocation3 + $0xb00] sm:$0xff] 0.0
      %485 = vst [vmem:[#allocation3 + $0xb08] sm:$0xff] 0.0
      %486 = vst [vmem:[#allocation3 + $0xb10] sm:$0xff] 0.0
      %487 = vst [vmem:[#allocation3 + $0xb18] sm:$0xff] 0.0
      %488 = vst [vmem:[#allocation3 + $0xb20] sm:$0xff] 0.0
      %489 = vst [vmem:[#allocation3 + $0xb28] sm:$0xff] 0.0
      %490 = vst [vmem:[#allocation3 + $0xb30] sm:$0xff] 0.0
      %491 = vst [vmem:[#allocation3 + $0xb38] sm:$0xff] 0.0
      %492 = vst [vmem:[#allocation3 + $0xb40] sm:$0xff] 0.0
      %493 = vst [vmem:[#allocation3 + $0xb48] sm:$0xff] 0.0
      %494 = vst [vmem:[#allocation3 + $0xb50] sm:$0xff] 0.0
      %495 = vst [vmem:[#allocation3 + $0xb58] sm:$0xff] 0.0
      %496 = vst [vmem:[#allocation3 + $0xb60] sm:$0xff] 0.0
      %497 = vst [vmem:[#allocation3 + $0xb68] sm:$0xff] 0.0
      %498 = vst [vmem:[#allocation3 + $0xb70] sm:$0xff] 0.0
      %499 = vst [vmem:[#allocation3 + $0xb78] sm:$0xff] 0.0
      %500 = vst [vmem:[#allocation3 + $0xb80] sm:$0xff] 0.0
      %501 = vst [vmem:[#allocation3 + $0xb88] sm:$0xff] 0.0
      %502 = vst [vmem:[#allocation3 + $0xb90] sm:$0xff] 0.0
      %503 = vst [vmem:[#allocation3 + $0xb98] sm:$0xff] 0.0
      %504 = vst [vmem:[#allocation3 + $0xba0] sm:$0xff] 0.0
      %505 = vst [vmem:[#allocation3 + $0xba8] sm:$0xff] 0.0
      %506 = vst [vmem:[#allocation3 + $0xbb0] sm:$0xff] 0.0
      %507 = vst [vmem:[#allocation3 + $0xbb8] sm:$0xff] 0.0
      %508 = vst [vmem:[#allocation3 + $0xbc0] sm:$0xff] 0.0
      %509 = vst [vmem:[#allocation3 + $0xbc8] sm:$0xff] 0.0
      %510 = vst [vmem:[#allocation3 + $0xbd0] sm:$0xff] 0.0
      %511 = vst [vmem:[#allocation3 + $0xbd8] sm:$0xff] 0.0
      %512 = vst [vmem:[#allocation3 + $0xbe0] sm:$0xff] 0.0
      %513 = vst [vmem:[#allocation3 + $0xbe8] sm:$0xff] 0.0
      %514 = vst [vmem:[#allocation3 + $0xbf0] sm:$0xff] 0.0
      %515 = vst [vmem:[#allocation3 + $0xbf8] sm:$0xff] 0.0
      %516 = vst [vmem:[#allocation3 + $0xc00] sm:$0xff] 0.0
      %517 = vst [vmem:[#allocation3 + $0xc08] sm:$0xff] 0.0
      %518 = vst [vmem:[#allocation3 + $0xc10] sm:$0xff] 0.0
      %519 = vst [vmem:[#allocation3 + $0xc18] sm:$0xff] 0.0
      %520 = vst [vmem:[#allocation3 + $0xc20] sm:$0xff] 0.0
      %521 = vst [vmem:[#allocation3 + $0xc28] sm:$0xff] 0.0
      %522 = vst [vmem:[#allocation3 + $0xc30] sm:$0xff] 0.0
      %523 = vst [vmem:[#allocation3 + $0xc38] sm:$0xff] 0.0
      %524 = vst [vmem:[#allocation3 + $0xc40] sm:$0xff] 0.0
      %525 = vst [vmem:[#allocation3 + $0xc48] sm:$0xff] 0.0
      %526 = vst [vmem:[#allocation3 + $0xc50] sm:$0xff] 0.0
      %527 = vst [vmem:[#allocation3 + $0xc58] sm:$0xff] 0.0
      %528 = vst [vmem:[#allocation3 + $0xc60] sm:$0xff] 0.0
      %529 = vst [vmem:[#allocation3 + $0xc68] sm:$0xff] 0.0
      %530 = vst [vmem:[#allocation3 + $0xc70] sm:$0xff] 0.0
      %531 = vst [vmem:[#allocation3 + $0xc78] sm:$0xff] 0.0
      %532 = vst [vmem:[#allocation3 + $0xc80] sm:$0xff] 0.0
      %533 = vst [vmem:[#allocation3 + $0xc88] sm:$0xff] 0.0
      %534 = vst [vmem:[#allocation3 + $0xc90] sm:$0xff] 0.0
      %535 = vst [vmem:[#allocation3 + $0xc98] sm:$0xff] 0.0
      %536 = vst [vmem:[#allocation3 + $0xca0] sm:$0xff] 0.0
      %537 = vst [vmem:[#allocation3 + $0xca8] sm:$0xff] 0.0
      %538 = vst [vmem:[#allocation3 + $0xcb0] sm:$0xff] 0.0
      %539 = vst [vmem:[#allocation3 + $0xcb8] sm:$0xff] 0.0
      %540 = vst [vmem:[#allocation3 + $0xcc0] sm:$0xff] 0.0
      %541 = vst [vmem:[#allocation3 + $0xcc8] sm:$0xff] 0.0
      %542 = vst [vmem:[#allocation3 + $0xcd0] sm:$0xff] 0.0
      %543 = vst [vmem:[#allocation3 + $0xcd8] sm:$0xff] 0.0
      %544 = vst [vmem:[#allocation3 + $0xce0] sm:$0xff] 0.0
      %545 = vst [vmem:[#allocation3 + $0xce8] sm:$0xff] 0.0
      %546 = vst [vmem:[#allocation3 + $0xcf0] sm:$0xff] 0.0
      %547 = vst [vmem:[#allocation3 + $0xcf8] sm:$0xff] 0.0
      %548 = vst [vmem:[#allocation3 + $0xd00] sm:$0xff] 0.0
      %549 = vst [vmem:[#allocation3 + $0xd08] sm:$0xff] 0.0
      %550 = vst [vmem:[#allocation3 + $0xd10] sm:$0xff] 0.0
      %551 = vst [vmem:[#allocation3 + $0xd18] sm:$0xff] 0.0
      %552 = vst [vmem:[#allocation3 + $0xd20] sm:$0xff] 0.0
      %553 = vst [vmem:[#allocation3 + $0xd28] sm:$0xff] 0.0
      %554 = vst [vmem:[#allocation3 + $0xd30] sm:$0xff] 0.0
      %555 = vst [vmem:[#allocation3 + $0xd38] sm:$0xff] 0.0
      %556 = vst [vmem:[#allocation3 + $0xd40] sm:$0xff] 0.0
      %557 = vst [vmem:[#allocation3 + $0xd48] sm:$0xff] 0.0
      %558 = vst [vmem:[#allocation3 + $0xd50] sm:$0xff] 0.0
      %559 = vst [vmem:[#allocation3 + $0xd58] sm:$0xff] 0.0
      %560 = vst [vmem:[#allocation3 + $0xd60] sm:$0xff] 0.0
      %561 = vst [vmem:[#allocation3 + $0xd68] sm:$0xff] 0.0
      %562 = vst [vmem:[#allocation3 + $0xd70] sm:$0xff] 0.0
      %563 = vst [vmem:[#allocation3 + $0xd78] sm:$0xff] 0.0
    $region41: #{tpu_custom_call.1} parent=1 // pred_fallthru
      _
    %v564 = vld [vmem:[#allocation4] sm:$0xff]
    %v565 = vld [vmem:[#allocation4 + $0x8] sm:$0xff]
    %v566 = vld [vmem:[#allocation4 + $0x10] sm:$0xff]
    %v567 = vld [vmem:[#allocation4 + $0x18] sm:$0xff]
    %v568 = vld [vmem:[#allocation4 + $0x20] sm:$0xff]
    %v569 = vld [vmem:[#allocation4 + $0x28] sm:$0xff]
    %v570 = vld [vmem:[#allocation4 + $0x30] sm:$0xff]
    %v571 = vld [vmem:[#allocation4 + $0x38] sm:$0xff]
    %v572 = vld [vmem:[#allocation4 + $0x40] sm:$0xf]
    %v582 = vcombine.high %v564, %v564
    %v583 = vcombine.high %v565, %v565
    %v584 = vcombine.high %v566, %v566
    %v585 = vcombine.high %v567, %v567
    %v586 = vcombine.high %v568, %v568
    %v587 = vcombine.high %v569, %v569
    %v588 = vcombine.high %v570, %v570
    %v589 = vcombine.high %v571, %v571
    %590 = vrot.lane.b32.xlu0 %v564, 111
    %v591 = vpop.permute.xlu0 %590
    %592 = vrot.lane.b32.xlu0 %v582, 111
    %v593 = vpop.permute.xlu0 %592
    %594 = vrot.lane.b32.xlu0 %v565, 111
    %v595 = vpop.permute.xlu0 %594
    %596 = vrot.lane.b32.xlu0 %v583, 111
    %v597 = vpop.permute.xlu0 %596
    %598 = vrot.lane.b32.xlu0 %v566, 111
    %v599 = vpop.permute.xlu0 %598
    %600 = vrot.lane.b32.xlu0 %v584, 111
    %v601 = vpop.permute.xlu0 %600
    %602 = vrot.lane.b32.xlu0 %v567, 111
    %v603 = vpop.permute.xlu0 %602
    %604 = vrot.lane.b32.xlu0 %v585, 111
    %v605 = vpop.permute.xlu0 %604
    %606 = vrot.lane.b32.xlu0 %v568, 111
    %v607 = vpop.permute.xlu0 %606
    %608 = vrot.lane.b32.xlu0 %v586, 111
    %v609 = vpop.permute.xlu0 %608
    %610 = vrot.lane.b32.xlu0 %v569, 111
    %v611 = vpop.permute.xlu0 %610
    %612 = vrot.lane.b32.xlu0 %v587, 111
    %v613 = vpop.permute.xlu0 %612
    %614 = vrot.lane.b32.xlu0 %v570, 111
    %v615 = vpop.permute.xlu0 %614
    %616 = vrot.lane.b32.xlu0 %v588, 111
    %v617 = vpop.permute.xlu0 %616
    %618 = vrot.lane.b32.xlu0 %v571, 111
    %v619 = vpop.permute.xlu0 %618
    %620 = vrot.lane.b32.xlu0 %v589, 111
    %v621 = vpop.permute.xlu0 %620
    %622 = vrot.lane.b32.xlu0 %v572, 111
    %v623 = vpop.permute.xlu0 %622
    %vm624 = vcmask 908288
    %v625 = vsel %vm624, %v591, %v593
    %v626 = vsel %vm624, %v593, %v595
    %v627 = vsel %vm624, %v595, %v597
    %v628 = vsel %vm624, %v597, %v599
    %v629 = vsel %vm624, %v599, %v601
    %v630 = vsel %vm624, %v601, %v603
    %v631 = vsel %vm624, %v603, %v605
    %v632 = vsel %vm624, %v605, %v607
    %v633 = vsel %vm624, %v607, %v609
    %v634 = vsel %vm624, %v609, %v611
    %v635 = vsel %vm624, %v611, %v613
    %v636 = vsel %vm624, %v613, %v615
    %v637 = vsel %vm624, %v615, %v617
    %v638 = vsel %vm624, %v617, %v619
    %v639 = vsel %vm624, %v619, %v621
    %v640 = vsel %vm624, %v621, %v623
    %657 = vst [vmem:[#allocation3] sm:$0xf] %v625
    %658 = vst [vmem:[#allocation3 + $0x8] sm:$0xf] %v626
    %659 = vst [vmem:[#allocation3 + $0x10] sm:$0xf] %v627
    %660 = vst [vmem:[#allocation3 + $0x18] sm:$0xf] %v628
    %661 = vst [vmem:[#allocation3 + $0x20] sm:$0xf] %v629
    %662 = vst [vmem:[#allocation3 + $0x28] sm:$0xf] %v630
    %663 = vst [vmem:[#allocation3 + $0x30] sm:$0xf] %v631
    %664 = vst [vmem:[#allocation3 + $0x38] sm:$0xf] %v632
    %665 = vst [vmem:[#allocation3 + $0x40] sm:$0xf] %v633
    %666 = vst [vmem:[#allocation3 + $0x48] sm:$0xf] %v634
    %667 = vst [vmem:[#allocation3 + $0x50] sm:$0xf] %v635
    %668 = vst [vmem:[#allocation3 + $0x58] sm:$0xf] %v636
    %669 = vst [vmem:[#allocation3 + $0x60] sm:$0xf] %v637
    %670 = vst [vmem:[#allocation3 + $0x68] sm:$0xf] %v638
    %671 = vst [vmem:[#allocation3 + $0x70] sm:$0xf] %v639
    %672 = vst [vmem:[#allocation3 + $0x78] sm:$0xf] %v640
    %673 = vrot.lane.b32.xlu0 %v564, 110
    %v674 = vpop.permute.xlu0 %673
    %675 = vrot.lane.b32.xlu0 %v582, 110
    %v676 = vpop.permute.xlu0 %675
    %677 = vrot.lane.b32.xlu0 %v565, 110
    %v678 = vpop.permute.xlu0 %677
    %679 = vrot.lane.b32.xlu0 %v583, 110
    %v680 = vpop.permute.xlu0 %679
    %681 = vrot.lane.b32.xlu0 %v566, 110
    %v682 = vpop.permute.xlu0 %681
    %683 = vrot.lane.b32.xlu0 %v584, 110
    %v684 = vpop.permute.xlu0 %683
    %685 = vrot.lane.b32.xlu0 %v567, 110
    %v686 = vpop.permute.xlu0 %685
    %687 = vrot.lane.b32.xlu0 %v585, 110
    %v688 = vpop.permute.xlu0 %687
    %689 = vrot.lane.b32.xlu0 %v568, 110
    %v690 = vpop.permute.xlu0 %689
    %691 = vrot.lane.b32.xlu0 %v586, 110
    %v692 = vpop.permute.xlu0 %691
    %693 = vrot.lane.b32.xlu0 %v569, 110
    %v694 = vpop.permute.xlu0 %693
    %695 = vrot.lane.b32.xlu0 %v587, 110
    %v696 = vpop.permute.xlu0 %695
    %697 = vrot.lane.b32.xlu0 %v570, 110
    %v698 = vpop.permute.xlu0 %697
    %699 = vrot.lane.b32.xlu0 %v588, 110
    %v700 = vpop.permute.xlu0 %699
    %701 = vrot.lane.b32.xlu0 %v571, 110
    %v702 = vpop.permute.xlu0 %701
    %703 = vrot.lane.b32.xlu0 %v589, 110
    %v704 = vpop.permute.xlu0 %703
    %705 = vrot.lane.b32.xlu0 %v572, 110
    %v706 = vpop.permute.xlu0 %705
    %vm707 = vcmask 900096
    %v708 = vsel %vm707, %v674, %v676
    %v709 = vsel %vm707, %v676, %v678
    %v710 = vsel %vm707, %v678, %v680
    %v711 = vsel %vm707, %v680, %v682
    %v712 = vsel %vm707, %v682, %v684
    %v713 = vsel %vm707, %v684, %v686
    %v714 = vsel %vm707, %v686, %v688
    %v715 = vsel %vm707, %v688, %v690
    %v716 = vsel %vm707, %v690, %v692
    %v717 = vsel %vm707, %v692, %v694
    %v718 = vsel %vm707, %v694, %v696
    %v719 = vsel %vm707, %v696, %v698
    %v720 = vsel %vm707, %v698, %v700
    %v721 = vsel %vm707, %v700, %v702
    %v722 = vsel %vm707, %v702, %v704
    %v723 = vsel %vm707, %v704, %v706
    %740 = vst [vmem:[#allocation3 + $0x80] sm:$0xf] %v708
    %741 = vst [vmem:[#allocation3 + $0x88] sm:$0xf] %v709
    %742 = vst [vmem:[#allocation3 + $0x90] sm:$0xf] %v710
    %743 = vst [vmem:[#allocation3 + $0x98] sm:$0xf] %v711
    %744 = vst [vmem:[#allocation3 + $0xa0] sm:$0xf] %v712
    %745 = vst [vmem:[#allocation3 + $0xa8] sm:$0xf] %v713
    %746 = vst [vmem:[#allocation3 + $0xb0] sm:$0xf] %v714
    %747 = vst [vmem:[#allocation3 + $0xb8] sm:$0xf] %v715
    %748 = vst [vmem:[#allocation3 + $0xc0] sm:$0xf] %v716
    %749 = vst [vmem:[#allocation3 + $0xc8] sm:$0xf] %v717
    %750 = vst [vmem:[#allocation3 + $0xd0] sm:$0xf] %v718
    %751 = vst [vmem:[#allocation3 + $0xd8] sm:$0xf] %v719
    %752 = vst [vmem:[#allocation3 + $0xe0] sm:$0xf] %v720
    %753 = vst [vmem:[#allocation3 + $0xe8] sm:$0xf] %v721
    %754 = vst [vmem:[#allocation3 + $0xf0] sm:$0xf] %v722
    %755 = vst [vmem:[#allocation3 + $0xf8] sm:$0xf] %v723
    %756 = vrot.lane.b32.xlu0 %v564, 109
    %v757 = vpop.permute.xlu0 %756
    %758 = vrot.lane.b32.xlu0 %v582, 109
    %v759 = vpop.permute.xlu0 %758
    %760 = vrot.lane.b32.xlu0 %v565, 109
    %v761 = vpop.permute.xlu0 %760
    %762 = vrot.lane.b32.xlu0 %v583, 109
    %v763 = vpop.permute.xlu0 %762
    %764 = vrot.lane.b32.xlu0 %v566, 109
    %v765 = vpop.permute.xlu0 %764
    %766 = vrot.lane.b32.xlu0 %v584, 109
    %v767 = vpop.permute.xlu0 %766
    %768 = vrot.lane.b32.xlu0 %v567, 109
    %v769 = vpop.permute.xlu0 %768
    %770 = vrot.lane.b32.xlu0 %v585, 109
    %v771 = vpop.permute.xlu0 %770
    %772 = vrot.lane.b32.xlu0 %v568, 109
    %v773 = vpop.permute.xlu0 %772
    %774 = vrot.lane.b32.xlu0 %v586, 109
    %v775 = vpop.permute.xlu0 %774
    %776 = vrot.lane.b32.xlu0 %v569, 109
    %v777 = vpop.permute.xlu0 %776
    %778 = vrot.lane.b32.xlu0 %v587, 109
    %v779 = vpop.permute.xlu0 %778
    %780 = vrot.lane.b32.xlu0 %v570, 109
    %v781 = vpop.permute.xlu0 %780
    %782 = vrot.lane.b32.xlu0 %v588, 109
    %v783 = vpop.permute.xlu0 %782
    %784 = vrot.lane.b32.xlu0 %v571, 109
    %v785 = vpop.permute.xlu0 %784
    %786 = vrot.lane.b32.xlu0 %v589, 109
    %v787 = vpop.permute.xlu0 %786
    %788 = vrot.lane.b32.xlu0 %v572, 109
    %v789 = vpop.permute.xlu0 %788
    %vm790 = vcmask 891904
    %v791 = vsel %vm790, %v757, %v759
    %v792 = vsel %vm790, %v759, %v761
    %v793 = vsel %vm790, %v761, %v763
    %v794 = vsel %vm790, %v763, %v765
    %v795 = vsel %vm790, %v765, %v767
    %v796 = vsel %vm790, %v767, %v769
    %v797 = vsel %vm790, %v769, %v771
    %v798 = vsel %vm790, %v771, %v773
    %v799 = vsel %vm790, %v773, %v775
    %v800 = vsel %vm790, %v775, %v777
    %v801 = vsel %vm790, %v777, %v779
    %v802 = vsel %vm790, %v779, %v781
    %v803 = vsel %vm790, %v781, %v783
    %v804 = vsel %vm790, %v783, %v785
    %v805 = vsel %vm790, %v785, %v787
    %v806 = vsel %vm790, %v787, %v789
    %823 = vst [vmem:[#allocation3 + $0x100] sm:$0xf] %v791
    %824 = vst [vmem:[#allocation3 + $0x108] sm:$0xf] %v792
    %825 = vst [vmem:[#allocation3 + $0x110] sm:$0xf] %v793
    %826 = vst [vmem:[#allocation3 + $0x118] sm:$0xf] %v794
    %827 = vst [vmem:[#allocation3 + $0x120] sm:$0xf] %v795
    %828 = vst [vmem:[#allocation3 + $0x128] sm:$0xf] %v796
    %829 = vst [vmem:[#allocation3 + $0x130] sm:$0xf] %v797
    %830 = vst [vmem:[#allocation3 + $0x138] sm:$0xf] %v798
    %831 = vst [vmem:[#allocation3 + $0x140] sm:$0xf] %v799
    %832 = vst [vmem:[#allocation3 + $0x148] sm:$0xf] %v800
    %833 = vst [vmem:[#allocation3 + $0x150] sm:$0xf] %v801
    %834 = vst [vmem:[#allocation3 + $0x158] sm:$0xf] %v802
    %835 = vst [vmem:[#allocation3 + $0x160] sm:$0xf] %v803
    %836 = vst [vmem:[#allocation3 + $0x168] sm:$0xf] %v804
    %837 = vst [vmem:[#allocation3 + $0x170] sm:$0xf] %v805
    %838 = vst [vmem:[#allocation3 + $0x178] sm:$0xf] %v806
    %v839 = vld [vmem:[#allocation4] sm:$0xff]
    %v840 = vld [vmem:[#allocation4 + $0x8] sm:$0xff]
    %v841 = vld [vmem:[#allocation4 + $0x10] sm:$0xff]
    %v842 = vld [vmem:[#allocation4 + $0x18] sm:$0xff]
    %v843 = vld [vmem:[#allocation4 + $0x20] sm:$0xff]
    %v844 = vld [vmem:[#allocation4 + $0x28] sm:$0xff]
    %v845 = vld [vmem:[#allocation4 + $0x30] sm:$0xff]
    %v846 = vld [vmem:[#allocation4 + $0x38] sm:$0xff]
    %v847 = vld [vmem:[#allocation4 + $0x40] sm:$0xf]
    %v857 = vcombine.high %v839, %v839
    %v858 = vcombine.high %v840, %v840
    %v859 = vcombine.high %v841, %v841
    %v860 = vcombine.high %v842, %v842
    %v861 = vcombine.high %v843, %v843
    %v862 = vcombine.high %v844, %v844
    %v863 = vcombine.high %v845, %v845
    %v864 = vcombine.high %v846, %v846
    %865 = vrot.lane.b32.xlu0 %v839, 101
    %v866 = vpop.permute.xlu0 %865
    %867 = vrot.lane.b32.xlu0 %v857, 101
    %v868 = vpop.permute.xlu0 %867
    %869 = vrot.lane.b32.xlu0 %v840, 101
    %v870 = vpop.permute.xlu0 %869
    %871 = vrot.lane.b32.xlu0 %v858, 101
    %v872 = vpop.permute.xlu0 %871
    %873 = vrot.lane.b32.xlu0 %v841, 101
    %v874 = vpop.permute.xlu0 %873
    %875 = vrot.lane.b32.xlu0 %v859, 101
    %v876 = vpop.permute.xlu0 %875
    %877 = vrot.lane.b32.xlu0 %v842, 101
    %v878 = vpop.permute.xlu0 %877
    %879 = vrot.lane.b32.xlu0 %v860, 101
    %v880 = vpop.permute.xlu0 %879
    %881 = vrot.lane.b32.xlu0 %v843, 101
    %v882 = vpop.permute.xlu0 %881
    %883 = vrot.lane.b32.xlu0 %v861, 101
    %v884 = vpop.permute.xlu0 %883
    %885 = vrot.lane.b32.xlu0 %v844, 101
    %v886 = vpop.permute.xlu0 %885
    %887 = vrot.lane.b32.xlu0 %v862, 101
    %v888 = vpop.permute.xlu0 %887
    %889 = vrot.lane.b32.xlu0 %v845, 101
    %v890 = vpop.permute.xlu0 %889
    %891 = vrot.lane.b32.xlu0 %v863, 101
    %v892 = vpop.permute.xlu0 %891
    %893 = vrot.lane.b32.xlu0 %v846, 101
    %v894 = vpop.permute.xlu0 %893
    %895 = vrot.lane.b32.xlu0 %v864, 101
    %v896 = vpop.permute.xlu0 %895
    %897 = vrot.lane.b32.xlu0 %v847, 101
    %v898 = vpop.permute.xlu0 %897
    %vm899 = vcmask 826368
    %v900 = vsel %vm899, %v866, %v868
    %v901 = vsel %vm899, %v868, %v870
    %v902 = vsel %vm899, %v870, %v872
    %v903 = vsel %vm899, %v872, %v874
    %v904 = vsel %vm899, %v874, %v876
    %v905 = vsel %vm899, %v876, %v878
    %v906 = vsel %vm899, %v878, %v880
    %v907 = vsel %vm899, %v880, %v882
    %v908 = vsel %vm899, %v882, %v884
    %v909 = vsel %vm899, %v884, %v886
    %v910 = vsel %vm899, %v886, %v888
    %v911 = vsel %vm899, %v888, %v890
    %v912 = vsel %vm899, %v890, %v892
    %v913 = vsel %vm899, %v892, %v894
    %v914 = vsel %vm899, %v894, %v896
    %v915 = vsel %vm899, %v896, %v898
    %932 = vst [vmem:[#allocation3 + $0x180] sm:$0xf] %v900
    %933 = vst [vmem:[#allocation3 + $0x188] sm:$0xf] %v901
    %934 = vst [vmem:[#allocation3 + $0x190] sm:$0xf] %v902
    %935 = vst [vmem:[#allocation3 + $0x198] sm:$0xf] %v903
    %936 = vst [vmem:[#allocation3 + $0x1a0] sm:$0xf] %v904
    %937 = vst [vmem:[#allocation3 + $0x1a8] sm:$0xf] %v905
    %938 = vst [vmem:[#allocation3 + $0x1b0] sm:$0xf] %v906
    %939 = vst [vmem:[#allocation3 + $0x1b8] sm:$0xf] %v907
    %940 = vst [vmem:[#allocation3 + $0x1c0] sm:$0xf] %v908
    %941 = vst [vmem:[#allocation3 + $0x1c8] sm:$0xf] %v909
    %942 = vst [vmem:[#allocation3 + $0x1d0] sm:$0xf] %v910
    %943 = vst [vmem:[#allocation3 + $0x1d8] sm:$0xf] %v911
    %944 = vst [vmem:[#allocation3 + $0x1e0] sm:$0xf] %v912
    %945 = vst [vmem:[#allocation3 + $0x1e8] sm:$0xf] %v913
    %946 = vst [vmem:[#allocation3 + $0x1f0] sm:$0xf] %v914
    %947 = vst [vmem:[#allocation3 + $0x1f8] sm:$0xf] %v915
    %948 = vrot.lane.b32.xlu0 %v839, 100
    %v949 = vpop.permute.xlu0 %948
    %950 = vrot.lane.b32.xlu0 %v857, 100
    %v951 = vpop.permute.xlu0 %950
    %952 = vrot.lane.b32.xlu0 %v840, 100
    %v953 = vpop.permute.xlu0 %952
    %954 = vrot.lane.b32.xlu0 %v858, 100
    %v955 = vpop.permute.xlu0 %954
    %956 = vrot.lane.b32.xlu0 %v841, 100
    %v957 = vpop.permute.xlu0 %956
    %958 = vrot.lane.b32.xlu0 %v859, 100
    %v959 = vpop.permute.xlu0 %958
    %960 = vrot.lane.b32.xlu0 %v842, 100
    %v961 = vpop.permute.xlu0 %960
    %962 = vrot.lane.b32.xlu0 %v860, 100
    %v963 = vpop.permute.xlu0 %962
    %964 = vrot.lane.b32.xlu0 %v843, 100
    %v965 = vpop.permute.xlu0 %964
    %966 = vrot.lane.b32.xlu0 %v861, 100
    %v967 = vpop.permute.xlu0 %966
    %968 = vrot.lane.b32.xlu0 %v844, 100
    %v969 = vpop.permute.xlu0 %968
    %970 = vrot.lane.b32.xlu0 %v862, 100
    %v971 = vpop.permute.xlu0 %970
    %972 = vrot.lane.b32.xlu0 %v845, 100
    %v973 = vpop.permute.xlu0 %972
    %974 = vrot.lane.b32.xlu0 %v863, 100
    %v975 = vpop.permute.xlu0 %974
    %976 = vrot.lane.b32.xlu0 %v846, 100
    %v977 = vpop.permute.xlu0 %976
    %978 = vrot.lane.b32.xlu0 %v864, 100
    %v979 = vpop.permute.xlu0 %978
    %980 = vrot.lane.b32.xlu0 %v847, 100
    %v981 = vpop.permute.xlu0 %980
    %vm982 = vcmask 818176
    %v983 = vsel %vm982, %v949, %v951
    %v984 = vsel %vm982, %v951, %v953
    %v985 = vsel %vm982, %v953, %v955
    %v986 = vsel %vm982, %v955, %v957
    %v987 = vsel %vm982, %v957, %v959
    %v988 = vsel %vm982, %v959, %v961
    %v989 = vsel %vm982, %v961, %v963
    %v990 = vsel %vm982, %v963, %v965
    %v991 = vsel %vm982, %v965, %v967
    %v992 = vsel %vm982, %v967, %v969
    %v993 = vsel %vm982, %v969, %v971
    %v994 = vsel %vm982, %v971, %v973
    %v995 = vsel %vm982, %v973, %v975
    %v996 = vsel %vm982, %v975, %v977
    %v997 = vsel %vm982, %v977, %v979
    %v998 = vsel %vm982, %v979, %v981
    %1015 = vst [vmem:[#allocation3 + $0x200] sm:$0xf] %v983
    %1016 = vst [vmem:[#allocation3 + $0x208] sm:$0xf] %v984
    %1017 = vst [vmem:[#allocation3 + $0x210] sm:$0xf] %v985
    %1018 = vst [vmem:[#allocation3 + $0x218] sm:$0xf] %v986
    %1019 = vst [vmem:[#allocation3 + $0x220] sm:$0xf] %v987
    %1020 = vst [vmem:[#allocation3 + $0x228] sm:$0xf] %v988
    %1021 = vst [vmem:[#allocation3 + $0x230] sm:$0xf] %v989
    %1022 = vst [vmem:[#allocation3 + $0x238] sm:$0xf] %v990
    %1023 = vst [vmem:[#allocation3 + $0x240] sm:$0xf] %v991
    %1024 = vst [vmem:[#allocation3 + $0x248] sm:$0xf] %v992
    %1025 = vst [vmem:[#allocation3 + $0x250] sm:$0xf] %v993
    %1026 = vst [vmem:[#allocation3 + $0x258] sm:$0xf] %v994
    %1027 = vst [vmem:[#allocation3 + $0x260] sm:$0xf] %v995
    %1028 = vst [vmem:[#allocation3 + $0x268] sm:$0xf] %v996
    %1029 = vst [vmem:[#allocation3 + $0x270] sm:$0xf] %v997
    %1030 = vst [vmem:[#allocation3 + $0x278] sm:$0xf] %v998
    %1031 = vrot.lane.b32.xlu0 %v839, 99
    %v1032 = vpop.permute.xlu0 %1031
    %1033 = vrot.lane.b32.xlu0 %v857, 99
    %v1034 = vpop.permute.xlu0 %1033
    %1035 = vrot.lane.b32.xlu0 %v840, 99
    %v1036 = vpop.permute.xlu0 %1035
    %1037 = vrot.lane.b32.xlu0 %v858, 99
    %v1038 = vpop.permute.xlu0 %1037
    %1039 = vrot.lane.b32.xlu0 %v841, 99
    %v1040 = vpop.permute.xlu0 %1039
    %1041 = vrot.lane.b32.xlu0 %v859, 99
    %v1042 = vpop.permute.xlu0 %1041
    %1043 = vrot.lane.b32.xlu0 %v842, 99
    %v1044 = vpop.permute.xlu0 %1043
    %1045 = vrot.lane.b32.xlu0 %v860, 99
    %v1046 = vpop.permute.xlu0 %1045
    %1047 = vrot.lane.b32.xlu0 %v843, 99
    %v1048 = vpop.permute.xlu0 %1047
    %1049 = vrot.lane.b32.xlu0 %v861, 99
    %v1050 = vpop.permute.xlu0 %1049
    %1051 = vrot.lane.b32.xlu0 %v844, 99
    %v1052 = vpop.permute.xlu0 %1051
    %1053 = vrot.lane.b32.xlu0 %v862, 99
    %v1054 = vpop.permute.xlu0 %1053
    %1055 = vrot.lane.b32.xlu0 %v845, 99
    %v1056 = vpop.permute.xlu0 %1055
    %1057 = vrot.lane.b32.xlu0 %v863, 99
    %v1058 = vpop.permute.xlu0 %1057
    %1059 = vrot.lane.b32.xlu0 %v846, 99
    %v1060 = vpop.permute.xlu0 %1059
    %1061 = vrot.lane.b32.xlu0 %v864, 99
    %v1062 = vpop.permute.xlu0 %1061
    %1063 = vrot.lane.b32.xlu0 %v847, 99
    %v1064 = vpop.permute.xlu0 %1063
    %vm1065 = vcmask 809984
    %v1066 = vsel %vm1065, %v1032, %v1034
    %v1067 = vsel %vm1065, %v1034, %v1036
    %v1068 = vsel %vm1065, %v1036, %v1038
    %v1069 = vsel %vm1065, %v1038, %v1040
    %v1070 = vsel %vm1065, %v1040, %v1042
    %v1071 = vsel %vm1065, %v1042, %v1044
    %v1072 = vsel %vm1065, %v1044, %v1046
    %v1073 = vsel %vm1065, %v1046, %v1048
    %v1074 = vsel %vm1065, %v1048, %v1050
    %v1075 = vsel %vm1065, %v1050, %v1052
    %v1076 = vsel %vm1065, %v1052, %v1054
    %v1077 = vsel %vm1065, %v1054, %v1056
    %v1078 = vsel %vm1065, %v1056, %v1058
    %v1079 = vsel %vm1065, %v1058, %v1060
    %v1080 = vsel %vm1065, %v1060, %v1062
    %v1081 = vsel %vm1065, %v1062, %v1064
    %1098 = vst [vmem:[#allocation3 + $0x280] sm:$0xf] %v1066
    %1099 = vst [vmem:[#allocation3 + $0x288] sm:$0xf] %v1067
    %1100 = vst [vmem:[#allocation3 + $0x290] sm:$0xf] %v1068
    %1101 = vst [vmem:[#allocation3 + $0x298] sm:$0xf] %v1069
    %1102 = vst [vmem:[#allocation3 + $0x2a0] sm:$0xf] %v1070
    %1103 = vst [vmem:[#allocation3 + $0x2a8] sm:$0xf] %v1071
    %1104 = vst [vmem:[#allocation3 + $0x2b0] sm:$0xf] %v1072
    %1105 = vst [vmem:[#allocation3 + $0x2b8] sm:$0xf] %v1073
    %1106 = vst [vmem:[#allocation3 + $0x2c0] sm:$0xf] %v1074
    %1107 = vst [vmem:[#allocation3 + $0x2c8] sm:$0xf] %v1075
    %1108 = vst [vmem:[#allocation3 + $0x2d0] sm:$0xf] %v1076
    %1109 = vst [vmem:[#allocation3 + $0x2d8] sm:$0xf] %v1077
    %1110 = vst [vmem:[#allocation3 + $0x2e0] sm:$0xf] %v1078
    %1111 = vst [vmem:[#allocation3 + $0x2e8] sm:$0xf] %v1079
    %1112 = vst [vmem:[#allocation3 + $0x2f0] sm:$0xf] %v1080
    %1113 = vst [vmem:[#allocation3 + $0x2f8] sm:$0xf] %v1081
    %v1114 = vld [vmem:[#allocation4] sm:$0xff]
    %v1115 = vld [vmem:[#allocation4 + $0x8] sm:$0xff]
    %v1116 = vld [vmem:[#allocation4 + $0x10] sm:$0xff]
    %v1117 = vld [vmem:[#allocation4 + $0x18] sm:$0xff]
    %v1118 = vld [vmem:[#allocation4 + $0x20] sm:$0xff]
    %v1119 = vld [vmem:[#allocation4 + $0x28] sm:$0xff]
    %v1120 = vld [vmem:[#allocation4 + $0x30] sm:$0xff]
    %v1121 = vld [vmem:[#allocation4 + $0x38] sm:$0xff]
    %v1122 = vld [vmem:[#allocation4 + $0x40] sm:$0xf]
    %v1132 = vcombine.high %v1114, %v1114
    %v1133 = vcombine.high %v1115, %v1115
    %v1134 = vcombine.high %v1116, %v1116
    %v1135 = vcombine.high %v1117, %v1117
    %v1136 = vcombine.high %v1118, %v1118
    %v1137 = vcombine.high %v1119, %v1119
    %v1138 = vcombine.high %v1120, %v1120
    %v1139 = vcombine.high %v1121, %v1121
    %1140 = vrot.lane.b32.xlu0 %v1114, 91
    %v1141 = vpop.permute.xlu0 %1140
    %1142 = vrot.lane.b32.xlu0 %v1132, 91
    %v1143 = vpop.permute.xlu0 %1142
    %1144 = vrot.lane.b32.xlu0 %v1115, 91
    %v1145 = vpop.permute.xlu0 %1144
    %1146 = vrot.lane.b32.xlu0 %v1133, 91
    %v1147 = vpop.permute.xlu0 %1146
    %1148 = vrot.lane.b32.xlu0 %v1116, 91
    %v1149 = vpop.permute.xlu0 %1148
    %1150 = vrot.lane.b32.xlu0 %v1134, 91
    %v1151 = vpop.permute.xlu0 %1150
    %1152 = vrot.lane.b32.xlu0 %v1117, 91
    %v1153 = vpop.permute.xlu0 %1152
    %1154 = vrot.lane.b32.xlu0 %v1135, 91
    %v1155 = vpop.permute.xlu0 %1154
    %1156 = vrot.lane.b32.xlu0 %v1118, 91
    %v1157 = vpop.permute.xlu0 %1156
    %1158 = vrot.lane.b32.xlu0 %v1136, 91
    %v1159 = vpop.permute.xlu0 %1158
    %1160 = vrot.lane.b32.xlu0 %v1119, 91
    %v1161 = vpop.permute.xlu0 %1160
    %1162 = vrot.lane.b32.xlu0 %v1137, 91
    %v1163 = vpop.permute.xlu0 %1162
    %1164 = vrot.lane.b32.xlu0 %v1120, 91
    %v1165 = vpop.permute.xlu0 %1164
    %1166 = vrot.lane.b32.xlu0 %v1138, 91
    %v1167 = vpop.permute.xlu0 %1166
    %1168 = vrot.lane.b32.xlu0 %v1121, 91
    %v1169 = vpop.permute.xlu0 %1168
    %1170 = vrot.lane.b32.xlu0 %v1139, 91
    %v1171 = vpop.permute.xlu0 %1170
    %1172 = vrot.lane.b32.xlu0 %v1122, 91
    %v1173 = vpop.permute.xlu0 %1172
    %vm1174 = vcmask 744448
    %v1175 = vsel %vm1174, %v1141, %v1143
    %v1176 = vsel %vm1174, %v1143, %v1145
    %v1177 = vsel %vm1174, %v1145, %v1147
    %v1178 = vsel %vm1174, %v1147, %v1149
    %v1179 = vsel %vm1174, %v1149, %v1151
    %v1180 = vsel %vm1174, %v1151, %v1153
    %v1181 = vsel %vm1174, %v1153, %v1155
    %v1182 = vsel %vm1174, %v1155, %v1157
    %v1183 = vsel %vm1174, %v1157, %v1159
    %v1184 = vsel %vm1174, %v1159, %v1161
    %v1185 = vsel %vm1174, %v1161, %v1163
    %v1186 = vsel %vm1174, %v1163, %v1165
    %v1187 = vsel %vm1174, %v1165, %v1167
    %v1188 = vsel %vm1174, %v1167, %v1169
    %v1189 = vsel %vm1174, %v1169, %v1171
    %v1190 = vsel %vm1174, %v1171, %v1173
    %1207 = vst [vmem:[#allocation3 + $0x300] sm:$0xf] %v1175
    %1208 = vst [vmem:[#allocation3 + $0x308] sm:$0xf] %v1176
    %1209 = vst [vmem:[#allocation3 + $0x310] sm:$0xf] %v1177
    %1210 = vst [vmem:[#allocation3 + $0x318] sm:$0xf] %v1178
    %1211 = vst [vmem:[#allocation3 + $0x320] sm:$0xf] %v1179
    %1212 = vst [vmem:[#allocation3 + $0x328] sm:$0xf] %v1180
    %1213 = vst [vmem:[#allocation3 + $0x330] sm:$0xf] %v1181
    %1214 = vst [vmem:[#allocation3 + $0x338] sm:$0xf] %v1182
    %1215 = vst [vmem:[#allocation3 + $0x340] sm:$0xf] %v1183
    %1216 = vst [vmem:[#allocation3 + $0x348] sm:$0xf] %v1184
    %1217 = vst [vmem:[#allocation3 + $0x350] sm:$0xf] %v1185
    %1218 = vst [vmem:[#allocation3 + $0x358] sm:$0xf] %v1186
    %1219 = vst [vmem:[#allocation3 + $0x360] sm:$0xf] %v1187
    %1220 = vst [vmem:[#allocation3 + $0x368] sm:$0xf] %v1188
    %1221 = vst [vmem:[#allocation3 + $0x370] sm:$0xf] %v1189
    %1222 = vst [vmem:[#allocation3 + $0x378] sm:$0xf] %v1190
    %1223 = vrot.lane.b32.xlu0 %v1114, 90
    %v1224 = vpop.permute.xlu0 %1223
    %1225 = vrot.lane.b32.xlu0 %v1132, 90
    %v1226 = vpop.permute.xlu0 %1225
    %1227 = vrot.lane.b32.xlu0 %v1115, 90
    %v1228 = vpop.permute.xlu0 %1227
    %1229 = vrot.lane.b32.xlu0 %v1133, 90
    %v1230 = vpop.permute.xlu0 %1229
    %1231 = vrot.lane.b32.xlu0 %v1116, 90
    %v1232 = vpop.permute.xlu0 %1231
    %1233 = vrot.lane.b32.xlu0 %v1134, 90
    %v1234 = vpop.permute.xlu0 %1233
    %1235 = vrot.lane.b32.xlu0 %v1117, 90
    %v1236 = vpop.permute.xlu0 %1235
    %1237 = vrot.lane.b32.xlu0 %v1135, 90
    %v1238 = vpop.permute.xlu0 %1237
    %1239 = vrot.lane.b32.xlu0 %v1118, 90
    %v1240 = vpop.permute.xlu0 %1239
    %1241 = vrot.lane.b32.xlu0 %v1136, 90
    %v1242 = vpop.permute.xlu0 %1241
    %1243 = vrot.lane.b32.xlu0 %v1119, 90
    %v1244 = vpop.permute.xlu0 %1243
    %1245 = vrot.lane.b32.xlu0 %v1137, 90
    %v1246 = vpop.permute.xlu0 %1245
    %1247 = vrot.lane.b32.xlu0 %v1120, 90
    %v1248 = vpop.permute.xlu0 %1247
    %1249 = vrot.lane.b32.xlu0 %v1138, 90
    %v1250 = vpop.permute.xlu0 %1249
    %1251 = vrot.lane.b32.xlu0 %v1121, 90
    %v1252 = vpop.permute.xlu0 %1251
    %1253 = vrot.lane.b32.xlu0 %v1139, 90
    %v1254 = vpop.permute.xlu0 %1253
    %1255 = vrot.lane.b32.xlu0 %v1122, 90
    %v1256 = vpop.permute.xlu0 %1255
    %vm1257 = vcmask 736256
    %v1258 = vsel %vm1257, %v1224, %v1226
    %v1259 = vsel %vm1257, %v1226, %v1228
    %v1260 = vsel %vm1257, %v1228, %v1230
    %v1261 = vsel %vm1257, %v1230, %v1232
    %v1262 = vsel %vm1257, %v1232, %v1234
    %v1263 = vsel %vm1257, %v1234, %v1236
    %v1264 = vsel %vm1257, %v1236, %v1238
    %v1265 = vsel %vm1257, %v1238, %v1240
    %v1266 = vsel %vm1257, %v1240, %v1242
    %v1267 = vsel %vm1257, %v1242, %v1244
    %v1268 = vsel %vm1257, %v1244, %v1246
    %v1269 = vsel %vm1257, %v1246, %v1248
    %v1270 = vsel %vm1257, %v1248, %v1250
    %v1271 = vsel %vm1257, %v1250, %v1252
    %v1272 = vsel %vm1257, %v1252, %v1254
    %v1273 = vsel %vm1257, %v1254, %v1256
    %1290 = vst [vmem:[#allocation3 + $0x380] sm:$0xf] %v1258
    %1291 = vst [vmem:[#allocation3 + $0x388] sm:$0xf] %v1259
    %1292 = vst [vmem:[#allocation3 + $0x390] sm:$0xf] %v1260
    %1293 = vst [vmem:[#allocation3 + $0x398] sm:$0xf] %v1261
    %1294 = vst [vmem:[#allocation3 + $0x3a0] sm:$0xf] %v1262
    %1295 = vst [vmem:[#allocation3 + $0x3a8] sm:$0xf] %v1263
    %1296 = vst [vmem:[#allocation3 + $0x3b0] sm:$0xf] %v1264
    %1297 = vst [vmem:[#allocation3 + $0x3b8] sm:$0xf] %v1265
    %1298 = vst [vmem:[#allocation3 + $0x3c0] sm:$0xf] %v1266
    %1299 = vst [vmem:[#allocation3 + $0x3c8] sm:$0xf] %v1267
    %1300 = vst [vmem:[#allocation3 + $0x3d0] sm:$0xf] %v1268
    %1301 = vst [vmem:[#allocation3 + $0x3d8] sm:$0xf] %v1269
    %1302 = vst [vmem:[#allocation3 + $0x3e0] sm:$0xf] %v1270
    %1303 = vst [vmem:[#allocation3 + $0x3e8] sm:$0xf] %v1271
    %1304 = vst [vmem:[#allocation3 + $0x3f0] sm:$0xf] %v1272
    %1305 = vst [vmem:[#allocation3 + $0x3f8] sm:$0xf] %v1273
    %1306 = vrot.lane.b32.xlu0 %v1114, 89
    %v1307 = vpop.permute.xlu0 %1306
    %1308 = vrot.lane.b32.xlu0 %v1132, 89
    %v1309 = vpop.permute.xlu0 %1308
    %1310 = vrot.lane.b32.xlu0 %v1115, 89
    %v1311 = vpop.permute.xlu0 %1310
    %1312 = vrot.lane.b32.xlu0 %v1133, 89
    %v1313 = vpop.permute.xlu0 %1312
    %1314 = vrot.lane.b32.xlu0 %v1116, 89
    %v1315 = vpop.permute.xlu0 %1314
    %1316 = vrot.lane.b32.xlu0 %v1134, 89
    %v1317 = vpop.permute.xlu0 %1316
    %1318 = vrot.lane.b32.xlu0 %v1117, 89
    %v1319 = vpop.permute.xlu0 %1318
    %1320 = vrot.lane.b32.xlu0 %v1135, 89
    %v1321 = vpop.permute.xlu0 %1320
    %1322 = vrot.lane.b32.xlu0 %v1118, 89
    %v1323 = vpop.permute.xlu0 %1322
    %1324 = vrot.lane.b32.xlu0 %v1136, 89
    %v1325 = vpop.permute.xlu0 %1324
    %1326 = vrot.lane.b32.xlu0 %v1119, 89
    %v1327 = vpop.permute.xlu0 %1326
    %1328 = vrot.lane.b32.xlu0 %v1137, 89
    %v1329 = vpop.permute.xlu0 %1328
    %1330 = vrot.lane.b32.xlu0 %v1120, 89
    %v1331 = vpop.permute.xlu0 %1330
    %1332 = vrot.lane.b32.xlu0 %v1138, 89
    %v1333 = vpop.permute.xlu0 %1332
    %1334 = vrot.lane.b32.xlu0 %v1121, 89
    %v1335 = vpop.permute.xlu0 %1334
    %1336 = vrot.lane.b32.xlu0 %v1139, 89
    %v1337 = vpop.permute.xlu0 %1336
    %1338 = vrot.lane.b32.xlu0 %v1122, 89
    %v1339 = vpop.permute.xlu0 %1338
    %vm1340 = vcmask 728064
    %v1341 = vsel %vm1340, %v1307, %v1309
    %v1342 = vsel %vm1340, %v1309, %v1311
    %v1343 = vsel %vm1340, %v1311, %v1313
    %v1344 = vsel %vm1340, %v1313, %v1315
    %v1345 = vsel %vm1340, %v1315, %v1317
    %v1346 = vsel %vm1340, %v1317, %v1319
    %v1347 = vsel %vm1340, %v1319, %v1321
    %v1348 = vsel %vm1340, %v1321, %v1323
    %v1349 = vsel %vm1340, %v1323, %v1325
    %v1350 = vsel %vm1340, %v1325, %v1327
    %v1351 = vsel %vm1340, %v1327, %v1329
    %v1352 = vsel %vm1340, %v1329, %v1331
    %v1353 = vsel %vm1340, %v1331, %v1333
    %v1354 = vsel %vm1340, %v1333, %v1335
    %v1355 = vsel %vm1340, %v1335, %v1337
    %v1356 = vsel %vm1340, %v1337, %v1339
    %1373 = vst [vmem:[#allocation3 + $0x400] sm:$0xf] %v1341
    %1374 = vst [vmem:[#allocation3 + $0x408] sm:$0xf] %v1342
    %1375 = vst [vmem:[#allocation3 + $0x410] sm:$0xf] %v1343
    %1376 = vst [vmem:[#allocation3 + $0x418] sm:$0xf] %v1344
    %1377 = vst [vmem:[#allocation3 + $0x420] sm:$0xf] %v1345
    %1378 = vst [vmem:[#allocation3 + $0x428] sm:$0xf] %v1346
    %1379 = vst [vmem:[#allocation3 + $0x430] sm:$0xf] %v1347
    %1380 = vst [vmem:[#allocation3 + $0x438] sm:$0xf] %v1348
    %1381 = vst [vmem:[#allocation3 + $0x440] sm:$0xf] %v1349
    %1382 = vst [vmem:[#allocation3 + $0x448] sm:$0xf] %v1350
    %1383 = vst [vmem:[#allocation3 + $0x450] sm:$0xf] %v1351
    %1384 = vst [vmem:[#allocation3 + $0x458] sm:$0xf] %v1352
    %1385 = vst [vmem:[#allocation3 + $0x460] sm:$0xf] %v1353
    %1386 = vst [vmem:[#allocation3 + $0x468] sm:$0xf] %v1354
    %1387 = vst [vmem:[#allocation3 + $0x470] sm:$0xf] %v1355
    %1388 = vst [vmem:[#allocation3 + $0x478] sm:$0xf] %v1356
    %v1389 = vld [vmem:[#allocation4] sm:$0xff]
    %v1390 = vld [vmem:[#allocation4 + $0x8] sm:$0xff]
    %v1391 = vld [vmem:[#allocation4 + $0x10] sm:$0xff]
    %v1392 = vld [vmem:[#allocation4 + $0x18] sm:$0xff]
    %v1393 = vld [vmem:[#allocation4 + $0x20] sm:$0xff]
    %v1394 = vld [vmem:[#allocation4 + $0x28] sm:$0xff]
    %v1395 = vld [vmem:[#allocation4 + $0x30] sm:$0xff]
    %v1396 = vld [vmem:[#allocation4 + $0x38] sm:$0xff]
    %v1397 = vld [vmem:[#allocation4 + $0x40] sm:$0xf]
    %v1407 = vcombine.high %v1389, %v1389
    %v1408 = vcombine.high %v1390, %v1390
    %v1409 = vcombine.high %v1391, %v1391
    %v1410 = vcombine.high %v1392, %v1392
    %v1411 = vcombine.high %v1393, %v1393
    %v1412 = vcombine.high %v1394, %v1394
    %v1413 = vcombine.high %v1395, %v1395
    %v1414 = vcombine.high %v1396, %v1396
    %1415 = vrot.lane.b32.xlu0 %v1389, 11
    %v1416 = vpop.permute.xlu0 %1415
    %1417 = vrot.lane.b32.xlu0 %v1407, 11
    %v1418 = vpop.permute.xlu0 %1417
    %1419 = vrot.lane.b32.xlu0 %v1390, 11
    %v1420 = vpop.permute.xlu0 %1419
    %1421 = vrot.lane.b32.xlu0 %v1408, 11
    %v1422 = vpop.permute.xlu0 %1421
    %1423 = vrot.lane.b32.xlu0 %v1391, 11
    %v1424 = vpop.permute.xlu0 %1423
    %1425 = vrot.lane.b32.xlu0 %v1409, 11
    %v1426 = vpop.permute.xlu0 %1425
    %1427 = vrot.lane.b32.xlu0 %v1392, 11
    %v1428 = vpop.permute.xlu0 %1427
    %1429 = vrot.lane.b32.xlu0 %v1410, 11
    %v1430 = vpop.permute.xlu0 %1429
    %1431 = vrot.lane.b32.xlu0 %v1393, 11
    %v1432 = vpop.permute.xlu0 %1431
    %1433 = vrot.lane.b32.xlu0 %v1411, 11
    %v1434 = vpop.permute.xlu0 %1433
    %1435 = vrot.lane.b32.xlu0 %v1394, 11
    %v1436 = vpop.permute.xlu0 %1435
    %1437 = vrot.lane.b32.xlu0 %v1412, 11
    %v1438 = vpop.permute.xlu0 %1437
    %1439 = vrot.lane.b32.xlu0 %v1395, 11
    %v1440 = vpop.permute.xlu0 %1439
    %1441 = vrot.lane.b32.xlu0 %v1413, 11
    %v1442 = vpop.permute.xlu0 %1441
    %1443 = vrot.lane.b32.xlu0 %v1396, 11
    %v1444 = vpop.permute.xlu0 %1443
    %1445 = vrot.lane.b32.xlu0 %v1414, 11
    %v1446 = vpop.permute.xlu0 %1445
    %1447 = vrot.lane.b32.xlu0 %v1397, 11
    %v1448 = vpop.permute.xlu0 %1447
    %vm1449 = vcmask 89088
    %v1450 = vsel %vm1449, %v1416, %v1418
    %v1451 = vsel %vm1449, %v1418, %v1420
    %v1452 = vsel %vm1449, %v1420, %v1422
    %v1453 = vsel %vm1449, %v1422, %v1424
    %v1454 = vsel %vm1449, %v1424, %v1426
    %v1455 = vsel %vm1449, %v1426, %v1428
    %v1456 = vsel %vm1449, %v1428, %v1430
    %v1457 = vsel %vm1449, %v1430, %v1432
    %v1458 = vsel %vm1449, %v1432, %v1434
    %v1459 = vsel %vm1449, %v1434, %v1436
    %v1460 = vsel %vm1449, %v1436, %v1438
    %v1461 = vsel %vm1449, %v1438, %v1440
    %v1462 = vsel %vm1449, %v1440, %v1442
    %v1463 = vsel %vm1449, %v1442, %v1444
    %v1464 = vsel %vm1449, %v1444, %v1446
    %v1465 = vsel %vm1449, %v1446, %v1448
    %1482 = vst [vmem:[#allocation3 + $0x480] sm:$0xf] %v1450
    %1483 = vst [vmem:[#allocation3 + $0x488] sm:$0xf] %v1451
    %1484 = vst [vmem:[#allocation3 + $0x490] sm:$0xf] %v1452
    %1485 = vst [vmem:[#allocation3 + $0x498] sm:$0xf] %v1453
    %1486 = vst [vmem:[#allocation3 + $0x4a0] sm:$0xf] %v1454
    %1487 = vst [vmem:[#allocation3 + $0x4a8] sm:$0xf] %v1455
    %1488 = vst [vmem:[#allocation3 + $0x4b0] sm:$0xf] %v1456
    %1489 = vst [vmem:[#allocation3 + $0x4b8] sm:$0xf] %v1457
    %1490 = vst [vmem:[#allocation3 + $0x4c0] sm:$0xf] %v1458
    %1491 = vst [vmem:[#allocation3 + $0x4c8] sm:$0xf] %v1459
    %1492 = vst [vmem:[#allocation3 + $0x4d0] sm:$0xf] %v1460
    %1493 = vst [vmem:[#allocation3 + $0x4d8] sm:$0xf] %v1461
    %1494 = vst [vmem:[#allocation3 + $0x4e0] sm:$0xf] %v1462
    %1495 = vst [vmem:[#allocation3 + $0x4e8] sm:$0xf] %v1463
    %1496 = vst [vmem:[#allocation3 + $0x4f0] sm:$0xf] %v1464
    %1497 = vst [vmem:[#allocation3 + $0x4f8] sm:$0xf] %v1465
    %1498 = vrot.lane.b32.xlu0 %v1389, 10
    %v1499 = vpop.permute.xlu0 %1498
    %1500 = vrot.lane.b32.xlu0 %v1407, 10
    %v1501 = vpop.permute.xlu0 %1500
    %1502 = vrot.lane.b32.xlu0 %v1390, 10
    %v1503 = vpop.permute.xlu0 %1502
    %1504 = vrot.lane.b32.xlu0 %v1408, 10
    %v1505 = vpop.permute.xlu0 %1504
    %1506 = vrot.lane.b32.xlu0 %v1391, 10
    %v1507 = vpop.permute.xlu0 %1506
    %1508 = vrot.lane.b32.xlu0 %v1409, 10
    %v1509 = vpop.permute.xlu0 %1508
    %1510 = vrot.lane.b32.xlu0 %v1392, 10
    %v1511 = vpop.permute.xlu0 %1510
    %1512 = vrot.lane.b32.xlu0 %v1410, 10
    %v1513 = vpop.permute.xlu0 %1512
    %1514 = vrot.lane.b32.xlu0 %v1393, 10
    %v1515 = vpop.permute.xlu0 %1514
    %1516 = vrot.lane.b32.xlu0 %v1411, 10
    %v1517 = vpop.permute.xlu0 %1516
    %1518 = vrot.lane.b32.xlu0 %v1394, 10
    %v1519 = vpop.permute.xlu0 %1518
    %1520 = vrot.lane.b32.xlu0 %v1412, 10
    %v1521 = vpop.permute.xlu0 %1520
    %1522 = vrot.lane.b32.xlu0 %v1395, 10
    %v1523 = vpop.permute.xlu0 %1522
    %1524 = vrot.lane.b32.xlu0 %v1413, 10
    %v1525 = vpop.permute.xlu0 %1524
    %1526 = vrot.lane.b32.xlu0 %v1396, 10
    %v1527 = vpop.permute.xlu0 %1526
    %1528 = vrot.lane.b32.xlu0 %v1414, 10
    %v1529 = vpop.permute.xlu0 %1528
    %1530 = vrot.lane.b32.xlu0 %v1397, 10
    %v1531 = vpop.permute.xlu0 %1530
    %vm1532 = vcmask 80896
    %v1533 = vsel %vm1532, %v1499, %v1501
    %v1534 = vsel %vm1532, %v1501, %v1503
    %v1535 = vsel %vm1532, %v1503, %v1505
    %v1536 = vsel %vm1532, %v1505, %v1507
    %v1537 = vsel %vm1532, %v1507, %v1509
    %v1538 = vsel %vm1532, %v1509, %v1511
    %v1539 = vsel %vm1532, %v1511, %v1513
    %v1540 = vsel %vm1532, %v1513, %v1515
    %v1541 = vsel %vm1532, %v1515, %v1517
    %v1542 = vsel %vm1532, %v1517, %v1519
    %v1543 = vsel %vm1532, %v1519, %v1521
    %v1544 = vsel %vm1532, %v1521, %v1523
    %v1545 = vsel %vm1532, %v1523, %v1525
    %v1546 = vsel %vm1532, %v1525, %v1527
    %v1547 = vsel %vm1532, %v1527, %v1529
    %v1548 = vsel %vm1532, %v1529, %v1531
    %1565 = vst [vmem:[#allocation3 + $0x500] sm:$0xf] %v1533
    %1566 = vst [vmem:[#allocation3 + $0x508] sm:$0xf] %v1534
    %1567 = vst [vmem:[#allocation3 + $0x510] sm:$0xf] %v1535
    %1568 = vst [vmem:[#allocation3 + $0x518] sm:$0xf] %v1536
    %1569 = vst [vmem:[#allocation3 + $0x520] sm:$0xf] %v1537
    %1570 = vst [vmem:[#allocation3 + $0x528] sm:$0xf] %v1538
    %1571 = vst [vmem:[#allocation3 + $0x530] sm:$0xf] %v1539
    %1572 = vst [vmem:[#allocation3 + $0x538] sm:$0xf] %v1540
    %1573 = vst [vmem:[#allocation3 + $0x540] sm:$0xf] %v1541
    %1574 = vst [vmem:[#allocation3 + $0x548] sm:$0xf] %v1542
    %1575 = vst [vmem:[#allocation3 + $0x550] sm:$0xf] %v1543
    %1576 = vst [vmem:[#allocation3 + $0x558] sm:$0xf] %v1544
    %1577 = vst [vmem:[#allocation3 + $0x560] sm:$0xf] %v1545
    %1578 = vst [vmem:[#allocation3 + $0x568] sm:$0xf] %v1546
    %1579 = vst [vmem:[#allocation3 + $0x570] sm:$0xf] %v1547
    %1580 = vst [vmem:[#allocation3 + $0x578] sm:$0xf] %v1548
    %1581 = vrot.lane.b32.xlu0 %v1389, 9
    %v1582 = vpop.permute.xlu0 %1581
    %1583 = vrot.lane.b32.xlu0 %v1407, 9
    %v1584 = vpop.permute.xlu0 %1583
    %1585 = vrot.lane.b32.xlu0 %v1390, 9
    %v1586 = vpop.permute.xlu0 %1585
    %1587 = vrot.lane.b32.xlu0 %v1408, 9
    %v1588 = vpop.permute.xlu0 %1587
    %1589 = vrot.lane.b32.xlu0 %v1391, 9
    %v1590 = vpop.permute.xlu0 %1589
    %1591 = vrot.lane.b32.xlu0 %v1409, 9
    %v1592 = vpop.permute.xlu0 %1591
    %1593 = vrot.lane.b32.xlu0 %v1392, 9
    %v1594 = vpop.permute.xlu0 %1593
    %1595 = vrot.lane.b32.xlu0 %v1410, 9
    %v1596 = vpop.permute.xlu0 %1595
    %1597 = vrot.lane.b32.xlu0 %v1393, 9
    %v1598 = vpop.permute.xlu0 %1597
    %1599 = vrot.lane.b32.xlu0 %v1411, 9
    %v1600 = vpop.permute.xlu0 %1599
    %1601 = vrot.lane.b32.xlu0 %v1394, 9
    %v1602 = vpop.permute.xlu0 %1601
    %1603 = vrot.lane.b32.xlu0 %v1412, 9
    %v1604 = vpop.permute.xlu0 %1603
    %1605 = vrot.lane.b32.xlu0 %v1395, 9
    %v1606 = vpop.permute.xlu0 %1605
    %1607 = vrot.lane.b32.xlu0 %v1413, 9
    %v1608 = vpop.permute.xlu0 %1607
    %1609 = vrot.lane.b32.xlu0 %v1396, 9
    %v1610 = vpop.permute.xlu0 %1609
    %1611 = vrot.lane.b32.xlu0 %v1414, 9
    %v1612 = vpop.permute.xlu0 %1611
    %1613 = vrot.lane.b32.xlu0 %v1397, 9
    %v1614 = vpop.permute.xlu0 %1613
    %vm1615 = vcmask 72704
    %v1616 = vsel %vm1615, %v1582, %v1584
    %v1617 = vsel %vm1615, %v1584, %v1586
    %v1618 = vsel %vm1615, %v1586, %v1588
    %v1619 = vsel %vm1615, %v1588, %v1590
    %v1620 = vsel %vm1615, %v1590, %v1592
    %v1621 = vsel %vm1615, %v1592, %v1594
    %v1622 = vsel %vm1615, %v1594, %v1596
    %v1623 = vsel %vm1615, %v1596, %v1598
    %v1624 = vsel %vm1615, %v1598, %v1600
    %v1625 = vsel %vm1615, %v1600, %v1602
    %v1626 = vsel %vm1615, %v1602, %v1604
    %v1627 = vsel %vm1615, %v1604, %v1606
    %v1628 = vsel %vm1615, %v1606, %v1608
    %v1629 = vsel %vm1615, %v1608, %v1610
    %v1630 = vsel %vm1615, %v1610, %v1612
    %v1631 = vsel %vm1615, %v1612, %v1614
    %1648 = vst [vmem:[#allocation3 + $0x580] sm:$0xf] %v1616
    %1649 = vst [vmem:[#allocation3 + $0x588] sm:$0xf] %v1617
    %1650 = vst [vmem:[#allocation3 + $0x590] sm:$0xf] %v1618
    %1651 = vst [vmem:[#allocation3 + $0x598] sm:$0xf] %v1619
    %1652 = vst [vmem:[#allocation3 + $0x5a0] sm:$0xf] %v1620
    %1653 = vst [vmem:[#allocation3 + $0x5a8] sm:$0xf] %v1621
    %1654 = vst [vmem:[#allocation3 + $0x5b0] sm:$0xf] %v1622
    %1655 = vst [vmem:[#allocation3 + $0x5b8] sm:$0xf] %v1623
    %1656 = vst [vmem:[#allocation3 + $0x5c0] sm:$0xf] %v1624
    %1657 = vst [vmem:[#allocation3 + $0x5c8] sm:$0xf] %v1625
    %1658 = vst [vmem:[#allocation3 + $0x5d0] sm:$0xf] %v1626
    %1659 = vst [vmem:[#allocation3 + $0x5d8] sm:$0xf] %v1627
    %1660 = vst [vmem:[#allocation3 + $0x5e0] sm:$0xf] %v1628
    %1661 = vst [vmem:[#allocation3 + $0x5e8] sm:$0xf] %v1629
    %1662 = vst [vmem:[#allocation3 + $0x5f0] sm:$0xf] %v1630
    %1663 = vst [vmem:[#allocation3 + $0x5f8] sm:$0xf] %v1631
    %v1664 = vld [vmem:[#allocation4] sm:$0xff]
    %v1665 = vld [vmem:[#allocation4 + $0x8] sm:$0xff]
    %v1666 = vld [vmem:[#allocation4 + $0x10] sm:$0xff]
    %v1667 = vld [vmem:[#allocation4 + $0x18] sm:$0xff]
    %v1668 = vld [vmem:[#allocation4 + $0x20] sm:$0xff]
    %v1669 = vld [vmem:[#allocation4 + $0x28] sm:$0xff]
    %v1670 = vld [vmem:[#allocation4 + $0x30] sm:$0xff]
    %v1671 = vld [vmem:[#allocation4 + $0x38] sm:$0xff]
    %v1672 = vld [vmem:[#allocation4 + $0x40] sm:$0xff]
    %v1682 = vcombine.high %v1664, %v1664
    %v1683 = vcombine.high %v1665, %v1665
    %v1684 = vcombine.high %v1666, %v1666
    %v1685 = vcombine.high %v1667, %v1667
    %v1686 = vcombine.high %v1668, %v1668
    %v1687 = vcombine.high %v1669, %v1669
    %v1688 = vcombine.high %v1670, %v1670
    %v1689 = vcombine.high %v1671, %v1671
    %1690 = vrot.lane.b32.xlu0 %v1664, 1
    %v1691 = vpop.permute.xlu0 %1690
    %1692 = vrot.lane.b32.xlu0 %v1682, 1
    %v1693 = vpop.permute.xlu0 %1692
    %1694 = vrot.lane.b32.xlu0 %v1665, 1
    %v1695 = vpop.permute.xlu0 %1694
    %1696 = vrot.lane.b32.xlu0 %v1683, 1
    %v1697 = vpop.permute.xlu0 %1696
    %1698 = vrot.lane.b32.xlu0 %v1666, 1
    %v1699 = vpop.permute.xlu0 %1698
    %1700 = vrot.lane.b32.xlu0 %v1684, 1
    %v1701 = vpop.permute.xlu0 %1700
    %1702 = vrot.lane.b32.xlu0 %v1667, 1
    %v1703 = vpop.permute.xlu0 %1702
    %1704 = vrot.lane.b32.xlu0 %v1685, 1
    %v1705 = vpop.permute.xlu0 %1704
    %1706 = vrot.lane.b32.xlu0 %v1668, 1
    %v1707 = vpop.permute.xlu0 %1706
    %1708 = vrot.lane.b32.xlu0 %v1686, 1
    %v1709 = vpop.permute.xlu0 %1708
    %1710 = vrot.lane.b32.xlu0 %v1669, 1
    %v1711 = vpop.permute.xlu0 %1710
    %1712 = vrot.lane.b32.xlu0 %v1687, 1
    %v1713 = vpop.permute.xlu0 %1712
    %1714 = vrot.lane.b32.xlu0 %v1670, 1
    %v1715 = vpop.permute.xlu0 %1714
    %1716 = vrot.lane.b32.xlu0 %v1688, 1
    %v1717 = vpop.permute.xlu0 %1716
    %1718 = vrot.lane.b32.xlu0 %v1671, 1
    %v1719 = vpop.permute.xlu0 %1718
    %1720 = vrot.lane.b32.xlu0 %v1689, 1
    %v1721 = vpop.permute.xlu0 %1720
    %1722 = vrot.lane.b32.xlu0 %v1672, 1
    %v1723 = vpop.permute.xlu0 %1722
    %vm1724 = vcmask 7168
    %v1725 = vsel %vm1724, %v1691, %v1693
    %v1726 = vsel %vm1724, %v1693, %v1695
    %v1727 = vsel %vm1724, %v1695, %v1697
    %v1728 = vsel %vm1724, %v1697, %v1699
    %v1729 = vsel %vm1724, %v1699, %v1701
    %v1730 = vsel %vm1724, %v1701, %v1703
    %v1731 = vsel %vm1724, %v1703, %v1705
    %v1732 = vsel %vm1724, %v1705, %v1707
    %v1733 = vsel %vm1724, %v1707, %v1709
    %v1734 = vsel %vm1724, %v1709, %v1711
    %v1735 = vsel %vm1724, %v1711, %v1713
    %v1736 = vsel %vm1724, %v1713, %v1715
    %v1737 = vsel %vm1724, %v1715, %v1717
    %v1738 = vsel %vm1724, %v1717, %v1719
    %v1739 = vsel %vm1724, %v1719, %v1721
    %v1740 = vsel %vm1724, %v1721, %v1723
    %1757 = vst [vmem:[#allocation3 + $0x600] sm:$0xf] %v1725
    %1758 = vst [vmem:[#allocation3 + $0x608] sm:$0xf] %v1726
    %1759 = vst [vmem:[#allocation3 + $0x610] sm:$0xf] %v1727
    %1760 = vst [vmem:[#allocation3 + $0x618] sm:$0xf] %v1728
    %1761 = vst [vmem:[#allocation3 + $0x620] sm:$0xf] %v1729
    %1762 = vst [vmem:[#allocation3 + $0x628] sm:$0xf] %v1730
    %1763 = vst [vmem:[#allocation3 + $0x630] sm:$0xf] %v1731
    %1764 = vst [vmem:[#allocation3 + $0x638] sm:$0xf] %v1732
    %1765 = vst [vmem:[#allocation3 + $0x640] sm:$0xf] %v1733
    %1766 = vst [vmem:[#allocation3 + $0x648] sm:$0xf] %v1734
    %1767 = vst [vmem:[#allocation3 + $0x650] sm:$0xf] %v1735
    %1768 = vst [vmem:[#allocation3 + $0x658] sm:$0xf] %v1736
    %1769 = vst [vmem:[#allocation3 + $0x660] sm:$0xf] %v1737
    %1770 = vst [vmem:[#allocation3 + $0x668] sm:$0xf] %v1738
    %1771 = vst [vmem:[#allocation3 + $0x670] sm:$0xf] %v1739
    %1772 = vst [vmem:[#allocation3 + $0x678] sm:$0xf] %v1740
    %1781 = vst [vmem:[#allocation3 + $0x680] sm:$0xf] %v1682
    %1782 = vst [vmem:[#allocation3 + $0x688] sm:$0xf] %v1665
    %1783 = vst [vmem:[#allocation3 + $0x690] sm:$0xf] %v1683
    %1784 = vst [vmem:[#allocation3 + $0x698] sm:$0xf] %v1666
    %1785 = vst [vmem:[#allocation3 + $0x6a0] sm:$0xf] %v1684
    %1786 = vst [vmem:[#allocation3 + $0x6a8] sm:$0xf] %v1667
    %1787 = vst [vmem:[#allocation3 + $0x6b0] sm:$0xf] %v1685
    %1788 = vst [vmem:[#allocation3 + $0x6b8] sm:$0xf] %v1668
    %1789 = vst [vmem:[#allocation3 + $0x6c0] sm:$0xf] %v1686
    %1790 = vst [vmem:[#allocation3 + $0x6c8] sm:$0xf] %v1669
    %1791 = vst [vmem:[#allocation3 + $0x6d0] sm:$0xf] %v1687
    %1792 = vst [vmem:[#allocation3 + $0x6d8] sm:$0xf] %v1670
    %1793 = vst [vmem:[#allocation3 + $0x6e0] sm:$0xf] %v1688
    %1794 = vst [vmem:[#allocation3 + $0x6e8] sm:$0xf] %v1671
    %1795 = vst [vmem:[#allocation3 + $0x6f0] sm:$0xf] %v1689
    %1796 = vst [vmem:[#allocation3 + $0x6f8] sm:$0xf] %v1672
    %v1797 = vcombine.high %v1672, %v1672
    %1798 = vrot.lane.b32.xlu0 %v1682, 127
    %v1799 = vpop.permute.xlu0 %1798
    %1800 = vrot.lane.b32.xlu0 %v1665, 127
    %v1801 = vpop.permute.xlu0 %1800
    %1802 = vrot.lane.b32.xlu0 %v1683, 127
    %v1803 = vpop.permute.xlu0 %1802
    %1804 = vrot.lane.b32.xlu0 %v1666, 127
    %v1805 = vpop.permute.xlu0 %1804
    %1806 = vrot.lane.b32.xlu0 %v1684, 127
    %v1807 = vpop.permute.xlu0 %1806
    %1808 = vrot.lane.b32.xlu0 %v1667, 127
    %v1809 = vpop.permute.xlu0 %1808
    %1810 = vrot.lane.b32.xlu0 %v1685, 127
    %v1811 = vpop.permute.xlu0 %1810
    %1812 = vrot.lane.b32.xlu0 %v1668, 127
    %v1813 = vpop.permute.xlu0 %1812
    %1814 = vrot.lane.b32.xlu0 %v1686, 127
    %v1815 = vpop.permute.xlu0 %1814
    %1816 = vrot.lane.b32.xlu0 %v1669, 127
    %v1817 = vpop.permute.xlu0 %1816
    %1818 = vrot.lane.b32.xlu0 %v1687, 127
    %v1819 = vpop.permute.xlu0 %1818
    %1820 = vrot.lane.b32.xlu0 %v1670, 127
    %v1821 = vpop.permute.xlu0 %1820
    %1822 = vrot.lane.b32.xlu0 %v1688, 127
    %v1823 = vpop.permute.xlu0 %1822
    %1824 = vrot.lane.b32.xlu0 %v1671, 127
    %v1825 = vpop.permute.xlu0 %1824
    %1826 = vrot.lane.b32.xlu0 %v1689, 127
    %v1827 = vpop.permute.xlu0 %1826
    %1828 = vrot.lane.b32.xlu0 %v1672, 127
    %v1829 = vpop.permute.xlu0 %1828
    %1830 = vrot.lane.b32.xlu0 %v1797, 127
    %v1831 = vpop.permute.xlu0 %1830
    %vm1832 = vcmask 1039360
    %v1833 = vsel %vm1832, %v1799, %v1801
    %v1834 = vsel %vm1832, %v1801, %v1803
    %v1835 = vsel %vm1832, %v1803, %v1805
    %v1836 = vsel %vm1832, %v1805, %v1807
    %v1837 = vsel %vm1832, %v1807, %v1809
    %v1838 = vsel %vm1832, %v1809, %v1811
    %v1839 = vsel %vm1832, %v1811, %v1813
    %v1840 = vsel %vm1832, %v1813, %v1815
    %v1841 = vsel %vm1832, %v1815, %v1817
    %v1842 = vsel %vm1832, %v1817, %v1819
    %v1843 = vsel %vm1832, %v1819, %v1821
    %v1844 = vsel %vm1832, %v1821, %v1823
    %v1845 = vsel %vm1832, %v1823, %v1825
    %v1846 = vsel %vm1832, %v1825, %v1827
    %v1847 = vsel %vm1832, %v1827, %v1829
    %v1848 = vsel %vm1832, %v1829, %v1831
    %1865 = vst [vmem:[#allocation3 + $0x700] sm:$0xf] %v1833
    %1866 = vst [vmem:[#allocation3 + $0x708] sm:$0xf] %v1834
    %1867 = vst [vmem:[#allocation3 + $0x710] sm:$0xf] %v1835
    %1868 = vst [vmem:[#allocation3 + $0x718] sm:$0xf] %v1836
    %1869 = vst [vmem:[#allocation3 + $0x720] sm:$0xf] %v1837
    %1870 = vst [vmem:[#allocation3 + $0x728] sm:$0xf] %v1838
    %1871 = vst [vmem:[#allocation3 + $0x730] sm:$0xf] %v1839
    %1872 = vst [vmem:[#allocation3 + $0x738] sm:$0xf] %v1840
    %1873 = vst [vmem:[#allocation3 + $0x740] sm:$0xf] %v1841
    %1874 = vst [vmem:[#allocation3 + $0x748] sm:$0xf] %v1842
    %1875 = vst [vmem:[#allocation3 + $0x750] sm:$0xf] %v1843
    %1876 = vst [vmem:[#allocation3 + $0x758] sm:$0xf] %v1844
    %1877 = vst [vmem:[#allocation3 + $0x760] sm:$0xf] %v1845
    %1878 = vst [vmem:[#allocation3 + $0x768] sm:$0xf] %v1846
    %1879 = vst [vmem:[#allocation3 + $0x770] sm:$0xf] %v1847
    %1880 = vst [vmem:[#allocation3 + $0x778] sm:$0xf] %v1848
    %v1881 = vld [vmem:[#allocation4 + $0x4] sm:$0xff]
    %v1882 = vld [vmem:[#allocation4 + $0xc] sm:$0xff]
    %v1883 = vld [vmem:[#allocation4 + $0x14] sm:$0xff]
    %v1884 = vld [vmem:[#allocation4 + $0x1c] sm:$0xff]
    %v1885 = vld [vmem:[#allocation4 + $0x24] sm:$0xff]
    %v1886 = vld [vmem:[#allocation4 + $0x2c] sm:$0xff]
    %v1887 = vld [vmem:[#allocation4 + $0x34] sm:$0xff]
    %v1888 = vld [vmem:[#allocation4 + $0x3c] sm:$0xff]
    %v1889 = vld [vmem:[#allocation4 + $0x44] sm:$0xf]
    %v1899 = vcombine.high %v1881, %v1881
    %v1900 = vcombine.high %v1882, %v1882
    %v1901 = vcombine.high %v1883, %v1883
    %v1902 = vcombine.high %v1884, %v1884
    %v1903 = vcombine.high %v1885, %v1885
    %v1904 = vcombine.high %v1886, %v1886
    %v1905 = vcombine.high %v1887, %v1887
    %v1906 = vcombine.high %v1888, %v1888
    %1907 = vrot.lane.b32.xlu0 %v1881, 119
    %v1908 = vpop.permute.xlu0 %1907
    %1909 = vrot.lane.b32.xlu0 %v1899, 119
    %v1910 = vpop.permute.xlu0 %1909
    %1911 = vrot.lane.b32.xlu0 %v1882, 119
    %v1912 = vpop.permute.xlu0 %1911
    %1913 = vrot.lane.b32.xlu0 %v1900, 119
    %v1914 = vpop.permute.xlu0 %1913
    %1915 = vrot.lane.b32.xlu0 %v1883, 119
    %v1916 = vpop.permute.xlu0 %1915
    %1917 = vrot.lane.b32.xlu0 %v1901, 119
    %v1918 = vpop.permute.xlu0 %1917
    %1919 = vrot.lane.b32.xlu0 %v1884, 119
    %v1920 = vpop.permute.xlu0 %1919
    %1921 = vrot.lane.b32.xlu0 %v1902, 119
    %v1922 = vpop.permute.xlu0 %1921
    %1923 = vrot.lane.b32.xlu0 %v1885, 119
    %v1924 = vpop.permute.xlu0 %1923
    %1925 = vrot.lane.b32.xlu0 %v1903, 119
    %v1926 = vpop.permute.xlu0 %1925
    %1927 = vrot.lane.b32.xlu0 %v1886, 119
    %v1928 = vpop.permute.xlu0 %1927
    %1929 = vrot.lane.b32.xlu0 %v1904, 119
    %v1930 = vpop.permute.xlu0 %1929
    %1931 = vrot.lane.b32.xlu0 %v1887, 119
    %v1932 = vpop.permute.xlu0 %1931
    %1933 = vrot.lane.b32.xlu0 %v1905, 119
    %v1934 = vpop.permute.xlu0 %1933
    %1935 = vrot.lane.b32.xlu0 %v1888, 119
    %v1936 = vpop.permute.xlu0 %1935
    %1937 = vrot.lane.b32.xlu0 %v1906, 119
    %v1938 = vpop.permute.xlu0 %1937
    %1939 = vrot.lane.b32.xlu0 %v1889, 119
    %v1940 = vpop.permute.xlu0 %1939
    %vm1941 = vcmask 973824
    %v1942 = vsel %vm1941, %v1908, %v1910
    %v1943 = vsel %vm1941, %v1910, %v1912
    %v1944 = vsel %vm1941, %v1912, %v1914
    %v1945 = vsel %vm1941, %v1914, %v1916
    %v1946 = vsel %vm1941, %v1916, %v1918
    %v1947 = vsel %vm1941, %v1918, %v1920
    %v1948 = vsel %vm1941, %v1920, %v1922
    %v1949 = vsel %vm1941, %v1922, %v1924
    %v1950 = vsel %vm1941, %v1924, %v1926
    %v1951 = vsel %vm1941, %v1926, %v1928
    %v1952 = vsel %vm1941, %v1928, %v1930
    %v1953 = vsel %vm1941, %v1930, %v1932
    %v1954 = vsel %vm1941, %v1932, %v1934
    %v1955 = vsel %vm1941, %v1934, %v1936
    %v1956 = vsel %vm1941, %v1936, %v1938
    %v1957 = vsel %vm1941, %v1938, %v1940
    %1974 = vst [vmem:[#allocation3 + $0x780] sm:$0xf] %v1942
    %1975 = vst [vmem:[#allocation3 + $0x788] sm:$0xf] %v1943
    %1976 = vst [vmem:[#allocation3 + $0x790] sm:$0xf] %v1944
    %1977 = vst [vmem:[#allocation3 + $0x798] sm:$0xf] %v1945
    %1978 = vst [vmem:[#allocation3 + $0x7a0] sm:$0xf] %v1946
    %1979 = vst [vmem:[#allocation3 + $0x7a8] sm:$0xf] %v1947
    %1980 = vst [vmem:[#allocation3 + $0x7b0] sm:$0xf] %v1948
    %1981 = vst [vmem:[#allocation3 + $0x7b8] sm:$0xf] %v1949
    %1982 = vst [vmem:[#allocation3 + $0x7c0] sm:$0xf] %v1950
    %1983 = vst [vmem:[#allocation3 + $0x7c8] sm:$0xf] %v1951
    %1984 = vst [vmem:[#allocation3 + $0x7d0] sm:$0xf] %v1952
    %1985 = vst [vmem:[#allocation3 + $0x7d8] sm:$0xf] %v1953
    %1986 = vst [vmem:[#allocation3 + $0x7e0] sm:$0xf] %v1954
    %1987 = vst [vmem:[#allocation3 + $0x7e8] sm:$0xf] %v1955
    %1988 = vst [vmem:[#allocation3 + $0x7f0] sm:$0xf] %v1956
    %1989 = vst [vmem:[#allocation3 + $0x7f8] sm:$0xf] %v1957
    %1990 = vrot.lane.b32.xlu0 %v1881, 118
    %v1991 = vpop.permute.xlu0 %1990
    %1992 = vrot.lane.b32.xlu0 %v1899, 118
    %v1993 = vpop.permute.xlu0 %1992
    %1994 = vrot.lane.b32.xlu0 %v1882, 118
    %v1995 = vpop.permute.xlu0 %1994
    %1996 = vrot.lane.b32.xlu0 %v1900, 118
    %v1997 = vpop.permute.xlu0 %1996
    %1998 = vrot.lane.b32.xlu0 %v1883, 118
    %v1999 = vpop.permute.xlu0 %1998
    %2000 = vrot.lane.b32.xlu0 %v1901, 118
    %v2001 = vpop.permute.xlu0 %2000
    %2002 = vrot.lane.b32.xlu0 %v1884, 118
    %v2003 = vpop.permute.xlu0 %2002
    %2004 = vrot.lane.b32.xlu0 %v1902, 118
    %v2005 = vpop.permute.xlu0 %2004
    %2006 = vrot.lane.b32.xlu0 %v1885, 118
    %v2007 = vpop.permute.xlu0 %2006
    %2008 = vrot.lane.b32.xlu0 %v1903, 118
    %v2009 = vpop.permute.xlu0 %2008
    %2010 = vrot.lane.b32.xlu0 %v1886, 118
    %v2011 = vpop.permute.xlu0 %2010
    %2012 = vrot.lane.b32.xlu0 %v1904, 118
    %v2013 = vpop.permute.xlu0 %2012
    %2014 = vrot.lane.b32.xlu0 %v1887, 118
    %v2015 = vpop.permute.xlu0 %2014
    %2016 = vrot.lane.b32.xlu0 %v1905, 118
    %v2017 = vpop.permute.xlu0 %2016
    %2018 = vrot.lane.b32.xlu0 %v1888, 118
    %v2019 = vpop.permute.xlu0 %2018
    %2020 = vrot.lane.b32.xlu0 %v1906, 118
    %v2021 = vpop.permute.xlu0 %2020
    %2022 = vrot.lane.b32.xlu0 %v1889, 118
    %v2023 = vpop.permute.xlu0 %2022
    %vm2024 = vcmask 965632
    %v2025 = vsel %vm2024, %v1991, %v1993
    %v2026 = vsel %vm2024, %v1993, %v1995
    %v2027 = vsel %vm2024, %v1995, %v1997
    %v2028 = vsel %vm2024, %v1997, %v1999
    %v2029 = vsel %vm2024, %v1999, %v2001
    %v2030 = vsel %vm2024, %v2001, %v2003
    %v2031 = vsel %vm2024, %v2003, %v2005
    %v2032 = vsel %vm2024, %v2005, %v2007
    %v2033 = vsel %vm2024, %v2007, %v2009
    %v2034 = vsel %vm2024, %v2009, %v2011
    %v2035 = vsel %vm2024, %v2011, %v2013
    %v2036 = vsel %vm2024, %v2013, %v2015
    %v2037 = vsel %vm2024, %v2015, %v2017
    %v2038 = vsel %vm2024, %v2017, %v2019
    %v2039 = vsel %vm2024, %v2019, %v2021
    %v2040 = vsel %vm2024, %v2021, %v2023
    %2057 = vst [vmem:[#allocation3 + $0x800] sm:$0xf] %v2025
    %2058 = vst [vmem:[#allocation3 + $0x808] sm:$0xf] %v2026
    %2059 = vst [vmem:[#allocation3 + $0x810] sm:$0xf] %v2027
    %2060 = vst [vmem:[#allocation3 + $0x818] sm:$0xf] %v2028
    %2061 = vst [vmem:[#allocation3 + $0x820] sm:$0xf] %v2029
    %2062 = vst [vmem:[#allocation3 + $0x828] sm:$0xf] %v2030
    %2063 = vst [vmem:[#allocation3 + $0x830] sm:$0xf] %v2031
    %2064 = vst [vmem:[#allocation3 + $0x838] sm:$0xf] %v2032
    %2065 = vst [vmem:[#allocation3 + $0x840] sm:$0xf] %v2033
    %2066 = vst [vmem:[#allocation3 + $0x848] sm:$0xf] %v2034
    %2067 = vst [vmem:[#allocation3 + $0x850] sm:$0xf] %v2035
    %2068 = vst [vmem:[#allocation3 + $0x858] sm:$0xf] %v2036
    %2069 = vst [vmem:[#allocation3 + $0x860] sm:$0xf] %v2037
    %2070 = vst [vmem:[#allocation3 + $0x868] sm:$0xf] %v2038
    %2071 = vst [vmem:[#allocation3 + $0x870] sm:$0xf] %v2039
    %2072 = vst [vmem:[#allocation3 + $0x878] sm:$0xf] %v2040
    %2073 = vrot.lane.b32.xlu0 %v1881, 117
    %v2074 = vpop.permute.xlu0 %2073
    %2075 = vrot.lane.b32.xlu0 %v1899, 117
    %v2076 = vpop.permute.xlu0 %2075
    %2077 = vrot.lane.b32.xlu0 %v1882, 117
    %v2078 = vpop.permute.xlu0 %2077
    %2079 = vrot.lane.b32.xlu0 %v1900, 117
    %v2080 = vpop.permute.xlu0 %2079
    %2081 = vrot.lane.b32.xlu0 %v1883, 117
    %v2082 = vpop.permute.xlu0 %2081
    %2083 = vrot.lane.b32.xlu0 %v1901, 117
    %v2084 = vpop.permute.xlu0 %2083
    %2085 = vrot.lane.b32.xlu0 %v1884, 117
    %v2086 = vpop.permute.xlu0 %2085
    %2087 = vrot.lane.b32.xlu0 %v1902, 117
    %v2088 = vpop.permute.xlu0 %2087
    %2089 = vrot.lane.b32.xlu0 %v1885, 117
    %v2090 = vpop.permute.xlu0 %2089
    %2091 = vrot.lane.b32.xlu0 %v1903, 117
    %v2092 = vpop.permute.xlu0 %2091
    %2093 = vrot.lane.b32.xlu0 %v1886, 117
    %v2094 = vpop.permute.xlu0 %2093
    %2095 = vrot.lane.b32.xlu0 %v1904, 117
    %v2096 = vpop.permute.xlu0 %2095
    %2097 = vrot.lane.b32.xlu0 %v1887, 117
    %v2098 = vpop.permute.xlu0 %2097
    %2099 = vrot.lane.b32.xlu0 %v1905, 117
    %v2100 = vpop.permute.xlu0 %2099
    %2101 = vrot.lane.b32.xlu0 %v1888, 117
    %v2102 = vpop.permute.xlu0 %2101
    %2103 = vrot.lane.b32.xlu0 %v1906, 117
    %v2104 = vpop.permute.xlu0 %2103
    %2105 = vrot.lane.b32.xlu0 %v1889, 117
    %v2106 = vpop.permute.xlu0 %2105
    %vm2107 = vcmask 957440
    %v2108 = vsel %vm2107, %v2074, %v2076
    %v2109 = vsel %vm2107, %v2076, %v2078
    %v2110 = vsel %vm2107, %v2078, %v2080
    %v2111 = vsel %vm2107, %v2080, %v2082
    %v2112 = vsel %vm2107, %v2082, %v2084
    %v2113 = vsel %vm2107, %v2084, %v2086
    %v2114 = vsel %vm2107, %v2086, %v2088
    %v2115 = vsel %vm2107, %v2088, %v2090
    %v2116 = vsel %vm2107, %v2090, %v2092
    %v2117 = vsel %vm2107, %v2092, %v2094
    %v2118 = vsel %vm2107, %v2094, %v2096
    %v2119 = vsel %vm2107, %v2096, %v2098
    %v2120 = vsel %vm2107, %v2098, %v2100
    %v2121 = vsel %vm2107, %v2100, %v2102
    %v2122 = vsel %vm2107, %v2102, %v2104
    %v2123 = vsel %vm2107, %v2104, %v2106
    %2140 = vst [vmem:[#allocation3 + $0x880] sm:$0xf] %v2108
    %2141 = vst [vmem:[#allocation3 + $0x888] sm:$0xf] %v2109
    %2142 = vst [vmem:[#allocation3 + $0x890] sm:$0xf] %v2110
    %2143 = vst [vmem:[#allocation3 + $0x898] sm:$0xf] %v2111
    %2144 = vst [vmem:[#allocation3 + $0x8a0] sm:$0xf] %v2112
    %2145 = vst [vmem:[#allocation3 + $0x8a8] sm:$0xf] %v2113
    %2146 = vst [vmem:[#allocation3 + $0x8b0] sm:$0xf] %v2114
    %2147 = vst [vmem:[#allocation3 + $0x8b8] sm:$0xf] %v2115
    %2148 = vst [vmem:[#allocation3 + $0x8c0] sm:$0xf] %v2116
    %2149 = vst [vmem:[#allocation3 + $0x8c8] sm:$0xf] %v2117
    %2150 = vst [vmem:[#allocation3 + $0x8d0] sm:$0xf] %v2118
    %2151 = vst [vmem:[#allocation3 + $0x8d8] sm:$0xf] %v2119
    %2152 = vst [vmem:[#allocation3 + $0x8e0] sm:$0xf] %v2120
    %2153 = vst [vmem:[#allocation3 + $0x8e8] sm:$0xf] %v2121
    %2154 = vst [vmem:[#allocation3 + $0x8f0] sm:$0xf] %v2122
    %2155 = vst [vmem:[#allocation3 + $0x8f8] sm:$0xf] %v2123
    %v2156 = vld [vmem:[#allocation4 + $0x4] sm:$0xff]
    %v2157 = vld [vmem:[#allocation4 + $0xc] sm:$0xff]
    %v2158 = vld [vmem:[#allocation4 + $0x14] sm:$0xff]
    %v2159 = vld [vmem:[#allocation4 + $0x1c] sm:$0xff]
    %v2160 = vld [vmem:[#allocation4 + $0x24] sm:$0xff]
    %v2161 = vld [vmem:[#allocation4 + $0x2c] sm:$0xff]
    %v2162 = vld [vmem:[#allocation4 + $0x34] sm:$0xff]
    %v2163 = vld [vmem:[#allocation4 + $0x3c] sm:$0xff]
    %v2164 = vld [vmem:[#allocation4 + $0x44] sm:$0xf]
    %v2174 = vcombine.high %v2156, %v2156
    %v2175 = vcombine.high %v2157, %v2157
    %v2176 = vcombine.high %v2158, %v2158
    %v2177 = vcombine.high %v2159, %v2159
    %v2178 = vcombine.high %v2160, %v2160
    %v2179 = vcombine.high %v2161, %v2161
    %v2180 = vcombine.high %v2162, %v2162
    %v2181 = vcombine.high %v2163, %v2163
    %2182 = vrot.lane.b32.xlu0 %v2156, 39
    %v2183 = vpop.permute.xlu0 %2182
    %2184 = vrot.lane.b32.xlu0 %v2174, 39
    %v2185 = vpop.permute.xlu0 %2184
    %2186 = vrot.lane.b32.xlu0 %v2157, 39
    %v2187 = vpop.permute.xlu0 %2186
    %2188 = vrot.lane.b32.xlu0 %v2175, 39
    %v2189 = vpop.permute.xlu0 %2188
    %2190 = vrot.lane.b32.xlu0 %v2158, 39
    %v2191 = vpop.permute.xlu0 %2190
    %2192 = vrot.lane.b32.xlu0 %v2176, 39
    %v2193 = vpop.permute.xlu0 %2192
    %2194 = vrot.lane.b32.xlu0 %v2159, 39
    %v2195 = vpop.permute.xlu0 %2194
    %2196 = vrot.lane.b32.xlu0 %v2177, 39
    %v2197 = vpop.permute.xlu0 %2196
    %2198 = vrot.lane.b32.xlu0 %v2160, 39
    %v2199 = vpop.permute.xlu0 %2198
    %2200 = vrot.lane.b32.xlu0 %v2178, 39
    %v2201 = vpop.permute.xlu0 %2200
    %2202 = vrot.lane.b32.xlu0 %v2161, 39
    %v2203 = vpop.permute.xlu0 %2202
    %2204 = vrot.lane.b32.xlu0 %v2179, 39
    %v2205 = vpop.permute.xlu0 %2204
    %2206 = vrot.lane.b32.xlu0 %v2162, 39
    %v2207 = vpop.permute.xlu0 %2206
    %2208 = vrot.lane.b32.xlu0 %v2180, 39
    %v2209 = vpop.permute.xlu0 %2208
    %2210 = vrot.lane.b32.xlu0 %v2163, 39
    %v2211 = vpop.permute.xlu0 %2210
    %2212 = vrot.lane.b32.xlu0 %v2181, 39
    %v2213 = vpop.permute.xlu0 %2212
    %2214 = vrot.lane.b32.xlu0 %v2164, 39
    %v2215 = vpop.permute.xlu0 %2214
    %vm2216 = vcmask 318464
    %v2217 = vsel %vm2216, %v2183, %v2185
    %v2218 = vsel %vm2216, %v2185, %v2187
    %v2219 = vsel %vm2216, %v2187, %v2189
    %v2220 = vsel %vm2216, %v2189, %v2191
    %v2221 = vsel %vm2216, %v2191, %v2193
    %v2222 = vsel %vm2216, %v2193, %v2195
    %v2223 = vsel %vm2216, %v2195, %v2197
    %v2224 = vsel %vm2216, %v2197, %v2199
    %v2225 = vsel %vm2216, %v2199, %v2201
    %v2226 = vsel %vm2216, %v2201, %v2203
    %v2227 = vsel %vm2216, %v2203, %v2205
    %v2228 = vsel %vm2216, %v2205, %v2207
    %v2229 = vsel %vm2216, %v2207, %v2209
    %v2230 = vsel %vm2216, %v2209, %v2211
    %v2231 = vsel %vm2216, %v2211, %v2213
    %v2232 = vsel %vm2216, %v2213, %v2215
    %2249 = vst [vmem:[#allocation3 + $0x900] sm:$0xf] %v2217
    %2250 = vst [vmem:[#allocation3 + $0x908] sm:$0xf] %v2218
    %2251 = vst [vmem:[#allocation3 + $0x910] sm:$0xf] %v2219
    %2252 = vst [vmem:[#allocation3 + $0x918] sm:$0xf] %v2220
    %2253 = vst [vmem:[#allocation3 + $0x920] sm:$0xf] %v2221
    %2254 = vst [vmem:[#allocation3 + $0x928] sm:$0xf] %v2222
    %2255 = vst [vmem:[#allocation3 + $0x930] sm:$0xf] %v2223
    %2256 = vst [vmem:[#allocation3 + $0x938] sm:$0xf] %v2224
    %2257 = vst [vmem:[#allocation3 + $0x940] sm:$0xf] %v2225
    %2258 = vst [vmem:[#allocation3 + $0x948] sm:$0xf] %v2226
    %2259 = vst [vmem:[#allocation3 + $0x950] sm:$0xf] %v2227
    %2260 = vst [vmem:[#allocation3 + $0x958] sm:$0xf] %v2228
    %2261 = vst [vmem:[#allocation3 + $0x960] sm:$0xf] %v2229
    %2262 = vst [vmem:[#allocation3 + $0x968] sm:$0xf] %v2230
    %2263 = vst [vmem:[#allocation3 + $0x970] sm:$0xf] %v2231
    %2264 = vst [vmem:[#allocation3 + $0x978] sm:$0xf] %v2232
    %2265 = vrot.lane.b32.xlu0 %v2156, 38
    %v2266 = vpop.permute.xlu0 %2265
    %2267 = vrot.lane.b32.xlu0 %v2174, 38
    %v2268 = vpop.permute.xlu0 %2267
    %2269 = vrot.lane.b32.xlu0 %v2157, 38
    %v2270 = vpop.permute.xlu0 %2269
    %2271 = vrot.lane.b32.xlu0 %v2175, 38
    %v2272 = vpop.permute.xlu0 %2271
    %2273 = vrot.lane.b32.xlu0 %v2158, 38
    %v2274 = vpop.permute.xlu0 %2273
    %2275 = vrot.lane.b32.xlu0 %v2176, 38
    %v2276 = vpop.permute.xlu0 %2275
    %2277 = vrot.lane.b32.xlu0 %v2159, 38
    %v2278 = vpop.permute.xlu0 %2277
    %2279 = vrot.lane.b32.xlu0 %v2177, 38
    %v2280 = vpop.permute.xlu0 %2279
    %2281 = vrot.lane.b32.xlu0 %v2160, 38
    %v2282 = vpop.permute.xlu0 %2281
    %2283 = vrot.lane.b32.xlu0 %v2178, 38
    %v2284 = vpop.permute.xlu0 %2283
    %2285 = vrot.lane.b32.xlu0 %v2161, 38
    %v2286 = vpop.permute.xlu0 %2285
    %2287 = vrot.lane.b32.xlu0 %v2179, 38
    %v2288 = vpop.permute.xlu0 %2287
    %2289 = vrot.lane.b32.xlu0 %v2162, 38
    %v2290 = vpop.permute.xlu0 %2289
    %2291 = vrot.lane.b32.xlu0 %v2180, 38
    %v2292 = vpop.permute.xlu0 %2291
    %2293 = vrot.lane.b32.xlu0 %v2163, 38
    %v2294 = vpop.permute.xlu0 %2293
    %2295 = vrot.lane.b32.xlu0 %v2181, 38
    %v2296 = vpop.permute.xlu0 %2295
    %2297 = vrot.lane.b32.xlu0 %v2164, 38
    %v2298 = vpop.permute.xlu0 %2297
    %vm2299 = vcmask 310272
    %v2300 = vsel %vm2299, %v2266, %v2268
    %v2301 = vsel %vm2299, %v2268, %v2270
    %v2302 = vsel %vm2299, %v2270, %v2272
    %v2303 = vsel %vm2299, %v2272, %v2274
    %v2304 = vsel %vm2299, %v2274, %v2276
    %v2305 = vsel %vm2299, %v2276, %v2278
    %v2306 = vsel %vm2299, %v2278, %v2280
    %v2307 = vsel %vm2299, %v2280, %v2282
    %v2308 = vsel %vm2299, %v2282, %v2284
    %v2309 = vsel %vm2299, %v2284, %v2286
    %v2310 = vsel %vm2299, %v2286, %v2288
    %v2311 = vsel %vm2299, %v2288, %v2290
    %v2312 = vsel %vm2299, %v2290, %v2292
    %v2313 = vsel %vm2299, %v2292, %v2294
    %v2314 = vsel %vm2299, %v2294, %v2296
    %v2315 = vsel %vm2299, %v2296, %v2298
    %2332 = vst [vmem:[#allocation3 + $0x980] sm:$0xf] %v2300
    %2333 = vst [vmem:[#allocation3 + $0x988] sm:$0xf] %v2301
    %2334 = vst [vmem:[#allocation3 + $0x990] sm:$0xf] %v2302
    %2335 = vst [vmem:[#allocation3 + $0x998] sm:$0xf] %v2303
    %2336 = vst [vmem:[#allocation3 + $0x9a0] sm:$0xf] %v2304
    %2337 = vst [vmem:[#allocation3 + $0x9a8] sm:$0xf] %v2305
    %2338 = vst [vmem:[#allocation3 + $0x9b0] sm:$0xf] %v2306
    %2339 = vst [vmem:[#allocation3 + $0x9b8] sm:$0xf] %v2307
    %2340 = vst [vmem:[#allocation3 + $0x9c0] sm:$0xf] %v2308
    %2341 = vst [vmem:[#allocation3 + $0x9c8] sm:$0xf] %v2309
    %2342 = vst [vmem:[#allocation3 + $0x9d0] sm:$0xf] %v2310
    %2343 = vst [vmem:[#allocation3 + $0x9d8] sm:$0xf] %v2311
    %2344 = vst [vmem:[#allocation3 + $0x9e0] sm:$0xf] %v2312
    %2345 = vst [vmem:[#allocation3 + $0x9e8] sm:$0xf] %v2313
    %2346 = vst [vmem:[#allocation3 + $0x9f0] sm:$0xf] %v2314
    %2347 = vst [vmem:[#allocation3 + $0x9f8] sm:$0xf] %v2315
    %2348 = vrot.lane.b32.xlu0 %v2156, 37
    %v2349 = vpop.permute.xlu0 %2348
    %2350 = vrot.lane.b32.xlu0 %v2174, 37
    %v2351 = vpop.permute.xlu0 %2350
    %2352 = vrot.lane.b32.xlu0 %v2157, 37
    %v2353 = vpop.permute.xlu0 %2352
    %2354 = vrot.lane.b32.xlu0 %v2175, 37
    %v2355 = vpop.permute.xlu0 %2354
    %2356 = vrot.lane.b32.xlu0 %v2158, 37
    %v2357 = vpop.permute.xlu0 %2356
    %2358 = vrot.lane.b32.xlu0 %v2176, 37
    %v2359 = vpop.permute.xlu0 %2358
    %2360 = vrot.lane.b32.xlu0 %v2159, 37
    %v2361 = vpop.permute.xlu0 %2360
    %2362 = vrot.lane.b32.xlu0 %v2177, 37
    %v2363 = vpop.permute.xlu0 %2362
    %2364 = vrot.lane.b32.xlu0 %v2160, 37
    %v2365 = vpop.permute.xlu0 %2364
    %2366 = vrot.lane.b32.xlu0 %v2178, 37
    %v2367 = vpop.permute.xlu0 %2366
    %2368 = vrot.lane.b32.xlu0 %v2161, 37
    %v2369 = vpop.permute.xlu0 %2368
    %2370 = vrot.lane.b32.xlu0 %v2179, 37
    %v2371 = vpop.permute.xlu0 %2370
    %2372 = vrot.lane.b32.xlu0 %v2162, 37
    %v2373 = vpop.permute.xlu0 %2372
    %2374 = vrot.lane.b32.xlu0 %v2180, 37
    %v2375 = vpop.permute.xlu0 %2374
    %2376 = vrot.lane.b32.xlu0 %v2163, 37
    %v2377 = vpop.permute.xlu0 %2376
    %2378 = vrot.lane.b32.xlu0 %v2181, 37
    %v2379 = vpop.permute.xlu0 %2378
    %2380 = vrot.lane.b32.xlu0 %v2164, 37
    %v2381 = vpop.permute.xlu0 %2380
    %vm2382 = vcmask 302080
    %v2383 = vsel %vm2382, %v2349, %v2351
    %v2384 = vsel %vm2382, %v2351, %v2353
    %v2385 = vsel %vm2382, %v2353, %v2355
    %v2386 = vsel %vm2382, %v2355, %v2357
    %v2387 = vsel %vm2382, %v2357, %v2359
    %v2388 = vsel %vm2382, %v2359, %v2361
    %v2389 = vsel %vm2382, %v2361, %v2363
    %v2390 = vsel %vm2382, %v2363, %v2365
    %v2391 = vsel %vm2382, %v2365, %v2367
    %v2392 = vsel %vm2382, %v2367, %v2369
    %v2393 = vsel %vm2382, %v2369, %v2371
    %v2394 = vsel %vm2382, %v2371, %v2373
    %v2395 = vsel %vm2382, %v2373, %v2375
    %v2396 = vsel %vm2382, %v2375, %v2377
    %v2397 = vsel %vm2382, %v2377, %v2379
    %v2398 = vsel %vm2382, %v2379, %v2381
    %2415 = vst [vmem:[#allocation3 + $0xa00] sm:$0xf] %v2383
    %2416 = vst [vmem:[#allocation3 + $0xa08] sm:$0xf] %v2384
    %2417 = vst [vmem:[#allocation3 + $0xa10] sm:$0xf] %v2385
    %2418 = vst [vmem:[#allocation3 + $0xa18] sm:$0xf] %v2386
    %2419 = vst [vmem:[#allocation3 + $0xa20] sm:$0xf] %v2387
    %2420 = vst [vmem:[#allocation3 + $0xa28] sm:$0xf] %v2388
    %2421 = vst [vmem:[#allocation3 + $0xa30] sm:$0xf] %v2389
    %2422 = vst [vmem:[#allocation3 + $0xa38] sm:$0xf] %v2390
    %2423 = vst [vmem:[#allocation3 + $0xa40] sm:$0xf] %v2391
    %2424 = vst [vmem:[#allocation3 + $0xa48] sm:$0xf] %v2392
    %2425 = vst [vmem:[#allocation3 + $0xa50] sm:$0xf] %v2393
    %2426 = vst [vmem:[#allocation3 + $0xa58] sm:$0xf] %v2394
    %2427 = vst [vmem:[#allocation3 + $0xa60] sm:$0xf] %v2395
    %2428 = vst [vmem:[#allocation3 + $0xa68] sm:$0xf] %v2396
    %2429 = vst [vmem:[#allocation3 + $0xa70] sm:$0xf] %v2397
    %2430 = vst [vmem:[#allocation3 + $0xa78] sm:$0xf] %v2398
    %v2431 = vld [vmem:[#allocation4 + $0x4] sm:$0xff]
    %v2432 = vld [vmem:[#allocation4 + $0xc] sm:$0xff]
    %v2433 = vld [vmem:[#allocation4 + $0x14] sm:$0xff]
    %v2434 = vld [vmem:[#allocation4 + $0x1c] sm:$0xff]
    %v2435 = vld [vmem:[#allocation4 + $0x24] sm:$0xff]
    %v2436 = vld [vmem:[#allocation4 + $0x2c] sm:$0xff]
    %v2437 = vld [vmem:[#allocation4 + $0x34] sm:$0xff]
    %v2438 = vld [vmem:[#allocation4 + $0x3c] sm:$0xff]
    %v2439 = vld [vmem:[#allocation4 + $0x44] sm:$0xf]
    %v2449 = vcombine.high %v2431, %v2431
    %v2450 = vcombine.high %v2432, %v2432
    %v2451 = vcombine.high %v2433, %v2433
    %v2452 = vcombine.high %v2434, %v2434
    %v2453 = vcombine.high %v2435, %v2435
    %v2454 = vcombine.high %v2436, %v2436
    %v2455 = vcombine.high %v2437, %v2437
    %v2456 = vcombine.high %v2438, %v2438
    %2457 = vrot.lane.b32.xlu0 %v2431, 29
    %v2458 = vpop.permute.xlu0 %2457
    %2459 = vrot.lane.b32.xlu0 %v2449, 29
    %v2460 = vpop.permute.xlu0 %2459
    %2461 = vrot.lane.b32.xlu0 %v2432, 29
    %v2462 = vpop.permute.xlu0 %2461
    %2463 = vrot.lane.b32.xlu0 %v2450, 29
    %v2464 = vpop.permute.xlu0 %2463
    %2465 = vrot.lane.b32.xlu0 %v2433, 29
    %v2466 = vpop.permute.xlu0 %2465
    %2467 = vrot.lane.b32.xlu0 %v2451, 29
    %v2468 = vpop.permute.xlu0 %2467
    %2469 = vrot.lane.b32.xlu0 %v2434, 29
    %v2470 = vpop.permute.xlu0 %2469
    %2471 = vrot.lane.b32.xlu0 %v2452, 29
    %v2472 = vpop.permute.xlu0 %2471
    %2473 = vrot.lane.b32.xlu0 %v2435, 29
    %v2474 = vpop.permute.xlu0 %2473
    %2475 = vrot.lane.b32.xlu0 %v2453, 29
    %v2476 = vpop.permute.xlu0 %2475
    %2477 = vrot.lane.b32.xlu0 %v2436, 29
    %v2478 = vpop.permute.xlu0 %2477
    %2479 = vrot.lane.b32.xlu0 %v2454, 29
    %v2480 = vpop.permute.xlu0 %2479
    %2481 = vrot.lane.b32.xlu0 %v2437, 29
    %v2482 = vpop.permute.xlu0 %2481
    %2483 = vrot.lane.b32.xlu0 %v2455, 29
    %v2484 = vpop.permute.xlu0 %2483
    %2485 = vrot.lane.b32.xlu0 %v2438, 29
    %v2486 = vpop.permute.xlu0 %2485
    %2487 = vrot.lane.b32.xlu0 %v2456, 29
    %v2488 = vpop.permute.xlu0 %2487
    %2489 = vrot.lane.b32.xlu0 %v2439, 29
    %v2490 = vpop.permute.xlu0 %2489
    %vm2491 = vcmask 236544
    %v2492 = vsel %vm2491, %v2458, %v2460
    %v2493 = vsel %vm2491, %v2460, %v2462
    %v2494 = vsel %vm2491, %v2462, %v2464
    %v2495 = vsel %vm2491, %v2464, %v2466
    %v2496 = vsel %vm2491, %v2466, %v2468
    %v2497 = vsel %vm2491, %v2468, %v2470
    %v2498 = vsel %vm2491, %v2470, %v2472
    %v2499 = vsel %vm2491, %v2472, %v2474
    %v2500 = vsel %vm2491, %v2474, %v2476
    %v2501 = vsel %vm2491, %v2476, %v2478
    %v2502 = vsel %vm2491, %v2478, %v2480
    %v2503 = vsel %vm2491, %v2480, %v2482
    %v2504 = vsel %vm2491, %v2482, %v2484
    %v2505 = vsel %vm2491, %v2484, %v2486
    %v2506 = vsel %vm2491, %v2486, %v2488
    %v2507 = vsel %vm2491, %v2488, %v2490
    %2524 = vst [vmem:[#allocation3 + $0xa80] sm:$0xf] %v2492
    %2525 = vst [vmem:[#allocation3 + $0xa88] sm:$0xf] %v2493
    %2526 = vst [vmem:[#allocation3 + $0xa90] sm:$0xf] %v2494
    %2527 = vst [vmem:[#allocation3 + $0xa98] sm:$0xf] %v2495
    %2528 = vst [vmem:[#allocation3 + $0xaa0] sm:$0xf] %v2496
    %2529 = vst [vmem:[#allocation3 + $0xaa8] sm:$0xf] %v2497
    %2530 = vst [vmem:[#allocation3 + $0xab0] sm:$0xf] %v2498
    %2531 = vst [vmem:[#allocation3 + $0xab8] sm:$0xf] %v2499
    %2532 = vst [vmem:[#allocation3 + $0xac0] sm:$0xf] %v2500
    %2533 = vst [vmem:[#allocation3 + $0xac8] sm:$0xf] %v2501
    %2534 = vst [vmem:[#allocation3 + $0xad0] sm:$0xf] %v2502
    %2535 = vst [vmem:[#allocation3 + $0xad8] sm:$0xf] %v2503
    %2536 = vst [vmem:[#allocation3 + $0xae0] sm:$0xf] %v2504
    %2537 = vst [vmem:[#allocation3 + $0xae8] sm:$0xf] %v2505
    %2538 = vst [vmem:[#allocation3 + $0xaf0] sm:$0xf] %v2506
    %2539 = vst [vmem:[#allocation3 + $0xaf8] sm:$0xf] %v2507
    %2540 = vrot.lane.b32.xlu0 %v2431, 28
    %v2541 = vpop.permute.xlu0 %2540
    %2542 = vrot.lane.b32.xlu0 %v2449, 28
    %v2543 = vpop.permute.xlu0 %2542
    %2544 = vrot.lane.b32.xlu0 %v2432, 28
    %v2545 = vpop.permute.xlu0 %2544
    %2546 = vrot.lane.b32.xlu0 %v2450, 28
    %v2547 = vpop.permute.xlu0 %2546
    %2548 = vrot.lane.b32.xlu0 %v2433, 28
    %v2549 = vpop.permute.xlu0 %2548
    %2550 = vrot.lane.b32.xlu0 %v2451, 28
    %v2551 = vpop.permute.xlu0 %2550
    %2552 = vrot.lane.b32.xlu0 %v2434, 28
    %v2553 = vpop.permute.xlu0 %2552
    %2554 = vrot.lane.b32.xlu0 %v2452, 28
    %v2555 = vpop.permute.xlu0 %2554
    %2556 = vrot.lane.b32.xlu0 %v2435, 28
    %v2557 = vpop.permute.xlu0 %2556
    %2558 = vrot.lane.b32.xlu0 %v2453, 28
    %v2559 = vpop.permute.xlu0 %2558
    %2560 = vrot.lane.b32.xlu0 %v2436, 28
    %v2561 = vpop.permute.xlu0 %2560
    %2562 = vrot.lane.b32.xlu0 %v2454, 28
    %v2563 = vpop.permute.xlu0 %2562
    %2564 = vrot.lane.b32.xlu0 %v2437, 28
    %v2565 = vpop.permute.xlu0 %2564
    %2566 = vrot.lane.b32.xlu0 %v2455, 28
    %v2567 = vpop.permute.xlu0 %2566
    %2568 = vrot.lane.b32.xlu0 %v2438, 28
    %v2569 = vpop.permute.xlu0 %2568
    %2570 = vrot.lane.b32.xlu0 %v2456, 28
    %v2571 = vpop.permute.xlu0 %2570
    %2572 = vrot.lane.b32.xlu0 %v2439, 28
    %v2573 = vpop.permute.xlu0 %2572
    %vm2574 = vcmask 228352
    %v2575 = vsel %vm2574, %v2541, %v2543
    %v2576 = vsel %vm2574, %v2543, %v2545
    %v2577 = vsel %vm2574, %v2545, %v2547
    %v2578 = vsel %vm2574, %v2547, %v2549
    %v2579 = vsel %vm2574, %v2549, %v2551
    %v2580 = vsel %vm2574, %v2551, %v2553
    %v2581 = vsel %vm2574, %v2553, %v2555
    %v2582 = vsel %vm2574, %v2555, %v2557
    %v2583 = vsel %vm2574, %v2557, %v2559
    %v2584 = vsel %vm2574, %v2559, %v2561
    %v2585 = vsel %vm2574, %v2561, %v2563
    %v2586 = vsel %vm2574, %v2563, %v2565
    %v2587 = vsel %vm2574, %v2565, %v2567
    %v2588 = vsel %vm2574, %v2567, %v2569
    %v2589 = vsel %vm2574, %v2569, %v2571
    %v2590 = vsel %vm2574, %v2571, %v2573
    %2607 = vst [vmem:[#allocation3 + $0xb00] sm:$0xf] %v2575
    %2608 = vst [vmem:[#allocation3 + $0xb08] sm:$0xf] %v2576
    %2609 = vst [vmem:[#allocation3 + $0xb10] sm:$0xf] %v2577
    %2610 = vst [vmem:[#allocation3 + $0xb18] sm:$0xf] %v2578
    %2611 = vst [vmem:[#allocation3 + $0xb20] sm:$0xf] %v2579
    %2612 = vst [vmem:[#allocation3 + $0xb28] sm:$0xf] %v2580
    %2613 = vst [vmem:[#allocation3 + $0xb30] sm:$0xf] %v2581
    %2614 = vst [vmem:[#allocation3 + $0xb38] sm:$0xf] %v2582
    %2615 = vst [vmem:[#allocation3 + $0xb40] sm:$0xf] %v2583
    %2616 = vst [vmem:[#allocation3 + $0xb48] sm:$0xf] %v2584
    %2617 = vst [vmem:[#allocation3 + $0xb50] sm:$0xf] %v2585
    %2618 = vst [vmem:[#allocation3 + $0xb58] sm:$0xf] %v2586
    %2619 = vst [vmem:[#allocation3 + $0xb60] sm:$0xf] %v2587
    %2620 = vst [vmem:[#allocation3 + $0xb68] sm:$0xf] %v2588
    %2621 = vst [vmem:[#allocation3 + $0xb70] sm:$0xf] %v2589
    %2622 = vst [vmem:[#allocation3 + $0xb78] sm:$0xf] %v2590
    %2623 = vrot.lane.b32.xlu0 %v2431, 27
    %v2624 = vpop.permute.xlu0 %2623
    %2625 = vrot.lane.b32.xlu0 %v2449, 27
    %v2626 = vpop.permute.xlu0 %2625
    %2627 = vrot.lane.b32.xlu0 %v2432, 27
    %v2628 = vpop.permute.xlu0 %2627
    %2629 = vrot.lane.b32.xlu0 %v2450, 27
    %v2630 = vpop.permute.xlu0 %2629
    %2631 = vrot.lane.b32.xlu0 %v2433, 27
    %v2632 = vpop.permute.xlu0 %2631
    %2633 = vrot.lane.b32.xlu0 %v2451, 27
    %v2634 = vpop.permute.xlu0 %2633
    %2635 = vrot.lane.b32.xlu0 %v2434, 27
    %v2636 = vpop.permute.xlu0 %2635
    %2637 = vrot.lane.b32.xlu0 %v2452, 27
    %v2638 = vpop.permute.xlu0 %2637
    %2639 = vrot.lane.b32.xlu0 %v2435, 27
    %v2640 = vpop.permute.xlu0 %2639
    %2641 = vrot.lane.b32.xlu0 %v2453, 27
    %v2642 = vpop.permute.xlu0 %2641
    %2643 = vrot.lane.b32.xlu0 %v2436, 27
    %v2644 = vpop.permute.xlu0 %2643
    %2645 = vrot.lane.b32.xlu0 %v2454, 27
    %v2646 = vpop.permute.xlu0 %2645
    %2647 = vrot.lane.b32.xlu0 %v2437, 27
    %v2648 = vpop.permute.xlu0 %2647
    %2649 = vrot.lane.b32.xlu0 %v2455, 27
    %v2650 = vpop.permute.xlu0 %2649
    %2651 = vrot.lane.b32.xlu0 %v2438, 27
    %v2652 = vpop.permute.xlu0 %2651
    %2653 = vrot.lane.b32.xlu0 %v2456, 27
    %v2654 = vpop.permute.xlu0 %2653
    %2655 = vrot.lane.b32.xlu0 %v2439, 27
    %v2656 = vpop.permute.xlu0 %2655
    %vm2657 = vcmask 220160
    %v2658 = vsel %vm2657, %v2624, %v2626
    %v2659 = vsel %vm2657, %v2626, %v2628
    %v2660 = vsel %vm2657, %v2628, %v2630
    %v2661 = vsel %vm2657, %v2630, %v2632
    %v2662 = vsel %vm2657, %v2632, %v2634
    %v2663 = vsel %vm2657, %v2634, %v2636
    %v2664 = vsel %vm2657, %v2636, %v2638
    %v2665 = vsel %vm2657, %v2638, %v2640
    %v2666 = vsel %vm2657, %v2640, %v2642
    %v2667 = vsel %vm2657, %v2642, %v2644
    %v2668 = vsel %vm2657, %v2644, %v2646
    %v2669 = vsel %vm2657, %v2646, %v2648
    %v2670 = vsel %vm2657, %v2648, %v2650
    %v2671 = vsel %vm2657, %v2650, %v2652
    %v2672 = vsel %vm2657, %v2652, %v2654
    %v2673 = vsel %vm2657, %v2654, %v2656
    %2690 = vst [vmem:[#allocation3 + $0xb80] sm:$0xf] %v2658
    %2691 = vst [vmem:[#allocation3 + $0xb88] sm:$0xf] %v2659
    %2692 = vst [vmem:[#allocation3 + $0xb90] sm:$0xf] %v2660
    %2693 = vst [vmem:[#allocation3 + $0xb98] sm:$0xf] %v2661
    %2694 = vst [vmem:[#allocation3 + $0xba0] sm:$0xf] %v2662
    %2695 = vst [vmem:[#allocation3 + $0xba8] sm:$0xf] %v2663
    %2696 = vst [vmem:[#allocation3 + $0xbb0] sm:$0xf] %v2664
    %2697 = vst [vmem:[#allocation3 + $0xbb8] sm:$0xf] %v2665
    %2698 = vst [vmem:[#allocation3 + $0xbc0] sm:$0xf] %v2666
    %2699 = vst [vmem:[#allocation3 + $0xbc8] sm:$0xf] %v2667
    %2700 = vst [vmem:[#allocation3 + $0xbd0] sm:$0xf] %v2668
    %2701 = vst [vmem:[#allocation3 + $0xbd8] sm:$0xf] %v2669
    %2702 = vst [vmem:[#allocation3 + $0xbe0] sm:$0xf] %v2670
    %2703 = vst [vmem:[#allocation3 + $0xbe8] sm:$0xf] %v2671
    %2704 = vst [vmem:[#allocation3 + $0xbf0] sm:$0xf] %v2672
    %2705 = vst [vmem:[#allocation3 + $0xbf8] sm:$0xf] %v2673
    %v2706 = vld [vmem:[#allocation4 + $0x4] sm:$0xff]
    %v2707 = vld [vmem:[#allocation4 + $0xc] sm:$0xff]
    %v2708 = vld [vmem:[#allocation4 + $0x14] sm:$0xff]
    %v2709 = vld [vmem:[#allocation4 + $0x1c] sm:$0xff]
    %v2710 = vld [vmem:[#allocation4 + $0x24] sm:$0xff]
    %v2711 = vld [vmem:[#allocation4 + $0x2c] sm:$0xff]
    %v2712 = vld [vmem:[#allocation4 + $0x34] sm:$0xff]
    %v2713 = vld [vmem:[#allocation4 + $0x3c] sm:$0xff]
    %v2714 = vld [vmem:[#allocation4 + $0x44] sm:$0xf]
    %v2724 = vcombine.high %v2706, %v2706
    %v2725 = vcombine.high %v2707, %v2707
    %v2726 = vcombine.high %v2708, %v2708
    %v2727 = vcombine.high %v2709, %v2709
    %v2728 = vcombine.high %v2710, %v2710
    %v2729 = vcombine.high %v2711, %v2711
    %v2730 = vcombine.high %v2712, %v2712
    %v2731 = vcombine.high %v2713, %v2713
    %2732 = vrot.lane.b32.xlu0 %v2706, 19
    %v2733 = vpop.permute.xlu0 %2732
    %2734 = vrot.lane.b32.xlu0 %v2724, 19
    %v2735 = vpop.permute.xlu0 %2734
    %2736 = vrot.lane.b32.xlu0 %v2707, 19
    %v2737 = vpop.permute.xlu0 %2736
    %2738 = vrot.lane.b32.xlu0 %v2725, 19
    %v2739 = vpop.permute.xlu0 %2738
    %2740 = vrot.lane.b32.xlu0 %v2708, 19
    %v2741 = vpop.permute.xlu0 %2740
    %2742 = vrot.lane.b32.xlu0 %v2726, 19
    %v2743 = vpop.permute.xlu0 %2742
    %2744 = vrot.lane.b32.xlu0 %v2709, 19
    %v2745 = vpop.permute.xlu0 %2744
    %2746 = vrot.lane.b32.xlu0 %v2727, 19
    %v2747 = vpop.permute.xlu0 %2746
    %2748 = vrot.lane.b32.xlu0 %v2710, 19
    %v2749 = vpop.permute.xlu0 %2748
    %2750 = vrot.lane.b32.xlu0 %v2728, 19
    %v2751 = vpop.permute.xlu0 %2750
    %2752 = vrot.lane.b32.xlu0 %v2711, 19
    %v2753 = vpop.permute.xlu0 %2752
    %2754 = vrot.lane.b32.xlu0 %v2729, 19
    %v2755 = vpop.permute.xlu0 %2754
    %2756 = vrot.lane.b32.xlu0 %v2712, 19
    %v2757 = vpop.permute.xlu0 %2756
    %2758 = vrot.lane.b32.xlu0 %v2730, 19
    %v2759 = vpop.permute.xlu0 %2758
    %2760 = vrot.lane.b32.xlu0 %v2713, 19
    %v2761 = vpop.permute.xlu0 %2760
    %2762 = vrot.lane.b32.xlu0 %v2731, 19
    %v2763 = vpop.permute.xlu0 %2762
    %2764 = vrot.lane.b32.xlu0 %v2714, 19
    %v2765 = vpop.permute.xlu0 %2764
    %vm2766 = vcmask 154624
    %v2767 = vsel %vm2766, %v2733, %v2735
    %v2768 = vsel %vm2766, %v2735, %v2737
    %v2769 = vsel %vm2766, %v2737, %v2739
    %v2770 = vsel %vm2766, %v2739, %v2741
    %v2771 = vsel %vm2766, %v2741, %v2743
    %v2772 = vsel %vm2766, %v2743, %v2745
    %v2773 = vsel %vm2766, %v2745, %v2747
    %v2774 = vsel %vm2766, %v2747, %v2749
    %v2775 = vsel %vm2766, %v2749, %v2751
    %v2776 = vsel %vm2766, %v2751, %v2753
    %v2777 = vsel %vm2766, %v2753, %v2755
    %v2778 = vsel %vm2766, %v2755, %v2757
    %v2779 = vsel %vm2766, %v2757, %v2759
    %v2780 = vsel %vm2766, %v2759, %v2761
    %v2781 = vsel %vm2766, %v2761, %v2763
    %v2782 = vsel %vm2766, %v2763, %v2765
    %2799 = vst [vmem:[#allocation3 + $0xc00] sm:$0xf] %v2767
    %2800 = vst [vmem:[#allocation3 + $0xc08] sm:$0xf] %v2768
    %2801 = vst [vmem:[#allocation3 + $0xc10] sm:$0xf] %v2769
    %2802 = vst [vmem:[#allocation3 + $0xc18] sm:$0xf] %v2770
    %2803 = vst [vmem:[#allocation3 + $0xc20] sm:$0xf] %v2771
    %2804 = vst [vmem:[#allocation3 + $0xc28] sm:$0xf] %v2772
    %2805 = vst [vmem:[#allocation3 + $0xc30] sm:$0xf] %v2773
    %2806 = vst [vmem:[#allocation3 + $0xc38] sm:$0xf] %v2774
    %2807 = vst [vmem:[#allocation3 + $0xc40] sm:$0xf] %v2775
    %2808 = vst [vmem:[#allocation3 + $0xc48] sm:$0xf] %v2776
    %2809 = vst [vmem:[#allocation3 + $0xc50] sm:$0xf] %v2777
    %2810 = vst [vmem:[#allocation3 + $0xc58] sm:$0xf] %v2778
    %2811 = vst [vmem:[#allocation3 + $0xc60] sm:$0xf] %v2779
    %2812 = vst [vmem:[#allocation3 + $0xc68] sm:$0xf] %v2780
    %2813 = vst [vmem:[#allocation3 + $0xc70] sm:$0xf] %v2781
    %2814 = vst [vmem:[#allocation3 + $0xc78] sm:$0xf] %v2782
    %2815 = vrot.lane.b32.xlu0 %v2706, 18
    %v2816 = vpop.permute.xlu0 %2815
    %2817 = vrot.lane.b32.xlu0 %v2724, 18
    %v2818 = vpop.permute.xlu0 %2817
    %2819 = vrot.lane.b32.xlu0 %v2707, 18
    %v2820 = vpop.permute.xlu0 %2819
    %2821 = vrot.lane.b32.xlu0 %v2725, 18
    %v2822 = vpop.permute.xlu0 %2821
    %2823 = vrot.lane.b32.xlu0 %v2708, 18
    %v2824 = vpop.permute.xlu0 %2823
    %2825 = vrot.lane.b32.xlu0 %v2726, 18
    %v2826 = vpop.permute.xlu0 %2825
    %2827 = vrot.lane.b32.xlu0 %v2709, 18
    %v2828 = vpop.permute.xlu0 %2827
    %2829 = vrot.lane.b32.xlu0 %v2727, 18
    %v2830 = vpop.permute.xlu0 %2829
    %2831 = vrot.lane.b32.xlu0 %v2710, 18
    %v2832 = vpop.permute.xlu0 %2831
    %2833 = vrot.lane.b32.xlu0 %v2728, 18
    %v2834 = vpop.permute.xlu0 %2833
    %2835 = vrot.lane.b32.xlu0 %v2711, 18
    %v2836 = vpop.permute.xlu0 %2835
    %2837 = vrot.lane.b32.xlu0 %v2729, 18
    %v2838 = vpop.permute.xlu0 %2837
    %2839 = vrot.lane.b32.xlu0 %v2712, 18
    %v2840 = vpop.permute.xlu0 %2839
    %2841 = vrot.lane.b32.xlu0 %v2730, 18
    %v2842 = vpop.permute.xlu0 %2841
    %2843 = vrot.lane.b32.xlu0 %v2713, 18
    %v2844 = vpop.permute.xlu0 %2843
    %2845 = vrot.lane.b32.xlu0 %v2731, 18
    %v2846 = vpop.permute.xlu0 %2845
    %2847 = vrot.lane.b32.xlu0 %v2714, 18
    %v2848 = vpop.permute.xlu0 %2847
    %vm2849 = vcmask 146432
    %v2850 = vsel %vm2849, %v2816, %v2818
    %v2851 = vsel %vm2849, %v2818, %v2820
    %v2852 = vsel %vm2849, %v2820, %v2822
    %v2853 = vsel %vm2849, %v2822, %v2824
    %v2854 = vsel %vm2849, %v2824, %v2826
    %v2855 = vsel %vm2849, %v2826, %v2828
    %v2856 = vsel %vm2849, %v2828, %v2830
    %v2857 = vsel %vm2849, %v2830, %v2832
    %v2858 = vsel %vm2849, %v2832, %v2834
    %v2859 = vsel %vm2849, %v2834, %v2836
    %v2860 = vsel %vm2849, %v2836, %v2838
    %v2861 = vsel %vm2849, %v2838, %v2840
    %v2862 = vsel %vm2849, %v2840, %v2842
    %v2863 = vsel %vm2849, %v2842, %v2844
    %v2864 = vsel %vm2849, %v2844, %v2846
    %v2865 = vsel %vm2849, %v2846, %v2848
    %2882 = vst [vmem:[#allocation3 + $0xc80] sm:$0xf] %v2850
    %2883 = vst [vmem:[#allocation3 + $0xc88] sm:$0xf] %v2851
    %2884 = vst [vmem:[#allocation3 + $0xc90] sm:$0xf] %v2852
    %2885 = vst [vmem:[#allocation3 + $0xc98] sm:$0xf] %v2853
    %2886 = vst [vmem:[#allocation3 + $0xca0] sm:$0xf] %v2854
    %2887 = vst [vmem:[#allocation3 + $0xca8] sm:$0xf] %v2855
    %2888 = vst [vmem:[#allocation3 + $0xcb0] sm:$0xf] %v2856
    %2889 = vst [vmem:[#allocation3 + $0xcb8] sm:$0xf] %v2857
    %2890 = vst [vmem:[#allocation3 + $0xcc0] sm:$0xf] %v2858
    %2891 = vst [vmem:[#allocation3 + $0xcc8] sm:$0xf] %v2859
    %2892 = vst [vmem:[#allocation3 + $0xcd0] sm:$0xf] %v2860
    %2893 = vst [vmem:[#allocation3 + $0xcd8] sm:$0xf] %v2861
    %2894 = vst [vmem:[#allocation3 + $0xce0] sm:$0xf] %v2862
    %2895 = vst [vmem:[#allocation3 + $0xce8] sm:$0xf] %v2863
    %2896 = vst [vmem:[#allocation3 + $0xcf0] sm:$0xf] %v2864
    %2897 = vst [vmem:[#allocation3 + $0xcf8] sm:$0xf] %v2865
    %2898 = vrot.lane.b32.xlu0 %v2706, 17
    %v2899 = vpop.permute.xlu0 %2898
    %2900 = vrot.lane.b32.xlu0 %v2724, 17
    %v2901 = vpop.permute.xlu0 %2900
    %2902 = vrot.lane.b32.xlu0 %v2707, 17
    %v2903 = vpop.permute.xlu0 %2902
    %2904 = vrot.lane.b32.xlu0 %v2725, 17
    %v2905 = vpop.permute.xlu0 %2904
    %2906 = vrot.lane.b32.xlu0 %v2708, 17
    %v2907 = vpop.permute.xlu0 %2906
    %2908 = vrot.lane.b32.xlu0 %v2726, 17
    %v2909 = vpop.permute.xlu0 %2908
    %2910 = vrot.lane.b32.xlu0 %v2709, 17
    %v2911 = vpop.permute.xlu0 %2910
    %2912 = vrot.lane.b32.xlu0 %v2727, 17
    %v2913 = vpop.permute.xlu0 %2912
    %2914 = vrot.lane.b32.xlu0 %v2710, 17
    %v2915 = vpop.permute.xlu0 %2914
    %2916 = vrot.lane.b32.xlu0 %v2728, 17
    %v2917 = vpop.permute.xlu0 %2916
    %2918 = vrot.lane.b32.xlu0 %v2711, 17
    %v2919 = vpop.permute.xlu0 %2918
    %2920 = vrot.lane.b32.xlu0 %v2729, 17
    %v2921 = vpop.permute.xlu0 %2920
    %2922 = vrot.lane.b32.xlu0 %v2712, 17
    %v2923 = vpop.permute.xlu0 %2922
    %2924 = vrot.lane.b32.xlu0 %v2730, 17
    %v2925 = vpop.permute.xlu0 %2924
    %2926 = vrot.lane.b32.xlu0 %v2713, 17
    %v2927 = vpop.permute.xlu0 %2926
    %2928 = vrot.lane.b32.xlu0 %v2731, 17
    %v2929 = vpop.permute.xlu0 %2928
    %2930 = vrot.lane.b32.xlu0 %v2714, 17
    %v2931 = vpop.permute.xlu0 %2930
    %vm2932 = vcmask 138240
    %v2933 = vsel %vm2932, %v2899, %v2901
    %v2934 = vsel %vm2932, %v2901, %v2903
    %v2935 = vsel %vm2932, %v2903, %v2905
    %v2936 = vsel %vm2932, %v2905, %v2907
    %v2937 = vsel %vm2932, %v2907, %v2909
    %v2938 = vsel %vm2932, %v2909, %v2911
    %v2939 = vsel %vm2932, %v2911, %v2913
    %v2940 = vsel %vm2932, %v2913, %v2915
    %v2941 = vsel %vm2932, %v2915, %v2917
    %v2942 = vsel %vm2932, %v2917, %v2919
    %v2943 = vsel %vm2932, %v2919, %v2921
    %v2944 = vsel %vm2932, %v2921, %v2923
    %v2945 = vsel %vm2932, %v2923, %v2925
    %v2946 = vsel %vm2932, %v2925, %v2927
    %v2947 = vsel %vm2932, %v2927, %v2929
    %v2948 = vsel %vm2932, %v2929, %v2931
    %2965 = vst [vmem:[#allocation3 + $0xd00] sm:$0xf] %v2933
    %2966 = vst [vmem:[#allocation3 + $0xd08] sm:$0xf] %v2934
    %2967 = vst [vmem:[#allocation3 + $0xd10] sm:$0xf] %v2935
    %2968 = vst [vmem:[#allocation3 + $0xd18] sm:$0xf] %v2936
    %2969 = vst [vmem:[#allocation3 + $0xd20] sm:$0xf] %v2937
    %2970 = vst [vmem:[#allocation3 + $0xd28] sm:$0xf] %v2938
    %2971 = vst [vmem:[#allocation3 + $0xd30] sm:$0xf] %v2939
    %2972 = vst [vmem:[#allocation3 + $0xd38] sm:$0xf] %v2940
    %2973 = vst [vmem:[#allocation3 + $0xd40] sm:$0xf] %v2941
    %2974 = vst [vmem:[#allocation3 + $0xd48] sm:$0xf] %v2942
    %2975 = vst [vmem:[#allocation3 + $0xd50] sm:$0xf] %v2943
    %2976 = vst [vmem:[#allocation3 + $0xd58] sm:$0xf] %v2944
    %2977 = vst [vmem:[#allocation3 + $0xd60] sm:$0xf] %v2945
    %2978 = vst [vmem:[#allocation3 + $0xd68] sm:$0xf] %v2946
    %2979 = vst [vmem:[#allocation3 + $0xd70] sm:$0xf] %v2947
    %2980 = vst [vmem:[#allocation3 + $0xd78] sm:$0xf] %v2948
    %v2981 = vld [vmem:[%s2] sm:$0xff]
    %v2982 = vld [vmem:[%s2 + $0x8] sm:$0xff]
    %v2983 = vld [vmem:[#allocation3] sm:$0xff]
    %v2984 = vld [vmem:[#allocation3 + $0x8] sm:$0xff]
    %v2985 = vld [vmem:[#allocation3 + $0x10] sm:$0xff]
    %v2986 = vld [vmem:[#allocation3 + $0x18] sm:$0xff]
    %v2987 = vld [vmem:[#allocation3 + $0x20] sm:$0xff]
    %v2988 = vld [vmem:[#allocation3 + $0x28] sm:$0xff]
    %v2989 = vld [vmem:[#allocation3 + $0x30] sm:$0xff]
    %v2990 = vld [vmem:[#allocation3 + $0x38] sm:$0xff]
    %v2991 = vld [vmem:[#allocation3 + $0x40] sm:$0xff]
    %v2992 = vld [vmem:[#allocation3 + $0x48] sm:$0xff]
    %v2993 = vld [vmem:[#allocation3 + $0x50] sm:$0xff]
    %v2994 = vld [vmem:[#allocation3 + $0x58] sm:$0xff]
    %v2995 = vld [vmem:[#allocation3 + $0x60] sm:$0xff]
    %v2996 = vld [vmem:[#allocation3 + $0x68] sm:$0xff]
    %v2997 = vld [vmem:[#allocation3 + $0x70] sm:$0xff]
    %v2998 = vld [vmem:[#allocation3 + $0x78] sm:$0xff]
    %v2999 = vld [vmem:[#allocation3 + $0x80] sm:$0xff]
    %v3000 = vld [vmem:[#allocation3 + $0x88] sm:$0xff]
    %v3001 = vld [vmem:[#allocation3 + $0x90] sm:$0xff]
    %v3002 = vld [vmem:[#allocation3 + $0x98] sm:$0xff]
    %v3003 = vld [vmem:[#allocation3 + $0xa0] sm:$0xff]
    %v3004 = vld [vmem:[#allocation3 + $0xa8] sm:$0xff]
    %v3005 = vld [vmem:[#allocation3 + $0xb0] sm:$0xff]
    %v3006 = vld [vmem:[#allocation3 + $0xb8] sm:$0xff]
    %v3007 = vld [vmem:[#allocation3 + $0xc0] sm:$0xff]
    %v3008 = vld [vmem:[#allocation3 + $0xc8] sm:$0xff]
    %v3009 = vld [vmem:[#allocation3 + $0xd0] sm:$0xff]
    %v3010 = vld [vmem:[#allocation3 + $0xd8] sm:$0xff]
    %v3011 = vld [vmem:[#allocation3 + $0xe0] sm:$0xff]
    %v3012 = vld [vmem:[#allocation3 + $0xe8] sm:$0xff]
    %v3013 = vld [vmem:[#allocation3 + $0xf0] sm:$0xff]
    %v3014 = vld [vmem:[#allocation3 + $0xf8] sm:$0xff]
    %v3015 = vld [vmem:[#allocation3 + $0x100] sm:$0xff]
    %v3016 = vld [vmem:[#allocation3 + $0x108] sm:$0xff]
    %v3017 = vld [vmem:[#allocation3 + $0x110] sm:$0xff]
    %v3018 = vld [vmem:[#allocation3 + $0x118] sm:$0xff]
    %v3019 = vld [vmem:[#allocation3 + $0x120] sm:$0xff]
    %v3020 = vld [vmem:[#allocation3 + $0x128] sm:$0xff]
    %v3021 = vld [vmem:[#allocation3 + $0x130] sm:$0xff]
    %v3022 = vld [vmem:[#allocation3 + $0x138] sm:$0xff]
    %v3023 = vld [vmem:[#allocation3 + $0x140] sm:$0xff]
    %v3024 = vld [vmem:[#allocation3 + $0x148] sm:$0xff]
    %v3025 = vld [vmem:[#allocation3 + $0x150] sm:$0xff]
    %v3026 = vld [vmem:[#allocation3 + $0x158] sm:$0xff]
    %v3027 = vld [vmem:[#allocation3 + $0x160] sm:$0xff]
    %v3028 = vld [vmem:[#allocation3 + $0x168] sm:$0xff]
    %v3029 = vld [vmem:[#allocation3 + $0x170] sm:$0xff]
    %v3030 = vld [vmem:[#allocation3 + $0x178] sm:$0xff]
    %v3031 = vld [vmem:[#allocation3 + $0x180] sm:$0xff]
    %v3032 = vld [vmem:[#allocation3 + $0x188] sm:$0xff]
    %v3033 = vld [vmem:[#allocation3 + $0x190] sm:$0xff]
    %v3034 = vld [vmem:[#allocation3 + $0x198] sm:$0xff]
    %v3035 = vld [vmem:[#allocation3 + $0x1a0] sm:$0xff]
    %v3036 = vld [vmem:[#allocation3 + $0x1a8] sm:$0xff]
    %v3037 = vld [vmem:[#allocation3 + $0x1b0] sm:$0xff]
    %v3038 = vld [vmem:[#allocation3 + $0x1b8] sm:$0xff]
    %v3039 = vld [vmem:[#allocation3 + $0x1c0] sm:$0xff]
    %v3040 = vld [vmem:[#allocation3 + $0x1c8] sm:$0xff]
    %v3041 = vld [vmem:[#allocation3 + $0x1d0] sm:$0xff]
    %v3042 = vld [vmem:[#allocation3 + $0x1d8] sm:$0xff]
    %v3043 = vld [vmem:[#allocation3 + $0x1e0] sm:$0xff]
    %v3044 = vld [vmem:[#allocation3 + $0x1e8] sm:$0xff]
    %v3045 = vld [vmem:[#allocation3 + $0x1f0] sm:$0xff]
    %v3046 = vld [vmem:[#allocation3 + $0x1f8] sm:$0xff]
    %v3047 = vld [vmem:[#allocation3 + $0x200] sm:$0xff]
    %v3048 = vld [vmem:[#allocation3 + $0x208] sm:$0xff]
    %v3049 = vld [vmem:[#allocation3 + $0x210] sm:$0xff]
    %v3050 = vld [vmem:[#allocation3 + $0x218] sm:$0xff]
    %v3051 = vld [vmem:[#allocation3 + $0x220] sm:$0xff]
    %v3052 = vld [vmem:[#allocation3 + $0x228] sm:$0xff]
    %v3053 = vld [vmem:[#allocation3 + $0x230] sm:$0xff]
    %v3054 = vld [vmem:[#allocation3 + $0x238] sm:$0xff]
    %v3055 = vld [vmem:[#allocation3 + $0x240] sm:$0xff]
    %v3056 = vld [vmem:[#allocation3 + $0x248] sm:$0xff]
    %v3057 = vld [vmem:[#allocation3 + $0x250] sm:$0xff]
    %v3058 = vld [vmem:[#allocation3 + $0x258] sm:$0xff]
    %v3059 = vld [vmem:[#allocation3 + $0x260] sm:$0xff]
    %v3060 = vld [vmem:[#allocation3 + $0x268] sm:$0xff]
    %v3061 = vld [vmem:[#allocation3 + $0x270] sm:$0xff]
    %v3062 = vld [vmem:[#allocation3 + $0x278] sm:$0xff]
    %v3063 = vld [vmem:[#allocation3 + $0x280] sm:$0xff]
    %v3064 = vld [vmem:[#allocation3 + $0x288] sm:$0xff]
    %v3065 = vld [vmem:[#allocation3 + $0x290] sm:$0xff]
    %v3066 = vld [vmem:[#allocation3 + $0x298] sm:$0xff]
    %v3067 = vld [vmem:[#allocation3 + $0x2a0] sm:$0xff]
    %v3068 = vld [vmem:[#allocation3 + $0x2a8] sm:$0xff]
    %v3069 = vld [vmem:[#allocation3 + $0x2b0] sm:$0xff]
    %v3070 = vld [vmem:[#allocation3 + $0x2b8] sm:$0xff]
    %v3071 = vld [vmem:[#allocation3 + $0x2c0] sm:$0xff]
    %v3072 = vld [vmem:[#allocation3 + $0x2c8] sm:$0xff]
    %v3073 = vld [vmem:[#allocation3 + $0x2d0] sm:$0xff]
    %v3074 = vld [vmem:[#allocation3 + $0x2d8] sm:$0xff]
    %v3075 = vld [vmem:[#allocation3 + $0x2e0] sm:$0xff]
    %v3076 = vld [vmem:[#allocation3 + $0x2e8] sm:$0xff]
    %v3077 = vld [vmem:[#allocation3 + $0x2f0] sm:$0xff]
    %v3078 = vld [vmem:[#allocation3 + $0x2f8] sm:$0xff]
    %v3079 = vld [vmem:[#allocation3 + $0x300] sm:$0xff]
    %v3080 = vld [vmem:[#allocation3 + $0x308] sm:$0xff]
    %v3081 = vld [vmem:[#allocation3 + $0x310] sm:$0xff]
    %v3082 = vld [vmem:[#allocation3 + $0x318] sm:$0xff]
    %v3083 = vld [vmem:[#allocation3 + $0x320] sm:$0xff]
    %v3084 = vld [vmem:[#allocation3 + $0x328] sm:$0xff]
    %v3085 = vld [vmem:[#allocation3 + $0x330] sm:$0xff]
    %v3086 = vld [vmem:[#allocation3 + $0x338] sm:$0xff]
    %v3087 = vld [vmem:[#allocation3 + $0x340] sm:$0xff]
    %v3088 = vld [vmem:[#allocation3 + $0x348] sm:$0xff]
    %v3089 = vld [vmem:[#allocation3 + $0x350] sm:$0xff]
    %v3090 = vld [vmem:[#allocation3 + $0x358] sm:$0xff]
    %v3091 = vld [vmem:[#allocation3 + $0x360] sm:$0xff]
    %v3092 = vld [vmem:[#allocation3 + $0x368] sm:$0xff]
    %v3093 = vld [vmem:[#allocation3 + $0x370] sm:$0xff]
    %v3094 = vld [vmem:[#allocation3 + $0x378] sm:$0xff]
    %v3095 = vld [vmem:[#allocation3 + $0x380] sm:$0xff]
    %v3096 = vld [vmem:[#allocation3 + $0x388] sm:$0xff]
    %v3097 = vld [vmem:[#allocation3 + $0x390] sm:$0xff]
    %v3098 = vld [vmem:[#allocation3 + $0x398] sm:$0xff]
    %v3099 = vld [vmem:[#allocation3 + $0x3a0] sm:$0xff]
    %v3100 = vld [vmem:[#allocation3 + $0x3a8] sm:$0xff]
    %v3101 = vld [vmem:[#allocation3 + $0x3b0] sm:$0xff]
    %v3102 = vld [vmem:[#allocation3 + $0x3b8] sm:$0xff]
    %v3103 = vld [vmem:[#allocation3 + $0x3c0] sm:$0xff]
    %v3104 = vld [vmem:[#allocation3 + $0x3c8] sm:$0xff]
    %v3105 = vld [vmem:[#allocation3 + $0x3d0] sm:$0xff]
    %v3106 = vld [vmem:[#allocation3 + $0x3d8] sm:$0xff]
    %v3107 = vld [vmem:[#allocation3 + $0x3e0] sm:$0xff]
    %v3108 = vld [vmem:[#allocation3 + $0x3e8] sm:$0xff]
    %v3109 = vld [vmem:[#allocation3 + $0x3f0] sm:$0xff]
    %v3110 = vld [vmem:[#allocation3 + $0x3f8] sm:$0xff]
    %v3111 = vld [vmem:[#allocation3 + $0x400] sm:$0xff]
    %v3112 = vld [vmem:[#allocation3 + $0x408] sm:$0xff]
    %v3113 = vld [vmem:[#allocation3 + $0x410] sm:$0xff]
    %v3114 = vld [vmem:[#allocation3 + $0x418] sm:$0xff]
    %v3115 = vld [vmem:[#allocation3 + $0x420] sm:$0xff]
    %v3116 = vld [vmem:[#allocation3 + $0x428] sm:$0xff]
    %v3117 = vld [vmem:[#allocation3 + $0x430] sm:$0xff]
    %v3118 = vld [vmem:[#allocation3 + $0x438] sm:$0xff]
    %v3119 = vld [vmem:[#allocation3 + $0x440] sm:$0xff]
    %v3120 = vld [vmem:[#allocation3 + $0x448] sm:$0xff]
    %v3121 = vld [vmem:[#allocation3 + $0x450] sm:$0xff]
    %v3122 = vld [vmem:[#allocation3 + $0x458] sm:$0xff]
    %v3123 = vld [vmem:[#allocation3 + $0x460] sm:$0xff]
    %v3124 = vld [vmem:[#allocation3 + $0x468] sm:$0xff]
    %v3125 = vld [vmem:[#allocation3 + $0x470] sm:$0xff]
    %v3126 = vld [vmem:[#allocation3 + $0x478] sm:$0xff]
    %v3127 = vld [vmem:[#allocation3 + $0x480] sm:$0xff]
    %v3128 = vld [vmem:[#allocation3 + $0x488] sm:$0xff]
    %v3129 = vld [vmem:[#allocation3 + $0x490] sm:$0xff]
    %v3130 = vld [vmem:[#allocation3 + $0x498] sm:$0xff]
    %v3131 = vld [vmem:[#allocation3 + $0x4a0] sm:$0xff]
    %v3132 = vld [vmem:[#allocation3 + $0x4a8] sm:$0xff]
    %v3133 = vld [vmem:[#allocation3 + $0x4b0] sm:$0xff]
    %v3134 = vld [vmem:[#allocation3 + $0x4b8] sm:$0xff]
    %v3135 = vld [vmem:[#allocation3 + $0x4c0] sm:$0xff]
    %v3136 = vld [vmem:[#allocation3 + $0x4c8] sm:$0xff]
    %v3137 = vld [vmem:[#allocation3 + $0x4d0] sm:$0xff]
    %v3138 = vld [vmem:[#allocation3 + $0x4d8] sm:$0xff]
    %v3139 = vld [vmem:[#allocation3 + $0x4e0] sm:$0xff]
    %v3140 = vld [vmem:[#allocation3 + $0x4e8] sm:$0xff]
    %v3141 = vld [vmem:[#allocation3 + $0x4f0] sm:$0xff]
    %v3142 = vld [vmem:[#allocation3 + $0x4f8] sm:$0xff]
    %v3143 = vld [vmem:[#allocation3 + $0x500] sm:$0xff]
    %v3144 = vld [vmem:[#allocation3 + $0x508] sm:$0xff]
    %v3145 = vld [vmem:[#allocation3 + $0x510] sm:$0xff]
    %v3146 = vld [vmem:[#allocation3 + $0x518] sm:$0xff]
    %v3147 = vld [vmem:[#allocation3 + $0x520] sm:$0xff]
    %v3148 = vld [vmem:[#allocation3 + $0x528] sm:$0xff]
    %v3149 = vld [vmem:[#allocation3 + $0x530] sm:$0xff]
    %v3150 = vld [vmem:[#allocation3 + $0x538] sm:$0xff]
    %v3151 = vld [vmem:[#allocation3 + $0x540] sm:$0xff]
    %v3152 = vld [vmem:[#allocation3 + $0x548] sm:$0xff]
    %v3153 = vld [vmem:[#allocation3 + $0x550] sm:$0xff]
    %v3154 = vld [vmem:[#allocation3 + $0x558] sm:$0xff]
    %v3155 = vld [vmem:[#allocation3 + $0x560] sm:$0xff]
    %v3156 = vld [vmem:[#allocation3 + $0x568] sm:$0xff]
    %v3157 = vld [vmem:[#allocation3 + $0x570] sm:$0xff]
    %v3158 = vld [vmem:[#allocation3 + $0x578] sm:$0xff]
    %v3159 = vld [vmem:[#allocation3 + $0x580] sm:$0xff]
    %v3160 = vld [vmem:[#allocation3 + $0x588] sm:$0xff]
    %v3161 = vld [vmem:[#allocation3 + $0x590] sm:$0xff]
    %v3162 = vld [vmem:[#allocation3 + $0x598] sm:$0xff]
    %v3163 = vld [vmem:[#allocation3 + $0x5a0] sm:$0xff]
    %v3164 = vld [vmem:[#allocation3 + $0x5a8] sm:$0xff]
    %v3165 = vld [vmem:[#allocation3 + $0x5b0] sm:$0xff]
    %v3166 = vld [vmem:[#allocation3 + $0x5b8] sm:$0xff]
    %v3167 = vld [vmem:[#allocation3 + $0x5c0] sm:$0xff]
    %v3168 = vld [vmem:[#allocation3 + $0x5c8] sm:$0xff]
    %v3169 = vld [vmem:[#allocation3 + $0x5d0] sm:$0xff]
    %v3170 = vld [vmem:[#allocation3 + $0x5d8] sm:$0xff]
    %v3171 = vld [vmem:[#allocation3 + $0x5e0] sm:$0xff]
    %v3172 = vld [vmem:[#allocation3 + $0x5e8] sm:$0xff]
    %v3173 = vld [vmem:[#allocation3 + $0x5f0] sm:$0xff]
    %v3174 = vld [vmem:[#allocation3 + $0x5f8] sm:$0xff]
    %v3175 = vld [vmem:[#allocation3 + $0x600] sm:$0xff]
    %v3176 = vld [vmem:[#allocation3 + $0x608] sm:$0xff]
    %v3177 = vld [vmem:[#allocation3 + $0x610] sm:$0xff]
    %v3178 = vld [vmem:[#allocation3 + $0x618] sm:$0xff]
    %v3179 = vld [vmem:[#allocation3 + $0x620] sm:$0xff]
    %v3180 = vld [vmem:[#allocation3 + $0x628] sm:$0xff]
    %v3181 = vld [vmem:[#allocation3 + $0x630] sm:$0xff]
    %v3182 = vld [vmem:[#allocation3 + $0x638] sm:$0xff]
    %v3183 = vld [vmem:[#allocation3 + $0x640] sm:$0xff]
    %v3184 = vld [vmem:[#allocation3 + $0x648] sm:$0xff]
    %v3185 = vld [vmem:[#allocation3 + $0x650] sm:$0xff]
    %v3186 = vld [vmem:[#allocation3 + $0x658] sm:$0xff]
    %v3187 = vld [vmem:[#allocation3 + $0x660] sm:$0xff]
    %v3188 = vld [vmem:[#allocation3 + $0x668] sm:$0xff]
    %v3189 = vld [vmem:[#allocation3 + $0x670] sm:$0xff]
    %v3190 = vld [vmem:[#allocation3 + $0x678] sm:$0xff]
    %v3191 = vld [vmem:[#allocation3 + $0x680] sm:$0xff]
    %v3192 = vld [vmem:[#allocation3 + $0x688] sm:$0xff]
    %v3193 = vld [vmem:[#allocation3 + $0x690] sm:$0xff]
    %v3194 = vld [vmem:[#allocation3 + $0x698] sm:$0xff]
    %v3195 = vld [vmem:[#allocation3 + $0x6a0] sm:$0xff]
    %v3196 = vld [vmem:[#allocation3 + $0x6a8] sm:$0xff]
    %v3197 = vld [vmem:[#allocation3 + $0x6b0] sm:$0xff]
    %v3198 = vld [vmem:[#allocation3 + $0x6b8] sm:$0xff]
    %v3199 = vld [vmem:[#allocation3 + $0x6c0] sm:$0xff]
    %v3200 = vld [vmem:[#allocation3 + $0x6c8] sm:$0xff]
    %v3201 = vld [vmem:[#allocation3 + $0x6d0] sm:$0xff]
    %v3202 = vld [vmem:[#allocation3 + $0x6d8] sm:$0xff]
    %v3203 = vld [vmem:[#allocation3 + $0x6e0] sm:$0xff]
    %v3204 = vld [vmem:[#allocation3 + $0x6e8] sm:$0xff]
    %v3205 = vld [vmem:[#allocation3 + $0x6f0] sm:$0xff]
    %v3206 = vld [vmem:[#allocation3 + $0x6f8] sm:$0xff]
    %v3207 = vld [vmem:[#allocation3 + $0x700] sm:$0xff]
    %v3208 = vld [vmem:[#allocation3 + $0x708] sm:$0xff]
    %v3209 = vld [vmem:[#allocation3 + $0x710] sm:$0xff]
    %v3210 = vld [vmem:[#allocation3 + $0x718] sm:$0xff]
    %v3211 = vld [vmem:[#allocation3 + $0x720] sm:$0xff]
    %v3212 = vld [vmem:[#allocation3 + $0x728] sm:$0xff]
    %v3213 = vld [vmem:[#allocation3 + $0x730] sm:$0xff]
    %v3214 = vld [vmem:[#allocation3 + $0x738] sm:$0xff]
    %v3215 = vld [vmem:[#allocation3 + $0x740] sm:$0xff]
    %v3216 = vld [vmem:[#allocation3 + $0x748] sm:$0xff]
    %v3217 = vld [vmem:[#allocation3 + $0x750] sm:$0xff]
    %v3218 = vld [vmem:[#allocation3 + $0x758] sm:$0xff]
    %v3219 = vld [vmem:[#allocation3 + $0x760] sm:$0xff]
    %v3220 = vld [vmem:[#allocation3 + $0x768] sm:$0xff]
    %v3221 = vld [vmem:[#allocation3 + $0x770] sm:$0xff]
    %v3222 = vld [vmem:[#allocation3 + $0x778] sm:$0xff]
    %v3223 = vld [vmem:[#allocation3 + $0x780] sm:$0xff]
    %v3224 = vld [vmem:[#allocation3 + $0x788] sm:$0xff]
    %v3225 = vld [vmem:[#allocation3 + $0x790] sm:$0xff]
    %v3226 = vld [vmem:[#allocation3 + $0x798] sm:$0xff]
    %v3227 = vld [vmem:[#allocation3 + $0x7a0] sm:$0xff]
    %v3228 = vld [vmem:[#allocation3 + $0x7a8] sm:$0xff]
    %v3229 = vld [vmem:[#allocation3 + $0x7b0] sm:$0xff]
    %v3230 = vld [vmem:[#allocation3 + $0x7b8] sm:$0xff]
    %v3231 = vld [vmem:[#allocation3 + $0x7c0] sm:$0xff]
    %v3232 = vld [vmem:[#allocation3 + $0x7c8] sm:$0xff]
    %v3233 = vld [vmem:[#allocation3 + $0x7d0] sm:$0xff]
    %v3234 = vld [vmem:[#allocation3 + $0x7d8] sm:$0xff]
    %v3235 = vld [vmem:[#allocation3 + $0x7e0] sm:$0xff]
    %v3236 = vld [vmem:[#allocation3 + $0x7e8] sm:$0xff]
    %v3237 = vld [vmem:[#allocation3 + $0x7f0] sm:$0xff]
    %v3238 = vld [vmem:[#allocation3 + $0x7f8] sm:$0xff]
    %v3239 = vld [vmem:[#allocation3 + $0x800] sm:$0xff]
    %v3240 = vld [vmem:[#allocation3 + $0x808] sm:$0xff]
    %v3241 = vld [vmem:[#allocation3 + $0x810] sm:$0xff]
    %v3242 = vld [vmem:[#allocation3 + $0x818] sm:$0xff]
    %v3243 = vld [vmem:[#allocation3 + $0x820] sm:$0xff]
    %v3244 = vld [vmem:[#allocation3 + $0x828] sm:$0xff]
    %v3245 = vld [vmem:[#allocation3 + $0x830] sm:$0xff]
    %v3246 = vld [vmem:[#allocation3 + $0x838] sm:$0xff]
    %v3247 = vld [vmem:[#allocation3 + $0x840] sm:$0xff]
    %v3248 = vld [vmem:[#allocation3 + $0x848] sm:$0xff]
    %v3249 = vld [vmem:[#allocation3 + $0x850] sm:$0xff]
    %v3250 = vld [vmem:[#allocation3 + $0x858] sm:$0xff]
    %v3251 = vld [vmem:[#allocation3 + $0x860] sm:$0xff]
    %v3252 = vld [vmem:[#allocation3 + $0x868] sm:$0xff]
    %v3253 = vld [vmem:[#allocation3 + $0x870] sm:$0xff]
    %v3254 = vld [vmem:[#allocation3 + $0x878] sm:$0xff]
    %v3255 = vld [vmem:[#allocation3 + $0x880] sm:$0xff]
    %v3256 = vld [vmem:[#allocation3 + $0x888] sm:$0xff]
    %v3257 = vld [vmem:[#allocation3 + $0x890] sm:$0xff]
    %v3258 = vld [vmem:[#allocation3 + $0x898] sm:$0xff]
    %v3259 = vld [vmem:[#allocation3 + $0x8a0] sm:$0xff]
    %v3260 = vld [vmem:[#allocation3 + $0x8a8] sm:$0xff]
    %v3261 = vld [vmem:[#allocation3 + $0x8b0] sm:$0xff]
    %v3262 = vld [vmem:[#allocation3 + $0x8b8] sm:$0xff]
    %v3263 = vld [vmem:[#allocation3 + $0x8c0] sm:$0xff]
    %v3264 = vld [vmem:[#allocation3 + $0x8c8] sm:$0xff]
    %v3265 = vld [vmem:[#allocation3 + $0x8d0] sm:$0xff]
    %v3266 = vld [vmem:[#allocation3 + $0x8d8] sm:$0xff]
    %v3267 = vld [vmem:[#allocation3 + $0x8e0] sm:$0xff]
    %v3268 = vld [vmem:[#allocation3 + $0x8e8] sm:$0xff]
    %v3269 = vld [vmem:[#allocation3 + $0x8f0] sm:$0xff]
    %v3270 = vld [vmem:[#allocation3 + $0x8f8] sm:$0xff]
    %v3271 = vld [vmem:[#allocation3 + $0x900] sm:$0xff]
    %v3272 = vld [vmem:[#allocation3 + $0x908] sm:$0xff]
    %v3273 = vld [vmem:[#allocation3 + $0x910] sm:$0xff]
    %v3274 = vld [vmem:[#allocation3 + $0x918] sm:$0xff]
    %v3275 = vld [vmem:[#allocation3 + $0x920] sm:$0xff]
    %v3276 = vld [vmem:[#allocation3 + $0x928] sm:$0xff]
    %v3277 = vld [vmem:[#allocation3 + $0x930] sm:$0xff]
    %v3278 = vld [vmem:[#allocation3 + $0x938] sm:$0xff]
    %v3279 = vld [vmem:[#allocation3 + $0x940] sm:$0xff]
    %v3280 = vld [vmem:[#allocation3 + $0x948] sm:$0xff]
    %v3281 = vld [vmem:[#allocation3 + $0x950] sm:$0xff]
    %v3282 = vld [vmem:[#allocation3 + $0x958] sm:$0xff]
    %v3283 = vld [vmem:[#allocation3 + $0x960] sm:$0xff]
    %v3284 = vld [vmem:[#allocation3 + $0x968] sm:$0xff]
    %v3285 = vld [vmem:[#allocation3 + $0x970] sm:$0xff]
    %v3286 = vld [vmem:[#allocation3 + $0x978] sm:$0xff]
    %v3287 = vld [vmem:[#allocation3 + $0x980] sm:$0xff]
    %v3288 = vld [vmem:[#allocation3 + $0x988] sm:$0xff]
    %v3289 = vld [vmem:[#allocation3 + $0x990] sm:$0xff]
    %v3290 = vld [vmem:[#allocation3 + $0x998] sm:$0xff]
    %v3291 = vld [vmem:[#allocation3 + $0x9a0] sm:$0xff]
    %v3292 = vld [vmem:[#allocation3 + $0x9a8] sm:$0xff]
    %v3293 = vld [vmem:[#allocation3 + $0x9b0] sm:$0xff]
    %v3294 = vld [vmem:[#allocation3 + $0x9b8] sm:$0xff]
    %v3295 = vld [vmem:[#allocation3 + $0x9c0] sm:$0xff]
    %v3296 = vld [vmem:[#allocation3 + $0x9c8] sm:$0xff]
    %v3297 = vld [vmem:[#allocation3 + $0x9d0] sm:$0xff]
    %v3298 = vld [vmem:[#allocation3 + $0x9d8] sm:$0xff]
    %v3299 = vld [vmem:[#allocation3 + $0x9e0] sm:$0xff]
    %v3300 = vld [vmem:[#allocation3 + $0x9e8] sm:$0xff]
    %v3301 = vld [vmem:[#allocation3 + $0x9f0] sm:$0xff]
    %v3302 = vld [vmem:[#allocation3 + $0x9f8] sm:$0xff]
    %v3303 = vld [vmem:[#allocation3 + $0xa00] sm:$0xff]
    %v3304 = vld [vmem:[#allocation3 + $0xa08] sm:$0xff]
    %v3305 = vld [vmem:[#allocation3 + $0xa10] sm:$0xff]
    %v3306 = vld [vmem:[#allocation3 + $0xa18] sm:$0xff]
    %v3307 = vld [vmem:[#allocation3 + $0xa20] sm:$0xff]
    %v3308 = vld [vmem:[#allocation3 + $0xa28] sm:$0xff]
    %v3309 = vld [vmem:[#allocation3 + $0xa30] sm:$0xff]
    %v3310 = vld [vmem:[#allocation3 + $0xa38] sm:$0xff]
    %v3311 = vld [vmem:[#allocation3 + $0xa40] sm:$0xff]
    %v3312 = vld [vmem:[#allocation3 + $0xa48] sm:$0xff]
    %v3313 = vld [vmem:[#allocation3 + $0xa50] sm:$0xff]
    %v3314 = vld [vmem:[#allocation3 + $0xa58] sm:$0xff]
    %v3315 = vld [vmem:[#allocation3 + $0xa60] sm:$0xff]
    %v3316 = vld [vmem:[#allocation3 + $0xa68] sm:$0xff]
    %v3317 = vld [vmem:[#allocation3 + $0xa70] sm:$0xff]
    %v3318 = vld [vmem:[#allocation3 + $0xa78] sm:$0xff]
    %v3319 = vld [vmem:[#allocation3 + $0xa80] sm:$0xff]
    %v3320 = vld [vmem:[#allocation3 + $0xa88] sm:$0xff]
    %v3321 = vld [vmem:[#allocation3 + $0xa90] sm:$0xff]
    %v3322 = vld [vmem:[#allocation3 + $0xa98] sm:$0xff]
    %v3323 = vld [vmem:[#allocation3 + $0xaa0] sm:$0xff]
    %v3324 = vld [vmem:[#allocation3 + $0xaa8] sm:$0xff]
    %v3325 = vld [vmem:[#allocation3 + $0xab0] sm:$0xff]
    %v3326 = vld [vmem:[#allocation3 + $0xab8] sm:$0xff]
    %v3327 = vld [vmem:[#allocation3 + $0xac0] sm:$0xff]
    %v3328 = vld [vmem:[#allocation3 + $0xac8] sm:$0xff]
    %v3329 = vld [vmem:[#allocation3 + $0xad0] sm:$0xff]
    %v3330 = vld [vmem:[#allocation3 + $0xad8] sm:$0xff]
    %v3331 = vld [vmem:[#allocation3 + $0xae0] sm:$0xff]
    %v3332 = vld [vmem:[#allocation3 + $0xae8] sm:$0xff]
    %v3333 = vld [vmem:[#allocation3 + $0xaf0] sm:$0xff]
    %v3334 = vld [vmem:[#allocation3 + $0xaf8] sm:$0xff]
    %v3335 = vld [vmem:[#allocation3 + $0xb00] sm:$0xff]
    %v3336 = vld [vmem:[#allocation3 + $0xb08] sm:$0xff]
    %v3337 = vld [vmem:[#allocation3 + $0xb10] sm:$0xff]
    %v3338 = vld [vmem:[#allocation3 + $0xb18] sm:$0xff]
    %v3339 = vld [vmem:[#allocation3 + $0xb20] sm:$0xff]
    %v3340 = vld [vmem:[#allocation3 + $0xb28] sm:$0xff]
    %v3341 = vld [vmem:[#allocation3 + $0xb30] sm:$0xff]
    %v3342 = vld [vmem:[#allocation3 + $0xb38] sm:$0xff]
    %v3343 = vld [vmem:[#allocation3 + $0xb40] sm:$0xff]
    %v3344 = vld [vmem:[#allocation3 + $0xb48] sm:$0xff]
    %v3345 = vld [vmem:[#allocation3 + $0xb50] sm:$0xff]
    %v3346 = vld [vmem:[#allocation3 + $0xb58] sm:$0xff]
    %v3347 = vld [vmem:[#allocation3 + $0xb60] sm:$0xff]
    %v3348 = vld [vmem:[#allocation3 + $0xb68] sm:$0xff]
    %v3349 = vld [vmem:[#allocation3 + $0xb70] sm:$0xff]
    %v3350 = vld [vmem:[#allocation3 + $0xb78] sm:$0xff]
    %v3351 = vld [vmem:[#allocation3 + $0xb80] sm:$0xff]
    %v3352 = vld [vmem:[#allocation3 + $0xb88] sm:$0xff]
    %v3353 = vld [vmem:[#allocation3 + $0xb90] sm:$0xff]
    %v3354 = vld [vmem:[#allocation3 + $0xb98] sm:$0xff]
    %v3355 = vld [vmem:[#allocation3 + $0xba0] sm:$0xff]
    %v3356 = vld [vmem:[#allocation3 + $0xba8] sm:$0xff]
    %v3357 = vld [vmem:[#allocation3 + $0xbb0] sm:$0xff]
    %v3358 = vld [vmem:[#allocation3 + $0xbb8] sm:$0xff]
    %v3359 = vld [vmem:[#allocation3 + $0xbc0] sm:$0xff]
    %v3360 = vld [vmem:[#allocation3 + $0xbc8] sm:$0xff]
    %v3361 = vld [vmem:[#allocation3 + $0xbd0] sm:$0xff]
    %v3362 = vld [vmem:[#allocation3 + $0xbd8] sm:$0xff]
    %v3363 = vld [vmem:[#allocation3 + $0xbe0] sm:$0xff]
    %v3364 = vld [vmem:[#allocation3 + $0xbe8] sm:$0xff]
    %v3365 = vld [vmem:[#allocation3 + $0xbf0] sm:$0xff]
    %v3366 = vld [vmem:[#allocation3 + $0xbf8] sm:$0xff]
    %v3367 = vld [vmem:[#allocation3 + $0xc00] sm:$0xff]
    %v3368 = vld [vmem:[#allocation3 + $0xc08] sm:$0xff]
    %v3369 = vld [vmem:[#allocation3 + $0xc10] sm:$0xff]
    %v3370 = vld [vmem:[#allocation3 + $0xc18] sm:$0xff]
    %v3371 = vld [vmem:[#allocation3 + $0xc20] sm:$0xff]
    %v3372 = vld [vmem:[#allocation3 + $0xc28] sm:$0xff]
    %v3373 = vld [vmem:[#allocation3 + $0xc30] sm:$0xff]
    %v3374 = vld [vmem:[#allocation3 + $0xc38] sm:$0xff]
    %v3375 = vld [vmem:[#allocation3 + $0xc40] sm:$0xff]
    %v3376 = vld [vmem:[#allocation3 + $0xc48] sm:$0xff]
    %v3377 = vld [vmem:[#allocation3 + $0xc50] sm:$0xff]
    %v3378 = vld [vmem:[#allocation3 + $0xc58] sm:$0xff]
    %v3379 = vld [vmem:[#allocation3 + $0xc60] sm:$0xff]
    %v3380 = vld [vmem:[#allocation3 + $0xc68] sm:$0xff]
    %v3381 = vld [vmem:[#allocation3 + $0xc70] sm:$0xff]
    %v3382 = vld [vmem:[#allocation3 + $0xc78] sm:$0xff]
    %v3383 = vld [vmem:[#allocation3 + $0xc80] sm:$0xff]
    %v3384 = vld [vmem:[#allocation3 + $0xc88] sm:$0xff]
    %v3385 = vld [vmem:[#allocation3 + $0xc90] sm:$0xff]
    %v3386 = vld [vmem:[#allocation3 + $0xc98] sm:$0xff]
    %v3387 = vld [vmem:[#allocation3 + $0xca0] sm:$0xff]
    %v3388 = vld [vmem:[#allocation3 + $0xca8] sm:$0xff]
    %v3389 = vld [vmem:[#allocation3 + $0xcb0] sm:$0xff]
    %v3390 = vld [vmem:[#allocation3 + $0xcb8] sm:$0xff]
    %v3391 = vld [vmem:[#allocation3 + $0xcc0] sm:$0xff]
    %v3392 = vld [vmem:[#allocation3 + $0xcc8] sm:$0xff]
    %v3393 = vld [vmem:[#allocation3 + $0xcd0] sm:$0xff]
    %v3394 = vld [vmem:[#allocation3 + $0xcd8] sm:$0xff]
    %v3395 = vld [vmem:[#allocation3 + $0xce0] sm:$0xff]
    %v3396 = vld [vmem:[#allocation3 + $0xce8] sm:$0xff]
    %v3397 = vld [vmem:[#allocation3 + $0xcf0] sm:$0xff]
    %v3398 = vld [vmem:[#allocation3 + $0xcf8] sm:$0xff]
    %v3399 = vld [vmem:[#allocation3 + $0xd00] sm:$0xff]
    %v3400 = vld [vmem:[#allocation3 + $0xd08] sm:$0xff]
    %v3401 = vld [vmem:[#allocation3 + $0xd10] sm:$0xff]
    %v3402 = vld [vmem:[#allocation3 + $0xd18] sm:$0xff]
    %v3403 = vld [vmem:[#allocation3 + $0xd20] sm:$0xff]
    %v3404 = vld [vmem:[#allocation3 + $0xd28] sm:$0xff]
    %v3405 = vld [vmem:[#allocation3 + $0xd30] sm:$0xff]
    %v3406 = vld [vmem:[#allocation3 + $0xd38] sm:$0xff]
    %v3407 = vld [vmem:[#allocation3 + $0xd40] sm:$0xff]
    %v3408 = vld [vmem:[#allocation3 + $0xd48] sm:$0xff]
    %v3409 = vld [vmem:[#allocation3 + $0xd50] sm:$0xff]
    %v3410 = vld [vmem:[#allocation3 + $0xd58] sm:$0xff]
    %v3411 = vld [vmem:[#allocation3 + $0xd60] sm:$0xff]
    %v3412 = vld [vmem:[#allocation3 + $0xd68] sm:$0xff]
    %v3413 = vld [vmem:[#allocation3 + $0xd70] sm:$0xff]
    %v3414 = vld [vmem:[#allocation3 + $0xd78] sm:$0xff]
    %vm3415 = vcmask 719872
    %v3417 = vsel %vm3415, %v2982, 0
    %3419 = vmatprep.subr.mxu0 %v2984
    %3420 = vmatpush1.msra.mxu0 %v2983
    %3421 = vmatprep.subr.mxu0 %v3000
    %3422 = vmatpush1.msra.mxu0 %v2999
    %3423 = vmatprep.subr.mxu0 %v3016
    %3424 = vmatpush1.msra.mxu0 %v3015
    %3425 = vmatprep.subr.mxu0 %v3032
    %3426 = vmatpush1.msra.mxu0 %v3031
    %3427 = vmatprep.subr.mxu0 %v3048
    %3428 = vmatpush1.msra.mxu0 %v3047
    %3429 = vmatprep.subr.mxu0 %v3064
    %3430 = vmatpush1.msra.mxu0 %v3063
    %3431 = vmatprep.subr.mxu0 %v3080
    %3432 = vmatpush1.msra.mxu0 %v3079
    %3433 = vmatprep.subr.mxu0 %v3096
    %3434 = vmatpush1.msra.mxu0 %v3095
    %3435 = vmatprep.subr.mxu0 %v3112
    %3436 = vmatpush1.msra.mxu0 %v3111
    %3437 = vmatprep.subr.mxu0 %v3128
    %3438 = vmatpush1.msra.mxu0 %v3127
    %3439 = vmatprep.subr.mxu0 %v3144
    %3440 = vmatpush1.msra.mxu0 %v3143
    %3441 = vmatprep.subr.mxu0 %v3160
    %3442 = vmatpush1.msra.mxu0 %v3159
    %3443 = vmatprep.subr.mxu0 %v3176
    %3444 = vmatpush1.msra.mxu0 %v3175
    %3445 = vmatprep.subr.mxu0 %v3192
    %3446 = vmatpush1.msra.mxu0 %v3191
    %3447 = vmatprep.subr.mxu0 %v3208
    %3448 = vmatpush1.msra.mxu0 %v3207
    %3449 = vmatprep.subr.mxu0 %v3224
    %3450 = vmatpush1.msra.mxu0 %v3223
    %3451 = vmatprep.subr.mxu0 %v3240
    %3452 = vmatpush1.msra.mxu0 %v3239
    %3453 = vmatprep.subr.mxu0 %v3256
    %3454 = vmatpush1.msra.mxu0 %v3255
    %3455 = vmatprep.subr.mxu0 %v3272
    %3456 = vmatpush1.msra.mxu0 %v3271
    %3457 = vmatprep.subr.mxu0 %v3288
    %3458 = vmatpush1.msra.mxu0 %v3287
    %3459 = vmatprep.subr.mxu0 %v3304
    %3460 = vmatpush1.msra.mxu0 %v3303
    %3461 = vmatprep.subr.mxu0 %v3320
    %3462 = vmatpush1.msra.mxu0 %v3319
    %3463 = vmatprep.subr.mxu0 %v3336
    %3464 = vmatpush1.msra.mxu0 %v3335
    %3465 = vmatprep.subr.mxu0 %v3352
    %3466 = vmatpush1.msra.mxu0 %v3351
    %3467 = vmatprep.subr.mxu0 %v3368
    %3468 = vmatpush1.msra.mxu0 %v3367
    %3469 = vmatprep.subr.mxu0 %v3384
    %3470 = vmatpush1.msra.mxu0 %v3383
    %3471 = vmatprep.subr.mxu0 %v3400
    %3472 = vmatpush1.msra.mxu0 %v3399
    %3473 = vmatprep.subr.mxu0 0.0
    %3474 = vmatpush1.msra.mxu0 0.0
    %3475 = vmatprep.subr.mxu0 0.0
    %3476 = vmatpush1.msra.mxu0 0.0
    %3477 = vmatprep.subr.mxu0 0.0
    %3478 = vmatpush1.msra.mxu0 0.0
    %3479 = vmatprep.subr.mxu0 0.0
    %3480 = vmatpush1.msra.mxu0 0.0
    %3481 = vmatprep.subr.mxu0 0.0
    %3482 = vmatpush1.msra.mxu0 0.0
    %3483 = vmatprep.mubr.f32.mxu0 %v3417
    %3484 = vmatmul.mubr.f32.gmra.mrb[0].mxu0 %v2981
    %v3485 = vpop.f32.mrb[0].mxu0
    %v3486 = vadd.f32 0.0, %v3485
    %v3487 = vpop.f32.mrb[0].mxu0
    %v3488 = vadd.f32 0.0, %v3487
    %3489 = vdwg.mxu0
    %3490 = vmatprep.subr.mxu0 %v2986
    %3491 = vmatpush1.msra.mxu0 %v2985
    %3492 = vmatprep.subr.mxu0 %v3002
    %3493 = vmatpush1.msra.mxu0 %v3001
    %3494 = vmatprep.subr.mxu0 %v3018
    %3495 = vmatpush1.msra.mxu0 %v3017
    %3496 = vmatprep.subr.mxu0 %v3034
    %3497 = vmatpush1.msra.mxu0 %v3033
    %3498 = vmatprep.subr.mxu0 %v3050
    %3499 = vmatpush1.msra.mxu0 %v3049
    %3500 = vmatprep.subr.mxu0 %v3066
    %3501 = vmatpush1.msra.mxu0 %v3065
    %3502 = vmatprep.subr.mxu0 %v3082
    %3503 = vmatpush1.msra.mxu0 %v3081
    %3504 = vmatprep.subr.mxu0 %v3098
    %3505 = vmatpush1.msra.mxu0 %v3097
    %3506 = vmatprep.subr.mxu0 %v3114
    %3507 = vmatpush1.msra.mxu0 %v3113
    %3508 = vmatprep.subr.mxu0 %v3130
    %3509 = vmatpush1.msra.mxu0 %v3129
    %3510 = vmatprep.subr.mxu0 %v3146
    %3511 = vmatpush1.msra.mxu0 %v3145
    %3512 = vmatprep.subr.mxu0 %v3162
    %3513 = vmatpush1.msra.mxu0 %v3161
    %3514 = vmatprep.subr.mxu0 %v3178
    %3515 = vmatpush1.msra.mxu0 %v3177
    %3516 = vmatprep.subr.mxu0 %v3194
    %3517 = vmatpush1.msra.mxu0 %v3193
    %3518 = vmatprep.subr.mxu0 %v3210
    %3519 = vmatpush1.msra.mxu0 %v3209
    %3520 = vmatprep.subr.mxu0 %v3226
    %3521 = vmatpush1.msra.mxu0 %v3225
    %3522 = vmatprep.subr.mxu0 %v3242
    %3523 = vmatpush1.msra.mxu0 %v3241
    %3524 = vmatprep.subr.mxu0 %v3258
    %3525 = vmatpush1.msra.mxu0 %v3257
    %3526 = vmatprep.subr.mxu0 %v3274
    %3527 = vmatpush1.msra.mxu0 %v3273
    %3528 = vmatprep.subr.mxu0 %v3290
    %3529 = vmatpush1.msra.mxu0 %v3289
    %3530 = vmatprep.subr.mxu0 %v3306
    %3531 = vmatpush1.msra.mxu0 %v3305
    %3532 = vmatprep.subr.mxu0 %v3322
    %3533 = vmatpush1.msra.mxu0 %v3321
    %3534 = vmatprep.subr.mxu0 %v3338
    %3535 = vmatpush1.msra.mxu0 %v3337
    %3536 = vmatprep.subr.mxu0 %v3354
    %3537 = vmatpush1.msra.mxu0 %v3353
    %3538 = vmatprep.subr.mxu0 %v3370
    %3539 = vmatpush1.msra.mxu0 %v3369
    %3540 = vmatprep.subr.mxu0 %v3386
    %3541 = vmatpush1.msra.mxu0 %v3385
    %3542 = vmatprep.subr.mxu0 %v3402
    %3543 = vmatpush1.msra.mxu0 %v3401
    %3544 = vmatprep.subr.mxu0 0.0
    %3545 = vmatpush1.msra.mxu0 0.0
    %3546 = vmatprep.subr.mxu0 0.0
    %3547 = vmatpush1.msra.mxu0 0.0
    %3548 = vmatprep.subr.mxu0 0.0
    %3549 = vmatpush1.msra.mxu0 0.0
    %3550 = vmatprep.subr.mxu0 0.0
    %3551 = vmatpush1.msra.mxu0 0.0
    %3552 = vmatprep.subr.mxu0 0.0
    %3553 = vmatpush1.msra.mxu0 0.0
    %3554 = vmatprep.mubr.f32.mxu0 %v3417
    %3555 = vmatmul.mubr.f32.gmra.mrb[0].mxu0 %v2981
    %v3556 = vpop.f32.mrb[0].mxu0
    %v3557 = vadd.f32 0.0, %v3556
    %v3558 = vpop.f32.mrb[0].mxu0
    %v3559 = vadd.f32 0.0, %v3558
    %3560 = vdwg.mxu0
    %3561 = vmatprep.subr.mxu0 %v2988
    %3562 = vmatpush1.msra.mxu0 %v2987
    %3563 = vmatprep.subr.mxu0 %v3004
    %3564 = vmatpush1.msra.mxu0 %v3003
    %3565 = vmatprep.subr.mxu0 %v3020
    %3566 = vmatpush1.msra.mxu0 %v3019
    %3567 = vmatprep.subr.mxu0 %v3036
    %3568 = vmatpush1.msra.mxu0 %v3035
    %3569 = vmatprep.subr.mxu0 %v3052
    %3570 = vmatpush1.msra.mxu0 %v3051
    %3571 = vmatprep.subr.mxu0 %v3068
    %3572 = vmatpush1.msra.mxu0 %v3067
    %3573 = vmatprep.subr.mxu0 %v3084
    %3574 = vmatpush1.msra.mxu0 %v3083
    %3575 = vmatprep.subr.mxu0 %v3100
    %3576 = vmatpush1.msra.mxu0 %v3099
    %3577 = vmatprep.subr.mxu0 %v3116
    %3578 = vmatpush1.msra.mxu0 %v3115
    %3579 = vmatprep.subr.mxu0 %v3132
    %3580 = vmatpush1.msra.mxu0 %v3131
    %3581 = vmatprep.subr.mxu0 %v3148
    %3582 = vmatpush1.msra.mxu0 %v3147
    %3583 = vmatprep.subr.mxu0 %v3164
    %3584 = vmatpush1.msra.mxu0 %v3163
    %3585 = vmatprep.subr.mxu0 %v3180
    %3586 = vmatpush1.msra.mxu0 %v3179
    %3587 = vmatprep.subr.mxu0 %v3196
    %3588 = vmatpush1.msra.mxu0 %v3195
    %3589 = vmatprep.subr.mxu0 %v3212
    %3590 = vmatpush1.msra.mxu0 %v3211
    %3591 = vmatprep.subr.mxu0 %v3228
    %3592 = vmatpush1.msra.mxu0 %v3227
    %3593 = vmatprep.subr.mxu0 %v3244
    %3594 = vmatpush1.msra.mxu0 %v3243
    %3595 = vmatprep.subr.mxu0 %v3260
    %3596 = vmatpush1.msra.mxu0 %v3259
    %3597 = vmatprep.subr.mxu0 %v3276
    %3598 = vmatpush1.msra.mxu0 %v3275
    %3599 = vmatprep.subr.mxu0 %v3292
    %3600 = vmatpush1.msra.mxu0 %v3291
    %3601 = vmatprep.subr.mxu0 %v3308
    %3602 = vmatpush1.msra.mxu0 %v3307
    %3603 = vmatprep.subr.mxu0 %v3324
    %3604 = vmatpush1.msra.mxu0 %v3323
    %3605 = vmatprep.subr.mxu0 %v3340
    %3606 = vmatpush1.msra.mxu0 %v3339
    %3607 = vmatprep.subr.mxu0 %v3356
    %3608 = vmatpush1.msra.mxu0 %v3355
    %3609 = vmatprep.subr.mxu0 %v3372
    %3610 = vmatpush1.msra.mxu0 %v3371
    %3611 = vmatprep.subr.mxu0 %v3388
    %3612 = vmatpush1.msra.mxu0 %v3387
    %3613 = vmatprep.subr.mxu0 %v3404
    %3614 = vmatpush1.msra.mxu0 %v3403
    %3615 = vmatprep.subr.mxu0 0.0
    %3616 = vmatpush1.msra.mxu0 0.0
    %3617 = vmatprep.subr.mxu0 0.0
    %3618 = vmatpush1.msra.mxu0 0.0
    %3619 = vmatprep.subr.mxu0 0.0
    %3620 = vmatpush1.msra.mxu0 0.0
    %3621 = vmatprep.subr.mxu0 0.0
    %3622 = vmatpush1.msra.mxu0 0.0
    %3623 = vmatprep.subr.mxu0 0.0
    %3624 = vmatpush1.msra.mxu0 0.0
    %3625 = vmatprep.mubr.f32.mxu0 %v3417
    %3626 = vmatmul.mubr.f32.gmra.mrb[0].mxu0 %v2981
    %v3627 = vpop.f32.mrb[0].mxu0
    %v3628 = vadd.f32 0.0, %v3627
    %v3629 = vpop.f32.mrb[0].mxu0
    %v3630 = vadd.f32 0.0, %v3629
    %3631 = vdwg.mxu0
    %3632 = vmatprep.subr.mxu0 %v2990
    %3633 = vmatpush1.msra.mxu0 %v2989
    %3634 = vmatprep.subr.mxu0 %v3006
    %3635 = vmatpush1.msra.mxu0 %v3005
    %3636 = vmatprep.subr.mxu0 %v3022
    %3637 = vmatpush1.msra.mxu0 %v3021
    %3638 = vmatprep.subr.mxu0 %v3038
    %3639 = vmatpush1.msra.mxu0 %v3037
    %3640 = vmatprep.subr.mxu0 %v3054
    %3641 = vmatpush1.msra.mxu0 %v3053
    %3642 = vmatprep.subr.mxu0 %v3070
    %3643 = vmatpush1.msra.mxu0 %v3069
    %3644 = vmatprep.subr.mxu0 %v3086
    %3645 = vmatpush1.msra.mxu0 %v3085
    %3646 = vmatprep.subr.mxu0 %v3102
    %3647 = vmatpush1.msra.mxu0 %v3101
    %3648 = vmatprep.subr.mxu0 %v3118
    %3649 = vmatpush1.msra.mxu0 %v3117
    %3650 = vmatprep.subr.mxu0 %v3134
    %3651 = vmatpush1.msra.mxu0 %v3133
    %3652 = vmatprep.subr.mxu0 %v3150
    %3653 = vmatpush1.msra.mxu0 %v3149
    %3654 = vmatprep.subr.mxu0 %v3166
    %3655 = vmatpush1.msra.mxu0 %v3165
    %3656 = vmatprep.subr.mxu0 %v3182
    %3657 = vmatpush1.msra.mxu0 %v3181
    %3658 = vmatprep.subr.mxu0 %v3198
    %3659 = vmatpush1.msra.mxu0 %v3197
    %3660 = vmatprep.subr.mxu0 %v3214
    %3661 = vmatpush1.msra.mxu0 %v3213
    %3662 = vmatprep.subr.mxu0 %v3230
    %3663 = vmatpush1.msra.mxu0 %v3229
    %3664 = vmatprep.subr.mxu0 %v3246
    %3665 = vmatpush1.msra.mxu0 %v3245
    %3666 = vmatprep.subr.mxu0 %v3262
    %3667 = vmatpush1.msra.mxu0 %v3261
    %3668 = vmatprep.subr.mxu0 %v3278
    %3669 = vmatpush1.msra.mxu0 %v3277
    %3670 = vmatprep.subr.mxu0 %v3294
    %3671 = vmatpush1.msra.mxu0 %v3293
    %3672 = vmatprep.subr.mxu0 %v3310
    %3673 = vmatpush1.msra.mxu0 %v3309
    %3674 = vmatprep.subr.mxu0 %v3326
    %3675 = vmatpush1.msra.mxu0 %v3325
    %3676 = vmatprep.subr.mxu0 %v3342
    %3677 = vmatpush1.msra.mxu0 %v3341
    %3678 = vmatprep.subr.mxu0 %v3358
    %3679 = vmatpush1.msra.mxu0 %v3357
    %3680 = vmatprep.subr.mxu0 %v3374
    %3681 = vmatpush1.msra.mxu0 %v3373
    %3682 = vmatprep.subr.mxu0 %v3390
    %3683 = vmatpush1.msra.mxu0 %v3389
    %3684 = vmatprep.subr.mxu0 %v3406
    %3685 = vmatpush1.msra.mxu0 %v3405
    %3686 = vmatprep.subr.mxu0 0.0
    %3687 = vmatpush1.msra.mxu0 0.0
    %3688 = vmatprep.subr.mxu0 0.0
    %3689 = vmatpush1.msra.mxu0 0.0
    %3690 = vmatprep.subr.mxu0 0.0
    %3691 = vmatpush1.msra.mxu0 0.0
    %3692 = vmatprep.subr.mxu0 0.0
    %3693 = vmatpush1.msra.mxu0 0.0
    %3694 = vmatprep.subr.mxu0 0.0
    %3695 = vmatpush1.msra.mxu0 0.0
    %3696 = vmatprep.mubr.f32.mxu0 %v3417
    %3697 = vmatmul.mubr.f32.gmra.mrb[0].mxu0 %v2981
    %v3698 = vpop.f32.mrb[0].mxu0
    %v3699 = vadd.f32 0.0, %v3698
    %v3700 = vpop.f32.mrb[0].mxu0
    %v3701 = vadd.f32 0.0, %v3700
    %3702 = vdwg.mxu0
    %3703 = vmatprep.subr.mxu0 %v2992
    %3704 = vmatpush1.msra.mxu0 %v2991
    %3705 = vmatprep.subr.mxu0 %v3008
    %3706 = vmatpush1.msra.mxu0 %v3007
    %3707 = vmatprep.subr.mxu0 %v3024
    %3708 = vmatpush1.msra.mxu0 %v3023
    %3709 = vmatprep.subr.mxu0 %v3040
    %3710 = vmatpush1.msra.mxu0 %v3039
    %3711 = vmatprep.subr.mxu0 %v3056
    %3712 = vmatpush1.msra.mxu0 %v3055
    %3713 = vmatprep.subr.mxu0 %v3072
    %3714 = vmatpush1.msra.mxu0 %v3071
    %3715 = vmatprep.subr.mxu0 %v3088
    %3716 = vmatpush1.msra.mxu0 %v3087
    %3717 = vmatprep.subr.mxu0 %v3104
    %3718 = vmatpush1.msra.mxu0 %v3103
    %3719 = vmatprep.subr.mxu0 %v3120
    %3720 = vmatpush1.msra.mxu0 %v3119
    %3721 = vmatprep.subr.mxu0 %v3136
    %3722 = vmatpush1.msra.mxu0 %v3135
    %3723 = vmatprep.subr.mxu0 %v3152
    %3724 = vmatpush1.msra.mxu0 %v3151
    %3725 = vmatprep.subr.mxu0 %v3168
    %3726 = vmatpush1.msra.mxu0 %v3167
    %3727 = vmatprep.subr.mxu0 %v3184
    %3728 = vmatpush1.msra.mxu0 %v3183
    %3729 = vmatprep.subr.mxu0 %v3200
    %3730 = vmatpush1.msra.mxu0 %v3199
    %3731 = vmatprep.subr.mxu0 %v3216
    %3732 = vmatpush1.msra.mxu0 %v3215
    %3733 = vmatprep.subr.mxu0 %v3232
    %3734 = vmatpush1.msra.mxu0 %v3231
    %3735 = vmatprep.subr.mxu0 %v3248
    %3736 = vmatpush1.msra.mxu0 %v3247
    %3737 = vmatprep.subr.mxu0 %v3264
    %3738 = vmatpush1.msra.mxu0 %v3263
    %3739 = vmatprep.subr.mxu0 %v3280
    %3740 = vmatpush1.msra.mxu0 %v3279
    %3741 = vmatprep.subr.mxu0 %v3296
    %3742 = vmatpush1.msra.mxu0 %v3295
    %3743 = vmatprep.subr.mxu0 %v3312
    %3744 = vmatpush1.msra.mxu0 %v3311
    %3745 = vmatprep.subr.mxu0 %v3328
    %3746 = vmatpush1.msra.mxu0 %v3327
    %3747 = vmatprep.subr.mxu0 %v3344
    %3748 = vmatpush1.msra.mxu0 %v3343
    %3749 = vmatprep.subr.mxu0 %v3360
    %3750 = vmatpush1.msra.mxu0 %v3359
    %3751 = vmatprep.subr.mxu0 %v3376
    %3752 = vmatpush1.msra.mxu0 %v3375
    %3753 = vmatprep.subr.mxu0 %v3392
    %3754 = vmatpush1.msra.mxu0 %v3391
    %3755 = vmatprep.subr.mxu0 %v3408
    %3756 = vmatpush1.msra.mxu0 %v3407
    %3757 = vmatprep.subr.mxu0 0.0
    %3758 = vmatpush1.msra.mxu0 0.0
    %3759 = vmatprep.subr.mxu0 0.0
    %3760 = vmatpush1.msra.mxu0 0.0
    %3761 = vmatprep.subr.mxu0 0.0
    %3762 = vmatpush1.msra.mxu0 0.0
    %3763 = vmatprep.subr.mxu0 0.0
    %3764 = vmatpush1.msra.mxu0 0.0
    %3765 = vmatprep.subr.mxu0 0.0
    %3766 = vmatpush1.msra.mxu0 0.0
    %3767 = vmatprep.mubr.f32.mxu0 %v3417
    %3768 = vmatmul.mubr.f32.gmra.mrb[0].mxu0 %v2981
    %v3769 = vpop.f32.mrb[0].mxu0
    %v3770 = vadd.f32 0.0, %v3769
    %v3771 = vpop.f32.mrb[0].mxu0
    %v3772 = vadd.f32 0.0, %v3771
    %3773 = vdwg.mxu0
    %3774 = vmatprep.subr.mxu0 %v2994
    %3775 = vmatpush1.msra.mxu0 %v2993
    %3776 = vmatprep.subr.mxu0 %v3010
    %3777 = vmatpush1.msra.mxu0 %v3009
    %3778 = vmatprep.subr.mxu0 %v3026
    %3779 = vmatpush1.msra.mxu0 %v3025
    %3780 = vmatprep.subr.mxu0 %v3042
    %3781 = vmatpush1.msra.mxu0 %v3041
    %3782 = vmatprep.subr.mxu0 %v3058
    %3783 = vmatpush1.msra.mxu0 %v3057
    %3784 = vmatprep.subr.mxu0 %v3074
    %3785 = vmatpush1.msra.mxu0 %v3073
    %3786 = vmatprep.subr.mxu0 %v3090
    %3787 = vmatpush1.msra.mxu0 %v3089
    %3788 = vmatprep.subr.mxu0 %v3106
    %3789 = vmatpush1.msra.mxu0 %v3105
    %3790 = vmatprep.subr.mxu0 %v3122
    %3791 = vmatpush1.msra.mxu0 %v3121
    %3792 = vmatprep.subr.mxu0 %v3138
    %3793 = vmatpush1.msra.mxu0 %v3137
    %3794 = vmatprep.subr.mxu0 %v3154
    %3795 = vmatpush1.msra.mxu0 %v3153
    %3796 = vmatprep.subr.mxu0 %v3170
    %3797 = vmatpush1.msra.mxu0 %v3169
    %3798 = vmatprep.subr.mxu0 %v3186
    %3799 = vmatpush1.msra.mxu0 %v3185
    %3800 = vmatprep.subr.mxu0 %v3202
    %3801 = vmatpush1.msra.mxu0 %v3201
    %3802 = vmatprep.subr.mxu0 %v3218
    %3803 = vmatpush1.msra.mxu0 %v3217
    %3804 = vmatprep.subr.mxu0 %v3234
    %3805 = vmatpush1.msra.mxu0 %v3233
    %3806 = vmatprep.subr.mxu0 %v3250
    %3807 = vmatpush1.msra.mxu0 %v3249
    %3808 = vmatprep.subr.mxu0 %v3266
    %3809 = vmatpush1.msra.mxu0 %v3265
    %3810 = vmatprep.subr.mxu0 %v3282
    %3811 = vmatpush1.msra.mxu0 %v3281
    %3812 = vmatprep.subr.mxu0 %v3298
    %3813 = vmatpush1.msra.mxu0 %v3297
    %3814 = vmatprep.subr.mxu0 %v3314
    %3815 = vmatpush1.msra.mxu0 %v3313
    %3816 = vmatprep.subr.mxu0 %v3330
    %3817 = vmatpush1.msra.mxu0 %v3329
    %3818 = vmatprep.subr.mxu0 %v3346
    %3819 = vmatpush1.msra.mxu0 %v3345
    %3820 = vmatprep.subr.mxu0 %v3362
    %3821 = vmatpush1.msra.mxu0 %v3361
    %3822 = vmatprep.subr.mxu0 %v3378
    %3823 = vmatpush1.msra.mxu0 %v3377
    %3824 = vmatprep.subr.mxu0 %v3394
    %3825 = vmatpush1.msra.mxu0 %v3393
    %3826 = vmatprep.subr.mxu0 %v3410
    %3827 = vmatpush1.msra.mxu0 %v3409
    %3828 = vmatprep.subr.mxu0 0.0
    %3829 = vmatpush1.msra.mxu0 0.0
    %3830 = vmatprep.subr.mxu0 0.0
    %3831 = vmatpush1.msra.mxu0 0.0
    %3832 = vmatprep.subr.mxu0 0.0
    %3833 = vmatpush1.msra.mxu0 0.0
    %3834 = vmatprep.subr.mxu0 0.0
    %3835 = vmatpush1.msra.mxu0 0.0
    %3836 = vmatprep.subr.mxu0 0.0
    %3837 = vmatpush1.msra.mxu0 0.0
    %3838 = vmatprep.mubr.f32.mxu0 %v3417
    %3839 = vmatmul.mubr.f32.gmra.mrb[0].mxu0 %v2981
    %v3840 = vpop.f32.mrb[0].mxu0
    %v3841 = vadd.f32 0.0, %v3840
    %v3842 = vpop.f32.mrb[0].mxu0
    %v3843 = vadd.f32 0.0, %v3842
    %3844 = vdwg.mxu0
    %3845 = vmatprep.subr.mxu0 %v2996
    %3846 = vmatpush1.msra.mxu0 %v2995
    %3847 = vmatprep.subr.mxu0 %v3012
    %3848 = vmatpush1.msra.mxu0 %v3011
    %3849 = vmatprep.subr.mxu0 %v3028
    %3850 = vmatpush1.msra.mxu0 %v3027
    %3851 = vmatprep.subr.mxu0 %v3044
    %3852 = vmatpush1.msra.mxu0 %v3043
    %3853 = vmatprep.subr.mxu0 %v3060
    %3854 = vmatpush1.msra.mxu0 %v3059
    %3855 = vmatprep.subr.mxu0 %v3076
    %3856 = vmatpush1.msra.mxu0 %v3075
    %3857 = vmatprep.subr.mxu0 %v3092
    %3858 = vmatpush1.msra.mxu0 %v3091
    %3859 = vmatprep.subr.mxu0 %v3108
    %3860 = vmatpush1.msra.mxu0 %v3107
    %3861 = vmatprep.subr.mxu0 %v3124
    %3862 = vmatpush1.msra.mxu0 %v3123
    %3863 = vmatprep.subr.mxu0 %v3140
    %3864 = vmatpush1.msra.mxu0 %v3139
    %3865 = vmatprep.subr.mxu0 %v3156
    %3866 = vmatpush1.msra.mxu0 %v3155
    %3867 = vmatprep.subr.mxu0 %v3172
    %3868 = vmatpush1.msra.mxu0 %v3171
    %3869 = vmatprep.subr.mxu0 %v3188
    %3870 = vmatpush1.msra.mxu0 %v3187
    %3871 = vmatprep.subr.mxu0 %v3204
    %3872 = vmatpush1.msra.mxu0 %v3203
    %3873 = vmatprep.subr.mxu0 %v3220
    %3874 = vmatpush1.msra.mxu0 %v3219
    %3875 = vmatprep.subr.mxu0 %v3236
    %3876 = vmatpush1.msra.mxu0 %v3235
    %3877 = vmatprep.subr.mxu0 %v3252
    %3878 = vmatpush1.msra.mxu0 %v3251
    %3879 = vmatprep.subr.mxu0 %v3268
    %3880 = vmatpush1.msra.mxu0 %v3267
    %3881 = vmatprep.subr.mxu0 %v3284
    %3882 = vmatpush1.msra.mxu0 %v3283
    %3883 = vmatprep.subr.mxu0 %v3300
    %3884 = vmatpush1.msra.mxu0 %v3299
    %3885 = vmatprep.subr.mxu0 %v3316
    %3886 = vmatpush1.msra.mxu0 %v3315
    %3887 = vmatprep.subr.mxu0 %v3332
    %3888 = vmatpush1.msra.mxu0 %v3331
    %3889 = vmatprep.subr.mxu0 %v3348
    %3890 = vmatpush1.msra.mxu0 %v3347
    %3891 = vmatprep.subr.mxu0 %v3364
    %3892 = vmatpush1.msra.mxu0 %v3363
    %3893 = vmatprep.subr.mxu0 %v3380
    %3894 = vmatpush1.msra.mxu0 %v3379
    %3895 = vmatprep.subr.mxu0 %v3396
    %3896 = vmatpush1.msra.mxu0 %v3395
    %3897 = vmatprep.subr.mxu0 %v3412
    %3898 = vmatpush1.msra.mxu0 %v3411
    %3899 = vmatprep.subr.mxu0 0.0
    %3900 = vmatpush1.msra.mxu0 0.0
    %3901 = vmatprep.subr.mxu0 0.0
    %3902 = vmatpush1.msra.mxu0 0.0
    %3903 = vmatprep.subr.mxu0 0.0
    %3904 = vmatpush1.msra.mxu0 0.0
    %3905 = vmatprep.subr.mxu0 0.0
    %3906 = vmatpush1.msra.mxu0 0.0
    %3907 = vmatprep.subr.mxu0 0.0
    %3908 = vmatpush1.msra.mxu0 0.0
    %3909 = vmatprep.mubr.f32.mxu0 %v3417
    %3910 = vmatmul.mubr.f32.gmra.mrb[0].mxu0 %v2981
    %v3911 = vpop.f32.mrb[0].mxu0
    %v3912 = vadd.f32 0.0, %v3911
    %v3913 = vpop.f32.mrb[0].mxu0
    %v3914 = vadd.f32 0.0, %v3913
    %3915 = vdwg.mxu0
    %3916 = vmatprep.subr.mxu0 %v2998
    %3917 = vmatpush1.msra.mxu0 %v2997
    %3918 = vmatprep.subr.mxu0 %v3014
    %3919 = vmatpush1.msra.mxu0 %v3013
    %3920 = vmatprep.subr.mxu0 %v3030
    %3921 = vmatpush1.msra.mxu0 %v3029
    %3922 = vmatprep.subr.mxu0 %v3046
    %3923 = vmatpush1.msra.mxu0 %v3045
    %3924 = vmatprep.subr.mxu0 %v3062
    %3925 = vmatpush1.msra.mxu0 %v3061
    %3926 = vmatprep.subr.mxu0 %v3078
    %3927 = vmatpush1.msra.mxu0 %v3077
    %3928 = vmatprep.subr.mxu0 %v3094
    %3929 = vmatpush1.msra.mxu0 %v3093
    %3930 = vmatprep.subr.mxu0 %v3110
    %3931 = vmatpush1.msra.mxu0 %v3109
    %3932 = vmatprep.subr.mxu0 %v3126
    %3933 = vmatpush1.msra.mxu0 %v3125
    %3934 = vmatprep.subr.mxu0 %v3142
    %3935 = vmatpush1.msra.mxu0 %v3141
    %3936 = vmatprep.subr.mxu0 %v3158
    %3937 = vmatpush1.msra.mxu0 %v3157
    %3938 = vmatprep.subr.mxu0 %v3174
    %3939 = vmatpush1.msra.mxu0 %v3173
    %3940 = vmatprep.subr.mxu0 %v3190
    %3941 = vmatpush1.msra.mxu0 %v3189
    %3942 = vmatprep.subr.mxu0 %v3206
    %3943 = vmatpush1.msra.mxu0 %v3205
    %3944 = vmatprep.subr.mxu0 %v3222
    %3945 = vmatpush1.msra.mxu0 %v3221
    %3946 = vmatprep.subr.mxu0 %v3238
    %3947 = vmatpush1.msra.mxu0 %v3237
    %3948 = vmatprep.subr.mxu0 %v3254
    %3949 = vmatpush1.msra.mxu0 %v3253
    %3950 = vmatprep.subr.mxu0 %v3270
    %3951 = vmatpush1.msra.mxu0 %v3269
    %3952 = vmatprep.subr.mxu0 %v3286
    %3953 = vmatpush1.msra.mxu0 %v3285
    %3954 = vmatprep.subr.mxu0 %v3302
    %3955 = vmatpush1.msra.mxu0 %v3301
    %3956 = vmatprep.subr.mxu0 %v3318
    %3957 = vmatpush1.msra.mxu0 %v3317
    %3958 = vmatprep.subr.mxu0 %v3334
    %3959 = vmatpush1.msra.mxu0 %v3333
    %3960 = vmatprep.subr.mxu0 %v3350
    %3961 = vmatpush1.msra.mxu0 %v3349
    %3962 = vmatprep.subr.mxu0 %v3366
    %3963 = vmatpush1.msra.mxu0 %v3365
    %3964 = vmatprep.subr.mxu0 %v3382
    %3965 = vmatpush1.msra.mxu0 %v3381
    %3966 = vmatprep.subr.mxu0 %v3398
    %3967 = vmatpush1.msra.mxu0 %v3397
    %3968 = vmatprep.subr.mxu0 %v3414
    %3969 = vmatpush1.msra.mxu0 %v3413
    %3970 = vmatprep.subr.mxu0 0.0
    %3971 = vmatpush1.msra.mxu0 0.0
    %3972 = vmatprep.subr.mxu0 0.0
    %3973 = vmatpush1.msra.mxu0 0.0
    %3974 = vmatprep.subr.mxu0 0.0
    %3975 = vmatpush1.msra.mxu0 0.0
    %3976 = vmatprep.subr.mxu0 0.0
    %3977 = vmatpush1.msra.mxu0 0.0
    %3978 = vmatprep.subr.mxu0 0.0
    %3979 = vmatpush1.msra.mxu0 0.0
    %3980 = vmatprep.mubr.f32.mxu0 %v3417
    %3981 = vmatmul.mubr.f32.gmra.mrb[0].mxu0 %v2981
    %v3982 = vpop.f32.mrb[0].mxu0
    %v3983 = vadd.f32 0.0, %v3982
    %v3984 = vpop.f32.mrb[0].mxu0
    %v3985 = vadd.f32 0.0, %v3984
    %3986 = vdwg.mxu0
    %v3987 = vmul.f32 %v3486, %v49
    %v3988 = vmul.f32 %v3488, %v53
    %v3989 = vmul.f32 %v3557, %v57
    %v3990 = vmul.f32 %v3559, %v61
    %v3991 = vmul.f32 %v3628, %v65
    %v3992 = vmul.f32 %v3630, %v69
    %v3993 = vmul.f32 %v3699, %v73
    %v3994 = vmul.f32 %v3701, %v77
    %v3995 = vmul.f32 %v3770, %v81
    %v3996 = vmul.f32 %v3772, %v85
    %v3997 = vmul.f32 %v3841, %v89
    %v3998 = vmul.f32 %v3843, %v93
    %v3999 = vmul.f32 %v3912, %v97
    %v4000 = vmul.f32 %v3914, %v101
    %v4001 = vmul.f32 %v3983, %v105
    %v4002 = vmul.f32 %v3985, %v109
    %v4003 = vadd.f32 %v3987, %v3988
    %v4004 = vadd.f32 %v4003, %v3989
    %v4005 = vadd.f32 %v4004, %v3990
    %v4006 = vadd.f32 %v4005, %v3991
    %v4007 = vadd.f32 %v4006, %v3992
    %v4008 = vadd.f32 %v4007, %v3993
    %v4009 = vadd.f32 %v4008, %v3994
    %v4010 = vadd.f32 %v4009, %v3995
    %v4011 = vadd.f32 %v4010, %v3996
    %v4012 = vadd.f32 %v4011, %v3997
    %v4013 = vadd.f32 %v4012, %v3998
    %v4014 = vadd.f32 %v4013, %v3999
    %v4015 = vadd.f32 %v4014, %v4000
    %v4016 = vadd.f32 %v4015, %v4001
    %v4017 = vadd.f32 %v4016, %v4002
    %4018 = vadd.xlane.f32.xlu0 %v4017
    %v4019 = vpop.xlane.xlu0 %4018
    %v4020 = vrcp.pop 1024.0
    %v4021 = vmul.f32 %v4019, %v4020
    %v4022 = vmul.f32 %v3987, %v3987
    %v4023 = vmul.f32 %v3988, %v3988
    %v4024 = vmul.f32 %v3989, %v3989
    %v4025 = vmul.f32 %v3990, %v3990
    %v4026 = vmul.f32 %v3991, %v3991
    %v4027 = vmul.f32 %v3992, %v3992
    %v4028 = vmul.f32 %v3993, %v3993
    %v4029 = vmul.f32 %v3994, %v3994
    %v4030 = vmul.f32 %v3995, %v3995
    %v4031 = vmul.f32 %v3996, %v3996
    %v4032 = vmul.f32 %v3997, %v3997
    %v4033 = vmul.f32 %v3998, %v3998
    %v4034 = vmul.f32 %v3999, %v3999
    %v4035 = vmul.f32 %v4000, %v4000
    %v4036 = vmul.f32 %v4001, %v4001
    %v4037 = vmul.f32 %v4002, %v4002
    %v4038 = vadd.f32 %v4022, %v4023
    %v4039 = vadd.f32 %v4038, %v4024
    %v4040 = vadd.f32 %v4039, %v4025
    %v4041 = vadd.f32 %v4040, %v4026
    %v4042 = vadd.f32 %v4041, %v4027
    %v4043 = vadd.f32 %v4042, %v4028
    %v4044 = vadd.f32 %v4043, %v4029
    %v4045 = vadd.f32 %v4044, %v4030
    %v4046 = vadd.f32 %v4045, %v4031
    %v4047 = vadd.f32 %v4046, %v4032
    %v4048 = vadd.f32 %v4047, %v4033
    %v4049 = vadd.f32 %v4048, %v4034
    %v4050 = vadd.f32 %v4049, %v4035
    %v4051 = vadd.f32 %v4050, %v4036
    %v4052 = vadd.f32 %v4051, %v4037
    %4053 = vadd.xlane.f32.xlu0 %v4052
    %v4054 = vpop.xlane.xlu0 %4053
    %v4055 = vmul.f32 %v4054, %v4020
    %v4056 = vmul.f32 %v4021, %v4021
    %v4057 = vsub.f32 %v4055, %v4056
    %v4058 = vld [vmem:[%s3] sm:$0xff]
    %v4059 = vadd.f32 %v4057, 1e-05
    %v4060 = vrsqrt.pop %v4059
    %v4061 = vmul.f32 %v4058, %v4060
    %v4062 = vld [vmem:[%s4] sm:$0xff]
    %v4063 = vmul.f32 %v4021, %v4061
    %v4064 = vsub.f32 %v4062, %v4063
    %4066 = vset.pattern.permute.xlu0 0
    %4067 = vperm.xlu0 %4066, %v4061
    %v4068 = vpop.permute.xlu0 %4067
    %v4070 = vmul.f32 %v3486, %v4068
    %v4071 = vmul.f32 %v3488, %v4068
    %v4072 = vmul.f32 %v3557, %v4068
    %v4073 = vmul.f32 %v3559, %v4068
    %v4074 = vmul.f32 %v3628, %v4068
    %v4075 = vmul.f32 %v3630, %v4068
    %v4076 = vmul.f32 %v3699, %v4068
    %v4077 = vmul.f32 %v3701, %v4068
    %v4078 = vmul.f32 %v3770, %v4068
    %v4079 = vmul.f32 %v3772, %v4068
    %v4080 = vmul.f32 %v3841, %v4068
    %v4081 = vmul.f32 %v3843, %v4068
    %v4082 = vmul.f32 %v3912, %v4068
    %v4083 = vmul.f32 %v3914, %v4068
    %v4084 = vmul.f32 %v3983, %v4068
    %v4085 = vmul.f32 %v3985, %v4068
    %4087 = vset.pattern.permute.xlu0 0
    %4088 = vperm.xlu0 %4087, %v4064
    %v4089 = vpop.permute.xlu0 %4088
    %v4091 = vadd.f32 %v4070, %v4089
    %v4092 = vadd.f32 %v4071, %v4089
    %v4093 = vadd.f32 %v4072, %v4089
    %v4094 = vadd.f32 %v4073, %v4089
    %v4095 = vadd.f32 %v4074, %v4089
    %v4096 = vadd.f32 %v4075, %v4089
    %v4097 = vadd.f32 %v4076, %v4089
    %v4098 = vadd.f32 %v4077, %v4089
    %v4099 = vadd.f32 %v4078, %v4089
    %v4100 = vadd.f32 %v4079, %v4089
    %v4101 = vadd.f32 %v4080, %v4089
    %v4102 = vadd.f32 %v4081, %v4089
    %v4103 = vadd.f32 %v4082, %v4089
    %v4104 = vadd.f32 %v4083, %v4089
    %v4105 = vadd.f32 %v4084, %v4089
    %v4106 = vadd.f32 %v4085, %v4089
    %v4107 = vmax.f32 %v4091, 0.0
    %v4108 = vmax.f32 %v4092, 0.0
    %v4109 = vmax.f32 %v4093, 0.0
    %v4110 = vmax.f32 %v4094, 0.0
    %v4111 = vmax.f32 %v4095, 0.0
    %v4112 = vmax.f32 %v4096, 0.0
    %v4113 = vmax.f32 %v4097, 0.0
    %v4114 = vmax.f32 %v4098, 0.0
    %v4115 = vmax.f32 %v4099, 0.0
    %v4116 = vmax.f32 %v4100, 0.0
    %v4117 = vmax.f32 %v4101, 0.0
    %v4118 = vmax.f32 %v4102, 0.0
    %v4119 = vmax.f32 %v4103, 0.0
    %v4120 = vmax.f32 %v4104, 0.0
    %v4121 = vmax.f32 %v4105, 0.0
    %v4122 = vmax.f32 %v4106, 0.0
    %v4123 = vmul.f32 %v4107, %v49
    %v4124 = vmul.f32 %v4108, %v53
    %v4125 = vmul.f32 %v4109, %v57
    %v4126 = vmul.f32 %v4110, %v61
    %v4127 = vmul.f32 %v4111, %v65
    %v4128 = vmul.f32 %v4112, %v69
    %v4129 = vmul.f32 %v4113, %v73
    %v4130 = vmul.f32 %v4114, %v77
    %v4131 = vmul.f32 %v4115, %v81
    %v4132 = vmul.f32 %v4116, %v85
    %v4133 = vmul.f32 %v4117, %v89
    %v4134 = vmul.f32 %v4118, %v93
    %v4135 = vmul.f32 %v4119, %v97
    %v4136 = vmul.f32 %v4120, %v101
    %v4137 = vmul.f32 %v4121, %v105
    %v4138 = vmul.f32 %v4122, %v109
    %4139 = vst [vmem:[#allocation2 + $0x8] sm:$0xff] %v4123
    %4140 = vst [vmem:[#allocation2 + $0x10] sm:$0xff] %v4124
    %4141 = vst [vmem:[#allocation2 + $0x18] sm:$0xff] %v4125
    %4142 = vst [vmem:[#allocation2 + $0x20] sm:$0xff] %v4126
    %4143 = vst [vmem:[#allocation2 + $0x28] sm:$0xff] %v4127
    %4144 = vst [vmem:[#allocation2 + $0x30] sm:$0xff] %v4128
    %4145 = vst [vmem:[#allocation2 + $0x38] sm:$0xff] %v4129
    %4146 = vst [vmem:[#allocation2 + $0x40] sm:$0xff] %v4130
    %4147 = vst [vmem:[#allocation2 + $0x48] sm:$0xff] %v4131
    %4148 = vst [vmem:[#allocation2 + $0x50] sm:$0xff] %v4132
    %4149 = vst [vmem:[#allocation2 + $0x58] sm:$0xff] %v4133
    %4150 = vst [vmem:[#allocation2 + $0x60] sm:$0xff] %v4134
    %4151 = vst [vmem:[#allocation2 + $0x68] sm:$0xff] %v4135
    %4152 = vst [vmem:[#allocation2 + $0x70] sm:$0xff] %v4136
    %4153 = vst [vmem:[#allocation2 + $0x78] sm:$0xff] %v4137
    %4154 = vst [vmem:[#allocation2 + $0x80] sm:$0xff] %v4138
    %v4155 = vld [vmem:[#allocation2] sm:$0xff]
    %v4156 = vld [vmem:[#allocation2 + $0x8] sm:$0xff]
    %v4157 = vld [vmem:[#allocation2 + $0x10] sm:$0xff]
    %v4158 = vld [vmem:[#allocation2 + $0x18] sm:$0xff]
    %v4159 = vld [vmem:[#allocation2 + $0x20] sm:$0xff]
    %v4160 = vld [vmem:[#allocation2 + $0x28] sm:$0xff]
    %v4161 = vld [vmem:[#allocation2 + $0x30] sm:$0xff]
    %v4162 = vld [vmem:[#allocation2 + $0x38] sm:$0xff]
    %v4163 = vld [vmem:[#allocation2 + $0x40] sm:$0xff]
    %v4164 = vld [vmem:[#allocation2 + $0x48] sm:$0xff]
    %v4165 = vld [vmem:[#allocation2 + $0x50] sm:$0xff]
    %v4166 = vld [vmem:[#allocation2 + $0x58] sm:$0xff]
    %v4167 = vld [vmem:[#allocation2 + $0x60] sm:$0xff]
    %v4168 = vld [vmem:[#allocation2 + $0x68] sm:$0xff]
    %v4169 = vld [vmem:[#allocation2 + $0x70] sm:$0xff]
    %v4170 = vld [vmem:[#allocation2 + $0x78] sm:$0xff]
    %v4171 = vld [vmem:[#allocation2 + $0x80] sm:$0xff]
    %4189 = vrot.lane.b32.xlu0 %v4155, 111
    %v4190 = vpop.permute.xlu0 %4189
    %4191 = vrot.lane.b32.xlu0 %v4156, 111
    %v4192 = vpop.permute.xlu0 %4191
    %4193 = vrot.lane.b32.xlu0 %v4157, 111
    %v4194 = vpop.permute.xlu0 %4193
    %4195 = vrot.lane.b32.xlu0 %v4158, 111
    %v4196 = vpop.permute.xlu0 %4195
    %4197 = vrot.lane.b32.xlu0 %v4159, 111
    %v4198 = vpop.permute.xlu0 %4197
    %4199 = vrot.lane.b32.xlu0 %v4160, 111
    %v4200 = vpop.permute.xlu0 %4199
    %4201 = vrot.lane.b32.xlu0 %v4161, 111
    %v4202 = vpop.permute.xlu0 %4201
    %4203 = vrot.lane.b32.xlu0 %v4162, 111
    %v4204 = vpop.permute.xlu0 %4203
    %4205 = vrot.lane.b32.xlu0 %v4163, 111
    %v4206 = vpop.permute.xlu0 %4205
    %4207 = vrot.lane.b32.xlu0 %v4164, 111
    %v4208 = vpop.permute.xlu0 %4207
    %4209 = vrot.lane.b32.xlu0 %v4165, 111
    %v4210 = vpop.permute.xlu0 %4209
    %4211 = vrot.lane.b32.xlu0 %v4166, 111
    %v4212 = vpop.permute.xlu0 %4211
    %4213 = vrot.lane.b32.xlu0 %v4167, 111
    %v4214 = vpop.permute.xlu0 %4213
    %4215 = vrot.lane.b32.xlu0 %v4168, 111
    %v4216 = vpop.permute.xlu0 %4215
    %4217 = vrot.lane.b32.xlu0 %v4169, 111
    %v4218 = vpop.permute.xlu0 %4217
    %4219 = vrot.lane.b32.xlu0 %v4170, 111
    %v4220 = vpop.permute.xlu0 %4219
    %4221 = vrot.lane.b32.xlu0 %v4171, 111
    %v4222 = vpop.permute.xlu0 %4221
    %v4223 = vsel %vm624, %v4190, %v4192
    %v4224 = vsel %vm624, %v4192, %v4194
    %v4225 = vsel %vm624, %v4194, %v4196
    %v4226 = vsel %vm624, %v4196, %v4198
    %v4227 = vsel %vm624, %v4198, %v4200
    %v4228 = vsel %vm624, %v4200, %v4202
    %v4229 = vsel %vm624, %v4202, %v4204
    %v4230 = vsel %vm624, %v4204, %v4206
    %v4231 = vsel %vm624, %v4206, %v4208
    %v4232 = vsel %vm624, %v4208, %v4210
    %v4233 = vsel %vm624, %v4210, %v4212
    %v4234 = vsel %vm624, %v4212, %v4214
    %v4235 = vsel %vm624, %v4214, %v4216
    %v4236 = vsel %vm624, %v4216, %v4218
    %v4237 = vsel %vm624, %v4218, %v4220
    %v4238 = vsel %vm624, %v4220, %v4222
    %4255 = vst [vmem:[#allocation3] sm:$0xff] %v4223
    %4256 = vst [vmem:[#allocation3 + $0x8] sm:$0xff] %v4224
    %4257 = vst [vmem:[#allocation3 + $0x10] sm:$0xff] %v4225
    %4258 = vst [vmem:[#allocation3 + $0x18] sm:$0xff] %v4226
    %4259 = vst [vmem:[#allocation3 + $0x20] sm:$0xff] %v4227
    %4260 = vst [vmem:[#allocation3 + $0x28] sm:$0xff] %v4228
    %4261 = vst [vmem:[#allocation3 + $0x30] sm:$0xff] %v4229
    %4262 = vst [vmem:[#allocation3 + $0x38] sm:$0xff] %v4230
    %4263 = vst [vmem:[#allocation3 + $0x40] sm:$0xff] %v4231
    %4264 = vst [vmem:[#allocation3 + $0x48] sm:$0xff] %v4232
    %4265 = vst [vmem:[#allocation3 + $0x50] sm:$0xff] %v4233
    %4266 = vst [vmem:[#allocation3 + $0x58] sm:$0xff] %v4234
    %4267 = vst [vmem:[#allocation3 + $0x60] sm:$0xff] %v4235
    %4268 = vst [vmem:[#allocation3 + $0x68] sm:$0xff] %v4236
    %4269 = vst [vmem:[#allocation3 + $0x70] sm:$0xff] %v4237
    %4270 = vst [vmem:[#allocation3 + $0x78] sm:$0xff] %v4238
    %4271 = vrot.lane.b32.xlu0 %v4155, 110
    %v4272 = vpop.permute.xlu0 %4271
    %4273 = vrot.lane.b32.xlu0 %v4156, 110
    %v4274 = vpop.permute.xlu0 %4273
    %4275 = vrot.lane.b32.xlu0 %v4157, 110
    %v4276 = vpop.permute.xlu0 %4275
    %4277 = vrot.lane.b32.xlu0 %v4158, 110
    %v4278 = vpop.permute.xlu0 %4277
    %4279 = vrot.lane.b32.xlu0 %v4159, 110
    %v4280 = vpop.permute.xlu0 %4279
    %4281 = vrot.lane.b32.xlu0 %v4160, 110
    %v4282 = vpop.permute.xlu0 %4281
    %4283 = vrot.lane.b32.xlu0 %v4161, 110
    %v4284 = vpop.permute.xlu0 %4283
    %4285 = vrot.lane.b32.xlu0 %v4162, 110
    %v4286 = vpop.permute.xlu0 %4285
    %4287 = vrot.lane.b32.xlu0 %v4163, 110
    %v4288 = vpop.permute.xlu0 %4287
    %4289 = vrot.lane.b32.xlu0 %v4164, 110
    %v4290 = vpop.permute.xlu0 %4289
    %4291 = vrot.lane.b32.xlu0 %v4165, 110
    %v4292 = vpop.permute.xlu0 %4291
    %4293 = vrot.lane.b32.xlu0 %v4166, 110
    %v4294 = vpop.permute.xlu0 %4293
    %4295 = vrot.lane.b32.xlu0 %v4167, 110
    %v4296 = vpop.permute.xlu0 %4295
    %4297 = vrot.lane.b32.xlu0 %v4168, 110
    %v4298 = vpop.permute.xlu0 %4297
    %4299 = vrot.lane.b32.xlu0 %v4169, 110
    %v4300 = vpop.permute.xlu0 %4299
    %4301 = vrot.lane.b32.xlu0 %v4170, 110
    %v4302 = vpop.permute.xlu0 %4301
    %4303 = vrot.lane.b32.xlu0 %v4171, 110
    %v4304 = vpop.permute.xlu0 %4303
    %v4305 = vsel %vm707, %v4272, %v4274
    %v4306 = vsel %vm707, %v4274, %v4276
    %v4307 = vsel %vm707, %v4276, %v4278
    %v4308 = vsel %vm707, %v4278, %v4280
    %v4309 = vsel %vm707, %v4280, %v4282
    %v4310 = vsel %vm707, %v4282, %v4284
    %v4311 = vsel %vm707, %v4284, %v4286
    %v4312 = vsel %vm707, %v4286, %v4288
    %v4313 = vsel %vm707, %v4288, %v4290
    %v4314 = vsel %vm707, %v4290, %v4292
    %v4315 = vsel %vm707, %v4292, %v4294
    %v4316 = vsel %vm707, %v4294, %v4296
    %v4317 = vsel %vm707, %v4296, %v4298
    %v4318 = vsel %vm707, %v4298, %v4300
    %v4319 = vsel %vm707, %v4300, %v4302
    %v4320 = vsel %vm707, %v4302, %v4304
    %4337 = vst [vmem:[#allocation3 + $0x80] sm:$0xff] %v4305
    %4338 = vst [vmem:[#allocation3 + $0x88] sm:$0xff] %v4306
    %4339 = vst [vmem:[#allocation3 + $0x90] sm:$0xff] %v4307
    %4340 = vst [vmem:[#allocation3 + $0x98] sm:$0xff] %v4308
    %4341 = vst [vmem:[#allocation3 + $0xa0] sm:$0xff] %v4309
    %4342 = vst [vmem:[#allocation3 + $0xa8] sm:$0xff] %v4310
    %4343 = vst [vmem:[#allocation3 + $0xb0] sm:$0xff] %v4311
    %4344 = vst [vmem:[#allocation3 + $0xb8] sm:$0xff] %v4312
    %4345 = vst [vmem:[#allocation3 + $0xc0] sm:$0xff] %v4313
    %4346 = vst [vmem:[#allocation3 + $0xc8] sm:$0xff] %v4314
    %4347 = vst [vmem:[#allocation3 + $0xd0] sm:$0xff] %v4315
    %4348 = vst [vmem:[#allocation3 + $0xd8] sm:$0xff] %v4316
    %4349 = vst [vmem:[#allocation3 + $0xe0] sm:$0xff] %v4317
    %4350 = vst [vmem:[#allocation3 + $0xe8] sm:$0xff] %v4318
    %4351 = vst [vmem:[#allocation3 + $0xf0] sm:$0xff] %v4319
    %4352 = vst [vmem:[#allocation3 + $0xf8] sm:$0xff] %v4320
    %4353 = vrot.lane.b32.xlu0 %v4155, 109
    %v4354 = vpop.permute.xlu0 %4353
    %4355 = vrot.lane.b32.xlu0 %v4156, 109
    %v4356 = vpop.permute.xlu0 %4355
    %4357 = vrot.lane.b32.xlu0 %v4157, 109
    %v4358 = vpop.permute.xlu0 %4357
    %4359 = vrot.lane.b32.xlu0 %v4158, 109
    %v4360 = vpop.permute.xlu0 %4359
    %4361 = vrot.lane.b32.xlu0 %v4159, 109
    %v4362 = vpop.permute.xlu0 %4361
    %4363 = vrot.lane.b32.xlu0 %v4160, 109
    %v4364 = vpop.permute.xlu0 %4363
    %4365 = vrot.lane.b32.xlu0 %v4161, 109
    %v4366 = vpop.permute.xlu0 %4365
    %4367 = vrot.lane.b32.xlu0 %v4162, 109
    %v4368 = vpop.permute.xlu0 %4367
    %4369 = vrot.lane.b32.xlu0 %v4163, 109
    %v4370 = vpop.permute.xlu0 %4369
    %4371 = vrot.lane.b32.xlu0 %v4164, 109
    %v4372 = vpop.permute.xlu0 %4371
    %4373 = vrot.lane.b32.xlu0 %v4165, 109
    %v4374 = vpop.permute.xlu0 %4373
    %4375 = vrot.lane.b32.xlu0 %v4166, 109
    %v4376 = vpop.permute.xlu0 %4375
    %4377 = vrot.lane.b32.xlu0 %v4167, 109
    %v4378 = vpop.permute.xlu0 %4377
    %4379 = vrot.lane.b32.xlu0 %v4168, 109
    %v4380 = vpop.permute.xlu0 %4379
    %4381 = vrot.lane.b32.xlu0 %v4169, 109
    %v4382 = vpop.permute.xlu0 %4381
    %4383 = vrot.lane.b32.xlu0 %v4170, 109
    %v4384 = vpop.permute.xlu0 %4383
    %4385 = vrot.lane.b32.xlu0 %v4171, 109
    %v4386 = vpop.permute.xlu0 %4385
    %v4387 = vsel %vm790, %v4354, %v4356
    %v4388 = vsel %vm790, %v4356, %v4358
    %v4389 = vsel %vm790, %v4358, %v4360
    %v4390 = vsel %vm790, %v4360, %v4362
    %v4391 = vsel %vm790, %v4362, %v4364
    %v4392 = vsel %vm790, %v4364, %v4366
    %v4393 = vsel %vm790, %v4366, %v4368
    %v4394 = vsel %vm790, %v4368, %v4370
    %v4395 = vsel %vm790, %v4370, %v4372
    %v4396 = vsel %vm790, %v4372, %v4374
    %v4397 = vsel %vm790, %v4374, %v4376
    %v4398 = vsel %vm790, %v4376, %v4378
    %v4399 = vsel %vm790, %v4378, %v4380
    %v4400 = vsel %vm790, %v4380, %v4382
    %v4401 = vsel %vm790, %v4382, %v4384
    %v4402 = vsel %vm790, %v4384, %v4386
    %4419 = vst [vmem:[#allocation3 + $0x100] sm:$0xff] %v4387
    %4420 = vst [vmem:[#allocation3 + $0x108] sm:$0xff] %v4388
    %4421 = vst [vmem:[#allocation3 + $0x110] sm:$0xff] %v4389
    %4422 = vst [vmem:[#allocation3 + $0x118] sm:$0xff] %v4390
    %4423 = vst [vmem:[#allocation3 + $0x120] sm:$0xff] %v4391
    %4424 = vst [vmem:[#allocation3 + $0x128] sm:$0xff] %v4392
    %4425 = vst [vmem:[#allocation3 + $0x130] sm:$0xff] %v4393
    %4426 = vst [vmem:[#allocation3 + $0x138] sm:$0xff] %v4394
    %4427 = vst [vmem:[#allocation3 + $0x140] sm:$0xff] %v4395
    %4428 = vst [vmem:[#allocation3 + $0x148] sm:$0xff] %v4396
    %4429 = vst [vmem:[#allocation3 + $0x150] sm:$0xff] %v4397
    %4430 = vst [vmem:[#allocation3 + $0x158] sm:$0xff] %v4398
    %4431 = vst [vmem:[#allocation3 + $0x160] sm:$0xff] %v4399
    %4432 = vst [vmem:[#allocation3 + $0x168] sm:$0xff] %v4400
    %4433 = vst [vmem:[#allocation3 + $0x170] sm:$0xff] %v4401
    %4434 = vst [vmem:[#allocation3 + $0x178] sm:$0xff] %v4402
    %v4435 = vld [vmem:[#allocation2] sm:$0xff]
    %v4436 = vld [vmem:[#allocation2 + $0x8] sm:$0xff]
    %v4437 = vld [vmem:[#allocation2 + $0x10] sm:$0xff]
    %v4438 = vld [vmem:[#allocation2 + $0x18] sm:$0xff]
    %v4439 = vld [vmem:[#allocation2 + $0x20] sm:$0xff]
    %v4440 = vld [vmem:[#allocation2 + $0x28] sm:$0xff]
    %v4441 = vld [vmem:[#allocation2 + $0x30] sm:$0xff]
    %v4442 = vld [vmem:[#allocation2 + $0x38] sm:$0xff]
    %v4443 = vld [vmem:[#allocation2 + $0x40] sm:$0xff]
    %v4444 = vld [vmem:[#allocation2 + $0x48] sm:$0xff]
    %v4445 = vld [vmem:[#allocation2 + $0x50] sm:$0xff]
    %v4446 = vld [vmem:[#allocation2 + $0x58] sm:$0xff]
    %v4447 = vld [vmem:[#allocation2 + $0x60] sm:$0xff]
    %v4448 = vld [vmem:[#allocation2 + $0x68] sm:$0xff]
    %v4449 = vld [vmem:[#allocation2 + $0x70] sm:$0xff]
    %v4450 = vld [vmem:[#allocation2 + $0x78] sm:$0xff]
    %v4451 = vld [vmem:[#allocation2 + $0x80] sm:$0xff]
    %4469 = vrot.lane.b32.xlu0 %v4435, 101
    %v4470 = vpop.permute.xlu0 %4469
    %4471 = vrot.lane.b32.xlu0 %v4436, 101
    %v4472 = vpop.permute.xlu0 %4471
    %4473 = vrot.lane.b32.xlu0 %v4437, 101
    %v4474 = vpop.permute.xlu0 %4473
    %4475 = vrot.lane.b32.xlu0 %v4438, 101
    %v4476 = vpop.permute.xlu0 %4475
    %4477 = vrot.lane.b32.xlu0 %v4439, 101
    %v4478 = vpop.permute.xlu0 %4477
    %4479 = vrot.lane.b32.xlu0 %v4440, 101
    %v4480 = vpop.permute.xlu0 %4479
    %4481 = vrot.lane.b32.xlu0 %v4441, 101
    %v4482 = vpop.permute.xlu0 %4481
    %4483 = vrot.lane.b32.xlu0 %v4442, 101
    %v4484 = vpop.permute.xlu0 %4483
    %4485 = vrot.lane.b32.xlu0 %v4443, 101
    %v4486 = vpop.permute.xlu0 %4485
    %4487 = vrot.lane.b32.xlu0 %v4444, 101
    %v4488 = vpop.permute.xlu0 %4487
    %4489 = vrot.lane.b32.xlu0 %v4445, 101
    %v4490 = vpop.permute.xlu0 %4489
    %4491 = vrot.lane.b32.xlu0 %v4446, 101
    %v4492 = vpop.permute.xlu0 %4491
    %4493 = vrot.lane.b32.xlu0 %v4447, 101
    %v4494 = vpop.permute.xlu0 %4493
    %4495 = vrot.lane.b32.xlu0 %v4448, 101
    %v4496 = vpop.permute.xlu0 %4495
    %4497 = vrot.lane.b32.xlu0 %v4449, 101
    %v4498 = vpop.permute.xlu0 %4497
    %4499 = vrot.lane.b32.xlu0 %v4450, 101
    %v4500 = vpop.permute.xlu0 %4499
    %4501 = vrot.lane.b32.xlu0 %v4451, 101
    %v4502 = vpop.permute.xlu0 %4501
    %v4503 = vsel %vm899, %v4470, %v4472
    %v4504 = vsel %vm899, %v4472, %v4474
    %v4505 = vsel %vm899, %v4474, %v4476
    %v4506 = vsel %vm899, %v4476, %v4478
    %v4507 = vsel %vm899, %v4478, %v4480
    %v4508 = vsel %vm899, %v4480, %v4482
    %v4509 = vsel %vm899, %v4482, %v4484
    %v4510 = vsel %vm899, %v4484, %v4486
    %v4511 = vsel %vm899, %v4486, %v4488
    %v4512 = vsel %vm899, %v4488, %v4490
    %v4513 = vsel %vm899, %v4490, %v4492
    %v4514 = vsel %vm899, %v4492, %v4494
    %v4515 = vsel %vm899, %v4494, %v4496
    %v4516 = vsel %vm899, %v4496, %v4498
    %v4517 = vsel %vm899, %v4498, %v4500
    %v4518 = vsel %vm899, %v4500, %v4502
    %4535 = vst [vmem:[#allocation3 + $0x180] sm:$0xff] %v4503
    %4536 = vst [vmem:[#allocation3 + $0x188] sm:$0xff] %v4504
    %4537 = vst [vmem:[#allocation3 + $0x190] sm:$0xff] %v4505
    %4538 = vst [vmem:[#allocation3 + $0x198] sm:$0xff] %v4506
    %4539 = vst [vmem:[#allocation3 + $0x1a0] sm:$0xff] %v4507
    %4540 = vst [vmem:[#allocation3 + $0x1a8] sm:$0xff] %v4508
    %4541 = vst [vmem:[#allocation3 + $0x1b0] sm:$0xff] %v4509
    %4542 = vst [vmem:[#allocation3 + $0x1b8] sm:$0xff] %v4510
    %4543 = vst [vmem:[#allocation3 + $0x1c0] sm:$0xff] %v4511
    %4544 = vst [vmem:[#allocation3 + $0x1c8] sm:$0xff] %v4512
    %4545 = vst [vmem:[#allocation3 + $0x1d0] sm:$0xff] %v4513
    %4546 = vst [vmem:[#allocation3 + $0x1d8] sm:$0xff] %v4514
    %4547 = vst [vmem:[#allocation3 + $0x1e0] sm:$0xff] %v4515
    %4548 = vst [vmem:[#allocation3 + $0x1e8] sm:$0xff] %v4516
    %4549 = vst [vmem:[#allocation3 + $0x1f0] sm:$0xff] %v4517
    %4550 = vst [vmem:[#allocation3 + $0x1f8] sm:$0xff] %v4518
    %4551 = vrot.lane.b32.xlu0 %v4435, 100
    %v4552 = vpop.permute.xlu0 %4551
    %4553 = vrot.lane.b32.xlu0 %v4436, 100
    %v4554 = vpop.permute.xlu0 %4553
    %4555 = vrot.lane.b32.xlu0 %v4437, 100
    %v4556 = vpop.permute.xlu0 %4555
    %4557 = vrot.lane.b32.xlu0 %v4438, 100
    %v4558 = vpop.permute.xlu0 %4557
    %4559 = vrot.lane.b32.xlu0 %v4439, 100
    %v4560 = vpop.permute.xlu0 %4559
    %4561 = vrot.lane.b32.xlu0 %v4440, 100
    %v4562 = vpop.permute.xlu0 %4561
    %4563 = vrot.lane.b32.xlu0 %v4441, 100
    %v4564 = vpop.permute.xlu0 %4563
    %4565 = vrot.lane.b32.xlu0 %v4442, 100
    %v4566 = vpop.permute.xlu0 %4565
    %4567 = vrot.lane.b32.xlu0 %v4443, 100
    %v4568 = vpop.permute.xlu0 %4567
    %4569 = vrot.lane.b32.xlu0 %v4444, 100
    %v4570 = vpop.permute.xlu0 %4569
    %4571 = vrot.lane.b32.xlu0 %v4445, 100
    %v4572 = vpop.permute.xlu0 %4571
    %4573 = vrot.lane.b32.xlu0 %v4446, 100
    %v4574 = vpop.permute.xlu0 %4573
    %4575 = vrot.lane.b32.xlu0 %v4447, 100
    %v4576 = vpop.permute.xlu0 %4575
    %4577 = vrot.lane.b32.xlu0 %v4448, 100
    %v4578 = vpop.permute.xlu0 %4577
    %4579 = vrot.lane.b32.xlu0 %v4449, 100
    %v4580 = vpop.permute.xlu0 %4579
    %4581 = vrot.lane.b32.xlu0 %v4450, 100
    %v4582 = vpop.permute.xlu0 %4581
    %4583 = vrot.lane.b32.xlu0 %v4451, 100
    %v4584 = vpop.permute.xlu0 %4583
    %v4585 = vsel %vm982, %v4552, %v4554
    %v4586 = vsel %vm982, %v4554, %v4556
    %v4587 = vsel %vm982, %v4556, %v4558
    %v4588 = vsel %vm982, %v4558, %v4560
    %v4589 = vsel %vm982, %v4560, %v4562
    %v4590 = vsel %vm982, %v4562, %v4564
    %v4591 = vsel %vm982, %v4564, %v4566
    %v4592 = vsel %vm982, %v4566, %v4568
    %v4593 = vsel %vm982, %v4568, %v4570
    %v4594 = vsel %vm982, %v4570, %v4572
    %v4595 = vsel %vm982, %v4572, %v4574
    %v4596 = vsel %vm982, %v4574, %v4576
    %v4597 = vsel %vm982, %v4576, %v4578
    %v4598 = vsel %vm982, %v4578, %v4580
    %v4599 = vsel %vm982, %v4580, %v4582
    %v4600 = vsel %vm982, %v4582, %v4584
    %4617 = vst [vmem:[#allocation3 + $0x200] sm:$0xff] %v4585
    %4618 = vst [vmem:[#allocation3 + $0x208] sm:$0xff] %v4586
    %4619 = vst [vmem:[#allocation3 + $0x210] sm:$0xff] %v4587
    %4620 = vst [vmem:[#allocation3 + $0x218] sm:$0xff] %v4588
    %4621 = vst [vmem:[#allocation3 + $0x220] sm:$0xff] %v4589
    %4622 = vst [vmem:[#allocation3 + $0x228] sm:$0xff] %v4590
    %4623 = vst [vmem:[#allocation3 + $0x230] sm:$0xff] %v4591
    %4624 = vst [vmem:[#allocation3 + $0x238] sm:$0xff] %v4592
    %4625 = vst [vmem:[#allocation3 + $0x240] sm:$0xff] %v4593
    %4626 = vst [vmem:[#allocation3 + $0x248] sm:$0xff] %v4594
    %4627 = vst [vmem:[#allocation3 + $0x250] sm:$0xff] %v4595
    %4628 = vst [vmem:[#allocation3 + $0x258] sm:$0xff] %v4596
    %4629 = vst [vmem:[#allocation3 + $0x260] sm:$0xff] %v4597
    %4630 = vst [vmem:[#allocation3 + $0x268] sm:$0xff] %v4598
    %4631 = vst [vmem:[#allocation3 + $0x270] sm:$0xff] %v4599
    %4632 = vst [vmem:[#allocation3 + $0x278] sm:$0xff] %v4600
    %4633 = vrot.lane.b32.xlu0 %v4435, 99
    %v4634 = vpop.permute.xlu0 %4633
    %4635 = vrot.lane.b32.xlu0 %v4436, 99
    %v4636 = vpop.permute.xlu0 %4635
    %4637 = vrot.lane.b32.xlu0 %v4437, 99
    %v4638 = vpop.permute.xlu0 %4637
    %4639 = vrot.lane.b32.xlu0 %v4438, 99
    %v4640 = vpop.permute.xlu0 %4639
    %4641 = vrot.lane.b32.xlu0 %v4439, 99
    %v4642 = vpop.permute.xlu0 %4641
    %4643 = vrot.lane.b32.xlu0 %v4440, 99
    %v4644 = vpop.permute.xlu0 %4643
    %4645 = vrot.lane.b32.xlu0 %v4441, 99
    %v4646 = vpop.permute.xlu0 %4645
    %4647 = vrot.lane.b32.xlu0 %v4442, 99
    %v4648 = vpop.permute.xlu0 %4647
    %4649 = vrot.lane.b32.xlu0 %v4443, 99
    %v4650 = vpop.permute.xlu0 %4649
    %4651 = vrot.lane.b32.xlu0 %v4444, 99
    %v4652 = vpop.permute.xlu0 %4651
    %4653 = vrot.lane.b32.xlu0 %v4445, 99
    %v4654 = vpop.permute.xlu0 %4653
    %4655 = vrot.lane.b32.xlu0 %v4446, 99
    %v4656 = vpop.permute.xlu0 %4655
    %4657 = vrot.lane.b32.xlu0 %v4447, 99
    %v4658 = vpop.permute.xlu0 %4657
    %4659 = vrot.lane.b32.xlu0 %v4448, 99
    %v4660 = vpop.permute.xlu0 %4659
    %4661 = vrot.lane.b32.xlu0 %v4449, 99
    %v4662 = vpop.permute.xlu0 %4661
    %4663 = vrot.lane.b32.xlu0 %v4450, 99
    %v4664 = vpop.permute.xlu0 %4663
    %4665 = vrot.lane.b32.xlu0 %v4451, 99
    %v4666 = vpop.permute.xlu0 %4665
    %v4667 = vsel %vm1065, %v4634, %v4636
    %v4668 = vsel %vm1065, %v4636, %v4638
    %v4669 = vsel %vm1065, %v4638, %v4640
    %v4670 = vsel %vm1065, %v4640, %v4642
    %v4671 = vsel %vm1065, %v4642, %v4644
    %v4672 = vsel %vm1065, %v4644, %v4646
    %v4673 = vsel %vm1065, %v4646, %v4648
    %v4674 = vsel %vm1065, %v4648, %v4650
    %v4675 = vsel %vm1065, %v4650, %v4652
    %v4676 = vsel %vm1065, %v4652, %v4654
    %v4677 = vsel %vm1065, %v4654, %v4656
    %v4678 = vsel %vm1065, %v4656, %v4658
    %v4679 = vsel %vm1065, %v4658, %v4660
    %v4680 = vsel %vm1065, %v4660, %v4662
    %v4681 = vsel %vm1065, %v4662, %v4664
    %v4682 = vsel %vm1065, %v4664, %v4666
    %4699 = vst [vmem:[#allocation3 + $0x280] sm:$0xff] %v4667
    %4700 = vst [vmem:[#allocation3 + $0x288] sm:$0xff] %v4668
    %4701 = vst [vmem:[#allocation3 + $0x290] sm:$0xff] %v4669
    %4702 = vst [vmem:[#allocation3 + $0x298] sm:$0xff] %v4670
    %4703 = vst [vmem:[#allocation3 + $0x2a0] sm:$0xff] %v4671
    %4704 = vst [vmem:[#allocation3 + $0x2a8] sm:$0xff] %v4672
    %4705 = vst [vmem:[#allocation3 + $0x2b0] sm:$0xff] %v4673
    %4706 = vst [vmem:[#allocation3 + $0x2b8] sm:$0xff] %v4674
    %4707 = vst [vmem:[#allocation3 + $0x2c0] sm:$0xff] %v4675
    %4708 = vst [vmem:[#allocation3 + $0x2c8] sm:$0xff] %v4676
    %4709 = vst [vmem:[#allocation3 + $0x2d0] sm:$0xff] %v4677
    %4710 = vst [vmem:[#allocation3 + $0x2d8] sm:$0xff] %v4678
    %4711 = vst [vmem:[#allocation3 + $0x2e0] sm:$0xff] %v4679
    %4712 = vst [vmem:[#allocation3 + $0x2e8] sm:$0xff] %v4680
    %4713 = vst [vmem:[#allocation3 + $0x2f0] sm:$0xff] %v4681
    %4714 = vst [vmem:[#allocation3 + $0x2f8] sm:$0xff] %v4682
    %v4715 = vld [vmem:[#allocation2] sm:$0xff]
    %v4716 = vld [vmem:[#allocation2 + $0x8] sm:$0xff]
    %v4717 = vld [vmem:[#allocation2 + $0x10] sm:$0xff]
    %v4718 = vld [vmem:[#allocation2 + $0x18] sm:$0xff]
    %v4719 = vld [vmem:[#allocation2 + $0x20] sm:$0xff]
    %v4720 = vld [vmem:[#allocation2 + $0x28] sm:$0xff]
    %v4721 = vld [vmem:[#allocation2 + $0x30] sm:$0xff]
    %v4722 = vld [vmem:[#allocation2 + $0x38] sm:$0xff]
    %v4723 = vld [vmem:[#allocation2 + $0x40] sm:$0xff]
    %v4724 = vld [vmem:[#allocation2 + $0x48] sm:$0xff]
    %v4725 = vld [vmem:[#allocation2 + $0x50] sm:$0xff]
    %v4726 = vld [vmem:[#allocation2 + $0x58] sm:$0xff]
    %v4727 = vld [vmem:[#allocation2 + $0x60] sm:$0xff]
    %v4728 = vld [vmem:[#allocation2 + $0x68] sm:$0xff]
    %v4729 = vld [vmem:[#allocation2 + $0x70] sm:$0xff]
    %v4730 = vld [vmem:[#allocation2 + $0x78] sm:$0xff]
    %v4731 = vld [vmem:[#allocation2 + $0x80] sm:$0xff]
    %4749 = vrot.lane.b32.xlu0 %v4715, 91
    %v4750 = vpop.permute.xlu0 %4749
    %4751 = vrot.lane.b32.xlu0 %v4716, 91
    %v4752 = vpop.permute.xlu0 %4751
    %4753 = vrot.lane.b32.xlu0 %v4717, 91
    %v4754 = vpop.permute.xlu0 %4753
    %4755 = vrot.lane.b32.xlu0 %v4718, 91
    %v4756 = vpop.permute.xlu0 %4755
    %4757 = vrot.lane.b32.xlu0 %v4719, 91
    %v4758 = vpop.permute.xlu0 %4757
    %4759 = vrot.lane.b32.xlu0 %v4720, 91
    %v4760 = vpop.permute.xlu0 %4759
    %4761 = vrot.lane.b32.xlu0 %v4721, 91
    %v4762 = vpop.permute.xlu0 %4761
    %4763 = vrot.lane.b32.xlu0 %v4722, 91
    %v4764 = vpop.permute.xlu0 %4763
    %4765 = vrot.lane.b32.xlu0 %v4723, 91
    %v4766 = vpop.permute.xlu0 %4765
    %4767 = vrot.lane.b32.xlu0 %v4724, 91
    %v4768 = vpop.permute.xlu0 %4767
    %4769 = vrot.lane.b32.xlu0 %v4725, 91
    %v4770 = vpop.permute.xlu0 %4769
    %4771 = vrot.lane.b32.xlu0 %v4726, 91
    %v4772 = vpop.permute.xlu0 %4771
    %4773 = vrot.lane.b32.xlu0 %v4727, 91
    %v4774 = vpop.permute.xlu0 %4773
    %4775 = vrot.lane.b32.xlu0 %v4728, 91
    %v4776 = vpop.permute.xlu0 %4775
    %4777 = vrot.lane.b32.xlu0 %v4729, 91
    %v4778 = vpop.permute.xlu0 %4777
    %4779 = vrot.lane.b32.xlu0 %v4730, 91
    %v4780 = vpop.permute.xlu0 %4779
    %4781 = vrot.lane.b32.xlu0 %v4731, 91
    %v4782 = vpop.permute.xlu0 %4781
    %v4783 = vsel %vm1174, %v4750, %v4752
    %v4784 = vsel %vm1174, %v4752, %v4754
    %v4785 = vsel %vm1174, %v4754, %v4756
    %v4786 = vsel %vm1174, %v4756, %v4758
    %v4787 = vsel %vm1174, %v4758, %v4760
    %v4788 = vsel %vm1174, %v4760, %v4762
    %v4789 = vsel %vm1174, %v4762, %v4764
    %v4790 = vsel %vm1174, %v4764, %v4766
    %v4791 = vsel %vm1174, %v4766, %v4768
    %v4792 = vsel %vm1174, %v4768, %v4770
    %v4793 = vsel %vm1174, %v4770, %v4772
    %v4794 = vsel %vm1174, %v4772, %v4774
    %v4795 = vsel %vm1174, %v4774, %v4776
    %v4796 = vsel %vm1174, %v4776, %v4778
    %v4797 = vsel %vm1174, %v4778, %v4780
    %v4798 = vsel %vm1174, %v4780, %v4782
    %4815 = vst [vmem:[#allocation3 + $0x300] sm:$0xff] %v4783
    %4816 = vst [vmem:[#allocation3 + $0x308] sm:$0xff] %v4784
    %4817 = vst [vmem:[#allocation3 + $0x310] sm:$0xff] %v4785
    %4818 = vst [vmem:[#allocation3 + $0x318] sm:$0xff] %v4786
    %4819 = vst [vmem:[#allocation3 + $0x320] sm:$0xff] %v4787
    %4820 = vst [vmem:[#allocation3 + $0x328] sm:$0xff] %v4788
    %4821 = vst [vmem:[#allocation3 + $0x330] sm:$0xff] %v4789
    %4822 = vst [vmem:[#allocation3 + $0x338] sm:$0xff] %v4790
    %4823 = vst [vmem:[#allocation3 + $0x340] sm:$0xff] %v4791
    %4824 = vst [vmem:[#allocation3 + $0x348] sm:$0xff] %v4792
    %4825 = vst [vmem:[#allocation3 + $0x350] sm:$0xff] %v4793
    %4826 = vst [vmem:[#allocation3 + $0x358] sm:$0xff] %v4794
    %4827 = vst [vmem:[#allocation3 + $0x360] sm:$0xff] %v4795
    %4828 = vst [vmem:[#allocation3 + $0x368] sm:$0xff] %v4796
    %4829 = vst [vmem:[#allocation3 + $0x370] sm:$0xff] %v4797
    %4830 = vst [vmem:[#allocation3 + $0x378] sm:$0xff] %v4798
    %4831 = vrot.lane.b32.xlu0 %v4715, 90
    %v4832 = vpop.permute.xlu0 %4831
    %4833 = vrot.lane.b32.xlu0 %v4716, 90
    %v4834 = vpop.permute.xlu0 %4833
    %4835 = vrot.lane.b32.xlu0 %v4717, 90
    %v4836 = vpop.permute.xlu0 %4835
    %4837 = vrot.lane.b32.xlu0 %v4718, 90
    %v4838 = vpop.permute.xlu0 %4837
    %4839 = vrot.lane.b32.xlu0 %v4719, 90
    %v4840 = vpop.permute.xlu0 %4839
    %4841 = vrot.lane.b32.xlu0 %v4720, 90
    %v4842 = vpop.permute.xlu0 %4841
    %4843 = vrot.lane.b32.xlu0 %v4721, 90
    %v4844 = vpop.permute.xlu0 %4843
    %4845 = vrot.lane.b32.xlu0 %v4722, 90
    %v4846 = vpop.permute.xlu0 %4845
    %4847 = vrot.lane.b32.xlu0 %v4723, 90
    %v4848 = vpop.permute.xlu0 %4847
    %4849 = vrot.lane.b32.xlu0 %v4724, 90
    %v4850 = vpop.permute.xlu0 %4849
    %4851 = vrot.lane.b32.xlu0 %v4725, 90
    %v4852 = vpop.permute.xlu0 %4851
    %4853 = vrot.lane.b32.xlu0 %v4726, 90
    %v4854 = vpop.permute.xlu0 %4853
    %4855 = vrot.lane.b32.xlu0 %v4727, 90
    %v4856 = vpop.permute.xlu0 %4855
    %4857 = vrot.lane.b32.xlu0 %v4728, 90
    %v4858 = vpop.permute.xlu0 %4857
    %4859 = vrot.lane.b32.xlu0 %v4729, 90
    %v4860 = vpop.permute.xlu0 %4859
    %4861 = vrot.lane.b32.xlu0 %v4730, 90
    %v4862 = vpop.permute.xlu0 %4861
    %4863 = vrot.lane.b32.xlu0 %v4731, 90
    %v4864 = vpop.permute.xlu0 %4863
    %v4865 = vsel %vm1257, %v4832, %v4834
    %v4866 = vsel %vm1257, %v4834, %v4836
    %v4867 = vsel %vm1257, %v4836, %v4838
    %v4868 = vsel %vm1257, %v4838, %v4840
    %v4869 = vsel %vm1257, %v4840, %v4842
    %v4870 = vsel %vm1257, %v4842, %v4844
    %v4871 = vsel %vm1257, %v4844, %v4846
    %v4872 = vsel %vm1257, %v4846, %v4848
    %v4873 = vsel %vm1257, %v4848, %v4850
    %v4874 = vsel %vm1257, %v4850, %v4852
    %v4875 = vsel %vm1257, %v4852, %v4854
    %v4876 = vsel %vm1257, %v4854, %v4856
    %v4877 = vsel %vm1257, %v4856, %v4858
    %v4878 = vsel %vm1257, %v4858, %v4860
    %v4879 = vsel %vm1257, %v4860, %v4862
    %v4880 = vsel %vm1257, %v4862, %v4864
    %4897 = vst [vmem:[#allocation3 + $0x380] sm:$0xff] %v4865
    %4898 = vst [vmem:[#allocation3 + $0x388] sm:$0xff] %v4866
    %4899 = vst [vmem:[#allocation3 + $0x390] sm:$0xff] %v4867
    %4900 = vst [vmem:[#allocation3 + $0x398] sm:$0xff] %v4868
    %4901 = vst [vmem:[#allocation3 + $0x3a0] sm:$0xff] %v4869
    %4902 = vst [vmem:[#allocation3 + $0x3a8] sm:$0xff] %v4870
    %4903 = vst [vmem:[#allocation3 + $0x3b0] sm:$0xff] %v4871
    %4904 = vst [vmem:[#allocation3 + $0x3b8] sm:$0xff] %v4872
    %4905 = vst [vmem:[#allocation3 + $0x3c0] sm:$0xff] %v4873
    %4906 = vst [vmem:[#allocation3 + $0x3c8] sm:$0xff] %v4874
    %4907 = vst [vmem:[#allocation3 + $0x3d0] sm:$0xff] %v4875
    %4908 = vst [vmem:[#allocation3 + $0x3d8] sm:$0xff] %v4876
    %4909 = vst [vmem:[#allocation3 + $0x3e0] sm:$0xff] %v4877
    %4910 = vst [vmem:[#allocation3 + $0x3e8] sm:$0xff] %v4878
    %4911 = vst [vmem:[#allocation3 + $0x3f0] sm:$0xff] %v4879
    %4912 = vst [vmem:[#allocation3 + $0x3f8] sm:$0xff] %v4880
    %4913 = vrot.lane.b32.xlu0 %v4715, 89
    %v4914 = vpop.permute.xlu0 %4913
    %4915 = vrot.lane.b32.xlu0 %v4716, 89
    %v4916 = vpop.permute.xlu0 %4915
    %4917 = vrot.lane.b32.xlu0 %v4717, 89
    %v4918 = vpop.permute.xlu0 %4917
    %4919 = vrot.lane.b32.xlu0 %v4718, 89
    %v4920 = vpop.permute.xlu0 %4919
    %4921 = vrot.lane.b32.xlu0 %v4719, 89
    %v4922 = vpop.permute.xlu0 %4921
    %4923 = vrot.lane.b32.xlu0 %v4720, 89
    %v4924 = vpop.permute.xlu0 %4923
    %4925 = vrot.lane.b32.xlu0 %v4721, 89
    %v4926 = vpop.permute.xlu0 %4925
    %4927 = vrot.lane.b32.xlu0 %v4722, 89
    %v4928 = vpop.permute.xlu0 %4927
    %4929 = vrot.lane.b32.xlu0 %v4723, 89
    %v4930 = vpop.permute.xlu0 %4929
    %4931 = vrot.lane.b32.xlu0 %v4724, 89
    %v4932 = vpop.permute.xlu0 %4931
    %4933 = vrot.lane.b32.xlu0 %v4725, 89
    %v4934 = vpop.permute.xlu0 %4933
    %4935 = vrot.lane.b32.xlu0 %v4726, 89
    %v4936 = vpop.permute.xlu0 %4935
    %4937 = vrot.lane.b32.xlu0 %v4727, 89
    %v4938 = vpop.permute.xlu0 %4937
    %4939 = vrot.lane.b32.xlu0 %v4728, 89
    %v4940 = vpop.permute.xlu0 %4939
    %4941 = vrot.lane.b32.xlu0 %v4729, 89
    %v4942 = vpop.permute.xlu0 %4941
    %4943 = vrot.lane.b32.xlu0 %v4730, 89
    %v4944 = vpop.permute.xlu0 %4943
    %4945 = vrot.lane.b32.xlu0 %v4731, 89
    %v4946 = vpop.permute.xlu0 %4945
    %v4947 = vsel %vm1340, %v4914, %v4916
    %v4948 = vsel %vm1340, %v4916, %v4918
    %v4949 = vsel %vm1340, %v4918, %v4920
    %v4950 = vsel %vm1340, %v4920, %v4922
    %v4951 = vsel %vm1340, %v4922, %v4924
    %v4952 = vsel %vm1340, %v4924, %v4926
    %v4953 = vsel %vm1340, %v4926, %v4928
    %v4954 = vsel %vm1340, %v4928, %v4930
    %v4955 = vsel %vm1340, %v4930, %v4932
    %v4956 = vsel %vm1340, %v4932, %v4934
    %v4957 = vsel %vm1340, %v4934, %v4936
    %v4958 = vsel %vm1340, %v4936, %v4938
    %v4959 = vsel %vm1340, %v4938, %v4940
    %v4960 = vsel %vm1340, %v4940, %v4942
    %v4961 = vsel %vm1340, %v4942, %v4944
    %v4962 = vsel %vm1340, %v4944, %v4946
    %4979 = vst [vmem:[#allocation3 + $0x400] sm:$0xff] %v4947
    %4980 = vst [vmem:[#allocation3 + $0x408] sm:$0xff] %v4948
    %4981 = vst [vmem:[#allocation3 + $0x410] sm:$0xff] %v4949
    %4982 = vst [vmem:[#allocation3 + $0x418] sm:$0xff] %v4950
    %4983 = vst [vmem:[#allocation3 + $0x420] sm:$0xff] %v4951
    %4984 = vst [vmem:[#allocation3 + $0x428] sm:$0xff] %v4952
    %4985 = vst [vmem:[#allocation3 + $0x430] sm:$0xff] %v4953
    %4986 = vst [vmem:[#allocation3 + $0x438] sm:$0xff] %v4954
    %4987 = vst [vmem:[#allocation3 + $0x440] sm:$0xff] %v4955
    %4988 = vst [vmem:[#allocation3 + $0x448] sm:$0xff] %v4956
    %4989 = vst [vmem:[#allocation3 + $0x450] sm:$0xff] %v4957
    %4990 = vst [vmem:[#allocation3 + $0x458] sm:$0xff] %v4958
    %4991 = vst [vmem:[#allocation3 + $0x460] sm:$0xff] %v4959
    %4992 = vst [vmem:[#allocation3 + $0x468] sm:$0xff] %v4960
    %4993 = vst [vmem:[#allocation3 + $0x470] sm:$0xff] %v4961
    %4994 = vst [vmem:[#allocation3 + $0x478] sm:$0xff] %v4962
    %v4995 = vld [vmem:[#allocation2] sm:$0xff]
    %v4996 = vld [vmem:[#allocation2 + $0x8] sm:$0xff]
    %v4997 = vld [vmem:[#allocation2 + $0x10] sm:$0xff]
    %v4998 = vld [vmem:[#allocation2 + $0x18] sm:$0xff]
    %v4999 = vld [vmem:[#allocation2 + $0x20] sm:$0xff]
    %v5000 = vld [vmem:[#allocation2 + $0x28] sm:$0xff]
    %v5001 = vld [vmem:[#allocation2 + $0x30] sm:$0xff]
    %v5002 = vld [vmem:[#allocation2 + $0x38] sm:$0xff]
    %v5003 = vld [vmem:[#allocation2 + $0x40] sm:$0xff]
    %v5004 = vld [vmem:[#allocation2 + $0x48] sm:$0xff]
    %v5005 = vld [vmem:[#allocation2 + $0x50] sm:$0xff]
    %v5006 = vld [vmem:[#allocation2 + $0x58] sm:$0xff]
    %v5007 = vld [vmem:[#allocation2 + $0x60] sm:$0xff]
    %v5008 = vld [vmem:[#allocation2 + $0x68] sm:$0xff]
    %v5009 = vld [vmem:[#allocation2 + $0x70] sm:$0xff]
    %v5010 = vld [vmem:[#allocation2 + $0x78] sm:$0xff]
    %v5011 = vld [vmem:[#allocation2 + $0x80] sm:$0xff]
    %5029 = vrot.lane.b32.xlu0 %v4995, 11
    %v5030 = vpop.permute.xlu0 %5029
    %5031 = vrot.lane.b32.xlu0 %v4996, 11
    %v5032 = vpop.permute.xlu0 %5031
    %5033 = vrot.lane.b32.xlu0 %v4997, 11
    %v5034 = vpop.permute.xlu0 %5033
    %5035 = vrot.lane.b32.xlu0 %v4998, 11
    %v5036 = vpop.permute.xlu0 %5035
    %5037 = vrot.lane.b32.xlu0 %v4999, 11
    %v5038 = vpop.permute.xlu0 %5037
    %5039 = vrot.lane.b32.xlu0 %v5000, 11
    %v5040 = vpop.permute.xlu0 %5039
    %5041 = vrot.lane.b32.xlu0 %v5001, 11
    %v5042 = vpop.permute.xlu0 %5041
    %5043 = vrot.lane.b32.xlu0 %v5002, 11
    %v5044 = vpop.permute.xlu0 %5043
    %5045 = vrot.lane.b32.xlu0 %v5003, 11
    %v5046 = vpop.permute.xlu0 %5045
    %5047 = vrot.lane.b32.xlu0 %v5004, 11
    %v5048 = vpop.permute.xlu0 %5047
    %5049 = vrot.lane.b32.xlu0 %v5005, 11
    %v5050 = vpop.permute.xlu0 %5049
    %5051 = vrot.lane.b32.xlu0 %v5006, 11
    %v5052 = vpop.permute.xlu0 %5051
    %5053 = vrot.lane.b32.xlu0 %v5007, 11
    %v5054 = vpop.permute.xlu0 %5053
    %5055 = vrot.lane.b32.xlu0 %v5008, 11
    %v5056 = vpop.permute.xlu0 %5055
    %5057 = vrot.lane.b32.xlu0 %v5009, 11
    %v5058 = vpop.permute.xlu0 %5057
    %5059 = vrot.lane.b32.xlu0 %v5010, 11
    %v5060 = vpop.permute.xlu0 %5059
    %5061 = vrot.lane.b32.xlu0 %v5011, 11
    %v5062 = vpop.permute.xlu0 %5061
    %v5063 = vsel %vm1449, %v5030, %v5032
    %v5064 = vsel %vm1449, %v5032, %v5034
    %v5065 = vsel %vm1449, %v5034, %v5036
    %v5066 = vsel %vm1449, %v5036, %v5038
    %v5067 = vsel %vm1449, %v5038, %v5040
    %v5068 = vsel %vm1449, %v5040, %v5042
    %v5069 = vsel %vm1449, %v5042, %v5044
    %v5070 = vsel %vm1449, %v5044, %v5046
    %v5071 = vsel %vm1449, %v5046, %v5048
    %v5072 = vsel %vm1449, %v5048, %v5050
    %v5073 = vsel %vm1449, %v5050, %v5052
    %v5074 = vsel %vm1449, %v5052, %v5054
    %v5075 = vsel %vm1449, %v5054, %v5056
    %v5076 = vsel %vm1449, %v5056, %v5058
    %v5077 = vsel %vm1449, %v5058, %v5060
    %v5078 = vsel %vm1449, %v5060, %v5062
    %5095 = vst [vmem:[#allocation3 + $0x480] sm:$0xff] %v5063
    %5096 = vst [vmem:[#allocation3 + $0x488] sm:$0xff] %v5064
    %5097 = vst [vmem:[#allocation3 + $0x490] sm:$0xff] %v5065
    %5098 = vst [vmem:[#allocation3 + $0x498] sm:$0xff] %v5066
    %5099 = vst [vmem:[#allocation3 + $0x4a0] sm:$0xff] %v5067
    %5100 = vst [vmem:[#allocation3 + $0x4a8] sm:$0xff] %v5068
    %5101 = vst [vmem:[#allocation3 + $0x4b0] sm:$0xff] %v5069
    %5102 = vst [vmem:[#allocation3 + $0x4b8] sm:$0xff] %v5070
    %5103 = vst [vmem:[#allocation3 + $0x4c0] sm:$0xff] %v5071
    %5104 = vst [vmem:[#allocation3 + $0x4c8] sm:$0xff] %v5072
    %5105 = vst [vmem:[#allocation3 + $0x4d0] sm:$0xff] %v5073
    %5106 = vst [vmem:[#allocation3 + $0x4d8] sm:$0xff] %v5074
    %5107 = vst [vmem:[#allocation3 + $0x4e0] sm:$0xff] %v5075
    %5108 = vst [vmem:[#allocation3 + $0x4e8] sm:$0xff] %v5076
    %5109 = vst [vmem:[#allocation3 + $0x4f0] sm:$0xff] %v5077
    %5110 = vst [vmem:[#allocation3 + $0x4f8] sm:$0xff] %v5078
    %5111 = vrot.lane.b32.xlu0 %v4995, 10
    %v5112 = vpop.permute.xlu0 %5111
    %5113 = vrot.lane.b32.xlu0 %v4996, 10
    %v5114 = vpop.permute.xlu0 %5113
    %5115 = vrot.lane.b32.xlu0 %v4997, 10
    %v5116 = vpop.permute.xlu0 %5115
    %5117 = vrot.lane.b32.xlu0 %v4998, 10
    %v5118 = vpop.permute.xlu0 %5117
    %5119 = vrot.lane.b32.xlu0 %v4999, 10
    %v5120 = vpop.permute.xlu0 %5119
    %5121 = vrot.lane.b32.xlu0 %v5000, 10
    %v5122 = vpop.permute.xlu0 %5121
    %5123 = vrot.lane.b32.xlu0 %v5001, 10
    %v5124 = vpop.permute.xlu0 %5123
    %5125 = vrot.lane.b32.xlu0 %v5002, 10
    %v5126 = vpop.permute.xlu0 %5125
    %5127 = vrot.lane.b32.xlu0 %v5003, 10
    %v5128 = vpop.permute.xlu0 %5127
    %5129 = vrot.lane.b32.xlu0 %v5004, 10
    %v5130 = vpop.permute.xlu0 %5129
    %5131 = vrot.lane.b32.xlu0 %v5005, 10
    %v5132 = vpop.permute.xlu0 %5131
    %5133 = vrot.lane.b32.xlu0 %v5006, 10
    %v5134 = vpop.permute.xlu0 %5133
    %5135 = vrot.lane.b32.xlu0 %v5007, 10
    %v5136 = vpop.permute.xlu0 %5135
    %5137 = vrot.lane.b32.xlu0 %v5008, 10
    %v5138 = vpop.permute.xlu0 %5137
    %5139 = vrot.lane.b32.xlu0 %v5009, 10
    %v5140 = vpop.permute.xlu0 %5139
    %5141 = vrot.lane.b32.xlu0 %v5010, 10
    %v5142 = vpop.permute.xlu0 %5141
    %5143 = vrot.lane.b32.xlu0 %v5011, 10
    %v5144 = vpop.permute.xlu0 %5143
    %v5145 = vsel %vm1532, %v5112, %v5114
    %v5146 = vsel %vm1532, %v5114, %v5116
    %v5147 = vsel %vm1532, %v5116, %v5118
    %v5148 = vsel %vm1532, %v5118, %v5120
    %v5149 = vsel %vm1532, %v5120, %v5122
    %v5150 = vsel %vm1532, %v5122, %v5124
    %v5151 = vsel %vm1532, %v5124, %v5126
    %v5152 = vsel %vm1532, %v5126, %v5128
    %v5153 = vsel %vm1532, %v5128, %v5130
    %v5154 = vsel %vm1532, %v5130, %v5132
    %v5155 = vsel %vm1532, %v5132, %v5134
    %v5156 = vsel %vm1532, %v5134, %v5136
    %v5157 = vsel %vm1532, %v5136, %v5138
    %v5158 = vsel %vm1532, %v5138, %v5140
    %v5159 = vsel %vm1532, %v5140, %v5142
    %v5160 = vsel %vm1532, %v5142, %v5144
    %5177 = vst [vmem:[#allocation3 + $0x500] sm:$0xff] %v5145
    %5178 = vst [vmem:[#allocation3 + $0x508] sm:$0xff] %v5146
    %5179 = vst [vmem:[#allocation3 + $0x510] sm:$0xff] %v5147
    %5180 = vst [vmem:[#allocation3 + $0x518] sm:$0xff] %v5148
    %5181 = vst [vmem:[#allocation3 + $0x520] sm:$0xff] %v5149
    %5182 = vst [vmem:[#allocation3 + $0x528] sm:$0xff] %v5150
    %5183 = vst [vmem:[#allocation3 + $0x530] sm:$0xff] %v5151
    %5184 = vst [vmem:[#allocation3 + $0x538] sm:$0xff] %v5152
    %5185 = vst [vmem:[#allocation3 + $0x540] sm:$0xff] %v5153
    %5186 = vst [vmem:[#allocation3 + $0x548] sm:$0xff] %v5154
    %5187 = vst [vmem:[#allocation3 + $0x550] sm:$0xff] %v5155
    %5188 = vst [vmem:[#allocation3 + $0x558] sm:$0xff] %v5156
    %5189 = vst [vmem:[#allocation3 + $0x560] sm:$0xff] %v5157
    %5190 = vst [vmem:[#allocation3 + $0x568] sm:$0xff] %v5158
    %5191 = vst [vmem:[#allocation3 + $0x570] sm:$0xff] %v5159
    %5192 = vst [vmem:[#allocation3 + $0x578] sm:$0xff] %v5160
    %5193 = vrot.lane.b32.xlu0 %v4995, 9
    %v5194 = vpop.permute.xlu0 %5193
    %5195 = vrot.lane.b32.xlu0 %v4996, 9
    %v5196 = vpop.permute.xlu0 %5195
    %5197 = vrot.lane.b32.xlu0 %v4997, 9
    %v5198 = vpop.permute.xlu0 %5197
    %5199 = vrot.lane.b32.xlu0 %v4998, 9
    %v5200 = vpop.permute.xlu0 %5199
    %5201 = vrot.lane.b32.xlu0 %v4999, 9
    %v5202 = vpop.permute.xlu0 %5201
    %5203 = vrot.lane.b32.xlu0 %v5000, 9
    %v5204 = vpop.permute.xlu0 %5203
    %5205 = vrot.lane.b32.xlu0 %v5001, 9
    %v5206 = vpop.permute.xlu0 %5205
    %5207 = vrot.lane.b32.xlu0 %v5002, 9
    %v5208 = vpop.permute.xlu0 %5207
    %5209 = vrot.lane.b32.xlu0 %v5003, 9
    %v5210 = vpop.permute.xlu0 %5209
    %5211 = vrot.lane.b32.xlu0 %v5004, 9
    %v5212 = vpop.permute.xlu0 %5211
    %5213 = vrot.lane.b32.xlu0 %v5005, 9
    %v5214 = vpop.permute.xlu0 %5213
    %5215 = vrot.lane.b32.xlu0 %v5006, 9
    %v5216 = vpop.permute.xlu0 %5215
    %5217 = vrot.lane.b32.xlu0 %v5007, 9
    %v5218 = vpop.permute.xlu0 %5217
    %5219 = vrot.lane.b32.xlu0 %v5008, 9
    %v5220 = vpop.permute.xlu0 %5219
    %5221 = vrot.lane.b32.xlu0 %v5009, 9
    %v5222 = vpop.permute.xlu0 %5221
    %5223 = vrot.lane.b32.xlu0 %v5010, 9
    %v5224 = vpop.permute.xlu0 %5223
    %5225 = vrot.lane.b32.xlu0 %v5011, 9
    %v5226 = vpop.permute.xlu0 %5225
    %v5227 = vsel %vm1615, %v5194, %v5196
    %v5228 = vsel %vm1615, %v5196, %v5198
    %v5229 = vsel %vm1615, %v5198, %v5200
    %v5230 = vsel %vm1615, %v5200, %v5202
    %v5231 = vsel %vm1615, %v5202, %v5204
    %v5232 = vsel %vm1615, %v5204, %v5206
    %v5233 = vsel %vm1615, %v5206, %v5208
    %v5234 = vsel %vm1615, %v5208, %v5210
    %v5235 = vsel %vm1615, %v5210, %v5212
    %v5236 = vsel %vm1615, %v5212, %v5214
    %v5237 = vsel %vm1615, %v5214, %v5216
    %v5238 = vsel %vm1615, %v5216, %v5218
    %v5239 = vsel %vm1615, %v5218, %v5220
    %v5240 = vsel %vm1615, %v5220, %v5222
    %v5241 = vsel %vm1615, %v5222, %v5224
    %v5242 = vsel %vm1615, %v5224, %v5226
    %5259 = vst [vmem:[#allocation3 + $0x580] sm:$0xff] %v5227
    %5260 = vst [vmem:[#allocation3 + $0x588] sm:$0xff] %v5228
    %5261 = vst [vmem:[#allocation3 + $0x590] sm:$0xff] %v5229
    %5262 = vst [vmem:[#allocation3 + $0x598] sm:$0xff] %v5230
    %5263 = vst [vmem:[#allocation3 + $0x5a0] sm:$0xff] %v5231
    %5264 = vst [vmem:[#allocation3 + $0x5a8] sm:$0xff] %v5232
    %5265 = vst [vmem:[#allocation3 + $0x5b0] sm:$0xff] %v5233
    %5266 = vst [vmem:[#allocation3 + $0x5b8] sm:$0xff] %v5234
    %5267 = vst [vmem:[#allocation3 + $0x5c0] sm:$0xff] %v5235
    %5268 = vst [vmem:[#allocation3 + $0x5c8] sm:$0xff] %v5236
    %5269 = vst [vmem:[#allocation3 + $0x5d0] sm:$0xff] %v5237
    %5270 = vst [vmem:[#allocation3 + $0x5d8] sm:$0xff] %v5238
    %5271 = vst [vmem:[#allocation3 + $0x5e0] sm:$0xff] %v5239
    %5272 = vst [vmem:[#allocation3 + $0x5e8] sm:$0xff] %v5240
    %5273 = vst [vmem:[#allocation3 + $0x5f0] sm:$0xff] %v5241
    %5274 = vst [vmem:[#allocation3 + $0x5f8] sm:$0xff] %v5242
    %v5275 = vld [vmem:[#allocation2] sm:$0xff]
    %v5276 = vld [vmem:[#allocation2 + $0x8] sm:$0xff]
    %v5277 = vld [vmem:[#allocation2 + $0x10] sm:$0xff]
    %v5278 = vld [vmem:[#allocation2 + $0x18] sm:$0xff]
    %v5279 = vld [vmem:[#allocation2 + $0x20] sm:$0xff]
    %v5280 = vld [vmem:[#allocation2 + $0x28] sm:$0xff]
    %v5281 = vld [vmem:[#allocation2 + $0x30] sm:$0xff]
    %v5282 = vld [vmem:[#allocation2 + $0x38] sm:$0xff]
    %v5283 = vld [vmem:[#allocation2 + $0x40] sm:$0xff]
    %v5284 = vld [vmem:[#allocation2 + $0x48] sm:$0xff]
    %v5285 = vld [vmem:[#allocation2 + $0x50] sm:$0xff]
    %v5286 = vld [vmem:[#allocation2 + $0x58] sm:$0xff]
    %v5287 = vld [vmem:[#allocation2 + $0x60] sm:$0xff]
    %v5288 = vld [vmem:[#allocation2 + $0x68] sm:$0xff]
    %v5289 = vld [vmem:[#allocation2 + $0x70] sm:$0xff]
    %v5290 = vld [vmem:[#allocation2 + $0x78] sm:$0xff]
    %v5291 = vld [vmem:[#allocation2 + $0x80] sm:$0xff]
    %v5292 = vld [vmem:[#allocation2 + $0x88] sm:$0xff]
    %5310 = vrot.lane.b32.xlu0 %v5275, 1
    %v5311 = vpop.permute.xlu0 %5310
    %5312 = vrot.lane.b32.xlu0 %v5276, 1
    %v5313 = vpop.permute.xlu0 %5312
    %5314 = vrot.lane.b32.xlu0 %v5277, 1
    %v5315 = vpop.permute.xlu0 %5314
    %5316 = vrot.lane.b32.xlu0 %v5278, 1
    %v5317 = vpop.permute.xlu0 %5316
    %5318 = vrot.lane.b32.xlu0 %v5279, 1
    %v5319 = vpop.permute.xlu0 %5318
    %5320 = vrot.lane.b32.xlu0 %v5280, 1
    %v5321 = vpop.permute.xlu0 %5320
    %5322 = vrot.lane.b32.xlu0 %v5281, 1
    %v5323 = vpop.permute.xlu0 %5322
    %5324 = vrot.lane.b32.xlu0 %v5282, 1
    %v5325 = vpop.permute.xlu0 %5324
    %5326 = vrot.lane.b32.xlu0 %v5283, 1
    %v5327 = vpop.permute.xlu0 %5326
    %5328 = vrot.lane.b32.xlu0 %v5284, 1
    %v5329 = vpop.permute.xlu0 %5328
    %5330 = vrot.lane.b32.xlu0 %v5285, 1
    %v5331 = vpop.permute.xlu0 %5330
    %5332 = vrot.lane.b32.xlu0 %v5286, 1
    %v5333 = vpop.permute.xlu0 %5332
    %5334 = vrot.lane.b32.xlu0 %v5287, 1
    %v5335 = vpop.permute.xlu0 %5334
    %5336 = vrot.lane.b32.xlu0 %v5288, 1
    %v5337 = vpop.permute.xlu0 %5336
    %5338 = vrot.lane.b32.xlu0 %v5289, 1
    %v5339 = vpop.permute.xlu0 %5338
    %5340 = vrot.lane.b32.xlu0 %v5290, 1
    %v5341 = vpop.permute.xlu0 %5340
    %5342 = vrot.lane.b32.xlu0 %v5291, 1
    %v5343 = vpop.permute.xlu0 %5342
    %v5344 = vsel %vm1724, %v5311, %v5313
    %v5345 = vsel %vm1724, %v5313, %v5315
    %v5346 = vsel %vm1724, %v5315, %v5317
    %v5347 = vsel %vm1724, %v5317, %v5319
    %v5348 = vsel %vm1724, %v5319, %v5321
    %v5349 = vsel %vm1724, %v5321, %v5323
    %v5350 = vsel %vm1724, %v5323, %v5325
    %v5351 = vsel %vm1724, %v5325, %v5327
    %v5352 = vsel %vm1724, %v5327, %v5329
    %v5353 = vsel %vm1724, %v5329, %v5331
    %v5354 = vsel %vm1724, %v5331, %v5333
    %v5355 = vsel %vm1724, %v5333, %v5335
    %v5356 = vsel %vm1724, %v5335, %v5337
    %v5357 = vsel %vm1724, %v5337, %v5339
    %v5358 = vsel %vm1724, %v5339, %v5341
    %v5359 = vsel %vm1724, %v5341, %v5343
    %5376 = vst [vmem:[#allocation3 + $0x600] sm:$0xff] %v5344
    %5377 = vst [vmem:[#allocation3 + $0x608] sm:$0xff] %v5345
    %5378 = vst [vmem:[#allocation3 + $0x610] sm:$0xff] %v5346
    %5379 = vst [vmem:[#allocation3 + $0x618] sm:$0xff] %v5347
    %5380 = vst [vmem:[#allocation3 + $0x620] sm:$0xff] %v5348
    %5381 = vst [vmem:[#allocation3 + $0x628] sm:$0xff] %v5349
    %5382 = vst [vmem:[#allocation3 + $0x630] sm:$0xff] %v5350
    %5383 = vst [vmem:[#allocation3 + $0x638] sm:$0xff] %v5351
    %5384 = vst [vmem:[#allocation3 + $0x640] sm:$0xff] %v5352
    %5385 = vst [vmem:[#allocation3 + $0x648] sm:$0xff] %v5353
    %5386 = vst [vmem:[#allocation3 + $0x650] sm:$0xff] %v5354
    %5387 = vst [vmem:[#allocation3 + $0x658] sm:$0xff] %v5355
    %5388 = vst [vmem:[#allocation3 + $0x660] sm:$0xff] %v5356
    %5389 = vst [vmem:[#allocation3 + $0x668] sm:$0xff] %v5357
    %5390 = vst [vmem:[#allocation3 + $0x670] sm:$0xff] %v5358
    %5391 = vst [vmem:[#allocation3 + $0x678] sm:$0xff] %v5359
    %5392 = vst [vmem:[#allocation3 + $0x680] sm:$0xff] %v5276
    %5393 = vst [vmem:[#allocation3 + $0x688] sm:$0xff] %v5277
    %5394 = vst [vmem:[#allocation3 + $0x690] sm:$0xff] %v5278
    %5395 = vst [vmem:[#allocation3 + $0x698] sm:$0xff] %v5279
    %5396 = vst [vmem:[#allocation3 + $0x6a0] sm:$0xff] %v5280
    %5397 = vst [vmem:[#allocation3 + $0x6a8] sm:$0xff] %v5281
    %5398 = vst [vmem:[#allocation3 + $0x6b0] sm:$0xff] %v5282
    %5399 = vst [vmem:[#allocation3 + $0x6b8] sm:$0xff] %v5283
    %5400 = vst [vmem:[#allocation3 + $0x6c0] sm:$0xff] %v5284
    %5401 = vst [vmem:[#allocation3 + $0x6c8] sm:$0xff] %v5285
    %5402 = vst [vmem:[#allocation3 + $0x6d0] sm:$0xff] %v5286
    %5403 = vst [vmem:[#allocation3 + $0x6d8] sm:$0xff] %v5287
    %5404 = vst [vmem:[#allocation3 + $0x6e0] sm:$0xff] %v5288
    %5405 = vst [vmem:[#allocation3 + $0x6e8] sm:$0xff] %v5289
    %5406 = vst [vmem:[#allocation3 + $0x6f0] sm:$0xff] %v5290
    %5407 = vst [vmem:[#allocation3 + $0x6f8] sm:$0xff] %v5291
    %5409 = vrot.lane.b32.xlu0 %v5276, 127
    %v5410 = vpop.permute.xlu0 %5409
    %5411 = vrot.lane.b32.xlu0 %v5277, 127
    %v5412 = vpop.permute.xlu0 %5411
    %5413 = vrot.lane.b32.xlu0 %v5278, 127
    %v5414 = vpop.permute.xlu0 %5413
    %5415 = vrot.lane.b32.xlu0 %v5279, 127
    %v5416 = vpop.permute.xlu0 %5415
    %5417 = vrot.lane.b32.xlu0 %v5280, 127
    %v5418 = vpop.permute.xlu0 %5417
    %5419 = vrot.lane.b32.xlu0 %v5281, 127
    %v5420 = vpop.permute.xlu0 %5419
    %5421 = vrot.lane.b32.xlu0 %v5282, 127
    %v5422 = vpop.permute.xlu0 %5421
    %5423 = vrot.lane.b32.xlu0 %v5283, 127
    %v5424 = vpop.permute.xlu0 %5423
    %5425 = vrot.lane.b32.xlu0 %v5284, 127
    %v5426 = vpop.permute.xlu0 %5425
    %5427 = vrot.lane.b32.xlu0 %v5285, 127
    %v5428 = vpop.permute.xlu0 %5427
    %5429 = vrot.lane.b32.xlu0 %v5286, 127
    %v5430 = vpop.permute.xlu0 %5429
    %5431 = vrot.lane.b32.xlu0 %v5287, 127
    %v5432 = vpop.permute.xlu0 %5431
    %5433 = vrot.lane.b32.xlu0 %v5288, 127
    %v5434 = vpop.permute.xlu0 %5433
    %5435 = vrot.lane.b32.xlu0 %v5289, 127
    %v5436 = vpop.permute.xlu0 %5435
    %5437 = vrot.lane.b32.xlu0 %v5290, 127
    %v5438 = vpop.permute.xlu0 %5437
    %5439 = vrot.lane.b32.xlu0 %v5291, 127
    %v5440 = vpop.permute.xlu0 %5439
    %5441 = vrot.lane.b32.xlu0 %v5292, 127
    %v5442 = vpop.permute.xlu0 %5441
    %v5443 = vsel %vm1832, %v5410, %v5412
    %v5444 = vsel %vm1832, %v5412, %v5414
    %v5445 = vsel %vm1832, %v5414, %v5416
    %v5446 = vsel %vm1832, %v5416, %v5418
    %v5447 = vsel %vm1832, %v5418, %v5420
    %v5448 = vsel %vm1832, %v5420, %v5422
    %v5449 = vsel %vm1832, %v5422, %v5424
    %v5450 = vsel %vm1832, %v5424, %v5426
    %v5451 = vsel %vm1832, %v5426, %v5428
    %v5452 = vsel %vm1832, %v5428, %v5430
    %v5453 = vsel %vm1832, %v5430, %v5432
    %v5454 = vsel %vm1832, %v5432, %v5434
    %v5455 = vsel %vm1832, %v5434, %v5436
    %v5456 = vsel %vm1832, %v5436, %v5438
    %v5457 = vsel %vm1832, %v5438, %v5440
    %v5458 = vsel %vm1832, %v5440, %v5442
    %5475 = vst [vmem:[#allocation3 + $0x700] sm:$0xff] %v5443
    %5476 = vst [vmem:[#allocation3 + $0x708] sm:$0xff] %v5444
    %5477 = vst [vmem:[#allocation3 + $0x710] sm:$0xff] %v5445
    %5478 = vst [vmem:[#allocation3 + $0x718] sm:$0xff] %v5446
    %5479 = vst [vmem:[#allocation3 + $0x720] sm:$0xff] %v5447
    %5480 = vst [vmem:[#allocation3 + $0x728] sm:$0xff] %v5448
    %5481 = vst [vmem:[#allocation3 + $0x730] sm:$0xff] %v5449
    %5482 = vst [vmem:[#allocation3 + $0x738] sm:$0xff] %v5450
    %5483 = vst [vmem:[#allocation3 + $0x740] sm:$0xff] %v5451
    %5484 = vst [vmem:[#allocation3 + $0x748] sm:$0xff] %v5452
    %5485 = vst [vmem:[#allocation3 + $0x750] sm:$0xff] %v5453
    %5486 = vst [vmem:[#allocation3 + $0x758] sm:$0xff] %v5454
    %5487 = vst [vmem:[#allocation3 + $0x760] sm:$0xff] %v5455
    %5488 = vst [vmem:[#allocation3 + $0x768] sm:$0xff] %v5456
    %5489 = vst [vmem:[#allocation3 + $0x770] sm:$0xff] %v5457
    %5490 = vst [vmem:[#allocation3 + $0x778] sm:$0xff] %v5458
    %v5491 = vld [vmem:[#allocation2 + $0x8] sm:$0xff]
    %v5492 = vld [vmem:[#allocation2 + $0x10] sm:$0xff]
    %v5493 = vld [vmem:[#allocation2 + $0x18] sm:$0xff]
    %v5494 = vld [vmem:[#allocation2 + $0x20] sm:$0xff]
    %v5495 = vld [vmem:[#allocation2 + $0x28] sm:$0xff]
    %v5496 = vld [vmem:[#allocation2 + $0x30] sm:$0xff]
    %v5497 = vld [vmem:[#allocation2 + $0x38] sm:$0xff]
    %v5498 = vld [vmem:[#allocation2 + $0x40] sm:$0xff]
    %v5499 = vld [vmem:[#allocation2 + $0x48] sm:$0xff]
    %v5500 = vld [vmem:[#allocation2 + $0x50] sm:$0xff]
    %v5501 = vld [vmem:[#allocation2 + $0x58] sm:$0xff]
    %v5502 = vld [vmem:[#allocation2 + $0x60] sm:$0xff]
    %v5503 = vld [vmem:[#allocation2 + $0x68] sm:$0xff]
    %v5504 = vld [vmem:[#allocation2 + $0x70] sm:$0xff]
    %v5505 = vld [vmem:[#allocation2 + $0x78] sm:$0xff]
    %v5506 = vld [vmem:[#allocation2 + $0x80] sm:$0xff]
    %v5507 = vld [vmem:[#allocation2 + $0x88] sm:$0xff]
    %5525 = vrot.lane.b32.xlu0 %v5491, 119
    %v5526 = vpop.permute.xlu0 %5525
    %5527 = vrot.lane.b32.xlu0 %v5492, 119
    %v5528 = vpop.permute.xlu0 %5527
    %5529 = vrot.lane.b32.xlu0 %v5493, 119
    %v5530 = vpop.permute.xlu0 %5529
    %5531 = vrot.lane.b32.xlu0 %v5494, 119
    %v5532 = vpop.permute.xlu0 %5531
    %5533 = vrot.lane.b32.xlu0 %v5495, 119
    %v5534 = vpop.permute.xlu0 %5533
    %5535 = vrot.lane.b32.xlu0 %v5496, 119
    %v5536 = vpop.permute.xlu0 %5535
    %5537 = vrot.lane.b32.xlu0 %v5497, 119
    %v5538 = vpop.permute.xlu0 %5537
    %5539 = vrot.lane.b32.xlu0 %v5498, 119
    %v5540 = vpop.permute.xlu0 %5539
    %5541 = vrot.lane.b32.xlu0 %v5499, 119
    %v5542 = vpop.permute.xlu0 %5541
    %5543 = vrot.lane.b32.xlu0 %v5500, 119
    %v5544 = vpop.permute.xlu0 %5543
    %5545 = vrot.lane.b32.xlu0 %v5501, 119
    %v5546 = vpop.permute.xlu0 %5545
    %5547 = vrot.lane.b32.xlu0 %v5502, 119
    %v5548 = vpop.permute.xlu0 %5547
    %5549 = vrot.lane.b32.xlu0 %v5503, 119
    %v5550 = vpop.permute.xlu0 %5549
    %5551 = vrot.lane.b32.xlu0 %v5504, 119
    %v5552 = vpop.permute.xlu0 %5551
    %5553 = vrot.lane.b32.xlu0 %v5505, 119
    %v5554 = vpop.permute.xlu0 %5553
    %5555 = vrot.lane.b32.xlu0 %v5506, 119
    %v5556 = vpop.permute.xlu0 %5555
    %5557 = vrot.lane.b32.xlu0 %v5507, 119
    %v5558 = vpop.permute.xlu0 %5557
    %v5559 = vsel %vm1941, %v5526, %v5528
    %v5560 = vsel %vm1941, %v5528, %v5530
    %v5561 = vsel %vm1941, %v5530, %v5532
    %v5562 = vsel %vm1941, %v5532, %v5534
    %v5563 = vsel %vm1941, %v5534, %v5536
    %v5564 = vsel %vm1941, %v5536, %v5538
    %v5565 = vsel %vm1941, %v5538, %v5540
    %v5566 = vsel %vm1941, %v5540, %v5542
    %v5567 = vsel %vm1941, %v5542, %v5544
    %v5568 = vsel %vm1941, %v5544, %v5546
    %v5569 = vsel %vm1941, %v5546, %v5548
    %v5570 = vsel %vm1941, %v5548, %v5550
    %v5571 = vsel %vm1941, %v5550, %v5552
    %v5572 = vsel %vm1941, %v5552, %v5554
    %v5573 = vsel %vm1941, %v5554, %v5556
    %v5574 = vsel %vm1941, %v5556, %v5558
    %5591 = vst [vmem:[#allocation3 + $0x780] sm:$0xff] %v5559
    %5592 = vst [vmem:[#allocation3 + $0x788] sm:$0xff] %v5560
    %5593 = vst [vmem:[#allocation3 + $0x790] sm:$0xff] %v5561
    %5594 = vst [vmem:[#allocation3 + $0x798] sm:$0xff] %v5562
    %5595 = vst [vmem:[#allocation3 + $0x7a0] sm:$0xff] %v5563
    %5596 = vst [vmem:[#allocation3 + $0x7a8] sm:$0xff] %v5564
    %5597 = vst [vmem:[#allocation3 + $0x7b0] sm:$0xff] %v5565
    %5598 = vst [vmem:[#allocation3 + $0x7b8] sm:$0xff] %v5566
    %5599 = vst [vmem:[#allocation3 + $0x7c0] sm:$0xff] %v5567
    %5600 = vst [vmem:[#allocation3 + $0x7c8] sm:$0xff] %v5568
    %5601 = vst [vmem:[#allocation3 + $0x7d0] sm:$0xff] %v5569
    %5602 = vst [vmem:[#allocation3 + $0x7d8] sm:$0xff] %v5570
    %5603 = vst [vmem:[#allocation3 + $0x7e0] sm:$0xff] %v5571
    %5604 = vst [vmem:[#allocation3 + $0x7e8] sm:$0xff] %v5572
    %5605 = vst [vmem:[#allocation3 + $0x7f0] sm:$0xff] %v5573
    %5606 = vst [vmem:[#allocation3 + $0x7f8] sm:$0xff] %v5574
    %5607 = vrot.lane.b32.xlu0 %v5491, 118
    %v5608 = vpop.permute.xlu0 %5607
    %5609 = vrot.lane.b32.xlu0 %v5492, 118
    %v5610 = vpop.permute.xlu0 %5609
    %5611 = vrot.lane.b32.xlu0 %v5493, 118
    %v5612 = vpop.permute.xlu0 %5611
    %5613 = vrot.lane.b32.xlu0 %v5494, 118
    %v5614 = vpop.permute.xlu0 %5613
    %5615 = vrot.lane.b32.xlu0 %v5495, 118
    %v5616 = vpop.permute.xlu0 %5615
    %5617 = vrot.lane.b32.xlu0 %v5496, 118
    %v5618 = vpop.permute.xlu0 %5617
    %5619 = vrot.lane.b32.xlu0 %v5497, 118
    %v5620 = vpop.permute.xlu0 %5619
    %5621 = vrot.lane.b32.xlu0 %v5498, 118
    %v5622 = vpop.permute.xlu0 %5621
    %5623 = vrot.lane.b32.xlu0 %v5499, 118
    %v5624 = vpop.permute.xlu0 %5623
    %5625 = vrot.lane.b32.xlu0 %v5500, 118
    %v5626 = vpop.permute.xlu0 %5625
    %5627 = vrot.lane.b32.xlu0 %v5501, 118
    %v5628 = vpop.permute.xlu0 %5627
    %5629 = vrot.lane.b32.xlu0 %v5502, 118
    %v5630 = vpop.permute.xlu0 %5629
    %5631 = vrot.lane.b32.xlu0 %v5503, 118
    %v5632 = vpop.permute.xlu0 %5631
    %5633 = vrot.lane.b32.xlu0 %v5504, 118
    %v5634 = vpop.permute.xlu0 %5633
    %5635 = vrot.lane.b32.xlu0 %v5505, 118
    %v5636 = vpop.permute.xlu0 %5635
    %5637 = vrot.lane.b32.xlu0 %v5506, 118
    %v5638 = vpop.permute.xlu0 %5637
    %5639 = vrot.lane.b32.xlu0 %v5507, 118
    %v5640 = vpop.permute.xlu0 %5639
    %v5641 = vsel %vm2024, %v5608, %v5610
    %v5642 = vsel %vm2024, %v5610, %v5612
    %v5643 = vsel %vm2024, %v5612, %v5614
    %v5644 = vsel %vm2024, %v5614, %v5616
    %v5645 = vsel %vm2024, %v5616, %v5618
    %v5646 = vsel %vm2024, %v5618, %v5620
    %v5647 = vsel %vm2024, %v5620, %v5622
    %v5648 = vsel %vm2024, %v5622, %v5624
    %v5649 = vsel %vm2024, %v5624, %v5626
    %v5650 = vsel %vm2024, %v5626, %v5628
    %v5651 = vsel %vm2024, %v5628, %v5630
    %v5652 = vsel %vm2024, %v5630, %v5632
    %v5653 = vsel %vm2024, %v5632, %v5634
    %v5654 = vsel %vm2024, %v5634, %v5636
    %v5655 = vsel %vm2024, %v5636, %v5638
    %v5656 = vsel %vm2024, %v5638, %v5640
    %5673 = vst [vmem:[#allocation3 + $0x800] sm:$0xff] %v5641
    %5674 = vst [vmem:[#allocation3 + $0x808] sm:$0xff] %v5642
    %5675 = vst [vmem:[#allocation3 + $0x810] sm:$0xff] %v5643
    %5676 = vst [vmem:[#allocation3 + $0x818] sm:$0xff] %v5644
    %5677 = vst [vmem:[#allocation3 + $0x820] sm:$0xff] %v5645
    %5678 = vst [vmem:[#allocation3 + $0x828] sm:$0xff] %v5646
    %5679 = vst [vmem:[#allocation3 + $0x830] sm:$0xff] %v5647
    %5680 = vst [vmem:[#allocation3 + $0x838] sm:$0xff] %v5648
    %5681 = vst [vmem:[#allocation3 + $0x840] sm:$0xff] %v5649
    %5682 = vst [vmem:[#allocation3 + $0x848] sm:$0xff] %v5650
    %5683 = vst [vmem:[#allocation3 + $0x850] sm:$0xff] %v5651
    %5684 = vst [vmem:[#allocation3 + $0x858] sm:$0xff] %v5652
    %5685 = vst [vmem:[#allocation3 + $0x860] sm:$0xff] %v5653
    %5686 = vst [vmem:[#allocation3 + $0x868] sm:$0xff] %v5654
    %5687 = vst [vmem:[#allocation3 + $0x870] sm:$0xff] %v5655
    %5688 = vst [vmem:[#allocation3 + $0x878] sm:$0xff] %v5656
    %5689 = vrot.lane.b32.xlu0 %v5491, 117
    %v5690 = vpop.permute.xlu0 %5689
    %5691 = vrot.lane.b32.xlu0 %v5492, 117
    %v5692 = vpop.permute.xlu0 %5691
    %5693 = vrot.lane.b32.xlu0 %v5493, 117
    %v5694 = vpop.permute.xlu0 %5693
    %5695 = vrot.lane.b32.xlu0 %v5494, 117
    %v5696 = vpop.permute.xlu0 %5695
    %5697 = vrot.lane.b32.xlu0 %v5495, 117
    %v5698 = vpop.permute.xlu0 %5697
    %5699 = vrot.lane.b32.xlu0 %v5496, 117
    %v5700 = vpop.permute.xlu0 %5699
    %5701 = vrot.lane.b32.xlu0 %v5497, 117
    %v5702 = vpop.permute.xlu0 %5701
    %5703 = vrot.lane.b32.xlu0 %v5498, 117
    %v5704 = vpop.permute.xlu0 %5703
    %5705 = vrot.lane.b32.xlu0 %v5499, 117
    %v5706 = vpop.permute.xlu0 %5705
    %5707 = vrot.lane.b32.xlu0 %v5500, 117
    %v5708 = vpop.permute.xlu0 %5707
    %5709 = vrot.lane.b32.xlu0 %v5501, 117
    %v5710 = vpop.permute.xlu0 %5709
    %5711 = vrot.lane.b32.xlu0 %v5502, 117
    %v5712 = vpop.permute.xlu0 %5711
    %5713 = vrot.lane.b32.xlu0 %v5503, 117
    %v5714 = vpop.permute.xlu0 %5713
    %5715 = vrot.lane.b32.xlu0 %v5504, 117
    %v5716 = vpop.permute.xlu0 %5715
    %5717 = vrot.lane.b32.xlu0 %v5505, 117
    %v5718 = vpop.permute.xlu0 %5717
    %5719 = vrot.lane.b32.xlu0 %v5506, 117
    %v5720 = vpop.permute.xlu0 %5719
    %5721 = vrot.lane.b32.xlu0 %v5507, 117
    %v5722 = vpop.permute.xlu0 %5721
    %v5723 = vsel %vm2107, %v5690, %v5692
    %v5724 = vsel %vm2107, %v5692, %v5694
    %v5725 = vsel %vm2107, %v5694, %v5696
    %v5726 = vsel %vm2107, %v5696, %v5698
    %v5727 = vsel %vm2107, %v5698, %v5700
    %v5728 = vsel %vm2107, %v5700, %v5702
    %v5729 = vsel %vm2107, %v5702, %v5704
    %v5730 = vsel %vm2107, %v5704, %v5706
    %v5731 = vsel %vm2107, %v5706, %v5708
    %v5732 = vsel %vm2107, %v5708, %v5710
    %v5733 = vsel %vm2107, %v5710, %v5712
    %v5734 = vsel %vm2107, %v5712, %v5714
    %v5735 = vsel %vm2107, %v5714, %v5716
    %v5736 = vsel %vm2107, %v5716, %v5718
    %v5737 = vsel %vm2107, %v5718, %v5720
    %v5738 = vsel %vm2107, %v5720, %v5722
    %5755 = vst [vmem:[#allocation3 + $0x880] sm:$0xff] %v5723
    %5756 = vst [vmem:[#allocation3 + $0x888] sm:$0xff] %v5724
    %5757 = vst [vmem:[#allocation3 + $0x890] sm:$0xff] %v5725
    %5758 = vst [vmem:[#allocation3 + $0x898] sm:$0xff] %v5726
    %5759 = vst [vmem:[#allocation3 + $0x8a0] sm:$0xff] %v5727
    %5760 = vst [vmem:[#allocation3 + $0x8a8] sm:$0xff] %v5728
    %5761 = vst [vmem:[#allocation3 + $0x8b0] sm:$0xff] %v5729
    %5762 = vst [vmem:[#allocation3 + $0x8b8] sm:$0xff] %v5730
    %5763 = vst [vmem:[#allocation3 + $0x8c0] sm:$0xff] %v5731
    %5764 = vst [vmem:[#allocation3 + $0x8c8] sm:$0xff] %v5732
    %5765 = vst [vmem:[#allocation3 + $0x8d0] sm:$0xff] %v5733
    %5766 = vst [vmem:[#allocation3 + $0x8d8] sm:$0xff] %v5734
    %5767 = vst [vmem:[#allocation3 + $0x8e0] sm:$0xff] %v5735
    %5768 = vst [vmem:[#allocation3 + $0x8e8] sm:$0xff] %v5736
    %5769 = vst [vmem:[#allocation3 + $0x8f0] sm:$0xff] %v5737
    %5770 = vst [vmem:[#allocation3 + $0x8f8] sm:$0xff] %v5738
    %v5771 = vld [vmem:[#allocation2 + $0x8] sm:$0xff]
    %v5772 = vld [vmem:[#allocation2 + $0x10] sm:$0xff]
    %v5773 = vld [vmem:[#allocation2 + $0x18] sm:$0xff]
    %v5774 = vld [vmem:[#allocation2 + $0x20] sm:$0xff]
    %v5775 = vld [vmem:[#allocation2 + $0x28] sm:$0xff]
    %v5776 = vld [vmem:[#allocation2 + $0x30] sm:$0xff]
    %v5777 = vld [vmem:[#allocation2 + $0x38] sm:$0xff]
    %v5778 = vld [vmem:[#allocation2 + $0x40] sm:$0xff]
    %v5779 = vld [vmem:[#allocation2 + $0x48] sm:$0xff]
    %v5780 = vld [vmem:[#allocation2 + $0x50] sm:$0xff]
    %v5781 = vld [vmem:[#allocation2 + $0x58] sm:$0xff]
    %v5782 = vld [vmem:[#allocation2 + $0x60] sm:$0xff]
    %v5783 = vld [vmem:[#allocation2 + $0x68] sm:$0xff]
    %v5784 = vld [vmem:[#allocation2 + $0x70] sm:$0xff]
    %v5785 = vld [vmem:[#allocation2 + $0x78] sm:$0xff]
    %v5786 = vld [vmem:[#allocation2 + $0x80] sm:$0xff]
    %v5787 = vld [vmem:[#allocation2 + $0x88] sm:$0xff]
    %5805 = vrot.lane.b32.xlu0 %v5771, 39
    %v5806 = vpop.permute.xlu0 %5805
    %5807 = vrot.lane.b32.xlu0 %v5772, 39
    %v5808 = vpop.permute.xlu0 %5807
    %5809 = vrot.lane.b32.xlu0 %v5773, 39
    %v5810 = vpop.permute.xlu0 %5809
    %5811 = vrot.lane.b32.xlu0 %v5774, 39
    %v5812 = vpop.permute.xlu0 %5811
    %5813 = vrot.lane.b32.xlu0 %v5775, 39
    %v5814 = vpop.permute.xlu0 %5813
    %5815 = vrot.lane.b32.xlu0 %v5776, 39
    %v5816 = vpop.permute.xlu0 %5815
    %5817 = vrot.lane.b32.xlu0 %v5777, 39
    %v5818 = vpop.permute.xlu0 %5817
    %5819 = vrot.lane.b32.xlu0 %v5778, 39
    %v5820 = vpop.permute.xlu0 %5819
    %5821 = vrot.lane.b32.xlu0 %v5779, 39
    %v5822 = vpop.permute.xlu0 %5821
    %5823 = vrot.lane.b32.xlu0 %v5780, 39
    %v5824 = vpop.permute.xlu0 %5823
    %5825 = vrot.lane.b32.xlu0 %v5781, 39
    %v5826 = vpop.permute.xlu0 %5825
    %5827 = vrot.lane.b32.xlu0 %v5782, 39
    %v5828 = vpop.permute.xlu0 %5827
    %5829 = vrot.lane.b32.xlu0 %v5783, 39
    %v5830 = vpop.permute.xlu0 %5829
    %5831 = vrot.lane.b32.xlu0 %v5784, 39
    %v5832 = vpop.permute.xlu0 %5831
    %5833 = vrot.lane.b32.xlu0 %v5785, 39
    %v5834 = vpop.permute.xlu0 %5833
    %5835 = vrot.lane.b32.xlu0 %v5786, 39
    %v5836 = vpop.permute.xlu0 %5835
    %5837 = vrot.lane.b32.xlu0 %v5787, 39
    %v5838 = vpop.permute.xlu0 %5837
    %v5839 = vsel %vm2216, %v5806, %v5808
    %v5840 = vsel %vm2216, %v5808, %v5810
    %v5841 = vsel %vm2216, %v5810, %v5812
    %v5842 = vsel %vm2216, %v5812, %v5814
    %v5843 = vsel %vm2216, %v5814, %v5816
    %v5844 = vsel %vm2216, %v5816, %v5818
    %v5845 = vsel %vm2216, %v5818, %v5820
    %v5846 = vsel %vm2216, %v5820, %v5822
    %v5847 = vsel %vm2216, %v5822, %v5824
    %v5848 = vsel %vm2216, %v5824, %v5826
    %v5849 = vsel %vm2216, %v5826, %v5828
    %v5850 = vsel %vm2216, %v5828, %v5830
    %v5851 = vsel %vm2216, %v5830, %v5832
    %v5852 = vsel %vm2216, %v5832, %v5834
    %v5853 = vsel %vm2216, %v5834, %v5836
    %v5854 = vsel %vm2216, %v5836, %v5838
    %5871 = vst [vmem:[#allocation3 + $0x900] sm:$0xff] %v5839
    %5872 = vst [vmem:[#allocation3 + $0x908] sm:$0xff] %v5840
    %5873 = vst [vmem:[#allocation3 + $0x910] sm:$0xff] %v5841
    %5874 = vst [vmem:[#allocation3 + $0x918] sm:$0xff] %v5842
    %5875 = vst [vmem:[#allocation3 + $0x920] sm:$0xff] %v5843
    %5876 = vst [vmem:[#allocation3 + $0x928] sm:$0xff] %v5844
    %5877 = vst [vmem:[#allocation3 + $0x930] sm:$0xff] %v5845
    %5878 = vst [vmem:[#allocation3 + $0x938] sm:$0xff] %v5846
    %5879 = vst [vmem:[#allocation3 + $0x940] sm:$0xff] %v5847
    %5880 = vst [vmem:[#allocation3 + $0x948] sm:$0xff] %v5848
    %5881 = vst [vmem:[#allocation3 + $0x950] sm:$0xff] %v5849
    %5882 = vst [vmem:[#allocation3 + $0x958] sm:$0xff] %v5850
    %5883 = vst [vmem:[#allocation3 + $0x960] sm:$0xff] %v5851
    %5884 = vst [vmem:[#allocation3 + $0x968] sm:$0xff] %v5852
    %5885 = vst [vmem:[#allocation3 + $0x970] sm:$0xff] %v5853
    %5886 = vst [vmem:[#allocation3 + $0x978] sm:$0xff] %v5854
    %5887 = vrot.lane.b32.xlu0 %v5771, 38
    %v5888 = vpop.permute.xlu0 %5887
    %5889 = vrot.lane.b32.xlu0 %v5772, 38
    %v5890 = vpop.permute.xlu0 %5889
    %5891 = vrot.lane.b32.xlu0 %v5773, 38
    %v5892 = vpop.permute.xlu0 %5891
    %5893 = vrot.lane.b32.xlu0 %v5774, 38
    %v5894 = vpop.permute.xlu0 %5893
    %5895 = vrot.lane.b32.xlu0 %v5775, 38
    %v5896 = vpop.permute.xlu0 %5895
    %5897 = vrot.lane.b32.xlu0 %v5776, 38
    %v5898 = vpop.permute.xlu0 %5897
    %5899 = vrot.lane.b32.xlu0 %v5777, 38
    %v5900 = vpop.permute.xlu0 %5899
    %5901 = vrot.lane.b32.xlu0 %v5778, 38
    %v5902 = vpop.permute.xlu0 %5901
    %5903 = vrot.lane.b32.xlu0 %v5779, 38
    %v5904 = vpop.permute.xlu0 %5903
    %5905 = vrot.lane.b32.xlu0 %v5780, 38
    %v5906 = vpop.permute.xlu0 %5905
    %5907 = vrot.lane.b32.xlu0 %v5781, 38
    %v5908 = vpop.permute.xlu0 %5907
    %5909 = vrot.lane.b32.xlu0 %v5782, 38
    %v5910 = vpop.permute.xlu0 %5909
    %5911 = vrot.lane.b32.xlu0 %v5783, 38
    %v5912 = vpop.permute.xlu0 %5911
    %5913 = vrot.lane.b32.xlu0 %v5784, 38
    %v5914 = vpop.permute.xlu0 %5913
    %5915 = vrot.lane.b32.xlu0 %v5785, 38
    %v5916 = vpop.permute.xlu0 %5915
    %5917 = vrot.lane.b32.xlu0 %v5786, 38
    %v5918 = vpop.permute.xlu0 %5917
    %5919 = vrot.lane.b32.xlu0 %v5787, 38
    %v5920 = vpop.permute.xlu0 %5919
    %v5921 = vsel %vm2299, %v5888, %v5890
    %v5922 = vsel %vm2299, %v5890, %v5892
    %v5923 = vsel %vm2299, %v5892, %v5894
    %v5924 = vsel %vm2299, %v5894, %v5896
    %v5925 = vsel %vm2299, %v5896, %v5898
    %v5926 = vsel %vm2299, %v5898, %v5900
    %v5927 = vsel %vm2299, %v5900, %v5902
    %v5928 = vsel %vm2299, %v5902, %v5904
    %v5929 = vsel %vm2299, %v5904, %v5906
    %v5930 = vsel %vm2299, %v5906, %v5908
    %v5931 = vsel %vm2299, %v5908, %v5910
    %v5932 = vsel %vm2299, %v5910, %v5912
    %v5933 = vsel %vm2299, %v5912, %v5914
    %v5934 = vsel %vm2299, %v5914, %v5916
    %v5935 = vsel %vm2299, %v5916, %v5918
    %v5936 = vsel %vm2299, %v5918, %v5920
    %5953 = vst [vmem:[#allocation3 + $0x980] sm:$0xff] %v5921
    %5954 = vst [vmem:[#allocation3 + $0x988] sm:$0xff] %v5922
    %5955 = vst [vmem:[#allocation3 + $0x990] sm:$0xff] %v5923
    %5956 = vst [vmem:[#allocation3 + $0x998] sm:$0xff] %v5924
    %5957 = vst [vmem:[#allocation3 + $0x9a0] sm:$0xff] %v5925
    %5958 = vst [vmem:[#allocation3 + $0x9a8] sm:$0xff] %v5926
    %5959 = vst [vmem:[#allocation3 + $0x9b0] sm:$0xff] %v5927
    %5960 = vst [vmem:[#allocation3 + $0x9b8] sm:$0xff] %v5928
    %5961 = vst [vmem:[#allocation3 + $0x9c0] sm:$0xff] %v5929
    %5962 = vst [vmem:[#allocation3 + $0x9c8] sm:$0xff] %v5930
    %5963 = vst [vmem:[#allocation3 + $0x9d0] sm:$0xff] %v5931
    %5964 = vst [vmem:[#allocation3 + $0x9d8] sm:$0xff] %v5932
    %5965 = vst [vmem:[#allocation3 + $0x9e0] sm:$0xff] %v5933
    %5966 = vst [vmem:[#allocation3 + $0x9e8] sm:$0xff] %v5934
    %5967 = vst [vmem:[#allocation3 + $0x9f0] sm:$0xff] %v5935
    %5968 = vst [vmem:[#allocation3 + $0x9f8] sm:$0xff] %v5936
    %5969 = vrot.lane.b32.xlu0 %v5771, 37
    %v5970 = vpop.permute.xlu0 %5969
    %5971 = vrot.lane.b32.xlu0 %v5772, 37
    %v5972 = vpop.permute.xlu0 %5971
    %5973 = vrot.lane.b32.xlu0 %v5773, 37
    %v5974 = vpop.permute.xlu0 %5973
    %5975 = vrot.lane.b32.xlu0 %v5774, 37
    %v5976 = vpop.permute.xlu0 %5975
    %5977 = vrot.lane.b32.xlu0 %v5775, 37
    %v5978 = vpop.permute.xlu0 %5977
    %5979 = vrot.lane.b32.xlu0 %v5776, 37
    %v5980 = vpop.permute.xlu0 %5979
    %5981 = vrot.lane.b32.xlu0 %v5777, 37
    %v5982 = vpop.permute.xlu0 %5981
    %5983 = vrot.lane.b32.xlu0 %v5778, 37
    %v5984 = vpop.permute.xlu0 %5983
    %5985 = vrot.lane.b32.xlu0 %v5779, 37
    %v5986 = vpop.permute.xlu0 %5985
    %5987 = vrot.lane.b32.xlu0 %v5780, 37
    %v5988 = vpop.permute.xlu0 %5987
    %5989 = vrot.lane.b32.xlu0 %v5781, 37
    %v5990 = vpop.permute.xlu0 %5989
    %5991 = vrot.lane.b32.xlu0 %v5782, 37
    %v5992 = vpop.permute.xlu0 %5991
    %5993 = vrot.lane.b32.xlu0 %v5783, 37
    %v5994 = vpop.permute.xlu0 %5993
    %5995 = vrot.lane.b32.xlu0 %v5784, 37
    %v5996 = vpop.permute.xlu0 %5995
    %5997 = vrot.lane.b32.xlu0 %v5785, 37
    %v5998 = vpop.permute.xlu0 %5997
    %5999 = vrot.lane.b32.xlu0 %v5786, 37
    %v6000 = vpop.permute.xlu0 %5999
    %6001 = vrot.lane.b32.xlu0 %v5787, 37
    %v6002 = vpop.permute.xlu0 %6001
    %v6003 = vsel %vm2382, %v5970, %v5972
    %v6004 = vsel %vm2382, %v5972, %v5974
    %v6005 = vsel %vm2382, %v5974, %v5976
    %v6006 = vsel %vm2382, %v5976, %v5978
    %v6007 = vsel %vm2382, %v5978, %v5980
    %v6008 = vsel %vm2382, %v5980, %v5982
    %v6009 = vsel %vm2382, %v5982, %v5984
    %v6010 = vsel %vm2382, %v5984, %v5986
    %v6011 = vsel %vm2382, %v5986, %v5988
    %v6012 = vsel %vm2382, %v5988, %v5990
    %v6013 = vsel %vm2382, %v5990, %v5992
    %v6014 = vsel %vm2382, %v5992, %v5994
    %v6015 = vsel %vm2382, %v5994, %v5996
    %v6016 = vsel %vm2382, %v5996, %v5998
    %v6017 = vsel %vm2382, %v5998, %v6000
    %v6018 = vsel %vm2382, %v6000, %v6002
    %6035 = vst [vmem:[#allocation3 + $0xa00] sm:$0xff] %v6003
    %6036 = vst [vmem:[#allocation3 + $0xa08] sm:$0xff] %v6004
    %6037 = vst [vmem:[#allocation3 + $0xa10] sm:$0xff] %v6005
    %6038 = vst [vmem:[#allocation3 + $0xa18] sm:$0xff] %v6006
    %6039 = vst [vmem:[#allocation3 + $0xa20] sm:$0xff] %v6007
    %6040 = vst [vmem:[#allocation3 + $0xa28] sm:$0xff] %v6008
    %6041 = vst [vmem:[#allocation3 + $0xa30] sm:$0xff] %v6009
    %6042 = vst [vmem:[#allocation3 + $0xa38] sm:$0xff] %v6010
    %6043 = vst [vmem:[#allocation3 + $0xa40] sm:$0xff] %v6011
    %6044 = vst [vmem:[#allocation3 + $0xa48] sm:$0xff] %v6012
    %6045 = vst [vmem:[#allocation3 + $0xa50] sm:$0xff] %v6013
    %6046 = vst [vmem:[#allocation3 + $0xa58] sm:$0xff] %v6014
    %6047 = vst [vmem:[#allocation3 + $0xa60] sm:$0xff] %v6015
    %6048 = vst [vmem:[#allocation3 + $0xa68] sm:$0xff] %v6016
    %6049 = vst [vmem:[#allocation3 + $0xa70] sm:$0xff] %v6017
    %6050 = vst [vmem:[#allocation3 + $0xa78] sm:$0xff] %v6018
    %v6051 = vld [vmem:[#allocation2 + $0x8] sm:$0xff]
    %v6052 = vld [vmem:[#allocation2 + $0x10] sm:$0xff]
    %v6053 = vld [vmem:[#allocation2 + $0x18] sm:$0xff]
    %v6054 = vld [vmem:[#allocation2 + $0x20] sm:$0xff]
    %v6055 = vld [vmem:[#allocation2 + $0x28] sm:$0xff]
    %v6056 = vld [vmem:[#allocation2 + $0x30] sm:$0xff]
    %v6057 = vld [vmem:[#allocation2 + $0x38] sm:$0xff]
    %v6058 = vld [vmem:[#allocation2 + $0x40] sm:$0xff]
    %v6059 = vld [vmem:[#allocation2 + $0x48] sm:$0xff]
    %v6060 = vld [vmem:[#allocation2 + $0x50] sm:$0xff]
    %v6061 = vld [vmem:[#allocation2 + $0x58] sm:$0xff]
    %v6062 = vld [vmem:[#allocation2 + $0x60] sm:$0xff]
    %v6063 = vld [vmem:[#allocation2 + $0x68] sm:$0xff]
    %v6064 = vld [vmem:[#allocation2 + $0x70] sm:$0xff]
    %v6065 = vld [vmem:[#allocation2 + $0x78] sm:$0xff]
    %v6066 = vld [vmem:[#allocation2 + $0x80] sm:$0xff]
    %v6067 = vld [vmem:[#allocation2 + $0x88] sm:$0xff]
    %6085 = vrot.lane.b32.xlu0 %v6051, 29
    %v6086 = vpop.permute.xlu0 %6085
    %6087 = vrot.lane.b32.xlu0 %v6052, 29
    %v6088 = vpop.permute.xlu0 %6087
    %6089 = vrot.lane.b32.xlu0 %v6053, 29
    %v6090 = vpop.permute.xlu0 %6089
    %6091 = vrot.lane.b32.xlu0 %v6054, 29
    %v6092 = vpop.permute.xlu0 %6091
    %6093 = vrot.lane.b32.xlu0 %v6055, 29
    %v6094 = vpop.permute.xlu0 %6093
    %6095 = vrot.lane.b32.xlu0 %v6056, 29
    %v6096 = vpop.permute.xlu0 %6095
    %6097 = vrot.lane.b32.xlu0 %v6057, 29
    %v6098 = vpop.permute.xlu0 %6097
    %6099 = vrot.lane.b32.xlu0 %v6058, 29
    %v6100 = vpop.permute.xlu0 %6099
    %6101 = vrot.lane.b32.xlu0 %v6059, 29
    %v6102 = vpop.permute.xlu0 %6101
    %6103 = vrot.lane.b32.xlu0 %v6060, 29
    %v6104 = vpop.permute.xlu0 %6103
    %6105 = vrot.lane.b32.xlu0 %v6061, 29
    %v6106 = vpop.permute.xlu0 %6105
    %6107 = vrot.lane.b32.xlu0 %v6062, 29
    %v6108 = vpop.permute.xlu0 %6107
    %6109 = vrot.lane.b32.xlu0 %v6063, 29
    %v6110 = vpop.permute.xlu0 %6109
    %6111 = vrot.lane.b32.xlu0 %v6064, 29
    %v6112 = vpop.permute.xlu0 %6111
    %6113 = vrot.lane.b32.xlu0 %v6065, 29
    %v6114 = vpop.permute.xlu0 %6113
    %6115 = vrot.lane.b32.xlu0 %v6066, 29
    %v6116 = vpop.permute.xlu0 %6115
    %6117 = vrot.lane.b32.xlu0 %v6067, 29
    %v6118 = vpop.permute.xlu0 %6117
    %v6119 = vsel %vm2491, %v6086, %v6088
    %v6120 = vsel %vm2491, %v6088, %v6090
    %v6121 = vsel %vm2491, %v6090, %v6092
    %v6122 = vsel %vm2491, %v6092, %v6094
    %v6123 = vsel %vm2491, %v6094, %v6096
    %v6124 = vsel %vm2491, %v6096, %v6098
    %v6125 = vsel %vm2491, %v6098, %v6100
    %v6126 = vsel %vm2491, %v6100, %v6102
    %v6127 = vsel %vm2491, %v6102, %v6104
    %v6128 = vsel %vm2491, %v6104, %v6106
    %v6129 = vsel %vm2491, %v6106, %v6108
    %v6130 = vsel %vm2491, %v6108, %v6110
    %v6131 = vsel %vm2491, %v6110, %v6112
    %v6132 = vsel %vm2491, %v6112, %v6114
    %v6133 = vsel %vm2491, %v6114, %v6116
    %v6134 = vsel %vm2491, %v6116, %v6118
    %6151 = vst [vmem:[#allocation3 + $0xa80] sm:$0xff] %v6119
    %6152 = vst [vmem:[#allocation3 + $0xa88] sm:$0xff] %v6120
    %6153 = vst [vmem:[#allocation3 + $0xa90] sm:$0xff] %v6121
    %6154 = vst [vmem:[#allocation3 + $0xa98] sm:$0xff] %v6122
    %6155 = vst [vmem:[#allocation3 + $0xaa0] sm:$0xff] %v6123
    %6156 = vst [vmem:[#allocation3 + $0xaa8] sm:$0xff] %v6124
    %6157 = vst [vmem:[#allocation3 + $0xab0] sm:$0xff] %v6125
    %6158 = vst [vmem:[#allocation3 + $0xab8] sm:$0xff] %v6126
    %6159 = vst [vmem:[#allocation3 + $0xac0] sm:$0xff] %v6127
    %6160 = vst [vmem:[#allocation3 + $0xac8] sm:$0xff] %v6128
    %6161 = vst [vmem:[#allocation3 + $0xad0] sm:$0xff] %v6129
    %6162 = vst [vmem:[#allocation3 + $0xad8] sm:$0xff] %v6130
    %6163 = vst [vmem:[#allocation3 + $0xae0] sm:$0xff] %v6131
    %6164 = vst [vmem:[#allocation3 + $0xae8] sm:$0xff] %v6132
    %6165 = vst [vmem:[#allocation3 + $0xaf0] sm:$0xff] %v6133
    %6166 = vst [vmem:[#allocation3 + $0xaf8] sm:$0xff] %v6134
    %6167 = vrot.lane.b32.xlu0 %v6051, 28
    %v6168 = vpop.permute.xlu0 %6167
    %6169 = vrot.lane.b32.xlu0 %v6052, 28
    %v6170 = vpop.permute.xlu0 %6169
    %6171 = vrot.lane.b32.xlu0 %v6053, 28
    %v6172 = vpop.permute.xlu0 %6171
    %6173 = vrot.lane.b32.xlu0 %v6054, 28
    %v6174 = vpop.permute.xlu0 %6173
    %6175 = vrot.lane.b32.xlu0 %v6055, 28
    %v6176 = vpop.permute.xlu0 %6175
    %6177 = vrot.lane.b32.xlu0 %v6056, 28
    %v6178 = vpop.permute.xlu0 %6177
    %6179 = vrot.lane.b32.xlu0 %v6057, 28
    %v6180 = vpop.permute.xlu0 %6179
    %6181 = vrot.lane.b32.xlu0 %v6058, 28
    %v6182 = vpop.permute.xlu0 %6181
    %6183 = vrot.lane.b32.xlu0 %v6059, 28
    %v6184 = vpop.permute.xlu0 %6183
    %6185 = vrot.lane.b32.xlu0 %v6060, 28
    %v6186 = vpop.permute.xlu0 %6185
    %6187 = vrot.lane.b32.xlu0 %v6061, 28
    %v6188 = vpop.permute.xlu0 %6187
    %6189 = vrot.lane.b32.xlu0 %v6062, 28
    %v6190 = vpop.permute.xlu0 %6189
    %6191 = vrot.lane.b32.xlu0 %v6063, 28
    %v6192 = vpop.permute.xlu0 %6191
    %6193 = vrot.lane.b32.xlu0 %v6064, 28
    %v6194 = vpop.permute.xlu0 %6193
    %6195 = vrot.lane.b32.xlu0 %v6065, 28
    %v6196 = vpop.permute.xlu0 %6195
    %6197 = vrot.lane.b32.xlu0 %v6066, 28
    %v6198 = vpop.permute.xlu0 %6197
    %6199 = vrot.lane.b32.xlu0 %v6067, 28
    %v6200 = vpop.permute.xlu0 %6199
    %v6201 = vsel %vm2574, %v6168, %v6170
    %v6202 = vsel %vm2574, %v6170, %v6172
    %v6203 = vsel %vm2574, %v6172, %v6174
    %v6204 = vsel %vm2574, %v6174, %v6176
    %v6205 = vsel %vm2574, %v6176, %v6178
    %v6206 = vsel %vm2574, %v6178, %v6180
    %v6207 = vsel %vm2574, %v6180, %v6182
    %v6208 = vsel %vm2574, %v6182, %v6184
    %v6209 = vsel %vm2574, %v6184, %v6186
    %v6210 = vsel %vm2574, %v6186, %v6188
    %v6211 = vsel %vm2574, %v6188, %v6190
    %v6212 = vsel %vm2574, %v6190, %v6192
    %v6213 = vsel %vm2574, %v6192, %v6194
    %v6214 = vsel %vm2574, %v6194, %v6196
    %v6215 = vsel %vm2574, %v6196, %v6198
    %v6216 = vsel %vm2574, %v6198, %v6200
    %6233 = vst [vmem:[#allocation3 + $0xb00] sm:$0xff] %v6201
    %6234 = vst [vmem:[#allocation3 + $0xb08] sm:$0xff] %v6202
    %6235 = vst [vmem:[#allocation3 + $0xb10] sm:$0xff] %v6203
    %6236 = vst [vmem:[#allocation3 + $0xb18] sm:$0xff] %v6204
    %6237 = vst [vmem:[#allocation3 + $0xb20] sm:$0xff] %v6205
    %6238 = vst [vmem:[#allocation3 + $0xb28] sm:$0xff] %v6206
    %6239 = vst [vmem:[#allocation3 + $0xb30] sm:$0xff] %v6207
    %6240 = vst [vmem:[#allocation3 + $0xb38] sm:$0xff] %v6208
    %6241 = vst [vmem:[#allocation3 + $0xb40] sm:$0xff] %v6209
    %6242 = vst [vmem:[#allocation3 + $0xb48] sm:$0xff] %v6210
    %6243 = vst [vmem:[#allocation3 + $0xb50] sm:$0xff] %v6211
    %6244 = vst [vmem:[#allocation3 + $0xb58] sm:$0xff] %v6212
    %6245 = vst [vmem:[#allocation3 + $0xb60] sm:$0xff] %v6213
    %6246 = vst [vmem:[#allocation3 + $0xb68] sm:$0xff] %v6214
    %6247 = vst [vmem:[#allocation3 + $0xb70] sm:$0xff] %v6215
    %6248 = vst [vmem:[#allocation3 + $0xb78] sm:$0xff] %v6216
    %6249 = vrot.lane.b32.xlu0 %v6051, 27
    %v6250 = vpop.permute.xlu0 %6249
    %6251 = vrot.lane.b32.xlu0 %v6052, 27
    %v6252 = vpop.permute.xlu0 %6251
    %6253 = vrot.lane.b32.xlu0 %v6053, 27
    %v6254 = vpop.permute.xlu0 %6253
    %6255 = vrot.lane.b32.xlu0 %v6054, 27
    %v6256 = vpop.permute.xlu0 %6255
    %6257 = vrot.lane.b32.xlu0 %v6055, 27
    %v6258 = vpop.permute.xlu0 %6257
    %6259 = vrot.lane.b32.xlu0 %v6056, 27
    %v6260 = vpop.permute.xlu0 %6259
    %6261 = vrot.lane.b32.xlu0 %v6057, 27
    %v6262 = vpop.permute.xlu0 %6261
    %6263 = vrot.lane.b32.xlu0 %v6058, 27
    %v6264 = vpop.permute.xlu0 %6263
    %6265 = vrot.lane.b32.xlu0 %v6059, 27
    %v6266 = vpop.permute.xlu0 %6265
    %6267 = vrot.lane.b32.xlu0 %v6060, 27
    %v6268 = vpop.permute.xlu0 %6267
    %6269 = vrot.lane.b32.xlu0 %v6061, 27
    %v6270 = vpop.permute.xlu0 %6269
    %6271 = vrot.lane.b32.xlu0 %v6062, 27
    %v6272 = vpop.permute.xlu0 %6271
    %6273 = vrot.lane.b32.xlu0 %v6063, 27
    %v6274 = vpop.permute.xlu0 %6273
    %6275 = vrot.lane.b32.xlu0 %v6064, 27
    %v6276 = vpop.permute.xlu0 %6275
    %6277 = vrot.lane.b32.xlu0 %v6065, 27
    %v6278 = vpop.permute.xlu0 %6277
    %6279 = vrot.lane.b32.xlu0 %v6066, 27
    %v6280 = vpop.permute.xlu0 %6279
    %6281 = vrot.lane.b32.xlu0 %v6067, 27
    %v6282 = vpop.permute.xlu0 %6281
    %v6283 = vsel %vm2657, %v6250, %v6252
    %v6284 = vsel %vm2657, %v6252, %v6254
    %v6285 = vsel %vm2657, %v6254, %v6256
    %v6286 = vsel %vm2657, %v6256, %v6258
    %v6287 = vsel %vm2657, %v6258, %v6260
    %v6288 = vsel %vm2657, %v6260, %v6262
    %v6289 = vsel %vm2657, %v6262, %v6264
    %v6290 = vsel %vm2657, %v6264, %v6266
    %v6291 = vsel %vm2657, %v6266, %v6268
    %v6292 = vsel %vm2657, %v6268, %v6270
    %v6293 = vsel %vm2657, %v6270, %v6272
    %v6294 = vsel %vm2657, %v6272, %v6274
    %v6295 = vsel %vm2657, %v6274, %v6276
    %v6296 = vsel %vm2657, %v6276, %v6278
    %v6297 = vsel %vm2657, %v6278, %v6280
    %v6298 = vsel %vm2657, %v6280, %v6282
    %6315 = vst [vmem:[#allocation3 + $0xb80] sm:$0xff] %v6283
    %6316 = vst [vmem:[#allocation3 + $0xb88] sm:$0xff] %v6284
    %6317 = vst [vmem:[#allocation3 + $0xb90] sm:$0xff] %v6285
    %6318 = vst [vmem:[#allocation3 + $0xb98] sm:$0xff] %v6286
    %6319 = vst [vmem:[#allocation3 + $0xba0] sm:$0xff] %v6287
    %6320 = vst [vmem:[#allocation3 + $0xba8] sm:$0xff] %v6288
    %6321 = vst [vmem:[#allocation3 + $0xbb0] sm:$0xff] %v6289
    %6322 = vst [vmem:[#allocation3 + $0xbb8] sm:$0xff] %v6290
    %6323 = vst [vmem:[#allocation3 + $0xbc0] sm:$0xff] %v6291
    %6324 = vst [vmem:[#allocation3 + $0xbc8] sm:$0xff] %v6292
    %6325 = vst [vmem:[#allocation3 + $0xbd0] sm:$0xff] %v6293
    %6326 = vst [vmem:[#allocation3 + $0xbd8] sm:$0xff] %v6294
    %6327 = vst [vmem:[#allocation3 + $0xbe0] sm:$0xff] %v6295
    %6328 = vst [vmem:[#allocation3 + $0xbe8] sm:$0xff] %v6296
    %6329 = vst [vmem:[#allocation3 + $0xbf0] sm:$0xff] %v6297
    %6330 = vst [vmem:[#allocation3 + $0xbf8] sm:$0xff] %v6298
    %v6331 = vld [vmem:[#allocation2 + $0x8] sm:$0xff]
    %v6332 = vld [vmem:[#allocation2 + $0x10] sm:$0xff]
    %v6333 = vld [vmem:[#allocation2 + $0x18] sm:$0xff]
    %v6334 = vld [vmem:[#allocation2 + $0x20] sm:$0xff]
    %v6335 = vld [vmem:[#allocation2 + $0x28] sm:$0xff]
    %v6336 = vld [vmem:[#allocation2 + $0x30] sm:$0xff]
    %v6337 = vld [vmem:[#allocation2 + $0x38] sm:$0xff]
    %v6338 = vld [vmem:[#allocation2 + $0x40] sm:$0xff]
    %v6339 = vld [vmem:[#allocation2 + $0x48] sm:$0xff]
    %v6340 = vld [vmem:[#allocation2 + $0x50] sm:$0xff]
    %v6341 = vld [vmem:[#allocation2 + $0x58] sm:$0xff]
    %v6342 = vld [vmem:[#allocation2 + $0x60] sm:$0xff]
    %v6343 = vld [vmem:[#allocation2 + $0x68] sm:$0xff]
    %v6344 = vld [vmem:[#allocation2 + $0x70] sm:$0xff]
    %v6345 = vld [vmem:[#allocation2 + $0x78] sm:$0xff]
    %v6346 = vld [vmem:[#allocation2 + $0x80] sm:$0xff]
    %v6347 = vld [vmem:[#allocation2 + $0x88] sm:$0xff]
    %6365 = vrot.lane.b32.xlu0 %v6331, 19
    %v6366 = vpop.permute.xlu0 %6365
    %6367 = vrot.lane.b32.xlu0 %v6332, 19
    %v6368 = vpop.permute.xlu0 %6367
    %6369 = vrot.lane.b32.xlu0 %v6333, 19
    %v6370 = vpop.permute.xlu0 %6369
    %6371 = vrot.lane.b32.xlu0 %v6334, 19
    %v6372 = vpop.permute.xlu0 %6371
    %6373 = vrot.lane.b32.xlu0 %v6335, 19
    %v6374 = vpop.permute.xlu0 %6373
    %6375 = vrot.lane.b32.xlu0 %v6336, 19
    %v6376 = vpop.permute.xlu0 %6375
    %6377 = vrot.lane.b32.xlu0 %v6337, 19
    %v6378 = vpop.permute.xlu0 %6377
    %6379 = vrot.lane.b32.xlu0 %v6338, 19
    %v6380 = vpop.permute.xlu0 %6379
    %6381 = vrot.lane.b32.xlu0 %v6339, 19
    %v6382 = vpop.permute.xlu0 %6381
    %6383 = vrot.lane.b32.xlu0 %v6340, 19
    %v6384 = vpop.permute.xlu0 %6383
    %6385 = vrot.lane.b32.xlu0 %v6341, 19
    %v6386 = vpop.permute.xlu0 %6385
    %6387 = vrot.lane.b32.xlu0 %v6342, 19
    %v6388 = vpop.permute.xlu0 %6387
    %6389 = vrot.lane.b32.xlu0 %v6343, 19
    %v6390 = vpop.permute.xlu0 %6389
    %6391 = vrot.lane.b32.xlu0 %v6344, 19
    %v6392 = vpop.permute.xlu0 %6391
    %6393 = vrot.lane.b32.xlu0 %v6345, 19
    %v6394 = vpop.permute.xlu0 %6393
    %6395 = vrot.lane.b32.xlu0 %v6346, 19
    %v6396 = vpop.permute.xlu0 %6395
    %6397 = vrot.lane.b32.xlu0 %v6347, 19
    %v6398 = vpop.permute.xlu0 %6397
    %v6399 = vsel %vm2766, %v6366, %v6368
    %v6400 = vsel %vm2766, %v6368, %v6370
    %v6401 = vsel %vm2766, %v6370, %v6372
    %v6402 = vsel %vm2766, %v6372, %v6374
    %v6403 = vsel %vm2766, %v6374, %v6376
    %v6404 = vsel %vm2766, %v6376, %v6378
    %v6405 = vsel %vm2766, %v6378, %v6380
    %v6406 = vsel %vm2766, %v6380, %v6382
    %v6407 = vsel %vm2766, %v6382, %v6384
    %v6408 = vsel %vm2766, %v6384, %v6386
    %v6409 = vsel %vm2766, %v6386, %v6388
    %v6410 = vsel %vm2766, %v6388, %v6390
    %v6411 = vsel %vm2766, %v6390, %v6392
    %v6412 = vsel %vm2766, %v6392, %v6394
    %v6413 = vsel %vm2766, %v6394, %v6396
    %v6414 = vsel %vm2766, %v6396, %v6398
    %6431 = vst [vmem:[#allocation3 + $0xc00] sm:$0xff] %v6399
    %6432 = vst [vmem:[#allocation3 + $0xc08] sm:$0xff] %v6400
    %6433 = vst [vmem:[#allocation3 + $0xc10] sm:$0xff] %v6401
    %6434 = vst [vmem:[#allocation3 + $0xc18] sm:$0xff] %v6402
    %6435 = vst [vmem:[#allocation3 + $0xc20] sm:$0xff] %v6403
    %6436 = vst [vmem:[#allocation3 + $0xc28] sm:$0xff] %v6404
    %6437 = vst [vmem:[#allocation3 + $0xc30] sm:$0xff] %v6405
    %6438 = vst [vmem:[#allocation3 + $0xc38] sm:$0xff] %v6406
    %6439 = vst [vmem:[#allocation3 + $0xc40] sm:$0xff] %v6407
    %6440 = vst [vmem:[#allocation3 + $0xc48] sm:$0xff] %v6408
    %6441 = vst [vmem:[#allocation3 + $0xc50] sm:$0xff] %v6409
    %6442 = vst [vmem:[#allocation3 + $0xc58] sm:$0xff] %v6410
    %6443 = vst [vmem:[#allocation3 + $0xc60] sm:$0xff] %v6411
    %6444 = vst [vmem:[#allocation3 + $0xc68] sm:$0xff] %v6412
    %6445 = vst [vmem:[#allocation3 + $0xc70] sm:$0xff] %v6413
    %6446 = vst [vmem:[#allocation3 + $0xc78] sm:$0xff] %v6414
    %6447 = vrot.lane.b32.xlu0 %v6331, 18
    %v6448 = vpop.permute.xlu0 %6447
    %6449 = vrot.lane.b32.xlu0 %v6332, 18
    %v6450 = vpop.permute.xlu0 %6449
    %6451 = vrot.lane.b32.xlu0 %v6333, 18
    %v6452 = vpop.permute.xlu0 %6451
    %6453 = vrot.lane.b32.xlu0 %v6334, 18
    %v6454 = vpop.permute.xlu0 %6453
    %6455 = vrot.lane.b32.xlu0 %v6335, 18
    %v6456 = vpop.permute.xlu0 %6455
    %6457 = vrot.lane.b32.xlu0 %v6336, 18
    %v6458 = vpop.permute.xlu0 %6457
    %6459 = vrot.lane.b32.xlu0 %v6337, 18
    %v6460 = vpop.permute.xlu0 %6459
    %6461 = vrot.lane.b32.xlu0 %v6338, 18
    %v6462 = vpop.permute.xlu0 %6461
    %6463 = vrot.lane.b32.xlu0 %v6339, 18
    %v6464 = vpop.permute.xlu0 %6463
    %6465 = vrot.lane.b32.xlu0 %v6340, 18
    %v6466 = vpop.permute.xlu0 %6465
    %6467 = vrot.lane.b32.xlu0 %v6341, 18
    %v6468 = vpop.permute.xlu0 %6467
    %6469 = vrot.lane.b32.xlu0 %v6342, 18
    %v6470 = vpop.permute.xlu0 %6469
    %6471 = vrot.lane.b32.xlu0 %v6343, 18
    %v6472 = vpop.permute.xlu0 %6471
    %6473 = vrot.lane.b32.xlu0 %v6344, 18
    %v6474 = vpop.permute.xlu0 %6473
    %6475 = vrot.lane.b32.xlu0 %v6345, 18
    %v6476 = vpop.permute.xlu0 %6475
    %6477 = vrot.lane.b32.xlu0 %v6346, 18
    %v6478 = vpop.permute.xlu0 %6477
    %6479 = vrot.lane.b32.xlu0 %v6347, 18
    %v6480 = vpop.permute.xlu0 %6479
    %v6481 = vsel %vm2849, %v6448, %v6450
    %v6482 = vsel %vm2849, %v6450, %v6452
    %v6483 = vsel %vm2849, %v6452, %v6454
    %v6484 = vsel %vm2849, %v6454, %v6456
    %v6485 = vsel %vm2849, %v6456, %v6458
    %v6486 = vsel %vm2849, %v6458, %v6460
    %v6487 = vsel %vm2849, %v6460, %v6462
    %v6488 = vsel %vm2849, %v6462, %v6464
    %v6489 = vsel %vm2849, %v6464, %v6466
    %v6490 = vsel %vm2849, %v6466, %v6468
    %v6491 = vsel %vm2849, %v6468, %v6470
    %v6492 = vsel %vm2849, %v6470, %v6472
    %v6493 = vsel %vm2849, %v6472, %v6474
    %v6494 = vsel %vm2849, %v6474, %v6476
    %v6495 = vsel %vm2849, %v6476, %v6478
    %v6496 = vsel %vm2849, %v6478, %v6480
    %6513 = vst [vmem:[#allocation3 + $0xc80] sm:$0xff] %v6481
    %6514 = vst [vmem:[#allocation3 + $0xc88] sm:$0xff] %v6482
    %6515 = vst [vmem:[#allocation3 + $0xc90] sm:$0xff] %v6483
    %6516 = vst [vmem:[#allocation3 + $0xc98] sm:$0xff] %v6484
    %6517 = vst [vmem:[#allocation3 + $0xca0] sm:$0xff] %v6485
    %6518 = vst [vmem:[#allocation3 + $0xca8] sm:$0xff] %v6486
    %6519 = vst [vmem:[#allocation3 + $0xcb0] sm:$0xff] %v6487
    %6520 = vst [vmem:[#allocation3 + $0xcb8] sm:$0xff] %v6488
    %6521 = vst [vmem:[#allocation3 + $0xcc0] sm:$0xff] %v6489
    %6522 = vst [vmem:[#allocation3 + $0xcc8] sm:$0xff] %v6490
    %6523 = vst [vmem:[#allocation3 + $0xcd0] sm:$0xff] %v6491
    %6524 = vst [vmem:[#allocation3 + $0xcd8] sm:$0xff] %v6492
    %6525 = vst [vmem:[#allocation3 + $0xce0] sm:$0xff] %v6493
    %6526 = vst [vmem:[#allocation3 + $0xce8] sm:$0xff] %v6494
    %6527 = vst [vmem:[#allocation3 + $0xcf0] sm:$0xff] %v6495
    %6528 = vst [vmem:[#allocation3 + $0xcf8] sm:$0xff] %v6496
    %6529 = vrot.lane.b32.xlu0 %v6331, 17
    %v6530 = vpop.permute.xlu0 %6529
    %6531 = vrot.lane.b32.xlu0 %v6332, 17
    %v6532 = vpop.permute.xlu0 %6531
    %6533 = vrot.lane.b32.xlu0 %v6333, 17
    %v6534 = vpop.permute.xlu0 %6533
    %6535 = vrot.lane.b32.xlu0 %v6334, 17
    %v6536 = vpop.permute.xlu0 %6535
    %6537 = vrot.lane.b32.xlu0 %v6335, 17
    %v6538 = vpop.permute.xlu0 %6537
    %6539 = vrot.lane.b32.xlu0 %v6336, 17
    %v6540 = vpop.permute.xlu0 %6539
    %6541 = vrot.lane.b32.xlu0 %v6337, 17
    %v6542 = vpop.permute.xlu0 %6541
    %6543 = vrot.lane.b32.xlu0 %v6338, 17
    %v6544 = vpop.permute.xlu0 %6543
    %6545 = vrot.lane.b32.xlu0 %v6339, 17
    %v6546 = vpop.permute.xlu0 %6545
    %6547 = vrot.lane.b32.xlu0 %v6340, 17
    %v6548 = vpop.permute.xlu0 %6547
    %6549 = vrot.lane.b32.xlu0 %v6341, 17
    %v6550 = vpop.permute.xlu0 %6549
    %6551 = vrot.lane.b32.xlu0 %v6342, 17
    %v6552 = vpop.permute.xlu0 %6551
    %6553 = vrot.lane.b32.xlu0 %v6343, 17
    %v6554 = vpop.permute.xlu0 %6553
    %6555 = vrot.lane.b32.xlu0 %v6344, 17
    %v6556 = vpop.permute.xlu0 %6555
    %6557 = vrot.lane.b32.xlu0 %v6345, 17
    %v6558 = vpop.permute.xlu0 %6557
    %6559 = vrot.lane.b32.xlu0 %v6346, 17
    %v6560 = vpop.permute.xlu0 %6559
    %6561 = vrot.lane.b32.xlu0 %v6347, 17
    %v6562 = vpop.permute.xlu0 %6561
    %v6563 = vsel %vm2932, %v6530, %v6532
    %v6564 = vsel %vm2932, %v6532, %v6534
    %v6565 = vsel %vm2932, %v6534, %v6536
    %v6566 = vsel %vm2932, %v6536, %v6538
    %v6567 = vsel %vm2932, %v6538, %v6540
    %v6568 = vsel %vm2932, %v6540, %v6542
    %v6569 = vsel %vm2932, %v6542, %v6544
    %v6570 = vsel %vm2932, %v6544, %v6546
    %v6571 = vsel %vm2932, %v6546, %v6548
    %v6572 = vsel %vm2932, %v6548, %v6550
    %v6573 = vsel %vm2932, %v6550, %v6552
    %v6574 = vsel %vm2932, %v6552, %v6554
    %v6575 = vsel %vm2932, %v6554, %v6556
    %v6576 = vsel %vm2932, %v6556, %v6558
    %v6577 = vsel %vm2932, %v6558, %v6560
    %v6578 = vsel %vm2932, %v6560, %v6562
    %6595 = vst [vmem:[#allocation3 + $0xd00] sm:$0xff] %v6563
    %6596 = vst [vmem:[#allocation3 + $0xd08] sm:$0xff] %v6564
    %6597 = vst [vmem:[#allocation3 + $0xd10] sm:$0xff] %v6565
    %6598 = vst [vmem:[#allocation3 + $0xd18] sm:$0xff] %v6566
    %6599 = vst [vmem:[#allocation3 + $0xd20] sm:$0xff] %v6567
    %6600 = vst [vmem:[#allocation3 + $0xd28] sm:$0xff] %v6568
    %6601 = vst [vmem:[#allocation3 + $0xd30] sm:$0xff] %v6569
    %6602 = vst [vmem:[#allocation3 + $0xd38] sm:$0xff] %v6570
    %6603 = vst [vmem:[#allocation3 + $0xd40] sm:$0xff] %v6571
    %6604 = vst [vmem:[#allocation3 + $0xd48] sm:$0xff] %v6572
    %6605 = vst [vmem:[#allocation3 + $0xd50] sm:$0xff] %v6573
    %6606 = vst [vmem:[#allocation3 + $0xd58] sm:$0xff] %v6574
    %6607 = vst [vmem:[#allocation3 + $0xd60] sm:$0xff] %v6575
    %6608 = vst [vmem:[#allocation3 + $0xd68] sm:$0xff] %v6576
    %6609 = vst [vmem:[#allocation3 + $0xd70] sm:$0xff] %v6577
    %6610 = vst [vmem:[#allocation3 + $0xd78] sm:$0xff] %v6578
    %v6611 = vld [vmem:[%s5] sm:$0xff]
    %v6612 = vld [vmem:[%s5 + $0x8] sm:$0xff]
    %v6613 = vld [vmem:[#allocation3] sm:$0xff]
    %v6614 = vld [vmem:[#allocation3 + $0x8] sm:$0xff]
    %v6615 = vld [vmem:[#allocation3 + $0x10] sm:$0xff]
    %v6616 = vld [vmem:[#allocation3 + $0x18] sm:$0xff]
    %v6617 = vld [vmem:[#allocation3 + $0x20] sm:$0xff]
    %v6618 = vld [vmem:[#allocation3 + $0x28] sm:$0xff]
    %v6619 = vld [vmem:[#allocation3 + $0x30] sm:$0xff]
    %v6620 = vld [vmem:[#allocation3 + $0x38] sm:$0xff]
    %v6621 = vld [vmem:[#allocation3 + $0x40] sm:$0xff]
    %v6622 = vld [vmem:[#allocation3 + $0x48] sm:$0xff]
    %v6623 = vld [vmem:[#allocation3 + $0x50] sm:$0xff]
    %v6624 = vld [vmem:[#allocation3 + $0x58] sm:$0xff]
    %v6625 = vld [vmem:[#allocation3 + $0x60] sm:$0xff]
    %v6626 = vld [vmem:[#allocation3 + $0x68] sm:$0xff]
    %v6627 = vld [vmem:[#allocation3 + $0x70] sm:$0xff]
    %v6628 = vld [vmem:[#allocation3 + $0x78] sm:$0xff]
    %v6629 = vld [vmem:[#allocation3 + $0x80] sm:$0xff]
    %v6630 = vld [vmem:[#allocation3 + $0x88] sm:$0xff]
    %v6631 = vld [vmem:[#allocation3 + $0x90] sm:$0xff]
    %v6632 = vld [vmem:[#allocation3 + $0x98] sm:$0xff]
    %v6633 = vld [vmem:[#allocation3 + $0xa0] sm:$0xff]
    %v6634 = vld [vmem:[#allocation3 + $0xa8] sm:$0xff]
    %v6635 = vld [vmem:[#allocation3 + $0xb0] sm:$0xff]
    %v6636 = vld [vmem:[#allocation3 + $0xb8] sm:$0xff]
    %v6637 = vld [vmem:[#allocation3 + $0xc0] sm:$0xff]
    %v6638 = vld [vmem:[#allocation3 + $0xc8] sm:$0xff]
    %v6639 = vld [vmem:[#allocation3 + $0xd0] sm:$0xff]
    %v6640 = vld [vmem:[#allocation3 + $0xd8] sm:$0xff]
    %v6641 = vld [vmem:[#allocation3 + $0xe0] sm:$0xff]
    %v6642 = vld [vmem:[#allocation3 + $0xe8] sm:$0xff]
    %v6643 = vld [vmem:[#allocation3 + $0xf0] sm:$0xff]
    %v6644 = vld [vmem:[#allocation3 + $0xf8] sm:$0xff]
    %v6645 = vld [vmem:[#allocation3 + $0x100] sm:$0xff]
    %v6646 = vld [vmem:[#allocation3 + $0x108] sm:$0xff]
    %v6647 = vld [vmem:[#allocation3 + $0x110] sm:$0xff]
    %v6648 = vld [vmem:[#allocation3 + $0x118] sm:$0xff]
    %v6649 = vld [vmem:[#allocation3 + $0x120] sm:$0xff]
    %v6650 = vld [vmem:[#allocation3 + $0x128] sm:$0xff]
    %v6651 = vld [vmem:[#allocation3 + $0x130] sm:$0xff]
    %v6652 = vld [vmem:[#allocation3 + $0x138] sm:$0xff]
    %v6653 = vld [vmem:[#allocation3 + $0x140] sm:$0xff]
    %v6654 = vld [vmem:[#allocation3 + $0x148] sm:$0xff]
    %v6655 = vld [vmem:[#allocation3 + $0x150] sm:$0xff]
    %v6656 = vld [vmem:[#allocation3 + $0x158] sm:$0xff]
    %v6657 = vld [vmem:[#allocation3 + $0x160] sm:$0xff]
    %v6658 = vld [vmem:[#allocation3 + $0x168] sm:$0xff]
    %v6659 = vld [vmem:[#allocation3 + $0x170] sm:$0xff]
    %v6660 = vld [vmem:[#allocation3 + $0x178] sm:$0xff]
    %v6661 = vld [vmem:[#allocation3 + $0x180] sm:$0xff]
    %v6662 = vld [vmem:[#allocation3 + $0x188] sm:$0xff]
    %v6663 = vld [vmem:[#allocation3 + $0x190] sm:$0xff]
    %v6664 = vld [vmem:[#allocation3 + $0x198] sm:$0xff]
    %v6665 = vld [vmem:[#allocation3 + $0x1a0] sm:$0xff]
    %v6666 = vld [vmem:[#allocation3 + $0x1a8] sm:$0xff]
    %v6667 = vld [vmem:[#allocation3 + $0x1b0] sm:$0xff]
    %v6668 = vld [vmem:[#allocation3 + $0x1b8] sm:$0xff]
    %v6669 = vld [vmem:[#allocation3 + $0x1c0] sm:$0xff]
    %v6670 = vld [vmem:[#allocation3 + $0x1c8] sm:$0xff]
    %v6671 = vld [vmem:[#allocation3 + $0x1d0] sm:$0xff]
    %v6672 = vld [vmem:[#allocation3 + $0x1d8] sm:$0xff]
    %v6673 = vld [vmem:[#allocation3 + $0x1e0] sm:$0xff]
    %v6674 = vld [vmem:[#allocation3 + $0x1e8] sm:$0xff]
    %v6675 = vld [vmem:[#allocation3 + $0x1f0] sm:$0xff]
    %v6676 = vld [vmem:[#allocation3 + $0x1f8] sm:$0xff]
    %v6677 = vld [vmem:[#allocation3 + $0x200] sm:$0xff]
    %v6678 = vld [vmem:[#allocation3 + $0x208] sm:$0xff]
    %v6679 = vld [vmem:[#allocation3 + $0x210] sm:$0xff]
    %v6680 = vld [vmem:[#allocation3 + $0x218] sm:$0xff]
    %v6681 = vld [vmem:[#allocation3 + $0x220] sm:$0xff]
    %v6682 = vld [vmem:[#allocation3 + $0x228] sm:$0xff]
    %v6683 = vld [vmem:[#allocation3 + $0x230] sm:$0xff]
    %v6684 = vld [vmem:[#allocation3 + $0x238] sm:$0xff]
    %v6685 = vld [vmem:[#allocation3 + $0x240] sm:$0xff]
    %v6686 = vld [vmem:[#allocation3 + $0x248] sm:$0xff]
    %v6687 = vld [vmem:[#allocation3 + $0x250] sm:$0xff]
    %v6688 = vld [vmem:[#allocation3 + $0x258] sm:$0xff]
    %v6689 = vld [vmem:[#allocation3 + $0x260] sm:$0xff]
    %v6690 = vld [vmem:[#allocation3 + $0x268] sm:$0xff]
    %v6691 = vld [vmem:[#allocation3 + $0x270] sm:$0xff]
    %v6692 = vld [vmem:[#allocation3 + $0x278] sm:$0xff]
    %v6693 = vld [vmem:[#allocation3 + $0x280] sm:$0xff]
    %v6694 = vld [vmem:[#allocation3 + $0x288] sm:$0xff]
    %v6695 = vld [vmem:[#allocation3 + $0x290] sm:$0xff]
    %v6696 = vld [vmem:[#allocation3 + $0x298] sm:$0xff]
    %v6697 = vld [vmem:[#allocation3 + $0x2a0] sm:$0xff]
    %v6698 = vld [vmem:[#allocation3 + $0x2a8] sm:$0xff]
    %v6699 = vld [vmem:[#allocation3 + $0x2b0] sm:$0xff]
    %v6700 = vld [vmem:[#allocation3 + $0x2b8] sm:$0xff]
    %v6701 = vld [vmem:[#allocation3 + $0x2c0] sm:$0xff]
    %v6702 = vld [vmem:[#allocation3 + $0x2c8] sm:$0xff]
    %v6703 = vld [vmem:[#allocation3 + $0x2d0] sm:$0xff]
    %v6704 = vld [vmem:[#allocation3 + $0x2d8] sm:$0xff]
    %v6705 = vld [vmem:[#allocation3 + $0x2e0] sm:$0xff]
    %v6706 = vld [vmem:[#allocation3 + $0x2e8] sm:$0xff]
    %v6707 = vld [vmem:[#allocation3 + $0x2f0] sm:$0xff]
    %v6708 = vld [vmem:[#allocation3 + $0x2f8] sm:$0xff]
    %v6709 = vld [vmem:[#allocation3 + $0x300] sm:$0xff]
    %v6710 = vld [vmem:[#allocation3 + $0x308] sm:$0xff]
    %v6711 = vld [vmem:[#allocation3 + $0x310] sm:$0xff]
    %v6712 = vld [vmem:[#allocation3 + $0x318] sm:$0xff]
    %v6713 = vld [vmem:[#allocation3 + $0x320] sm:$0xff]
    %v6714 = vld [vmem:[#allocation3 + $0x328] sm:$0xff]
    %v6715 = vld [vmem:[#allocation3 + $0x330] sm:$0xff]
    %v6716 = vld [vmem:[#allocation3 + $0x338] sm:$0xff]
    %v6717 = vld [vmem:[#allocation3 + $0x340] sm:$0xff]
    %v6718 = vld [vmem:[#allocation3 + $0x348] sm:$0xff]
    %v6719 = vld [vmem:[#allocation3 + $0x350] sm:$0xff]
    %v6720 = vld [vmem:[#allocation3 + $0x358] sm:$0xff]
    %v6721 = vld [vmem:[#allocation3 + $0x360] sm:$0xff]
    %v6722 = vld [vmem:[#allocation3 + $0x368] sm:$0xff]
    %v6723 = vld [vmem:[#allocation3 + $0x370] sm:$0xff]
    %v6724 = vld [vmem:[#allocation3 + $0x378] sm:$0xff]
    %v6725 = vld [vmem:[#allocation3 + $0x380] sm:$0xff]
    %v6726 = vld [vmem:[#allocation3 + $0x388] sm:$0xff]
    %v6727 = vld [vmem:[#allocation3 + $0x390] sm:$0xff]
    %v6728 = vld [vmem:[#allocation3 + $0x398] sm:$0xff]
    %v6729 = vld [vmem:[#allocation3 + $0x3a0] sm:$0xff]
    %v6730 = vld [vmem:[#allocation3 + $0x3a8] sm:$0xff]
    %v6731 = vld [vmem:[#allocation3 + $0x3b0] sm:$0xff]
    %v6732 = vld [vmem:[#allocation3 + $0x3b8] sm:$0xff]
    %v6733 = vld [vmem:[#allocation3 + $0x3c0] sm:$0xff]
    %v6734 = vld [vmem:[#allocation3 + $0x3c8] sm:$0xff]
    %v6735 = vld [vmem:[#allocation3 + $0x3d0] sm:$0xff]
    %v6736 = vld [vmem:[#allocation3 + $0x3d8] sm:$0xff]
    %v6737 = vld [vmem:[#allocation3 + $0x3e0] sm:$0xff]
    %v6738 = vld [vmem:[#allocation3 + $0x3e8] sm:$0xff]
    %v6739 = vld [vmem:[#allocation3 + $0x3f0] sm:$0xff]
    %v6740 = vld [vmem:[#allocation3 + $0x3f8] sm:$0xff]
    %v6741 = vld [vmem:[#allocation3 + $0x400] sm:$0xff]
    %v6742 = vld [vmem:[#allocation3 + $0x408] sm:$0xff]
    %v6743 = vld [vmem:[#allocation3 + $0x410] sm:$0xff]
    %v6744 = vld [vmem:[#allocation3 + $0x418] sm:$0xff]
    %v6745 = vld [vmem:[#allocation3 + $0x420] sm:$0xff]
    %v6746 = vld [vmem:[#allocation3 + $0x428] sm:$0xff]
    %v6747 = vld [vmem:[#allocation3 + $0x430] sm:$0xff]
    %v6748 = vld [vmem:[#allocation3 + $0x438] sm:$0xff]
    %v6749 = vld [vmem:[#allocation3 + $0x440] sm:$0xff]
    %v6750 = vld [vmem:[#allocation3 + $0x448] sm:$0xff]
    %v6751 = vld [vmem:[#allocation3 + $0x450] sm:$0xff]
    %v6752 = vld [vmem:[#allocation3 + $0x458] sm:$0xff]
    %v6753 = vld [vmem:[#allocation3 + $0x460] sm:$0xff]
    %v6754 = vld [vmem:[#allocation3 + $0x468] sm:$0xff]
    %v6755 = vld [vmem:[#allocation3 + $0x470] sm:$0xff]
    %v6756 = vld [vmem:[#allocation3 + $0x478] sm:$0xff]
    %v6757 = vld [vmem:[#allocation3 + $0x480] sm:$0xff]
    %v6758 = vld [vmem:[#allocation3 + $0x488] sm:$0xff]
    %v6759 = vld [vmem:[#allocation3 + $0x490] sm:$0xff]
    %v6760 = vld [vmem:[#allocation3 + $0x498] sm:$0xff]
    %v6761 = vld [vmem:[#allocation3 + $0x4a0] sm:$0xff]
    %v6762 = vld [vmem:[#allocation3 + $0x4a8] sm:$0xff]
    %v6763 = vld [vmem:[#allocation3 + $0x4b0] sm:$0xff]
    %v6764 = vld [vmem:[#allocation3 + $0x4b8] sm:$0xff]
    %v6765 = vld [vmem:[#allocation3 + $0x4c0] sm:$0xff]
    %v6766 = vld [vmem:[#allocation3 + $0x4c8] sm:$0xff]
    %v6767 = vld [vmem:[#allocation3 + $0x4d0] sm:$0xff]
    %v6768 = vld [vmem:[#allocation3 + $0x4d8] sm:$0xff]
    %v6769 = vld [vmem:[#allocation3 + $0x4e0] sm:$0xff]
    %v6770 = vld [vmem:[#allocation3 + $0x4e8] sm:$0xff]
    %v6771 = vld [vmem:[#allocation3 + $0x4f0] sm:$0xff]
    %v6772 = vld [vmem:[#allocation3 + $0x4f8] sm:$0xff]
    %v6773 = vld [vmem:[#allocation3 + $0x500] sm:$0xff]
    %v6774 = vld [vmem:[#allocation3 + $0x508] sm:$0xff]
    %v6775 = vld [vmem:[#allocation3 + $0x510] sm:$0xff]
    %v6776 = vld [vmem:[#allocation3 + $0x518] sm:$0xff]
    %v6777 = vld [vmem:[#allocation3 + $0x520] sm:$0xff]
    %v6778 = vld [vmem:[#allocation3 + $0x528] sm:$0xff]
    %v6779 = vld [vmem:[#allocation3 + $0x530] sm:$0xff]
    %v6780 = vld [vmem:[#allocation3 + $0x538] sm:$0xff]
    %v6781 = vld [vmem:[#allocation3 + $0x540] sm:$0xff]
    %v6782 = vld [vmem:[#allocation3 + $0x548] sm:$0xff]
    %v6783 = vld [vmem:[#allocation3 + $0x550] sm:$0xff]
    %v6784 = vld [vmem:[#allocation3 + $0x558] sm:$0xff]
    %v6785 = vld [vmem:[#allocation3 + $0x560] sm:$0xff]
    %v6786 = vld [vmem:[#allocation3 + $0x568] sm:$0xff]
    %v6787 = vld [vmem:[#allocation3 + $0x570] sm:$0xff]
    %v6788 = vld [vmem:[#allocation3 + $0x578] sm:$0xff]
    %v6789 = vld [vmem:[#allocation3 + $0x580] sm:$0xff]
    %v6790 = vld [vmem:[#allocation3 + $0x588] sm:$0xff]
    %v6791 = vld [vmem:[#allocation3 + $0x590] sm:$0xff]
    %v6792 = vld [vmem:[#allocation3 + $0x598] sm:$0xff]
    %v6793 = vld [vmem:[#allocation3 + $0x5a0] sm:$0xff]
    %v6794 = vld [vmem:[#allocation3 + $0x5a8] sm:$0xff]
    %v6795 = vld [vmem:[#allocation3 + $0x5b0] sm:$0xff]
    %v6796 = vld [vmem:[#allocation3 + $0x5b8] sm:$0xff]
    %v6797 = vld [vmem:[#allocation3 + $0x5c0] sm:$0xff]
    %v6798 = vld [vmem:[#allocation3 + $0x5c8] sm:$0xff]
    %v6799 = vld [vmem:[#allocation3 + $0x5d0] sm:$0xff]
    %v6800 = vld [vmem:[#allocation3 + $0x5d8] sm:$0xff]
    %v6801 = vld [vmem:[#allocation3 + $0x5e0] sm:$0xff]
    %v6802 = vld [vmem:[#allocation3 + $0x5e8] sm:$0xff]
    %v6803 = vld [vmem:[#allocation3 + $0x5f0] sm:$0xff]
    %v6804 = vld [vmem:[#allocation3 + $0x5f8] sm:$0xff]
    %v6805 = vld [vmem:[#allocation3 + $0x600] sm:$0xff]
    %v6806 = vld [vmem:[#allocation3 + $0x608] sm:$0xff]
    %v6807 = vld [vmem:[#allocation3 + $0x610] sm:$0xff]
    %v6808 = vld [vmem:[#allocation3 + $0x618] sm:$0xff]
    %v6809 = vld [vmem:[#allocation3 + $0x620] sm:$0xff]
    %v6810 = vld [vmem:[#allocation3 + $0x628] sm:$0xff]
    %v6811 = vld [vmem:[#allocation3 + $0x630] sm:$0xff]
    %v6812 = vld [vmem:[#allocation3 + $0x638] sm:$0xff]
    %v6813 = vld [vmem:[#allocation3 + $0x640] sm:$0xff]
    %v6814 = vld [vmem:[#allocation3 + $0x648] sm:$0xff]
    %v6815 = vld [vmem:[#allocation3 + $0x650] sm:$0xff]
    %v6816 = vld [vmem:[#allocation3 + $0x658] sm:$0xff]
    %v6817 = vld [vmem:[#allocation3 + $0x660] sm:$0xff]
    %v6818 = vld [vmem:[#allocation3 + $0x668] sm:$0xff]
    %v6819 = vld [vmem:[#allocation3 + $0x670] sm:$0xff]
    %v6820 = vld [vmem:[#allocation3 + $0x678] sm:$0xff]
    %v6821 = vld [vmem:[#allocation3 + $0x680] sm:$0xff]
    %v6822 = vld [vmem:[#allocation3 + $0x688] sm:$0xff]
    %v6823 = vld [vmem:[#allocation3 + $0x690] sm:$0xff]
    %v6824 = vld [vmem:[#allocation3 + $0x698] sm:$0xff]
    %v6825 = vld [vmem:[#allocation3 + $0x6a0] sm:$0xff]
    %v6826 = vld [vmem:[#allocation3 + $0x6a8] sm:$0xff]
    %v6827 = vld [vmem:[#allocation3 + $0x6b0] sm:$0xff]
    %v6828 = vld [vmem:[#allocation3 + $0x6b8] sm:$0xff]
    %v6829 = vld [vmem:[#allocation3 + $0x6c0] sm:$0xff]
    %v6830 = vld [vmem:[#allocation3 + $0x6c8] sm:$0xff]
    %v6831 = vld [vmem:[#allocation3 + $0x6d0] sm:$0xff]
    %v6832 = vld [vmem:[#allocation3 + $0x6d8] sm:$0xff]
    %v6833 = vld [vmem:[#allocation3 + $0x6e0] sm:$0xff]
    %v6834 = vld [vmem:[#allocation3 + $0x6e8] sm:$0xff]
    %v6835 = vld [vmem:[#allocation3 + $0x6f0] sm:$0xff]
    %v6836 = vld [vmem:[#allocation3 + $0x6f8] sm:$0xff]
    %v6837 = vld [vmem:[#allocation3 + $0x700] sm:$0xff]
    %v6838 = vld [vmem:[#allocation3 + $0x708] sm:$0xff]
    %v6839 = vld [vmem:[#allocation3 + $0x710] sm:$0xff]
    %v6840 = vld [vmem:[#allocation3 + $0x718] sm:$0xff]
    %v6841 = vld [vmem:[#allocation3 + $0x720] sm:$0xff]
    %v6842 = vld [vmem:[#allocation3 + $0x728] sm:$0xff]
    %v6843 = vld [vmem:[#allocation3 + $0x730] sm:$0xff]
    %v6844 = vld [vmem:[#allocation3 + $0x738] sm:$0xff]
    %v6845 = vld [vmem:[#allocation3 + $0x740] sm:$0xff]
    %v6846 = vld [vmem:[#allocation3 + $0x748] sm:$0xff]
    %v6847 = vld [vmem:[#allocation3 + $0x750] sm:$0xff]
    %v6848 = vld [vmem:[#allocation3 + $0x758] sm:$0xff]
    %v6849 = vld [vmem:[#allocation3 + $0x760] sm:$0xff]
    %v6850 = vld [vmem:[#allocation3 + $0x768] sm:$0xff]
    %v6851 = vld [vmem:[#allocation3 + $0x770] sm:$0xff]
    %v6852 = vld [vmem:[#allocation3 + $0x778] sm:$0xff]
    %v6853 = vld [vmem:[#allocation3 + $0x780] sm:$0xff]
    %v6854 = vld [vmem:[#allocation3 + $0x788] sm:$0xff]
    %v6855 = vld [vmem:[#allocation3 + $0x790] sm:$0xff]
    %v6856 = vld [vmem:[#allocation3 + $0x798] sm:$0xff]
    %v6857 = vld [vmem:[#allocation3 + $0x7a0] sm:$0xff]
    %v6858 = vld [vmem:[#allocation3 + $0x7a8] sm:$0xff]
    %v6859 = vld [vmem:[#allocation3 + $0x7b0] sm:$0xff]
    %v6860 = vld [vmem:[#allocation3 + $0x7b8] sm:$0xff]
    %v6861 = vld [vmem:[#allocation3 + $0x7c0] sm:$0xff]
    %v6862 = vld [vmem:[#allocation3 + $0x7c8] sm:$0xff]
    %v6863 = vld [vmem:[#allocation3 + $0x7d0] sm:$0xff]
    %v6864 = vld [vmem:[#allocation3 + $0x7d8] sm:$0xff]
    %v6865 = vld [vmem:[#allocation3 + $0x7e0] sm:$0xff]
    %v6866 = vld [vmem:[#allocation3 + $0x7e8] sm:$0xff]
    %v6867 = vld [vmem:[#allocation3 + $0x7f0] sm:$0xff]
    %v6868 = vld [vmem:[#allocation3 + $0x7f8] sm:$0xff]
    %v6869 = vld [vmem:[#allocation3 + $0x800] sm:$0xff]
    %v6870 = vld [vmem:[#allocation3 + $0x808] sm:$0xff]
    %v6871 = vld [vmem:[#allocation3 + $0x810] sm:$0xff]
    %v6872 = vld [vmem:[#allocation3 + $0x818] sm:$0xff]
    %v6873 = vld [vmem:[#allocation3 + $0x820] sm:$0xff]
    %v6874 = vld [vmem:[#allocation3 + $0x828] sm:$0xff]
    %v6875 = vld [vmem:[#allocation3 + $0x830] sm:$0xff]
    %v6876 = vld [vmem:[#allocation3 + $0x838] sm:$0xff]
    %v6877 = vld [vmem:[#allocation3 + $0x840] sm:$0xff]
    %v6878 = vld [vmem:[#allocation3 + $0x848] sm:$0xff]
    %v6879 = vld [vmem:[#allocation3 + $0x850] sm:$0xff]
    %v6880 = vld [vmem:[#allocation3 + $0x858] sm:$0xff]
    %v6881 = vld [vmem:[#allocation3 + $0x860] sm:$0xff]
    %v6882 = vld [vmem:[#allocation3 + $0x868] sm:$0xff]
    %v6883 = vld [vmem:[#allocation3 + $0x870] sm:$0xff]
    %v6884 = vld [vmem:[#allocation3 + $0x878] sm:$0xff]
    %v6885 = vld [vmem:[#allocation3 + $0x880] sm:$0xff]
    %v6886 = vld [vmem:[#allocation3 + $0x888] sm:$0xff]
    %v6887 = vld [vmem:[#allocation3 + $0x890] sm:$0xff]
    %v6888 = vld [vmem:[#allocation3 + $0x898] sm:$0xff]
    %v6889 = vld [vmem:[#allocation3 + $0x8a0] sm:$0xff]
    %v6890 = vld [vmem:[#allocation3 + $0x8a8] sm:$0xff]
    %v6891 = vld [vmem:[#allocation3 + $0x8b0] sm:$0xff]
    %v6892 = vld [vmem:[#allocation3 + $0x8b8] sm:$0xff]
    %v6893 = vld [vmem:[#allocation3 + $0x8c0] sm:$0xff]
    %v6894 = vld [vmem:[#allocation3 + $0x8c8] sm:$0xff]
    %v6895 = vld [vmem:[#allocation3 + $0x8d0] sm:$0xff]
    %v6896 = vld [vmem:[#allocation3 + $0x8d8] sm:$0xff]
    %v6897 = vld [vmem:[#allocation3 + $0x8e0] sm:$0xff]
    %v6898 = vld [vmem:[#allocation3 + $0x8e8] sm:$0xff]
    %v6899 = vld [vmem:[#allocation3 + $0x8f0] sm:$0xff]
    %v6900 = vld [vmem:[#allocation3 + $0x8f8] sm:$0xff]
    %v6901 = vld [vmem:[#allocation3 + $0x900] sm:$0xff]
    %v6902 = vld [vmem:[#allocation3 + $0x908] sm:$0xff]
    %v6903 = vld [vmem:[#allocation3 + $0x910] sm:$0xff]
    %v6904 = vld [vmem:[#allocation3 + $0x918] sm:$0xff]
    %v6905 = vld [vmem:[#allocation3 + $0x920] sm:$0xff]
    %v6906 = vld [vmem:[#allocation3 + $0x928] sm:$0xff]
    %v6907 = vld [vmem:[#allocation3 + $0x930] sm:$0xff]
    %v6908 = vld [vmem:[#allocation3 + $0x938] sm:$0xff]
    %v6909 = vld [vmem:[#allocation3 + $0x940] sm:$0xff]
    %v6910 = vld [vmem:[#allocation3 + $0x948] sm:$0xff]
    %v6911 = vld [vmem:[#allocation3 + $0x950] sm:$0xff]
    %v6912 = vld [vmem:[#allocation3 + $0x958] sm:$0xff]
    %v6913 = vld [vmem:[#allocation3 + $0x960] sm:$0xff]
    %v6914 = vld [vmem:[#allocation3 + $0x968] sm:$0xff]
    %v6915 = vld [vmem:[#allocation3 + $0x970] sm:$0xff]
    %v6916 = vld [vmem:[#allocation3 + $0x978] sm:$0xff]
    %v6917 = vld [vmem:[#allocation3 + $0x980] sm:$0xff]
    %v6918 = vld [vmem:[#allocation3 + $0x988] sm:$0xff]
    %v6919 = vld [vmem:[#allocation3 + $0x990] sm:$0xff]
    %v6920 = vld [vmem:[#allocation3 + $0x998] sm:$0xff]
    %v6921 = vld [vmem:[#allocation3 + $0x9a0] sm:$0xff]
    %v6922 = vld [vmem:[#allocation3 + $0x9a8] sm:$0xff]
    %v6923 = vld [vmem:[#allocation3 + $0x9b0] sm:$0xff]
    %v6924 = vld [vmem:[#allocation3 + $0x9b8] sm:$0xff]
    %v6925 = vld [vmem:[#allocation3 + $0x9c0] sm:$0xff]
    %v6926 = vld [vmem:[#allocation3 + $0x9c8] sm:$0xff]
    %v6927 = vld [vmem:[#allocation3 + $0x9d0] sm:$0xff]
    %v6928 = vld [vmem:[#allocation3 + $0x9d8] sm:$0xff]
    %v6929 = vld [vmem:[#allocation3 + $0x9e0] sm:$0xff]
    %v6930 = vld [vmem:[#allocation3 + $0x9e8] sm:$0xff]
    %v6931 = vld [vmem:[#allocation3 + $0x9f0] sm:$0xff]
    %v6932 = vld [vmem:[#allocation3 + $0x9f8] sm:$0xff]
    %v6933 = vld [vmem:[#allocation3 + $0xa00] sm:$0xff]
    %v6934 = vld [vmem:[#allocation3 + $0xa08] sm:$0xff]
    %v6935 = vld [vmem:[#allocation3 + $0xa10] sm:$0xff]
    %v6936 = vld [vmem:[#allocation3 + $0xa18] sm:$0xff]
    %v6937 = vld [vmem:[#allocation3 + $0xa20] sm:$0xff]
    %v6938 = vld [vmem:[#allocation3 + $0xa28] sm:$0xff]
    %v6939 = vld [vmem:[#allocation3 + $0xa30] sm:$0xff]
    %v6940 = vld [vmem:[#allocation3 + $0xa38] sm:$0xff]
    %v6941 = vld [vmem:[#allocation3 + $0xa40] sm:$0xff]
    %v6942 = vld [vmem:[#allocation3 + $0xa48] sm:$0xff]
    %v6943 = vld [vmem:[#allocation3 + $0xa50] sm:$0xff]
    %v6944 = vld [vmem:[#allocation3 + $0xa58] sm:$0xff]
    %v6945 = vld [vmem:[#allocation3 + $0xa60] sm:$0xff]
    %v6946 = vld [vmem:[#allocation3 + $0xa68] sm:$0xff]
    %v6947 = vld [vmem:[#allocation3 + $0xa70] sm:$0xff]
    %v6948 = vld [vmem:[#allocation3 + $0xa78] sm:$0xff]
    %v6949 = vld [vmem:[#allocation3 + $0xa80] sm:$0xff]
    %v6950 = vld [vmem:[#allocation3 + $0xa88] sm:$0xff]
    %v6951 = vld [vmem:[#allocation3 + $0xa90] sm:$0xff]
    %v6952 = vld [vmem:[#allocation3 + $0xa98] sm:$0xff]
    %v6953 = vld [vmem:[#allocation3 + $0xaa0] sm:$0xff]
    %v6954 = vld [vmem:[#allocation3 + $0xaa8] sm:$0xff]
    %v6955 = vld [vmem:[#allocation3 + $0xab0] sm:$0xff]
    %v6956 = vld [vmem:[#allocation3 + $0xab8] sm:$0xff]
    %v6957 = vld [vmem:[#allocation3 + $0xac0] sm:$0xff]
    %v6958 = vld [vmem:[#allocation3 + $0xac8] sm:$0xff]
    %v6959 = vld [vmem:[#allocation3 + $0xad0] sm:$0xff]
    %v6960 = vld [vmem:[#allocation3 + $0xad8] sm:$0xff]
    %v6961 = vld [vmem:[#allocation3 + $0xae0] sm:$0xff]
    %v6962 = vld [vmem:[#allocation3 + $0xae8] sm:$0xff]
    %v6963 = vld [vmem:[#allocation3 + $0xaf0] sm:$0xff]
    %v6964 = vld [vmem:[#allocation3 + $0xaf8] sm:$0xff]
    %v6965 = vld [vmem:[#allocation3 + $0xb00] sm:$0xff]
    %v6966 = vld [vmem:[#allocation3 + $0xb08] sm:$0xff]
    %v6967 = vld [vmem:[#allocation3 + $0xb10] sm:$0xff]
    %v6968 = vld [vmem:[#allocation3 + $0xb18] sm:$0xff]
    %v6969 = vld [vmem:[#allocation3 + $0xb20] sm:$0xff]
    %v6970 = vld [vmem:[#allocation3 + $0xb28] sm:$0xff]
    %v6971 = vld [vmem:[#allocation3 + $0xb30] sm:$0xff]
    %v6972 = vld [vmem:[#allocation3 + $0xb38] sm:$0xff]
    %v6973 = vld [vmem:[#allocation3 + $0xb40] sm:$0xff]
    %v6974 = vld [vmem:[#allocation3 + $0xb48] sm:$0xff]
    %v6975 = vld [vmem:[#allocation3 + $0xb50] sm:$0xff]
    %v6976 = vld [vmem:[#allocation3 + $0xb58] sm:$0xff]
    %v6977 = vld [vmem:[#allocation3 + $0xb60] sm:$0xff]
    %v6978 = vld [vmem:[#allocation3 + $0xb68] sm:$0xff]
    %v6979 = vld [vmem:[#allocation3 + $0xb70] sm:$0xff]
    %v6980 = vld [vmem:[#allocation3 + $0xb78] sm:$0xff]
    %v6981 = vld [vmem:[#allocation3 + $0xb80] sm:$0xff]
    %v6982 = vld [vmem:[#allocation3 + $0xb88] sm:$0xff]
    %v6983 = vld [vmem:[#allocation3 + $0xb90] sm:$0xff]
    %v6984 = vld [vmem:[#allocation3 + $0xb98] sm:$0xff]
    %v6985 = vld [vmem:[#allocation3 + $0xba0] sm:$0xff]
    %v6986 = vld [vmem:[#allocation3 + $0xba8] sm:$0xff]
    %v6987 = vld [vmem:[#allocation3 + $0xbb0] sm:$0xff]
    %v6988 = vld [vmem:[#allocation3 + $0xbb8] sm:$0xff]
    %v6989 = vld [vmem:[#allocation3 + $0xbc0] sm:$0xff]
    %v6990 = vld [vmem:[#allocation3 + $0xbc8] sm:$0xff]
    %v6991 = vld [vmem:[#allocation3 + $0xbd0] sm:$0xff]
    %v6992 = vld [vmem:[#allocation3 + $0xbd8] sm:$0xff]
    %v6993 = vld [vmem:[#allocation3 + $0xbe0] sm:$0xff]
    %v6994 = vld [vmem:[#allocation3 + $0xbe8] sm:$0xff]
    %v6995 = vld [vmem:[#allocation3 + $0xbf0] sm:$0xff]
    %v6996 = vld [vmem:[#allocation3 + $0xbf8] sm:$0xff]
    %v6997 = vld [vmem:[#allocation3 + $0xc00] sm:$0xff]
    %v6998 = vld [vmem:[#allocation3 + $0xc08] sm:$0xff]
    %v6999 = vld [vmem:[#allocation3 + $0xc10] sm:$0xff]
    %v7000 = vld [vmem:[#allocation3 + $0xc18] sm:$0xff]
    %v7001 = vld [vmem:[#allocation3 + $0xc20] sm:$0xff]
    %v7002 = vld [vmem:[#allocation3 + $0xc28] sm:$0xff]
    %v7003 = vld [vmem:[#allocation3 + $0xc30] sm:$0xff]
    %v7004 = vld [vmem:[#allocation3 + $0xc38] sm:$0xff]
    %v7005 = vld [vmem:[#allocation3 + $0xc40] sm:$0xff]
    %v7006 = vld [vmem:[#allocation3 + $0xc48] sm:$0xff]
    %v7007 = vld [vmem:[#allocation3 + $0xc50] sm:$0xff]
    %v7008 = vld [vmem:[#allocation3 + $0xc58] sm:$0xff]
    %v7009 = vld [vmem:[#allocation3 + $0xc60] sm:$0xff]
    %v7010 = vld [vmem:[#allocation3 + $0xc68] sm:$0xff]
    %v7011 = vld [vmem:[#allocation3 + $0xc70] sm:$0xff]
    %v7012 = vld [vmem:[#allocation3 + $0xc78] sm:$0xff]
    %v7013 = vld [vmem:[#allocation3 + $0xc80] sm:$0xff]
    %v7014 = vld [vmem:[#allocation3 + $0xc88] sm:$0xff]
    %v7015 = vld [vmem:[#allocation3 + $0xc90] sm:$0xff]
    %v7016 = vld [vmem:[#allocation3 + $0xc98] sm:$0xff]
    %v7017 = vld [vmem:[#allocation3 + $0xca0] sm:$0xff]
    %v7018 = vld [vmem:[#allocation3 + $0xca8] sm:$0xff]
    %v7019 = vld [vmem:[#allocation3 + $0xcb0] sm:$0xff]
    %v7020 = vld [vmem:[#allocation3 + $0xcb8] sm:$0xff]
    %v7021 = vld [vmem:[#allocation3 + $0xcc0] sm:$0xff]
    %v7022 = vld [vmem:[#allocation3 + $0xcc8] sm:$0xff]
    %v7023 = vld [vmem:[#allocation3 + $0xcd0] sm:$0xff]
    %v7024 = vld [vmem:[#allocation3 + $0xcd8] sm:$0xff]
    %v7025 = vld [vmem:[#allocation3 + $0xce0] sm:$0xff]
    %v7026 = vld [vmem:[#allocation3 + $0xce8] sm:$0xff]
    %v7027 = vld [vmem:[#allocation3 + $0xcf0] sm:$0xff]
    %v7028 = vld [vmem:[#allocation3 + $0xcf8] sm:$0xff]
    %v7029 = vld [vmem:[#allocation3 + $0xd00] sm:$0xff]
    %v7030 = vld [vmem:[#allocation3 + $0xd08] sm:$0xff]
    %v7031 = vld [vmem:[#allocation3 + $0xd10] sm:$0xff]
    %v7032 = vld [vmem:[#allocation3 + $0xd18] sm:$0xff]
    %v7033 = vld [vmem:[#allocation3 + $0xd20] sm:$0xff]
    %v7034 = vld [vmem:[#allocation3 + $0xd28] sm:$0xff]
    %v7035 = vld [vmem:[#allocation3 + $0xd30] sm:$0xff]
    %v7036 = vld [vmem:[#allocation3 + $0xd38] sm:$0xff]
    %v7037 = vld [vmem:[#allocation3 + $0xd40] sm:$0xff]
    %v7038 = vld [vmem:[#allocation3 + $0xd48] sm:$0xff]
    %v7039 = vld [vmem:[#allocation3 + $0xd50] sm:$0xff]
    %v7040 = vld [vmem:[#allocation3 + $0xd58] sm:$0xff]
    %v7041 = vld [vmem:[#allocation3 + $0xd60] sm:$0xff]
    %v7042 = vld [vmem:[#allocation3 + $0xd68] sm:$0xff]
    %v7043 = vld [vmem:[#allocation3 + $0xd70] sm:$0xff]
    %v7044 = vld [vmem:[#allocation3 + $0xd78] sm:$0xff]
    %v7046 = vsel %vm3415, %v6612, 0
    %7048 = vmatprep.subr.mxu0 %v6614
    %7049 = vmatpush1.msra.mxu0 %v6613
    %7050 = vmatprep.subr.mxu0 %v6630
    %7051 = vmatpush1.msra.mxu0 %v6629
    %7052 = vmatprep.subr.mxu0 %v6646
    %7053 = vmatpush1.msra.mxu0 %v6645
    %7054 = vmatprep.subr.mxu0 %v6662
    %7055 = vmatpush1.msra.mxu0 %v6661
    %7056 = vmatprep.subr.mxu0 %v6678
    %7057 = vmatpush1.msra.mxu0 %v6677
    %7058 = vmatprep.subr.mxu0 %v6694
    %7059 = vmatpush1.msra.mxu0 %v6693
    %7060 = vmatprep.subr.mxu0 %v6710
    %7061 = vmatpush1.msra.mxu0 %v6709
    %7062 = vmatprep.subr.mxu0 %v6726
    %7063 = vmatpush1.msra.mxu0 %v6725
    %7064 = vmatprep.subr.mxu0 %v6742
    %7065 = vmatpush1.msra.mxu0 %v6741
    %7066 = vmatprep.subr.mxu0 %v6758
    %7067 = vmatpush1.msra.mxu0 %v6757
    %7068 = vmatprep.subr.mxu0 %v6774
    %7069 = vmatpush1.msra.mxu0 %v6773
    %7070 = vmatprep.subr.mxu0 %v6790
    %7071 = vmatpush1.msra.mxu0 %v6789
    %7072 = vmatprep.subr.mxu0 %v6806
    %7073 = vmatpush1.msra.mxu0 %v6805
    %7074 = vmatprep.subr.mxu0 %v6822
    %7075 = vmatpush1.msra.mxu0 %v6821
    %7076 = vmatprep.subr.mxu0 %v6838
    %7077 = vmatpush1.msra.mxu0 %v6837
    %7078 = vmatprep.subr.mxu0 %v6854
    %7079 = vmatpush1.msra.mxu0 %v6853
    %7080 = vmatprep.subr.mxu0 %v6870
    %7081 = vmatpush1.msra.mxu0 %v6869
    %7082 = vmatprep.subr.mxu0 %v6886
    %7083 = vmatpush1.msra.mxu0 %v6885
    %7084 = vmatprep.subr.mxu0 %v6902
    %7085 = vmatpush1.msra.mxu0 %v6901
    %7086 = vmatprep.subr.mxu0 %v6918
    %7087 = vmatpush1.msra.mxu0 %v6917
    %7088 = vmatprep.subr.mxu0 %v6934
    %7089 = vmatpush1.msra.mxu0 %v6933
    %7090 = vmatprep.subr.mxu0 %v6950
    %7091 = vmatpush1.msra.mxu0 %v6949
    %7092 = vmatprep.subr.mxu0 %v6966
    %7093 = vmatpush1.msra.mxu0 %v6965
    %7094 = vmatprep.subr.mxu0 %v6982
    %7095 = vmatpush1.msra.mxu0 %v6981
    %7096 = vmatprep.subr.mxu0 %v6998
    %7097 = vmatpush1.msra.mxu0 %v6997
    %7098 = vmatprep.subr.mxu0 %v7014
    %7099 = vmatpush1.msra.mxu0 %v7013
    %7100 = vmatprep.subr.mxu0 %v7030
    %7101 = vmatpush1.msra.mxu0 %v7029
    %7102 = vmatprep.subr.mxu0 0.0
    %7103 = vmatpush1.msra.mxu0 0.0
    %7104 = vmatprep.subr.mxu0 0.0
    %7105 = vmatpush1.msra.mxu0 0.0
    %7106 = vmatprep.subr.mxu0 0.0
    %7107 = vmatpush1.msra.mxu0 0.0
    %7108 = vmatprep.subr.mxu0 0.0
    %7109 = vmatpush1.msra.mxu0 0.0
    %7110 = vmatprep.subr.mxu0 0.0
    %7111 = vmatpush1.msra.mxu0 0.0
    %7112 = vmatprep.mubr.f32.mxu0 %v7046
    %7113 = vmatmul.mubr.f32.gmra.mrb[0].mxu0 %v6611
    %v7114 = vpop.f32.mrb[0].mxu0
    %v7115 = vadd.f32 0.0, %v7114
    %v7116 = vpop.f32.mrb[0].mxu0
    %v7117 = vadd.f32 0.0, %v7116
    %7118 = vdwg.mxu0
    %7119 = vmatprep.subr.mxu0 %v6616
    %7120 = vmatpush1.msra.mxu0 %v6615
    %7121 = vmatprep.subr.mxu0 %v6632
    %7122 = vmatpush1.msra.mxu0 %v6631
    %7123 = vmatprep.subr.mxu0 %v6648
    %7124 = vmatpush1.msra.mxu0 %v6647
    %7125 = vmatprep.subr.mxu0 %v6664
    %7126 = vmatpush1.msra.mxu0 %v6663
    %7127 = vmatprep.subr.mxu0 %v6680
    %7128 = vmatpush1.msra.mxu0 %v6679
    %7129 = vmatprep.subr.mxu0 %v6696
    %7130 = vmatpush1.msra.mxu0 %v6695
    %7131 = vmatprep.subr.mxu0 %v6712
    %7132 = vmatpush1.msra.mxu0 %v6711
    %7133 = vmatprep.subr.mxu0 %v6728
    %7134 = vmatpush1.msra.mxu0 %v6727
    %7135 = vmatprep.subr.mxu0 %v6744
    %7136 = vmatpush1.msra.mxu0 %v6743
    %7137 = vmatprep.subr.mxu0 %v6760
    %7138 = vmatpush1.msra.mxu0 %v6759
    %7139 = vmatprep.subr.mxu0 %v6776
    %7140 = vmatpush1.msra.mxu0 %v6775
    %7141 = vmatprep.subr.mxu0 %v6792
    %7142 = vmatpush1.msra.mxu0 %v6791
    %7143 = vmatprep.subr.mxu0 %v6808
    %7144 = vmatpush1.msra.mxu0 %v6807
    %7145 = vmatprep.subr.mxu0 %v6824
    %7146 = vmatpush1.msra.mxu0 %v6823
    %7147 = vmatprep.subr.mxu0 %v6840
    %7148 = vmatpush1.msra.mxu0 %v6839
    %7149 = vmatprep.subr.mxu0 %v6856
    %7150 = vmatpush1.msra.mxu0 %v6855
    %7151 = vmatprep.subr.mxu0 %v6872
    %7152 = vmatpush1.msra.mxu0 %v6871
    %7153 = vmatprep.subr.mxu0 %v6888
    %7154 = vmatpush1.msra.mxu0 %v6887
    %7155 = vmatprep.subr.mxu0 %v6904
    %7156 = vmatpush1.msra.mxu0 %v6903
    %7157 = vmatprep.subr.mxu0 %v6920
    %7158 = vmatpush1.msra.mxu0 %v6919
    %7159 = vmatprep.subr.mxu0 %v6936
    %7160 = vmatpush1.msra.mxu0 %v6935
    %7161 = vmatprep.subr.mxu0 %v6952
    %7162 = vmatpush1.msra.mxu0 %v6951
    %7163 = vmatprep.subr.mxu0 %v6968
    %7164 = vmatpush1.msra.mxu0 %v6967
    %7165 = vmatprep.subr.mxu0 %v6984
    %7166 = vmatpush1.msra.mxu0 %v6983
    %7167 = vmatprep.subr.mxu0 %v7000
    %7168 = vmatpush1.msra.mxu0 %v6999
    %7169 = vmatprep.subr.mxu0 %v7016
    %7170 = vmatpush1.msra.mxu0 %v7015
    %7171 = vmatprep.subr.mxu0 %v7032
    %7172 = vmatpush1.msra.mxu0 %v7031
    %7173 = vmatprep.subr.mxu0 0.0
    %7174 = vmatpush1.msra.mxu0 0.0
    %7175 = vmatprep.subr.mxu0 0.0
    %7176 = vmatpush1.msra.mxu0 0.0
    %7177 = vmatprep.subr.mxu0 0.0
    %7178 = vmatpush1.msra.mxu0 0.0
    %7179 = vmatprep.subr.mxu0 0.0
    %7180 = vmatpush1.msra.mxu0 0.0
    %7181 = vmatprep.subr.mxu0 0.0
    %7182 = vmatpush1.msra.mxu0 0.0
    %7183 = vmatprep.mubr.f32.mxu0 %v7046
    %7184 = vmatmul.mubr.f32.gmra.mrb[0].mxu0 %v6611
    %v7185 = vpop.f32.mrb[0].mxu0
    %v7186 = vadd.f32 0.0, %v7185
    %v7187 = vpop.f32.mrb[0].mxu0
    %v7188 = vadd.f32 0.0, %v7187
    %7189 = vdwg.mxu0
    %7190 = vmatprep.subr.mxu0 %v6618
    %7191 = vmatpush1.msra.mxu0 %v6617
    %7192 = vmatprep.subr.mxu0 %v6634
    %7193 = vmatpush1.msra.mxu0 %v6633
    %7194 = vmatprep.subr.mxu0 %v6650
    %7195 = vmatpush1.msra.mxu0 %v6649
    %7196 = vmatprep.subr.mxu0 %v6666
    %7197 = vmatpush1.msra.mxu0 %v6665
    %7198 = vmatprep.subr.mxu0 %v6682
    %7199 = vmatpush1.msra.mxu0 %v6681
    %7200 = vmatprep.subr.mxu0 %v6698
    %7201 = vmatpush1.msra.mxu0 %v6697
    %7202 = vmatprep.subr.mxu0 %v6714
    %7203 = vmatpush1.msra.mxu0 %v6713
    %7204 = vmatprep.subr.mxu0 %v6730
    %7205 = vmatpush1.msra.mxu0 %v6729
    %7206 = vmatprep.subr.mxu0 %v6746
    %7207 = vmatpush1.msra.mxu0 %v6745
    %7208 = vmatprep.subr.mxu0 %v6762
    %7209 = vmatpush1.msra.mxu0 %v6761
    %7210 = vmatprep.subr.mxu0 %v6778
    %7211 = vmatpush1.msra.mxu0 %v6777
    %7212 = vmatprep.subr.mxu0 %v6794
    %7213 = vmatpush1.msra.mxu0 %v6793
    %7214 = vmatprep.subr.mxu0 %v6810
    %7215 = vmatpush1.msra.mxu0 %v6809
    %7216 = vmatprep.subr.mxu0 %v6826
    %7217 = vmatpush1.msra.mxu0 %v6825
    %7218 = vmatprep.subr.mxu0 %v6842
    %7219 = vmatpush1.msra.mxu0 %v6841
    %7220 = vmatprep.subr.mxu0 %v6858
    %7221 = vmatpush1.msra.mxu0 %v6857
    %7222 = vmatprep.subr.mxu0 %v6874
    %7223 = vmatpush1.msra.mxu0 %v6873
    %7224 = vmatprep.subr.mxu0 %v6890
    %7225 = vmatpush1.msra.mxu0 %v6889
    %7226 = vmatprep.subr.mxu0 %v6906
    %7227 = vmatpush1.msra.mxu0 %v6905
    %7228 = vmatprep.subr.mxu0 %v6922
    %7229 = vmatpush1.msra.mxu0 %v6921
    %7230 = vmatprep.subr.mxu0 %v6938
    %7231 = vmatpush1.msra.mxu0 %v6937
    %7232 = vmatprep.subr.mxu0 %v6954
    %7233 = vmatpush1.msra.mxu0 %v6953
    %7234 = vmatprep.subr.mxu0 %v6970
    %7235 = vmatpush1.msra.mxu0 %v6969
    %7236 = vmatprep.subr.mxu0 %v6986
    %7237 = vmatpush1.msra.mxu0 %v6985
    %7238 = vmatprep.subr.mxu0 %v7002
    %7239 = vmatpush1.msra.mxu0 %v7001
    %7240 = vmatprep.subr.mxu0 %v7018
    %7241 = vmatpush1.msra.mxu0 %v7017
    %7242 = vmatprep.subr.mxu0 %v7034
    %7243 = vmatpush1.msra.mxu0 %v7033
    %7244 = vmatprep.subr.mxu0 0.0
    %7245 = vmatpush1.msra.mxu0 0.0
    %7246 = vmatprep.subr.mxu0 0.0
    %7247 = vmatpush1.msra.mxu0 0.0
    %7248 = vmatprep.subr.mxu0 0.0
    %7249 = vmatpush1.msra.mxu0 0.0
    %7250 = vmatprep.subr.mxu0 0.0
    %7251 = vmatpush1.msra.mxu0 0.0
    %7252 = vmatprep.subr.mxu0 0.0
    %7253 = vmatpush1.msra.mxu0 0.0
    %7254 = vmatprep.mubr.f32.mxu0 %v7046
    %7255 = vmatmul.mubr.f32.gmra.mrb[0].mxu0 %v6611
    %v7256 = vpop.f32.mrb[0].mxu0
    %v7257 = vadd.f32 0.0, %v7256
    %v7258 = vpop.f32.mrb[0].mxu0
    %v7259 = vadd.f32 0.0, %v7258
    %7260 = vdwg.mxu0
    %7261 = vmatprep.subr.mxu0 %v6620
    %7262 = vmatpush1.msra.mxu0 %v6619
    %7263 = vmatprep.subr.mxu0 %v6636
    %7264 = vmatpush1.msra.mxu0 %v6635
    %7265 = vmatprep.subr.mxu0 %v6652
    %7266 = vmatpush1.msra.mxu0 %v6651
    %7267 = vmatprep.subr.mxu0 %v6668
    %7268 = vmatpush1.msra.mxu0 %v6667
    %7269 = vmatprep.subr.mxu0 %v6684
    %7270 = vmatpush1.msra.mxu0 %v6683
    %7271 = vmatprep.subr.mxu0 %v6700
    %7272 = vmatpush1.msra.mxu0 %v6699
    %7273 = vmatprep.subr.mxu0 %v6716
    %7274 = vmatpush1.msra.mxu0 %v6715
    %7275 = vmatprep.subr.mxu0 %v6732
    %7276 = vmatpush1.msra.mxu0 %v6731
    %7277 = vmatprep.subr.mxu0 %v6748
    %7278 = vmatpush1.msra.mxu0 %v6747
    %7279 = vmatprep.subr.mxu0 %v6764
    %7280 = vmatpush1.msra.mxu0 %v6763
    %7281 = vmatprep.subr.mxu0 %v6780
    %7282 = vmatpush1.msra.mxu0 %v6779
    %7283 = vmatprep.subr.mxu0 %v6796
    %7284 = vmatpush1.msra.mxu0 %v6795
    %7285 = vmatprep.subr.mxu0 %v6812
    %7286 = vmatpush1.msra.mxu0 %v6811
    %7287 = vmatprep.subr.mxu0 %v6828
    %7288 = vmatpush1.msra.mxu0 %v6827
    %7289 = vmatprep.subr.mxu0 %v6844
    %7290 = vmatpush1.msra.mxu0 %v6843
    %7291 = vmatprep.subr.mxu0 %v6860
    %7292 = vmatpush1.msra.mxu0 %v6859
    %7293 = vmatprep.subr.mxu0 %v6876
    %7294 = vmatpush1.msra.mxu0 %v6875
    %7295 = vmatprep.subr.mxu0 %v6892
    %7296 = vmatpush1.msra.mxu0 %v6891
    %7297 = vmatprep.subr.mxu0 %v6908
    %7298 = vmatpush1.msra.mxu0 %v6907
    %7299 = vmatprep.subr.mxu0 %v6924
    %7300 = vmatpush1.msra.mxu0 %v6923
    %7301 = vmatprep.subr.mxu0 %v6940
    %7302 = vmatpush1.msra.mxu0 %v6939
    %7303 = vmatprep.subr.mxu0 %v6956
    %7304 = vmatpush1.msra.mxu0 %v6955
    %7305 = vmatprep.subr.mxu0 %v6972
    %7306 = vmatpush1.msra.mxu0 %v6971
    %7307 = vmatprep.subr.mxu0 %v6988
    %7308 = vmatpush1.msra.mxu0 %v6987
    %7309 = vmatprep.subr.mxu0 %v7004
    %7310 = vmatpush1.msra.mxu0 %v7003
    %7311 = vmatprep.subr.mxu0 %v7020
    %7312 = vmatpush1.msra.mxu0 %v7019
    %7313 = vmatprep.subr.mxu0 %v7036
    %7314 = vmatpush1.msra.mxu0 %v7035
    %7315 = vmatprep.subr.mxu0 0.0
    %7316 = vmatpush1.msra.mxu0 0.0
    %7317 = vmatprep.subr.mxu0 0.0
    %7318 = vmatpush1.msra.mxu0 0.0
    %7319 = vmatprep.subr.mxu0 0.0
    %7320 = vmatpush1.msra.mxu0 0.0
    %7321 = vmatprep.subr.mxu0 0.0
    %7322 = vmatpush1.msra.mxu0 0.0
    %7323 = vmatprep.subr.mxu0 0.0
    %7324 = vmatpush1.msra.mxu0 0.0
    %7325 = vmatprep.mubr.f32.mxu0 %v7046
    %7326 = vmatmul.mubr.f32.gmra.mrb[0].mxu0 %v6611
    %v7327 = vpop.f32.mrb[0].mxu0
    %v7328 = vadd.f32 0.0, %v7327
    %v7329 = vpop.f32.mrb[0].mxu0
    %v7330 = vadd.f32 0.0, %v7329
    %7331 = vdwg.mxu0
    %7332 = vmatprep.subr.mxu0 %v6622
    %7333 = vmatpush1.msra.mxu0 %v6621
    %7334 = vmatprep.subr.mxu0 %v6638
    %7335 = vmatpush1.msra.mxu0 %v6637
    %7336 = vmatprep.subr.mxu0 %v6654
    %7337 = vmatpush1.msra.mxu0 %v6653
    %7338 = vmatprep.subr.mxu0 %v6670
    %7339 = vmatpush1.msra.mxu0 %v6669
    %7340 = vmatprep.subr.mxu0 %v6686
    %7341 = vmatpush1.msra.mxu0 %v6685
    %7342 = vmatprep.subr.mxu0 %v6702
    %7343 = vmatpush1.msra.mxu0 %v6701
    %7344 = vmatprep.subr.mxu0 %v6718
    %7345 = vmatpush1.msra.mxu0 %v6717
    %7346 = vmatprep.subr.mxu0 %v6734
    %7347 = vmatpush1.msra.mxu0 %v6733
    %7348 = vmatprep.subr.mxu0 %v6750
    %7349 = vmatpush1.msra.mxu0 %v6749
    %7350 = vmatprep.subr.mxu0 %v6766
    %7351 = vmatpush1.msra.mxu0 %v6765
    %7352 = vmatprep.subr.mxu0 %v6782
    %7353 = vmatpush1.msra.mxu0 %v6781
    %7354 = vmatprep.subr.mxu0 %v6798
    %7355 = vmatpush1.msra.mxu0 %v6797
    %7356 = vmatprep.subr.mxu0 %v6814
    %7357 = vmatpush1.msra.mxu0 %v6813
    %7358 = vmatprep.subr.mxu0 %v6830
    %7359 = vmatpush1.msra.mxu0 %v6829
    %7360 = vmatprep.subr.mxu0 %v6846
    %7361 = vmatpush1.msra.mxu0 %v6845
    %7362 = vmatprep.subr.mxu0 %v6862
    %7363 = vmatpush1.msra.mxu0 %v6861
    %7364 = vmatprep.subr.mxu0 %v6878
    %7365 = vmatpush1.msra.mxu0 %v6877
    %7366 = vmatprep.subr.mxu0 %v6894
    %7367 = vmatpush1.msra.mxu0 %v6893
    %7368 = vmatprep.subr.mxu0 %v6910
    %7369 = vmatpush1.msra.mxu0 %v6909
    %7370 = vmatprep.subr.mxu0 %v6926
    %7371 = vmatpush1.msra.mxu0 %v6925
    %7372 = vmatprep.subr.mxu0 %v6942
    %7373 = vmatpush1.msra.mxu0 %v6941
    %7374 = vmatprep.subr.mxu0 %v6958
    %7375 = vmatpush1.msra.mxu0 %v6957
    %7376 = vmatprep.subr.mxu0 %v6974
    %7377 = vmatpush1.msra.mxu0 %v6973
    %7378 = vmatprep.subr.mxu0 %v6990
    %7379 = vmatpush1.msra.mxu0 %v6989
    %7380 = vmatprep.subr.mxu0 %v7006
    %7381 = vmatpush1.msra.mxu0 %v7005
    %7382 = vmatprep.subr.mxu0 %v7022
    %7383 = vmatpush1.msra.mxu0 %v7021
    %7384 = vmatprep.subr.mxu0 %v7038
    %7385 = vmatpush1.msra.mxu0 %v7037
    %7386 = vmatprep.subr.mxu0 0.0
    %7387 = vmatpush1.msra.mxu0 0.0
    %7388 = vmatprep.subr.mxu0 0.0
    %7389 = vmatpush1.msra.mxu0 0.0
    %7390 = vmatprep.subr.mxu0 0.0
    %7391 = vmatpush1.msra.mxu0 0.0
    %7392 = vmatprep.subr.mxu0 0.0
    %7393 = vmatpush1.msra.mxu0 0.0
    %7394 = vmatprep.subr.mxu0 0.0
    %7395 = vmatpush1.msra.mxu0 0.0
    %7396 = vmatprep.mubr.f32.mxu0 %v7046
    %7397 = vmatmul.mubr.f32.gmra.mrb[0].mxu0 %v6611
    %v7398 = vpop.f32.mrb[0].mxu0
    %v7399 = vadd.f32 0.0, %v7398
    %v7400 = vpop.f32.mrb[0].mxu0
    %v7401 = vadd.f32 0.0, %v7400
    %7402 = vdwg.mxu0
    %7403 = vmatprep.subr.mxu0 %v6624
    %7404 = vmatpush1.msra.mxu0 %v6623
    %7405 = vmatprep.subr.mxu0 %v6640
    %7406 = vmatpush1.msra.mxu0 %v6639
    %7407 = vmatprep.subr.mxu0 %v6656
    %7408 = vmatpush1.msra.mxu0 %v6655
    %7409 = vmatprep.subr.mxu0 %v6672
    %7410 = vmatpush1.msra.mxu0 %v6671
    %7411 = vmatprep.subr.mxu0 %v6688
    %7412 = vmatpush1.msra.mxu0 %v6687
    %7413 = vmatprep.subr.mxu0 %v6704
    %7414 = vmatpush1.msra.mxu0 %v6703
    %7415 = vmatprep.subr.mxu0 %v6720
    %7416 = vmatpush1.msra.mxu0 %v6719
    %7417 = vmatprep.subr.mxu0 %v6736
    %7418 = vmatpush1.msra.mxu0 %v6735
    %7419 = vmatprep.subr.mxu0 %v6752
    %7420 = vmatpush1.msra.mxu0 %v6751
    %7421 = vmatprep.subr.mxu0 %v6768
    %7422 = vmatpush1.msra.mxu0 %v6767
    %7423 = vmatprep.subr.mxu0 %v6784
    %7424 = vmatpush1.msra.mxu0 %v6783
    %7425 = vmatprep.subr.mxu0 %v6800
    %7426 = vmatpush1.msra.mxu0 %v6799
    %7427 = vmatprep.subr.mxu0 %v6816
    %7428 = vmatpush1.msra.mxu0 %v6815
    %7429 = vmatprep.subr.mxu0 %v6832
    %7430 = vmatpush1.msra.mxu0 %v6831
    %7431 = vmatprep.subr.mxu0 %v6848
    %7432 = vmatpush1.msra.mxu0 %v6847
    %7433 = vmatprep.subr.mxu0 %v6864
    %7434 = vmatpush1.msra.mxu0 %v6863
    %7435 = vmatprep.subr.mxu0 %v6880
    %7436 = vmatpush1.msra.mxu0 %v6879
    %7437 = vmatprep.subr.mxu0 %v6896
    %7438 = vmatpush1.msra.mxu0 %v6895
    %7439 = vmatprep.subr.mxu0 %v6912
    %7440 = vmatpush1.msra.mxu0 %v6911
    %7441 = vmatprep.subr.mxu0 %v6928
    %7442 = vmatpush1.msra.mxu0 %v6927
    %7443 = vmatprep.subr.mxu0 %v6944
    %7444 = vmatpush1.msra.mxu0 %v6943
    %7445 = vmatprep.subr.mxu0 %v6960
    %7446 = vmatpush1.msra.mxu0 %v6959
    %7447 = vmatprep.subr.mxu0 %v6976
    %7448 = vmatpush1.msra.mxu0 %v6975
    %7449 = vmatprep.subr.mxu0 %v6992
    %7450 = vmatpush1.msra.mxu0 %v6991
    %7451 = vmatprep.subr.mxu0 %v7008
    %7452 = vmatpush1.msra.mxu0 %v7007
    %7453 = vmatprep.subr.mxu0 %v7024
    %7454 = vmatpush1.msra.mxu0 %v7023
    %7455 = vmatprep.subr.mxu0 %v7040
    %7456 = vmatpush1.msra.mxu0 %v7039
    %7457 = vmatprep.subr.mxu0 0.0
    %7458 = vmatpush1.msra.mxu0 0.0
    %7459 = vmatprep.subr.mxu0 0.0
    %7460 = vmatpush1.msra.mxu0 0.0
    %7461 = vmatprep.subr.mxu0 0.0
    %7462 = vmatpush1.msra.mxu0 0.0
    %7463 = vmatprep.subr.mxu0 0.0
    %7464 = vmatpush1.msra.mxu0 0.0
    %7465 = vmatprep.subr.mxu0 0.0
    %7466 = vmatpush1.msra.mxu0 0.0
    %7467 = vmatprep.mubr.f32.mxu0 %v7046
    %7468 = vmatmul.mubr.f32.gmra.mrb[0].mxu0 %v6611
    %v7469 = vpop.f32.mrb[0].mxu0
    %v7470 = vadd.f32 0.0, %v7469
    %v7471 = vpop.f32.mrb[0].mxu0
    %v7472 = vadd.f32 0.0, %v7471
    %7473 = vdwg.mxu0
    %7474 = vmatprep.subr.mxu0 %v6626
    %7475 = vmatpush1.msra.mxu0 %v6625
    %7476 = vmatprep.subr.mxu0 %v6642
    %7477 = vmatpush1.msra.mxu0 %v6641
    %7478 = vmatprep.subr.mxu0 %v6658
    %7479 = vmatpush1.msra.mxu0 %v6657
    %7480 = vmatprep.subr.mxu0 %v6674
    %7481 = vmatpush1.msra.mxu0 %v6673
    %7482 = vmatprep.subr.mxu0 %v6690
    %7483 = vmatpush1.msra.mxu0 %v6689
    %7484 = vmatprep.subr.mxu0 %v6706
    %7485 = vmatpush1.msra.mxu0 %v6705
    %7486 = vmatprep.subr.mxu0 %v6722
    %7487 = vmatpush1.msra.mxu0 %v6721
    %7488 = vmatprep.subr.mxu0 %v6738
    %7489 = vmatpush1.msra.mxu0 %v6737
    %7490 = vmatprep.subr.mxu0 %v6754
    %7491 = vmatpush1.msra.mxu0 %v6753
    %7492 = vmatprep.subr.mxu0 %v6770
    %7493 = vmatpush1.msra.mxu0 %v6769
    %7494 = vmatprep.subr.mxu0 %v6786
    %7495 = vmatpush1.msra.mxu0 %v6785
    %7496 = vmatprep.subr.mxu0 %v6802
    %7497 = vmatpush1.msra.mxu0 %v6801
    %7498 = vmatprep.subr.mxu0 %v6818
    %7499 = vmatpush1.msra.mxu0 %v6817
    %7500 = vmatprep.subr.mxu0 %v6834
    %7501 = vmatpush1.msra.mxu0 %v6833
    %7502 = vmatprep.subr.mxu0 %v6850
    %7503 = vmatpush1.msra.mxu0 %v6849
    %7504 = vmatprep.subr.mxu0 %v6866
    %7505 = vmatpush1.msra.mxu0 %v6865
    %7506 = vmatprep.subr.mxu0 %v6882
    %7507 = vmatpush1.msra.mxu0 %v6881
    %7508 = vmatprep.subr.mxu0 %v6898
    %7509 = vmatpush1.msra.mxu0 %v6897
    %7510 = vmatprep.subr.mxu0 %v6914
    %7511 = vmatpush1.msra.mxu0 %v6913
    %7512 = vmatprep.subr.mxu0 %v6930
    %7513 = vmatpush1.msra.mxu0 %v6929
    %7514 = vmatprep.subr.mxu0 %v6946
    %7515 = vmatpush1.msra.mxu0 %v6945
    %7516 = vmatprep.subr.mxu0 %v6962
    %7517 = vmatpush1.msra.mxu0 %v6961
    %7518 = vmatprep.subr.mxu0 %v6978
    %7519 = vmatpush1.msra.mxu0 %v6977
    %7520 = vmatprep.subr.mxu0 %v6994
    %7521 = vmatpush1.msra.mxu0 %v6993
    %7522 = vmatprep.subr.mxu0 %v7010
    %7523 = vmatpush1.msra.mxu0 %v7009
    %7524 = vmatprep.subr.mxu0 %v7026
    %7525 = vmatpush1.msra.mxu0 %v7025
    %7526 = vmatprep.subr.mxu0 %v7042
    %7527 = vmatpush1.msra.mxu0 %v7041
    %7528 = vmatprep.subr.mxu0 0.0
    %7529 = vmatpush1.msra.mxu0 0.0
    %7530 = vmatprep.subr.mxu0 0.0
    %7531 = vmatpush1.msra.mxu0 0.0
    %7532 = vmatprep.subr.mxu0 0.0
    %7533 = vmatpush1.msra.mxu0 0.0
    %7534 = vmatprep.subr.mxu0 0.0
    %7535 = vmatpush1.msra.mxu0 0.0
    %7536 = vmatprep.subr.mxu0 0.0
    %7537 = vmatpush1.msra.mxu0 0.0
    %7538 = vmatprep.mubr.f32.mxu0 %v7046
    %7539 = vmatmul.mubr.f32.gmra.mrb[0].mxu0 %v6611
    %v7540 = vpop.f32.mrb[0].mxu0
    %v7541 = vadd.f32 0.0, %v7540
    %v7542 = vpop.f32.mrb[0].mxu0
    %v7543 = vadd.f32 0.0, %v7542
    %7544 = vdwg.mxu0
    %7545 = vmatprep.subr.mxu0 %v6628
    %7546 = vmatpush1.msra.mxu0 %v6627
    %7547 = vmatprep.subr.mxu0 %v6644
    %7548 = vmatpush1.msra.mxu0 %v6643
    %7549 = vmatprep.subr.mxu0 %v6660
    %7550 = vmatpush1.msra.mxu0 %v6659
    %7551 = vmatprep.subr.mxu0 %v6676
    %7552 = vmatpush1.msra.mxu0 %v6675
    %7553 = vmatprep.subr.mxu0 %v6692
    %7554 = vmatpush1.msra.mxu0 %v6691
    %7555 = vmatprep.subr.mxu0 %v6708
    %7556 = vmatpush1.msra.mxu0 %v6707
    %7557 = vmatprep.subr.mxu0 %v6724
    %7558 = vmatpush1.msra.mxu0 %v6723
    %7559 = vmatprep.subr.mxu0 %v6740
    %7560 = vmatpush1.msra.mxu0 %v6739
    %7561 = vmatprep.subr.mxu0 %v6756
    %7562 = vmatpush1.msra.mxu0 %v6755
    %7563 = vmatprep.subr.mxu0 %v6772
    %7564 = vmatpush1.msra.mxu0 %v6771
    %7565 = vmatprep.subr.mxu0 %v6788
    %7566 = vmatpush1.msra.mxu0 %v6787
    %7567 = vmatprep.subr.mxu0 %v6804
    %7568 = vmatpush1.msra.mxu0 %v6803
    %7569 = vmatprep.subr.mxu0 %v6820
    %7570 = vmatpush1.msra.mxu0 %v6819
    %7571 = vmatprep.subr.mxu0 %v6836
    %7572 = vmatpush1.msra.mxu0 %v6835
    %7573 = vmatprep.subr.mxu0 %v6852
    %7574 = vmatpush1.msra.mxu0 %v6851
    %7575 = vmatprep.subr.mxu0 %v6868
    %7576 = vmatpush1.msra.mxu0 %v6867
    %7577 = vmatprep.subr.mxu0 %v6884
    %7578 = vmatpush1.msra.mxu0 %v6883
    %7579 = vmatprep.subr.mxu0 %v6900
    %7580 = vmatpush1.msra.mxu0 %v6899
    %7581 = vmatprep.subr.mxu0 %v6916
    %7582 = vmatpush1.msra.mxu0 %v6915
    %7583 = vmatprep.subr.mxu0 %v6932
    %7584 = vmatpush1.msra.mxu0 %v6931
    %7585 = vmatprep.subr.mxu0 %v6948
    %7586 = vmatpush1.msra.mxu0 %v6947
    %7587 = vmatprep.subr.mxu0 %v6964
    %7588 = vmatpush1.msra.mxu0 %v6963
    %7589 = vmatprep.subr.mxu0 %v6980
    %7590 = vmatpush1.msra.mxu0 %v6979
    %7591 = vmatprep.subr.mxu0 %v6996
    %7592 = vmatpush1.msra.mxu0 %v6995
    %7593 = vmatprep.subr.mxu0 %v7012
    %7594 = vmatpush1.msra.mxu0 %v7011
    %7595 = vmatprep.subr.mxu0 %v7028
    %7596 = vmatpush1.msra.mxu0 %v7027
    %7597 = vmatprep.subr.mxu0 %v7044
    %7598 = vmatpush1.msra.mxu0 %v7043
    %7599 = vmatprep.subr.mxu0 0.0
    %7600 = vmatpush1.msra.mxu0 0.0
    %7601 = vmatprep.subr.mxu0 0.0
    %7602 = vmatpush1.msra.mxu0 0.0
    %7603 = vmatprep.subr.mxu0 0.0
    %7604 = vmatpush1.msra.mxu0 0.0
    %7605 = vmatprep.subr.mxu0 0.0
    %7606 = vmatpush1.msra.mxu0 0.0
    %7607 = vmatprep.subr.mxu0 0.0
    %7608 = vmatpush1.msra.mxu0 0.0
    %7609 = vmatprep.mubr.f32.mxu0 %v7046
    %7610 = vmatmul.mubr.f32.gmra.mrb[0].mxu0 %v6611
    %v7611 = vpop.f32.mrb[0].mxu0
    %v7612 = vadd.f32 0.0, %v7611
    %v7613 = vpop.f32.mrb[0].mxu0
    %v7614 = vadd.f32 0.0, %v7613
    %7615 = vdwg.mxu0
    %v7616 = vmul.f32 %v7115, %v49
    %v7617 = vmul.f32 %v7117, %v53
    %v7618 = vmul.f32 %v7186, %v57
    %v7619 = vmul.f32 %v7188, %v61
    %v7620 = vmul.f32 %v7257, %v65
    %v7621 = vmul.f32 %v7259, %v69
    %v7622 = vmul.f32 %v7328, %v73
    %v7623 = vmul.f32 %v7330, %v77
    %v7624 = vmul.f32 %v7399, %v81
    %v7625 = vmul.f32 %v7401, %v85
    %v7626 = vmul.f32 %v7470, %v89
    %v7627 = vmul.f32 %v7472, %v93
    %v7628 = vmul.f32 %v7541, %v97
    %v7629 = vmul.f32 %v7543, %v101
    %v7630 = vmul.f32 %v7612, %v105
    %v7631 = vmul.f32 %v7614, %v109
    %v7632 = vadd.f32 %v7616, %v7617
    %v7633 = vadd.f32 %v7632, %v7618
    %v7634 = vadd.f32 %v7633, %v7619
    %v7635 = vadd.f32 %v7634, %v7620
    %v7636 = vadd.f32 %v7635, %v7621
    %v7637 = vadd.f32 %v7636, %v7622
    %v7638 = vadd.f32 %v7637, %v7623
    %v7639 = vadd.f32 %v7638, %v7624
    %v7640 = vadd.f32 %v7639, %v7625
    %v7641 = vadd.f32 %v7640, %v7626
    %v7642 = vadd.f32 %v7641, %v7627
    %v7643 = vadd.f32 %v7642, %v7628
    %v7644 = vadd.f32 %v7643, %v7629
    %v7645 = vadd.f32 %v7644, %v7630
    %v7646 = vadd.f32 %v7645, %v7631
    %7647 = vadd.xlane.f32.xlu0 %v7646
    %v7648 = vpop.xlane.xlu0 %7647
    %v7649 = vmul.f32 %v7648, %v4020
    %v7650 = vmul.f32 %v7616, %v7616
    %v7651 = vmul.f32 %v7617, %v7617
    %v7652 = vmul.f32 %v7618, %v7618
    %v7653 = vmul.f32 %v7619, %v7619
    %v7654 = vmul.f32 %v7620, %v7620
    %v7655 = vmul.f32 %v7621, %v7621
    %v7656 = vmul.f32 %v7622, %v7622
    %v7657 = vmul.f32 %v7623, %v7623
    %v7658 = vmul.f32 %v7624, %v7624
    %v7659 = vmul.f32 %v7625, %v7625
    %v7660 = vmul.f32 %v7626, %v7626
    %v7661 = vmul.f32 %v7627, %v7627
    %v7662 = vmul.f32 %v7628, %v7628
    %v7663 = vmul.f32 %v7629, %v7629
    %v7664 = vmul.f32 %v7630, %v7630
    %v7665 = vmul.f32 %v7631, %v7631
    %v7666 = vadd.f32 %v7650, %v7651
    %v7667 = vadd.f32 %v7666, %v7652
    %v7668 = vadd.f32 %v7667, %v7653
    %v7669 = vadd.f32 %v7668, %v7654
    %v7670 = vadd.f32 %v7669, %v7655
    %v7671 = vadd.f32 %v7670, %v7656
    %v7672 = vadd.f32 %v7671, %v7657
    %v7673 = vadd.f32 %v7672, %v7658
    %v7674 = vadd.f32 %v7673, %v7659
    %v7675 = vadd.f32 %v7674, %v7660
    %v7676 = vadd.f32 %v7675, %v7661
    %v7677 = vadd.f32 %v7676, %v7662
    %v7678 = vadd.f32 %v7677, %v7663
    %v7679 = vadd.f32 %v7678, %v7664
    %v7680 = vadd.f32 %v7679, %v7665
    %7681 = vadd.xlane.f32.xlu0 %v7680
    %v7682 = vpop.xlane.xlu0 %7681
    %v7683 = vmul.f32 %v7682, %v4020
    %v7684 = vmul.f32 %v7649, %v7649
    %v7685 = vsub.f32 %v7683, %v7684
    %v7686 = vld [vmem:[%s6] sm:$0xff]
    %v7687 = vadd.f32 %v7685, 1e-05
    %v7688 = vrsqrt.pop %v7687
    %v7689 = vmul.f32 %v7686, %v7688
    %v7690 = vld [vmem:[%s7] sm:$0xff]
    %v7691 = vmul.f32 %v7649, %v7689
    %v7692 = vsub.f32 %v7690, %v7691
    %7694 = vset.pattern.permute.xlu0 0
    %7695 = vperm.xlu0 %7694, %v7689
    %v7696 = vpop.permute.xlu0 %7695
    %v7698 = vmul.f32 %v7115, %v7696
    %v7699 = vmul.f32 %v7117, %v7696
    %v7700 = vmul.f32 %v7186, %v7696
    %v7701 = vmul.f32 %v7188, %v7696
    %v7702 = vmul.f32 %v7257, %v7696
    %v7703 = vmul.f32 %v7259, %v7696
    %v7704 = vmul.f32 %v7328, %v7696
    %v7705 = vmul.f32 %v7330, %v7696
    %v7706 = vmul.f32 %v7399, %v7696
    %v7707 = vmul.f32 %v7401, %v7696
    %v7708 = vmul.f32 %v7470, %v7696
    %v7709 = vmul.f32 %v7472, %v7696
    %v7710 = vmul.f32 %v7541, %v7696
    %v7711 = vmul.f32 %v7543, %v7696
    %v7712 = vmul.f32 %v7612, %v7696
    %v7713 = vmul.f32 %v7614, %v7696
    %7715 = vset.pattern.permute.xlu0 0
    %7716 = vperm.xlu0 %7715, %v7692
    %v7717 = vpop.permute.xlu0 %7716
    %v7719 = vadd.f32 %v7698, %v7717
    %v7720 = vadd.f32 %v7699, %v7717
    %v7721 = vadd.f32 %v7700, %v7717
    %v7722 = vadd.f32 %v7701, %v7717
    %v7723 = vadd.f32 %v7702, %v7717
    %v7724 = vadd.f32 %v7703, %v7717
    %v7725 = vadd.f32 %v7704, %v7717
    %v7726 = vadd.f32 %v7705, %v7717
    %v7727 = vadd.f32 %v7706, %v7717
    %v7728 = vadd.f32 %v7707, %v7717
    %v7729 = vadd.f32 %v7708, %v7717
    %v7730 = vadd.f32 %v7709, %v7717
    %v7731 = vadd.f32 %v7710, %v7717
    %v7732 = vadd.f32 %v7711, %v7717
    %v7733 = vadd.f32 %v7712, %v7717
    %v7734 = vadd.f32 %v7713, %v7717
    %v7735 = vmax.f32 %v7719, 0.0
    %v7736 = vmax.f32 %v7720, 0.0
    %v7737 = vmax.f32 %v7721, 0.0
    %v7738 = vmax.f32 %v7722, 0.0
    %v7739 = vmax.f32 %v7723, 0.0
    %v7740 = vmax.f32 %v7724, 0.0
    %v7741 = vmax.f32 %v7725, 0.0
    %v7742 = vmax.f32 %v7726, 0.0
    %v7743 = vmax.f32 %v7727, 0.0
    %v7744 = vmax.f32 %v7728, 0.0
    %v7745 = vmax.f32 %v7729, 0.0
    %v7746 = vmax.f32 %v7730, 0.0
    %v7747 = vmax.f32 %v7731, 0.0
    %v7748 = vmax.f32 %v7732, 0.0
    %v7749 = vmax.f32 %v7733, 0.0
    %v7750 = vmax.f32 %v7734, 0.0
    %v7751 = vmul.f32 %v7735, %v49
    %v7752 = vmul.f32 %v7736, %v53
    %v7753 = vmul.f32 %v7737, %v57
    %v7754 = vmul.f32 %v7738, %v61
    %v7755 = vmul.f32 %v7739, %v65
    %v7756 = vmul.f32 %v7740, %v69
    %v7757 = vmul.f32 %v7741, %v73
    %v7758 = vmul.f32 %v7742, %v77
    %v7759 = vmul.f32 %v7743, %v81
    %v7760 = vmul.f32 %v7744, %v85
    %v7761 = vmul.f32 %v7745, %v89
    %v7762 = vmul.f32 %v7746, %v93
    %v7763 = vmul.f32 %v7747, %v97
    %v7764 = vmul.f32 %v7748, %v101
    %v7765 = vmul.f32 %v7749, %v105
    %v7766 = vmul.f32 %v7750, %v109
    %7767 = vst [vmem:[#allocation7] sm:$0xff] %v7751
    %7768 = vst [vmem:[#allocation7 + $0x8] sm:$0xff] %v7752
    %7769 = vst [vmem:[#allocation7 + $0x10] sm:$0xff] %v7753
    %7770 = vst [vmem:[#allocation7 + $0x18] sm:$0xff] %v7754
    %7771 = vst [vmem:[#allocation7 + $0x20] sm:$0xff] %v7755
    %7772 = vst [vmem:[#allocation7 + $0x28] sm:$0xff] %v7756
    %7773 = vst [vmem:[#allocation7 + $0x30] sm:$0xff] %v7757
    %7774 = vst [vmem:[#allocation7 + $0x38] sm:$0xff] %v7758
    %7775 = vst [vmem:[#allocation7 + $0x40] sm:$0xff] %v7759
    %7776 = vst [vmem:[#allocation7 + $0x48] sm:$0xff] %v7760
    %7777 = vst [vmem:[#allocation7 + $0x50] sm:$0xff] %v7761
    %7778 = vst [vmem:[#allocation7 + $0x58] sm:$0xff] %v7762
    %7779 = vst [vmem:[#allocation7 + $0x60] sm:$0xff] %v7763
    %7780 = vst [vmem:[#allocation7 + $0x68] sm:$0xff] %v7764
    %7781 = vst [vmem:[#allocation7 + $0x70] sm:$0xff] %v7765
    %7782 = vst [vmem:[#allocation7 + $0x78] sm:$0xff] %v7766
    // Predicated region
    $region42: #{tpu_custom_call.1} parent=1 // pred_check
      _
    $region43: #{tpu_custom_call.1} parent=1 // pred_check_branch
      %7784 = sbr.rel (0) target = $region45
    $region44: #{tpu_custom_call.1} parent=1 // pred_region
      %s7786 = ssub.s32 2048, 2048
      %7787 = vsyncadd [#allocation6], %s7786
      %s7789 = sshll.u32 [#allocation7], 4
      %s7790 = int_to_ptr.vmem [resolvable:$true] %s7789
      %7792 = dma.vmem_to_hbm [thread:$0]  %s7790, 2048, %s8, [#allocation6]
    $region45: #{tpu_custom_call.1} parent=1 // pred_fallthru
      _
    // Predicated region
    $region46: #{tpu_custom_call.1} parent=1 // pred_check
      _
    $region47: #{tpu_custom_call.1} parent=1 // pred_check_branch
      %7794 = sbr.rel (0) target = $region49
    $region48: #{tpu_custom_call.1} parent=1 // pred_region
      %7795 = dma.done [#allocation6], 2048
    $region49: #{tpu_custom_call.1} parent=1 // pred_fallthru
      _
    %7796 = vsyncpa [#allocation5], 1
    %7797 = vsyncpa [#allocation6], 1

</llo_original>
